<compile_context>
chip_gen: v7x
topology: tpu7x:2x2x1
jax: 0.10.0
libtpu: 0.0.40
codegen_flags: <defaults>
</compile_context>

<pallas_src>
import numpy as np
import jax
import jax.numpy as jnp
from jax.experimental import pallas as pl
from jax.experimental.pallas import tpu as pltpu


# ---------------------------------------------------------------------------
# Kernel 1: fused FC head + first transposed conv (d1).
#   h1 = relu(z @ w1 + b1); h2 = relu(h1 @ w2 + b2)       (recomputed per tile)
#   y  = relu((h2 @ dequant(w3_int8_tile)) * scale + b3)  (int8 weights, f32 acc)
#   per pixel p in the tile: d1 = relu(y_p @ wd1 + bd1)
# Grid: 7 steps, one per image row h of the 7x7 feature map (1792 fc3 columns).
# ---------------------------------------------------------------------------
def _fc_head_kernel(z_ref, w1_ref, b1_ref, w2_ref, b2_ref,
                    w3q_ref, w3s_ref, b3_ref, wd1_ref, bd1_ref, o_ref):
    h = jnp.dot(z_ref[...], w1_ref[...], preferred_element_type=jnp.float32)
    h = jnp.maximum(h + b1_ref[...], 0.0)
    h = jnp.dot(h, w2_ref[...], preferred_element_type=jnp.float32)
    h = jnp.maximum(h + b2_ref[...], 0.0)                       # (B, 1024) f32
    # fc3 tile: int8 weights streamed from HBM (halves the dominant DMA),
    # VPU dequant to bf16, f32 accumulation on the MXU, per-column scale after.
    w3 = w3q_ref[...].astype(jnp.bfloat16)                      # (1024, 1792)
    y = jnp.dot(h.astype(jnp.bfloat16), w3,
                preferred_element_type=jnp.float32)
    y = jnp.maximum(y * w3s_ref[...] + b3_ref[...], 0.0)        # (B, 7*256)
    wd1 = wd1_ref[...]                                          # (256, 256)
    bd1 = bd1_ref[...]                                          # (1, 256)
    # TODO(synk): replace with one (7B,256)@(256,256) matmul once a cheap
    # lane->sublane relayout is available; hidden under the weight DMA today.
    for p in range(7):                                          # 7 pixels / tile
        yp = y[:, p * 256:(p + 1) * 256]                        # (B, 256)
        d1 = jnp.dot(yp, wd1, preferred_element_type=jnp.float32)
        o_ref[:, p * 256:(p + 1) * 256] = jnp.maximum(d1 + bd1, 0.0)


def fc_head_pallas(z, pp):
    """Returns (B, 12544) where col = (h*7+w)*256 + (co*4 + kh*2 + kw)."""
    B, zdim = z.shape
    flops = 2 * B * (7 * (zdim * 32 + 32 * 1024)
                     + 1024 * 12544 + 49 * 256 * 256)
    bytes_accessed = (pp["fc3_w_q"].size                         # int8 weight
                      + 4 * (pp["fc3_scale"].size + pp["fc3_b"].size)
                      + 4 * B * 12544 + 4 * pp["d1_wm"].size)
    return pl.pallas_call(
        _fc_head_kernel,
        out_shape=jax.ShapeDtypeStruct((B, 49 * 256), jnp.float32),
        grid=(7,),
        in_specs=[
            pl.BlockSpec((B, zdim), lambda j: (0, 0)),
            pl.BlockSpec((zdim, 32), lambda j: (0, 0)),
            pl.BlockSpec((1, 32), lambda j: (0, 0)),
            pl.BlockSpec((32, 1024), lambda j: (0, 0)),
            pl.BlockSpec((1, 1024), lambda j: (0, 0)),
            pl.BlockSpec((1024, 7 * 256), lambda j: (0, j)),     # int8 weight
            pl.BlockSpec((1, 7 * 256), lambda j: (0, j)),        # per-col scale
            pl.BlockSpec((1, 7 * 256), lambda j: (0, j)),        # bias
            pl.BlockSpec((256, 256), lambda j: (0, 0)),
            pl.BlockSpec((1, 256), lambda j: (0, 0)),
        ],
        out_specs=pl.BlockSpec((B, 7 * 256), lambda j: (0, j)),
        compiler_params=pltpu.CompilerParams(
            dimension_semantics=("parallel",)),
        cost_estimate=pl.CostEstimate(
            flops=int(flops), transcendentals=0,
            bytes_accessed=int(bytes_accessed)),
    )(z, pp["fc1_w"], pp["fc1_b"], pp["fc2_w"], pp["fc2_b"],
      pp["fc3_w_q"], pp["fc3_scale"], pp["fc3_b"], pp["d1_wm"], pp["d1_bm"])


# ---------------------------------------------------------------------------
# Kernel 2: fused d2 (3x3 "same" deconv as im2col matmul, K=576) + d3 (k2 s2
# deconv as a per-pixel 16->16 matmul).  Weight-stationary / pixels on lanes:
#   o2 = relu(W2T @ x2T + b2);  o3 = relu(W3T @ o2 + b3)     (16, B*196) output
# ---------------------------------------------------------------------------
def _mid_tail_kernel(x_ref, w2_ref, b2_ref, w3_ref, b3_ref, o_ref):
    o2 = jnp.dot(w2_ref[...], x_ref[...], preferred_element_type=jnp.float32)
    o2 = jnp.maximum(o2 + b2_ref[...], 0.0)
    o3 = jnp.dot(w3_ref[...], o2, preferred_element_type=jnp.float32)
    o_ref[...] = jnp.maximum(o3 + b3_ref[...], 0.0)


def mid_tail_pallas(x2T, pp):
    M = x2T.shape[1]
    return pl.pallas_call(
        _mid_tail_kernel,
        out_shape=jax.ShapeDtypeStruct((16, M), jnp.float32),
        grid=(1,),
        in_specs=[
            pl.BlockSpec((576, M), lambda i: (0, 0)),
            pl.BlockSpec((16, 576), lambda i: (0, 0)),
            pl.BlockSpec((16, 1), lambda i: (0, 0)),
            pl.BlockSpec((16, 16), lambda i: (0, 0)),
            pl.BlockSpec((16, 1), lambda i: (0, 0)),
        ],
        out_specs=pl.BlockSpec((16, M), lambda i: (0, 0)),
    )(x2T, pp["d2_wT"], pp["d2_bT"], pp["d3_wT"], pp["d3_bT"])


# ---------------------------------------------------------------------------
# Kernel 3: d4 folded onto the 14x14 grid (sub-pixel-conv identity), one
# lane-dense matmul + sigmoid producing the 4 output sub-pixels per grid pixel.
# ---------------------------------------------------------------------------
def _last_tail_kernel(x_ref, w_ref, b_ref, o_ref):
    y = jnp.dot(w_ref[...], x_ref[...], preferred_element_type=jnp.float32)
    o_ref[...] = jax.nn.sigmoid(y + b_ref[...])


def last_tail_pallas(x3T, pp):
    M = x3T.shape[1]
    return pl.pallas_call(
        _last_tail_kernel,
        out_shape=jax.ShapeDtypeStruct((4, M), jnp.float32),
        grid=(1,),
        in_specs=[
            pl.BlockSpec((144, M), lambda i: (0, 0)),
            pl.BlockSpec((4, 144), lambda i: (0, 0)),
            pl.BlockSpec((4, 1), lambda i: (0, 0)),
        ],
        out_specs=pl.BlockSpec((4, M), lambda i: (0, 0)),
    )(x3T, pp["d4_wT"], pp["d4_bT"])


# ------------------------- inter-kernel layout glue --------------------------
def _unscatter2x2(y, B, H, W, Cout):
    """(B*H*W, Cout*4) with cols co*4 + a*2 + b  ->  (B, 2H, 2W, Cout) NHWC."""
    y = y.reshape(B, H, W, Cout, 2, 2)
    y = jnp.transpose(y, (0, 1, 4, 2, 5, 3))         # (B, H, 2, W, 2, Cout)
    return y.reshape(B, 2 * H, 2 * W, Cout)


def _im2col3x3_T(x):
    """(B, H, W, C) -> (9*C, B*H*W); tap-major rows, zero 'same' padding."""
    B, H, W, C = x.shape
    xp = jnp.pad(x, ((0, 0), (1, 1), (1, 1), (0, 0)))
    taps = [xp[:, a:a + H, b:b + W, :].reshape(B * H * W, C).T
            for a in range(3) for b in range(3)]
    return jnp.concatenate(taps, axis=0)


# ------------------------------ full decoder ---------------------------------
def decoder_forward(z, pp):
    """z: (B, z_dim). Returns NCHW (B, 1, 28, 28), matching PyTorch."""
    B = z.shape[0]
    y1 = fc_head_pallas(z, pp)                       # (B, 12544)  fc + d1 fused
    y1 = y1.reshape(B * 49, 256)                     # rows (b,h,w), cols (co,a,b)
    img14 = _unscatter2x2(y1, B, 7, 7, 64)           # (B, 14, 14, 64)
    x2T = _im2col3x3_T(img14)                        # (576, B*196)
    o3T = mid_tail_pallas(x2T, pp)                   # (16, B*196)  d2 + d3 fused
    o3 = o3T.T.reshape(B, 14, 14, 16)                # 14x14 grid of d3 outputs
    x3T = _im2col3x3_T(o3)                           # (144, B*196)
    y4 = last_tail_pallas(x3T, pp)                   # (4, B*196)  sub-pixel rows
    # Final 2x2 sub-pixel unshuffle (pure layout on a 6 KB tensor).
    out = y4.reshape(2, 2, B, 14, 14)                # (a, b, bb, i, j)
    out = jnp.transpose(out, (2, 3, 0, 4, 1))        # (bb, i, a, j, b)
    return out.reshape(B, 1, 28, 28)                 # NCHW


# --------------------- one-time parameter preparation ------------------------
def _fold_d3_unscatter_into_d4(d4_w, d4_b):
    """Folds (2x2 pixel-unshuffle of d3's output) + (ConvT k3 s1 p1, 4->1) into
    one 3x3 'same' conv over the 14x14 grid of d3's 16 matmul outputs (channel
    layout co*4 + sr*2 + sc); the 4 output columns are the 2x2 sub-pixels."""
    k4 = np.asarray(jnp.transpose(d4_w[:, :, ::-1, ::-1], (2, 3, 0, 1)))  # (3,3,4,1)
    w = np.zeros((9 * 16, 4), np.float32)
    for a in range(2):                       # output row sub-pixel
        for b in range(2):                   # output col sub-pixel
            col = a * 2 + b
            for dr in range(3):              # 3x3 taps in 28x28 space
                for dc in range(3):
                    gr, sr = divmod(a + dr - 1, 2)   # 14-grid row offset / subrow
                    gc, sc = divmod(b + dc - 1, 2)
                    tap = (gr + 1) * 3 + (gc + 1)    # tap index in _im2col3x3_T
                    for co in range(4):
                        w[tap * 16 + co * 4 + sr * 2 + sc, col] += k4[dr, dc, co, 0]
    b4 = np.full((4, 1), float(np.asarray(d4_b)[0]), np.float32)
    return jnp.asarray(w), jnp.asarray(b4)


def prepare_params(p):
    """Hoists all weight layout / quantization work out of the forward pass."""
    pp = {}
    pp["fc1_w"] = p["fc1_w"]
    pp["fc1_b"] = p["fc1_b"].reshape(1, -1)
    pp["fc2_w"] = p["fc2_w"]
    pp["fc2_b"] = p["fc2_b"].reshape(1, -1)
    # fc3: permute columns from NCHW (c*49+h*7+w) to NHWC ((h*7+w)*256+c) order,
    # then weight-only int8 quantization with a per-output-column scale (the
    # forward pass is HBM-bound on this weight).
    K = p["fc3_w"].shape[0]
    w3 = p["fc3_w"].reshape(K, 256, 49).transpose(0, 2, 1).reshape(K, 49 * 256)
    amax = jnp.maximum(jnp.max(jnp.abs(w3), axis=0, keepdims=True), 1e-12)
    scale = amax / 127.0                                          # (1, 12544)
    pp["fc3_w_q"] = jnp.clip(jnp.round(w3 / scale), -127, 127).astype(jnp.int8)
    pp["fc3_scale"] = scale.astype(jnp.float32)
    pp["fc3_b"] = p["fc3_b"].reshape(256, 49).transpose(1, 0).reshape(1, 49 * 256)
    # d1 (ConvT k2 s2): Cin x (Cout*4) matmul weight, col = co*4 + kh*2 + kw.
    pp["d1_wm"] = p["d1_w"].reshape(256, 64 * 4)
    pp["d1_bm"] = jnp.repeat(p["d1_b"], 4).reshape(1, -1)

    # ConvT(k3,s1,p1) == same-conv with flipped+transposed kernel, stored as a
    # (9*Cin, Cout) im2col matmul weight with tap-major rows.
    def conv3_w(w):
        cin = w.shape[0]
        wk = jnp.transpose(w[:, :, ::-1, ::-1], (2, 3, 0, 1))     # (3,3,Cin,Cout)
        return wk.reshape(9 * cin, w.shape[1])

    # Tail weights stored transposed (weight-stationary, pixels on MXU lanes).
    pp["d2_wT"] = conv3_w(p["d2_w"]).T                            # (16, 576)
    pp["d2_bT"] = p["d2_b"].reshape(-1, 1)                        # (16, 1)
    pp["d3_wT"] = p["d3_w"].reshape(16, 4 * 4).T                  # (16, 16)
    pp["d3_bT"] = jnp.repeat(p["d3_b"], 4).reshape(-1, 1)         # (16, 1)
    w4p, b4p = _fold_d3_unscatter_into_d4(p["d4_w"], p["d4_b"])
    pp["d4_wT"] = w4p.T                                           # (4, 144)
    pp["d4_bT"] = b4p                                             # (4, 1)
    return pp


# ---------------------- pure-JAX reference (for checking) --------------------
def reference_forward(z, p):
    hp = jax.lax.Precision.HIGHEST
    h = jnp.maximum(jnp.dot(z, p["fc1_w"], precision=hp) + p["fc1_b"], 0.0)
    h = jnp.maximum(jnp.dot(h, p["fc2_w"], precision=hp) + p["fc2_b"], 0.0)
    h = jnp.maximum(jnp.dot(h, p["fc3_w"], precision=hp) + p["fc3_b"], 0.0)
    x = h.reshape(-1, 256, 7, 7)

    def deconv(x, w, b, stride, k, pad, act):
        wf = jnp.transpose(w[:, :, ::-1, ::-1], (1, 0, 2, 3))  # OIHW flipped
        y = jax.lax.conv_general_dilated(
            x, wf, window_strides=(1, 1),
            padding=[(k - 1 - pad, k - 1 - pad)] * 2,
            lhs_dilation=(stride, stride),
            dimension_numbers=("NCHW", "OIHW", "NCHW"),
            precision=hp)
        y = y + b.reshape(1, -1, 1, 1)
        return jnp.maximum(y, 0.0) if act == "relu" else jax.nn.sigmoid(y)

    x = deconv(x, p["d1_w"], p["d1_b"], 2, 2, 0, "relu")
    x = deconv(x, p["d2_w"], p["d2_b"], 1, 3, 1, "relu")
    x = deconv(x, p["d3_w"], p["d3_b"], 2, 2, 0, "relu")
    x = deconv(x, p["d4_w"], p["d4_b"], 1, 3, 1, "sigmoid")
    return x


# ------------------------------ parameter init --------------------------------
def init_params(key, z_dim=1):
    ks = jax.random.split(key, 14)

    def rnd(k, shape, scale):
        return jax.random.normal(k, shape, jnp.float32) * scale

    p = {}
    p["fc1_w"] = rnd(ks[0], (z_dim, 32), 1.0)
    p["fc1_b"] = rnd(ks[1], (32,), 0.1)
    p["fc2_w"] = rnd(ks[2], (32, 1024), 0.18)
    p["fc2_b"] = rnd(ks[3], (1024,), 0.1)
    p["fc3_w"] = rnd(ks[4], (1024, 256 * 7 * 7), 0.03)
    p["fc3_b"] = rnd(ks[5], (256 * 7 * 7,), 0.1)
    # ConvTranspose2d weights use PyTorch layout (Cin, Cout, kH, kW).
    p["d1_w"] = rnd(ks[6], (256, 64, 2, 2), 0.03)
    p["d1_b"] = rnd(ks[7], (64,), 0.1)
    p["d2_w"] = rnd(ks[8], (64, 16, 3, 3), 0.04)
    p["d2_b"] = rnd(ks[9], (16,), 0.1)
    p["d3_w"] = rnd(ks[10], (16, 4, 2, 2), 0.12)
    p["d3_b"] = rnd(ks[11], (4,), 0.1)
    p["d4_w"] = rnd(ks[12], (4, 1, 3, 3), 0.16)
    p["d4_b"] = rnd(ks[13], (1,), 0.1)
    return p


# ----------------------------------- main --------------------------------------
if __name__ == "__main__":
    key = jax.random.PRNGKey(0)
    kz, kp = jax.random.split(key)
    B, z_dim = 2, 1
    z = jax.random.normal(kz, (B, z_dim), jnp.float32)
    params = init_params(kp, z_dim=z_dim)
    prepped = jax.block_until_ready(prepare_params(params))   # one-time prep

    out = jax.jit(decoder_forward)(z, prepped)
    out = jax.block_until_ready(out)
    assert out.shape == (B, 1, 28, 28), out.shape
    assert bool(jnp.all(jnp.isfinite(out)))

    ref = jax.block_until_ready(reference_forward(z, params))
    max_err = float(jnp.max(jnp.abs(out - ref)))
    assert max_err < 2e-2, f"max abs err vs reference: {max_err}"

    print("KERNEL_OK")
</pallas_src>

<mosaic_0001>
module attributes {stable_mosaic.version = 11 : i64} {
  func.func @_fc_head_kernel(%arg0: i32, %arg1: memref<2x1xf32, #tpu.memory_space<vmem>>, %arg2: memref<1x32xf32, #tpu.memory_space<vmem>>, %arg3: memref<1x32xf32, #tpu.memory_space<vmem>>, %arg4: memref<32x1024xf32, #tpu.memory_space<vmem>>, %arg5: memref<1x1024xf32, #tpu.memory_space<vmem>>, %arg6: memref<1024x1792xi8, #tpu.memory_space<vmem>>, %arg7: memref<1x1792xf32, #tpu.memory_space<vmem>>, %arg8: memref<1x1792xf32, #tpu.memory_space<vmem>>, %arg9: memref<256x256xf32, #tpu.memory_space<vmem>>, %arg10: memref<1x256xf32, #tpu.memory_space<vmem>>, %arg11: memref<2x1792xf32, #tpu.memory_space<vmem>>) attributes {dimension_semantics = [#tpu.dimension_semantics<parallel>], iteration_bounds = array<i64: 7>, scalar_prefetch = 0 : i64, scratch_operands = 0 : i64, tpu.core_type = #tpu.core_type<tc>, window_params = [{pipeline_mode = #tpu.pipeline_mode<synchronous>, transform_indices = @transform_0, window_bounds = array<i64: 2, 1>}, {pipeline_mode = #tpu.pipeline_mode<synchronous>, transform_indices = @transform_1, window_bounds = array<i64: 1, 32>}, {pipeline_mode = #tpu.pipeline_mode<synchronous>, transform_indices = @transform_2, window_bounds = array<i64: 1, 32>}, {pipeline_mode = #tpu.pipeline_mode<synchronous>, transform_indices = @transform_3, window_bounds = array<i64: 32, 1024>}, {pipeline_mode = #tpu.pipeline_mode<synchronous>, transform_indices = @transform_4, window_bounds = array<i64: 1, 1024>}, {transform_indices = @transform_5, window_bounds = array<i64: 1024, 1792>}, {transform_indices = @transform_6, window_bounds = array<i64: 1, 1792>}, {transform_indices = @transform_7, window_bounds = array<i64: 1, 1792>}, {pipeline_mode = #tpu.pipeline_mode<synchronous>, transform_indices = @transform_8, window_bounds = array<i64: 256, 256>}, {pipeline_mode = #tpu.pipeline_mode<synchronous>, transform_indices = @transform_9, window_bounds = array<i64: 1, 256>}, {transform_indices = @transform_10, window_bounds = array<i64: 2, 1792>}]} {
    %c0 = arith.constant 0 : index
    %c0_0 = arith.constant 0 : index
    %0 = vector.load %arg1[%c0, %c0_0] : memref<2x1xf32, #tpu.memory_space<vmem>>, vector<2x1xf32>
    %c0_1 = arith.constant 0 : index
    %c0_2 = arith.constant 0 : index
    %1 = vector.load %arg2[%c0_1, %c0_2] : memref<1x32xf32, #tpu.memory_space<vmem>>, vector<1x32xf32>
    %cst = arith.constant dense<0.000000e+00> : vector<2x32xf32>
    %2 = tpu.matmul %0, %1, %cst {dimension_numbers = #tpu.dot_dimension_numbers<[1], [0], [0], [1], [0, 0, 1, 1], [], []>} : vector<2x1xf32>, vector<1x32xf32>, vector<2x32xf32> -> vector<2x32xf32>
    %c0_3 = arith.constant 0 : index
    %c0_4 = arith.constant 0 : index
    %3 = vector.load %arg3[%c0_3, %c0_4] : memref<1x32xf32, #tpu.memory_space<vmem>>, vector<1x32xf32>
    %4 = vector.broadcast %3 : vector<1x32xf32> to vector<2x32xf32>
    %5 = arith.addf %2, %4 : vector<2x32xf32>
    %cst_5 = arith.constant 0.000000e+00 : f32
    %6 = vector.broadcast %cst_5 : f32 to vector<2x32xf32>
    %7 = arith.maximumf %5, %6 : vector<2x32xf32>
    %c0_6 = arith.constant 0 : index
    %c0_7 = arith.constant 0 : index
    %8 = vector.load %arg4[%c0_6, %c0_7] : memref<32x1024xf32, #tpu.memory_space<vmem>>, vector<32x1024xf32>
    %cst_8 = arith.constant dense<0.000000e+00> : vector<2x1024xf32>
    %9 = tpu.matmul %7, %8, %cst_8 {dimension_numbers = #tpu.dot_dimension_numbers<[1], [0], [0], [1], [0, 0, 1, 1], [], []>} : vector<2x32xf32>, vector<32x1024xf32>, vector<2x1024xf32> -> vector<2x1024xf32>
    %c0_9 = arith.constant 0 : index
    %c0_10 = arith.constant 0 : index
    %10 = vector.load %arg5[%c0_9, %c0_10] : memref<1x1024xf32, #tpu.memory_space<vmem>>, vector<1x1024xf32>
    %11 = vector.broadcast %10 : vector<1x1024xf32> to vector<2x1024xf32>
    %12 = arith.addf %9, %11 : vector<2x1024xf32>
    %cst_11 = arith.constant 0.000000e+00 : f32
    %13 = vector.broadcast %cst_11 : f32 to vector<2x1024xf32>
    %14 = arith.maximumf %12, %13 : vector<2x1024xf32>
    %c0_12 = arith.constant 0 : index
    %c0_13 = arith.constant 0 : index
    %15 = vector.load %arg6[%c0_12, %c0_13] : memref<1024x1792xi8, #tpu.memory_space<vmem>>, vector<1024x1792xi8>
    %16 = arith.sitofp %15 : vector<1024x1792xi8> to vector<1024x1792xbf16>
    %17 = arith.truncf %14 : vector<2x1024xf32> to vector<2x1024xbf16>
    %cst_14 = arith.constant dense<0.000000e+00> : vector<2x1792xf32>
    %18 = tpu.matmul %17, %16, %cst_14 {dimension_numbers = #tpu.dot_dimension_numbers<[1], [0], [0], [1], [0, 0, 1, 1], [], []>} : vector<2x1024xbf16>, vector<1024x1792xbf16>, vector<2x1792xf32> -> vector<2x1792xf32>
    %c0_15 = arith.constant 0 : index
    %c0_16 = arith.constant 0 : index
    %19 = vector.load %arg7[%c0_15, %c0_16] : memref<1x1792xf32, #tpu.memory_space<vmem>>, vector<1x1792xf32>
    %20 = vector.broadcast %19 : vector<1x1792xf32> to vector<2x1792xf32>
    %21 = arith.mulf %18, %20 : vector<2x1792xf32>
    %c0_17 = arith.constant 0 : index
    %c0_18 = arith.constant 0 : index
    %22 = vector.load %arg8[%c0_17, %c0_18] : memref<1x1792xf32, #tpu.memory_space<vmem>>, vector<1x1792xf32>
    %23 = vector.broadcast %22 : vector<1x1792xf32> to vector<2x1792xf32>
    %24 = arith.addf %21, %23 : vector<2x1792xf32>
    %cst_19 = arith.constant 0.000000e+00 : f32
    %25 = vector.broadcast %cst_19 : f32 to vector<2x1792xf32>
    %26 = arith.maximumf %24, %25 : vector<2x1792xf32>
    %c0_20 = arith.constant 0 : index
    %c0_21 = arith.constant 0 : index
    %27 = vector.load %arg9[%c0_20, %c0_21] : memref<256x256xf32, #tpu.memory_space<vmem>>, vector<256x256xf32>
    %c0_22 = arith.constant 0 : index
    %c0_23 = arith.constant 0 : index
    %28 = vector.load %arg10[%c0_22, %c0_23] : memref<1x256xf32, #tpu.memory_space<vmem>>, vector<1x256xf32>
    %29 = vector.extract_strided_slice %26 {offsets = [0, 0], sizes = [2, 256], strides = [1, 1]} : vector<2x1792xf32> to vector<2x256xf32>
    %cst_24 = arith.constant dense<0.000000e+00> : vector<2x256xf32>
    %30 = tpu.matmul %29, %27, %cst_24 {dimension_numbers = #tpu.dot_dimension_numbers<[1], [0], [0], [1], [0, 0, 1, 1], [], []>} : vector<2x256xf32>, vector<256x256xf32>, vector<2x256xf32> -> vector<2x256xf32>
    %31 = vector.broadcast %28 : vector<1x256xf32> to vector<2x256xf32>
    %32 = arith.addf %30, %31 : vector<2x256xf32>
    %cst_25 = arith.constant 0.000000e+00 : f32
    %33 = vector.broadcast %cst_25 : f32 to vector<2x256xf32>
    %34 = arith.maximumf %32, %33 : vector<2x256xf32>
    %c0_26 = arith.constant 0 : index
    %c0_27 = arith.constant 0 : index
    %35 = vector.load %arg11[%c0_26, %c0_27] : memref<2x1792xf32, #tpu.memory_space<vmem>>, vector<2x256xf32>
    tpu.vector_store %arg11[%c0_26, %c0_27], %34 {strides = array<i32>} : memref<2x1792xf32, #tpu.memory_space<vmem>>, vector<2x256xf32>,
    %36 = vector.extract_strided_slice %26 {offsets = [0, 256], sizes = [2, 256], strides = [1, 1]} : vector<2x1792xf32> to vector<2x256xf32>
    %cst_28 = arith.constant dense<0.000000e+00> : vector<2x256xf32>
    %37 = tpu.matmul %36, %27, %cst_28 {dimension_numbers = #tpu.dot_dimension_numbers<[1], [0], [0], [1], [0, 0, 1, 1], [], []>} : vector<2x256xf32>, vector<256x256xf32>, vector<2x256xf32> -> vector<2x256xf32>
    %38 = vector.broadcast %28 : vector<1x256xf32> to vector<2x256xf32>
    %39 = arith.addf %37, %38 : vector<2x256xf32>
    %cst_29 = arith.constant 0.000000e+00 : f32
    %40 = vector.broadcast %cst_29 : f32 to vector<2x256xf32>
    %41 = arith.maximumf %39, %40 : vector<2x256xf32>
    %c0_30 = arith.constant 0 : index
    %c256 = arith.constant 256 : index
    %42 = vector.load %arg11[%c0_30, %c256] : memref<2x1792xf32, #tpu.memory_space<vmem>>, vector<2x256xf32>
    tpu.vector_store %arg11[%c0_30, %c256], %41 {strides = array<i32>} : memref<2x1792xf32, #tpu.memory_space<vmem>>, vector<2x256xf32>,
    %43 = vector.extract_strided_slice %26 {offsets = [0, 512], sizes = [2, 256], strides = [1, 1]} : vector<2x1792xf32> to vector<2x256xf32>
    %cst_31 = arith.constant dense<0.000000e+00> : vector<2x256xf32>
    %44 = tpu.matmul %43, %27, %cst_31 {dimension_numbers = #tpu.dot_dimension_numbers<[1], [0], [0], [1], [0, 0, 1, 1], [], []>} : vector<2x256xf32>, vector<256x256xf32>, vector<2x256xf32> -> vector<2x256xf32>
    %45 = vector.broadcast %28 : vector<1x256xf32> to vector<2x256xf32>
    %46 = arith.addf %44, %45 : vector<2x256xf32>
    %cst_32 = arith.constant 0.000000e+00 : f32
    %47 = vector.broadcast %cst_32 : f32 to vector<2x256xf32>
    %48 = arith.maximumf %46, %47 : vector<2x256xf32>
    %c0_33 = arith.constant 0 : index
    %c512 = arith.constant 512 : index
    %49 = vector.load %arg11[%c0_33, %c512] : memref<2x1792xf32, #tpu.memory_space<vmem>>, vector<2x256xf32>
    tpu.vector_store %arg11[%c0_33, %c512], %48 {strides = array<i32>} : memref<2x1792xf32, #tpu.memory_space<vmem>>, vector<2x256xf32>,
    %50 = vector.extract_strided_slice %26 {offsets = [0, 768], sizes = [2, 256], strides = [1, 1]} : vector<2x1792xf32> to vector<2x256xf32>
    %cst_34 = arith.constant dense<0.000000e+00> : vector<2x256xf32>
    %51 = tpu.matmul %50, %27, %cst_34 {dimension_numbers = #tpu.dot_dimension_numbers<[1], [0], [0], [1], [0, 0, 1, 1], [], []>} : vector<2x256xf32>, vector<256x256xf32>, vector<2x256xf32> -> vector<2x256xf32>
    %52 = vector.broadcast %28 : vector<1x256xf32> to vector<2x256xf32>
    %53 = arith.addf %51, %52 : vector<2x256xf32>
    %cst_35 = arith.constant 0.000000e+00 : f32
    %54 = vector.broadcast %cst_35 : f32 to vector<2x256xf32>
    %55 = arith.maximumf %53, %54 : vector<2x256xf32>
    %c0_36 = arith.constant 0 : index
    %c768 = arith.constant 768 : index
    %56 = vector.load %arg11[%c0_36, %c768] : memref<2x1792xf32, #tpu.memory_space<vmem>>, vector<2x256xf32>
    tpu.vector_store %arg11[%c0_36, %c768], %55 {strides = array<i32>} : memref<2x1792xf32, #tpu.memory_space<vmem>>, vector<2x256xf32>,
    %57 = vector.extract_strided_slice %26 {offsets = [0, 1024], sizes = [2, 256], strides = [1, 1]} : vector<2x1792xf32> to vector<2x256xf32>
    %cst_37 = arith.constant dense<0.000000e+00> : vector<2x256xf32>
    %58 = tpu.matmul %57, %27, %cst_37 {dimension_numbers = #tpu.dot_dimension_numbers<[1], [0], [0], [1], [0, 0, 1, 1], [], []>} : vector<2x256xf32>, vector<256x256xf32>, vector<2x256xf32> -> vector<2x256xf32>
    %59 = vector.broadcast %28 : vector<1x256xf32> to vector<2x256xf32>
    %60 = arith.addf %58, %59 : vector<2x256xf32>
    %cst_38 = arith.constant 0.000000e+00 : f32
    %61 = vector.broadcast %cst_38 : f32 to vector<2x256xf32>
    %62 = arith.maximumf %60, %61 : vector<2x256xf32>
    %c0_39 = arith.constant 0 : index
    %c1024 = arith.constant 1024 : index
    %63 = vector.load %arg11[%c0_39, %c1024] : memref<2x1792xf32, #tpu.memory_space<vmem>>, vector<2x256xf32>
    tpu.vector_store %arg11[%c0_39, %c1024], %62 {strides = array<i32>} : memref<2x1792xf32, #tpu.memory_space<vmem>>, vector<2x256xf32>,
    %64 = vector.extract_strided_slice %26 {offsets = [0, 1280], sizes = [2, 256], strides = [1, 1]} : vector<2x1792xf32> to vector<2x256xf32>
    %cst_40 = arith.constant dense<0.000000e+00> : vector<2x256xf32>
    %65 = tpu.matmul %64, %27, %cst_40 {dimension_numbers = #tpu.dot_dimension_numbers<[1], [0], [0], [1], [0, 0, 1, 1], [], []>} : vector<2x256xf32>, vector<256x256xf32>, vector<2x256xf32> -> vector<2x256xf32>
    %66 = vector.broadcast %28 : vector<1x256xf32> to vector<2x256xf32>
    %67 = arith.addf %65, %66 : vector<2x256xf32>
    %cst_41 = arith.constant 0.000000e+00 : f32
    %68 = vector.broadcast %cst_41 : f32 to vector<2x256xf32>
    %69 = arith.maximumf %67, %68 : vector<2x256xf32>
    %c0_42 = arith.constant 0 : index
    %c1280 = arith.constant 1280 : index
    %70 = vector.load %arg11[%c0_42, %c1280] : memref<2x1792xf32, #tpu.memory_space<vmem>>, vector<2x256xf32>
    tpu.vector_store %arg11[%c0_42, %c1280], %69 {strides = array<i32>} : memref<2x1792xf32, #tpu.memory_space<vmem>>, vector<2x256xf32>,
    %71 = vector.extract_strided_slice %26 {offsets = [0, 1536], sizes = [2, 256], strides = [1, 1]} : vector<2x1792xf32> to vector<2x256xf32>
    %cst_43 = arith.constant dense<0.000000e+00> : vector<2x256xf32>
    %72 = tpu.matmul %71, %27, %cst_43 {dimension_numbers = #tpu.dot_dimension_numbers<[1], [0], [0], [1], [0, 0, 1, 1], [], []>} : vector<2x256xf32>, vector<256x256xf32>, vector<2x256xf32> -> vector<2x256xf32>
    %73 = vector.broadcast %28 : vector<1x256xf32> to vector<2x256xf32>
    %74 = arith.addf %72, %73 : vector<2x256xf32>
    %cst_44 = arith.constant 0.000000e+00 : f32
    %75 = vector.broadcast %cst_44 : f32 to vector<2x256xf32>
    %76 = arith.maximumf %74, %75 : vector<2x256xf32>
    %c0_45 = arith.constant 0 : index
    %c1536 = arith.constant 1536 : index
    %77 = vector.load %arg11[%c0_45, %c1536] : memref<2x1792xf32, #tpu.memory_space<vmem>>, vector<2x256xf32>
    tpu.vector_store %arg11[%c0_45, %c1536], %76 {strides = array<i32>} : memref<2x1792xf32, #tpu.memory_space<vmem>>, vector<2x256xf32>,
    return
  }
  func.func @transform_0(%arg0: i32) -> (i32, i32) {
    %c0_i32 = arith.constant 0 : i32
    %c0_i32_0 = arith.constant 0 : i32
    %c0_i32_1 = arith.constant 0 : i32
    return %c0_i32, %c0_i32_0 : i32, i32
  }
  func.func @transform_1(%arg0: i32) -> (i32, i32) {
    %c0_i32 = arith.constant 0 : i32
    %c0_i32_0 = arith.constant 0 : i32
    %c0_i32_1 = arith.constant 0 : i32
    return %c0_i32, %c0_i32_0 : i32, i32
  }
  func.func @transform_2(%arg0: i32) -> (i32, i32) {
    %c0_i32 = arith.constant 0 : i32
    %c0_i32_0 = arith.constant 0 : i32
    %c0_i32_1 = arith.constant 0 : i32
    return %c0_i32, %c0_i32_0 : i32, i32
  }
  func.func @transform_3(%arg0: i32) -> (i32, i32) {
    %c0_i32 = arith.constant 0 : i32
    %c0_i32_0 = arith.constant 0 : i32
    %c0_i32_1 = arith.constant 0 : i32
    return %c0_i32, %c0_i32_0 : i32, i32
  }
  func.func @transform_4(%arg0: i32) -> (i32, i32) {
    %c0_i32 = arith.constant 0 : i32
    %c0_i32_0 = arith.constant 0 : i32
    %c0_i32_1 = arith.constant 0 : i32
    return %c0_i32, %c0_i32_0 : i32, i32
  }
  func.func @transform_5(%arg0: i32) -> (i32, i32) {
    %c0_i32 = arith.constant 0 : i32
    %c0_i32_0 = arith.constant 0 : i32
    return %c0_i32, %arg0 : i32, i32
  }
  func.func @transform_6(%arg0: i32) -> (i32, i32) {
    %c0_i32 = arith.constant 0 : i32
    %c0_i32_0 = arith.constant 0 : i32
    return %c0_i32, %arg0 : i32, i32
  }
  func.func @transform_7(%arg0: i32) -> (i32, i32) {
    %c0_i32 = arith.constant 0 : i32
    %c0_i32_0 = arith.constant 0 : i32
    return %c0_i32, %arg0 : i32, i32
  }
  func.func @transform_8(%arg0: i32) -> (i32, i32) {
    %c0_i32 = arith.constant 0 : i32
    %c0_i32_0 = arith.constant 0 : i32
    %c0_i32_1 = arith.constant 0 : i32
    return %c0_i32, %c0_i32_0 : i32, i32
  }
  func.func @transform_9(%arg0: i32) -> (i32, i32) {
    %c0_i32 = arith.constant 0 : i32
    %c0_i32_0 = arith.constant 0 : i32
    %c0_i32_1 = arith.constant 0 : i32
    return %c0_i32, %c0_i32_0 : i32, i32
  }
  func.func @transform_10(%arg0: i32) -> (i32, i32) {
    %c0_i32 = arith.constant 0 : i32
    %c0_i32_0 = arith.constant 0 : i32
    return %c0_i32, %arg0 : i32, i32
  }
}

module attributes {stable_mosaic.version = 11 : i64} {
  func.func @_mid_tail_kernel(%arg0: i32, %arg1: memref<576x392xf32, #tpu.memory_space<vmem>>, %arg2: memref<16x576xf32, #tpu.memory_space<vmem>>, %arg3: memref<16x1xf32, #tpu.memory_space<vmem>>, %arg4: memref<16x16xf32, #tpu.memory_space<vmem>>, %arg5: memref<16x1xf32, #tpu.memory_space<vmem>>, %arg6: memref<16x392xf32, #tpu.memory_space<vmem>>) attributes {dimension_semantics = [#tpu.dimension_semantics<arbitrary>], iteration_bounds = array<i64: 1>, scalar_prefetch = 0 : i64, scratch_operands = 0 : i64, tpu.core_type = #tpu.core_type<tc>, window_params = [{pipeline_mode = #tpu.pipeline_mode<synchronous>, transform_indices = @transform_0, window_bounds = array<i64: 576, 392>}, {pipeline_mode = #tpu.pipeline_mode<synchronous>, transform_indices = @transform_1, window_bounds = array<i64: 16, 576>}, {pipeline_mode = #tpu.pipeline_mode<synchronous>, transform_indices = @transform_2, window_bounds = array<i64: 16, 1>}, {pipeline_mode = #tpu.pipeline_mode<synchronous>, transform_indices = @transform_3, window_bounds = array<i64: 16, 16>}, {pipeline_mode = #tpu.pipeline_mode<synchronous>, transform_indices = @transform_4, window_bounds = array<i64: 16, 1>}, {pipeline_mode = #tpu.pipeline_mode<synchronous>, transform_indices = @transform_5, window_bounds = array<i64: 16, 392>}]} {
    %c0 = arith.constant 0 : index
    %c0_0 = arith.constant 0 : index
    %0 = vector.load %arg2[%c0, %c0_0] : memref<16x576xf32, #tpu.memory_space<vmem>>, vector<16x576xf32>
    %c0_1 = arith.constant 0 : index
    %c0_2 = arith.constant 0 : index
    %1 = vector.load %arg1[%c0_1, %c0_2] : memref<576x392xf32, #tpu.memory_space<vmem>>, vector<576x392xf32>
    %cst = arith.constant dense<0.000000e+00> : vector<16x392xf32>
    %2 = tpu.matmul %0, %1, %cst {dimension_numbers = #tpu.dot_dimension_numbers<[1], [0], [0], [1], [0, 0, 1, 1], [], []>} : vector<16x576xf32>, vector<576x392xf32>, vector<16x392xf32> -> vector<16x392xf32>
    %c0_3 = arith.constant 0 : index
    %c0_4 = arith.constant 0 : index
    %3 = vector.load %arg3[%c0_3, %c0_4] : memref<16x1xf32, #tpu.memory_space<vmem>>, vector<16x1xf32>
    %4 = vector.broadcast %3 : vector<16x1xf32> to vector<16x392xf32>
    %5 = arith.addf %2, %4 : vector<16x392xf32>
    %cst_5 = arith.constant 0.000000e+00 : f32
    %6 = vector.broadcast %cst_5 : f32 to vector<16x392xf32>
    %7 = arith.maximumf %5, %6 : vector<16x392xf32>
    %c0_6 = arith.constant 0 : index
    %c0_7 = arith.constant 0 : index
    %8 = vector.load %arg4[%c0_6, %c0_7] : memref<16x16xf32, #tpu.memory_space<vmem>>, vector<16x16xf32>
    %cst_8 = arith.constant dense<0.000000e+00> : vector<16x392xf32>
    %9 = tpu.matmul %8, %7, %cst_8 {dimension_numbers = #tpu.dot_dimension_numbers<[1], [0], [0], [1], [0, 0, 1, 1], [], []>} : vector<16x16xf32>, vector<16x392xf32>, vector<16x392xf32> -> vector<16x392xf32>
    %c0_9 = arith.constant 0 : index
    %c0_10 = arith.constant 0 : index
    %10 = vector.load %arg5[%c0_9, %c0_10] : memref<16x1xf32, #tpu.memory_space<vmem>>, vector<16x1xf32>
    %11 = vector.broadcast %10 : vector<16x1xf32> to vector<16x392xf32>
    %12 = arith.addf %9, %11 : vector<16x392xf32>
    %cst_11 = arith.constant 0.000000e+00 : f32
    %13 = vector.broadcast %cst_11 : f32 to vector<16x392xf32>
    %14 = arith.maximumf %12, %13 : vector<16x392xf32>
    %c0_12 = arith.constant 0 : index
    %c0_13 = arith.constant 0 : index
    %15 = vector.load %arg6[%c0_12, %c0_13] : memref<16x392xf32, #tpu.memory_space<vmem>>, vector<16x392xf32>
    tpu.vector_store %arg6[%c0_12, %c0_13], %14 {strides = array<i32>} : memref<16x392xf32, #tpu.memory_space<vmem>>, vector<16x392xf32>,
    return
  }
  func.func @transform_0(%arg0: i32) -> (i32, i32) {
    %c0_i32 = arith.constant 0 : i32
    %c0_i32_0 = arith.constant 0 : i32
    %c0_i32_1 = arith.constant 0 : i32
    return %c0_i32, %c0_i32_0 : i32, i32
  }
  func.func @transform_1(%arg0: i32) -> (i32, i32) {
    %c0_i32 = arith.constant 0 : i32
    %c0_i32_0 = arith.constant 0 : i32
    %c0_i32_1 = arith.constant 0 : i32
    return %c0_i32, %c0_i32_0 : i32, i32
  }
  func.func @transform_2(%arg0: i32) -> (i32, i32) {
    %c0_i32 = arith.constant 0 : i32
    %c0_i32_0 = arith.constant 0 : i32
    %c0_i32_1 = arith.constant 0 : i32
    return %c0_i32, %c0_i32_0 : i32, i32
  }
  func.func @transform_3(%arg0: i32) -> (i32, i32) {
    %c0_i32 = arith.constant 0 : i32
    %c0_i32_0 = arith.constant 0 : i32
    %c0_i32_1 = arith.constant 0 : i32
    return %c0_i32, %c0_i32_0 : i32, i32
  }
  func.func @transform_4(%arg0: i32) -> (i32, i32) {
    %c0_i32 = arith.constant 0 : i32
    %c0_i32_0 = arith.constant 0 : i32
    %c0_i32_1 = arith.constant 0 : i32
    return %c0_i32, %c0_i32_0 : i32, i32
  }
  func.func @transform_5(%arg0: i32) -> (i32, i32) {
    %c0_i32 = arith.constant 0 : i32
    %c0_i32_0 = arith.constant 0 : i32
    %c0_i32_1 = arith.constant 0 : i32
    return %c0_i32, %c0_i32_0 : i32, i32
  }
}

module attributes {stable_mosaic.version = 11 : i64} {
  func.func @_last_tail_kernel(%arg0: i32, %arg1: memref<144x392xf32, #tpu.memory_space<vmem>>, %arg2: memref<4x144xf32, #tpu.memory_space<vmem>>, %arg3: memref<4x1xf32, #tpu.memory_space<vmem>>, %arg4: memref<4x392xf32, #tpu.memory_space<vmem>>) attributes {dimension_semantics = [#tpu.dimension_semantics<arbitrary>], iteration_bounds = array<i64: 1>, scalar_prefetch = 0 : i64, scratch_operands = 0 : i64, tpu.core_type = #tpu.core_type<tc>, window_params = [{pipeline_mode = #tpu.pipeline_mode<synchronous>, transform_indices = @transform_0, window_bounds = array<i64: 144, 392>}, {pipeline_mode = #tpu.pipeline_mode<synchronous>, transform_indices = @transform_1, window_bounds = array<i64: 4, 144>}, {pipeline_mode = #tpu.pipeline_mode<synchronous>, transform_indices = @transform_2, window_bounds = array<i64: 4, 1>}, {pipeline_mode = #tpu.pipeline_mode<synchronous>, transform_indices = @transform_3, window_bounds = array<i64: 4, 392>}]} {
    %c0 = arith.constant 0 : index
    %c0_0 = arith.constant 0 : index
    %0 = vector.load %arg2[%c0, %c0_0] : memref<4x144xf32, #tpu.memory_space<vmem>>, vector<4x144xf32>
    %c0_1 = arith.constant 0 : index
    %c0_2 = arith.constant 0 : index
    %1 = vector.load %arg1[%c0_1, %c0_2] : memref<144x392xf32, #tpu.memory_space<vmem>>, vector<144x392xf32>
    %cst = arith.constant dense<0.000000e+00> : vector<4x392xf32>
    %2 = tpu.matmul %0, %1, %cst {dimension_numbers = #tpu.dot_dimension_numbers<[1], [0], [0], [1], [0, 0, 1, 1], [], []>} : vector<4x144xf32>, vector<144x392xf32>, vector<4x392xf32> -> vector<4x392xf32>
    %c0_3 = arith.constant 0 : index
    %c0_4 = arith.constant 0 : index
    %3 = vector.load %arg3[%c0_3, %c0_4] : memref<4x1xf32, #tpu.memory_space<vmem>>, vector<4x1xf32>
    %4 = vector.broadcast %3 : vector<4x1xf32> to vector<4x392xf32>
    %5 = arith.addf %2, %4 : vector<4x392xf32>
    %6 = arith.negf %5 : vector<4x392xf32>
    %7 = math.exp %6 : vector<4x392xf32>
    %cst_5 = arith.constant 1.000000e+00 : f32
    %8 = vector.broadcast %cst_5 : f32 to vector<4x392xf32>
    %9 = arith.addf %8, %7 : vector<4x392xf32>
    %10 = arith.divf %8, %9 : vector<4x392xf32>
    %c0_6 = arith.constant 0 : index
    %c0_7 = arith.constant 0 : index
    %11 = vector.load %arg4[%c0_6, %c0_7] : memref<4x392xf32, #tpu.memory_space<vmem>>, vector<4x392xf32>
    tpu.vector_store %arg4[%c0_6, %c0_7], %10 {strides = array<i32>} : memref<4x392xf32, #tpu.memory_space<vmem>>, vector<4x392xf32>,
    return
  }
  func.func @transform_0(%arg0: i32) -> (i32, i32) {
    %c0_i32 = arith.constant 0 : i32
    %c0_i32_0 = arith.constant 0 : i32
    %c0_i32_1 = arith.constant 0 : i32
    return %c0_i32, %c0_i32_0 : i32, i32
  }
  func.func @transform_1(%arg0: i32) -> (i32, i32) {
    %c0_i32 = arith.constant 0 : i32
    %c0_i32_0 = arith.constant 0 : i32
    %c0_i32_1 = arith.constant 0 : i32
    return %c0_i32, %c0_i32_0 : i32, i32
  }
  func.func @transform_2(%arg0: i32) -> (i32, i32) {
    %c0_i32 = arith.constant 0 : i32
    %c0_i32_0 = arith.constant 0 : i32
    %c0_i32_1 = arith.constant 0 : i32
    return %c0_i32, %c0_i32_0 : i32, i32
  }
  func.func @transform_3(%arg0: i32) -> (i32, i32) {
    %c0_i32 = arith.constant 0 : i32
    %c0_i32_0 = arith.constant 0 : i32
    %c0_i32_1 = arith.constant 0 : i32
    return %c0_i32, %c0_i32_0 : i32, i32
  }
}

</mosaic_0001>

<llo_original>
// kernel: decoder_forward.4
$region0: #{decoder_forward.4}
  #allocation0 [shape = 'u32[]', space=smem, size = 0x4, offset = 0x4, fixed_abs, tag = 'smem constant byte address 0x4 - core index']
  #allocation1 [shape = 'u32[144,128]{1,0:T(1,128)}', space=vmem, size = 0x12000, scoped, tag = 'internal scratch']
  %s0 = inlined_call_operand.vmem [shape: f32[576,392], index: 0, kind: input, shape index: {}]
  %s1 = inlined_call_operand.vmem [shape: f32[16,576], index: 1, kind: input, shape index: {}]
  %s2 = inlined_call_operand.vmem [shape: f32[16,1], index: 2, kind: input, shape index: {}]
  %s3 = inlined_call_operand.vmem [shape: f32[16,16], index: 3, kind: input, shape index: {}]
  %s4 = inlined_call_operand.vmem [shape: f32[16,1], index: 4, kind: input, shape index: {}]
  %s5 = inlined_call_operand.vmem [shape: f32[16,392], index: 5, kind: output, shape index: {}]
  %s6 = sld [smem:[#allocation0]]
  $region30: #{decoder_forward.4} parent=0
    _
  %s8 = ssub.s32 1, %s6
  %s9 = scalar_select 0, %s8, %s6
  // Predicated region
  $region2: #{decoder_forward.4} parent=0 // pred_check
    _
  $region3: #{decoder_forward.4} parent=0 // pred_check_branch
    %11 = sbr.rel (0) target = $region5
  $region4: #{decoder_forward.4} parent=0 // pred_region
    _
  $region5: #{decoder_forward.4} parent=0 // pred_fallthru
    _
  // Predicated region
  $region6: #{decoder_forward.4} parent=0 // pred_check
    _
  $region7: #{decoder_forward.4} parent=0 // pred_check_branch
    %13 = sbr.rel (0) target = $region9
  $region8: #{decoder_forward.4} parent=0 // pred_region
    _
  $region9: #{decoder_forward.4} parent=0 // pred_fallthru
    _
  // Predicated region
  $region10: #{decoder_forward.4} parent=0 // pred_check
    _
  $region11: #{decoder_forward.4} parent=0 // pred_check_branch
    %15 = sbr.rel (0) target = $region13
  $region12: #{decoder_forward.4} parent=0 // pred_region
    _
  $region13: #{decoder_forward.4} parent=0 // pred_fallthru
    _
  // Predicated region
  $region14: #{decoder_forward.4} parent=0 // pred_check
    _
  $region15: #{decoder_forward.4} parent=0 // pred_check_branch
    %17 = sbr.rel (0) target = $region17
  $region16: #{decoder_forward.4} parent=0 // pred_region
    _
  $region17: #{decoder_forward.4} parent=0 // pred_fallthru
    _
  // Predicated region
  $region18: #{decoder_forward.4} parent=0 // pred_check
    _
  $region19: #{decoder_forward.4} parent=0 // pred_check_branch
    %19 = sbr.rel (0) target = $region21
  $region20: #{decoder_forward.4} parent=0 // pred_region
    _
  $region21: #{decoder_forward.4} parent=0 // pred_fallthru
    _
  %v20 = vld [vmem:[%s1] sm:$0xff]
  %v21 = vld [vmem:[%s1 + $0x8] sm:$0xff]
  %v22 = vld [vmem:[%s1 + $0x10] sm:$0xff]
  %v23 = vld [vmem:[%s1 + $0x18] sm:$0xff]
  %v24 = vld [vmem:[%s1 + $0x20] sm:$0xff]
  %v25 = vld [vmem:[%s1 + $0x28] sm:$0xff]
  %v26 = vld [vmem:[%s1 + $0x30] sm:$0xff]
  %v27 = vld [vmem:[%s1 + $0x38] sm:$0xff]
  %v28 = vld [vmem:[%s1 + $0x40] sm:$0xff]
  %v29 = vld [vmem:[%s1 + $0x48] sm:$0xff]
  %v30 = vld [vmem:[%s0] sm:$0xff]
  %v31 = vld [vmem:[%s0 + $0x8] sm:$0xff]
  %v32 = vld [vmem:[%s0 + $0x10] sm:$0xff]
  %v33 = vld [vmem:[%s0 + $0x18] sm:$0xff]
  %v34 = vld [vmem:[%s0 + $0x20] sm:$0xff]
  %v35 = vld [vmem:[%s0 + $0x28] sm:$0xff]
  %v36 = vld [vmem:[%s0 + $0x30] sm:$0xff]
  %v37 = vld [vmem:[%s0 + $0x38] sm:$0xff]
  %v38 = vld [vmem:[%s0 + $0x40] sm:$0xff]
  %v39 = vld [vmem:[%s0 + $0x48] sm:$0xff]
  %v40 = vld [vmem:[%s0 + $0x50] sm:$0xff]
  %v41 = vld [vmem:[%s0 + $0x58] sm:$0xff]
  %v42 = vld [vmem:[%s0 + $0x60] sm:$0xff]
  %v43 = vld [vmem:[%s0 + $0x68] sm:$0xff]
  %v44 = vld [vmem:[%s0 + $0x70] sm:$0xff]
  %v45 = vld [vmem:[%s0 + $0x78] sm:$0xff]
  %v46 = vld [vmem:[%s0 + $0x80] sm:$0xff]
  %v47 = vld [vmem:[%s0 + $0x88] sm:$0xff]
  %v48 = vld [vmem:[%s0 + $0x90] sm:$0xff]
  %v49 = vld [vmem:[%s0 + $0x98] sm:$0xff]
  %v50 = vld [vmem:[%s0 + $0xa0] sm:$0xff]
  %v51 = vld [vmem:[%s0 + $0xa8] sm:$0xff]
  %v52 = vld [vmem:[%s0 + $0xb0] sm:$0xff]
  %v53 = vld [vmem:[%s0 + $0xb8] sm:$0xff]
  %v54 = vld [vmem:[%s0 + $0xc0] sm:$0xff]
  %v55 = vld [vmem:[%s0 + $0xc8] sm:$0xff]
  %v56 = vld [vmem:[%s0 + $0xd0] sm:$0xff]
  %v57 = vld [vmem:[%s0 + $0xd8] sm:$0xff]
  %v58 = vld [vmem:[%s0 + $0xe0] sm:$0xff]
  %v59 = vld [vmem:[%s0 + $0xe8] sm:$0xff]
  %v60 = vld [vmem:[%s0 + $0xf0] sm:$0xff]
  %v61 = vld [vmem:[%s0 + $0xf8] sm:$0xff]
  %v62 = vld [vmem:[%s0 + $0x100] sm:$0xff]
  %v63 = vld [vmem:[%s0 + $0x108] sm:$0xff]
  %v64 = vld [vmem:[%s0 + $0x110] sm:$0xff]
  %v65 = vld [vmem:[%s0 + $0x118] sm:$0xff]
  %v66 = vld [vmem:[%s0 + $0x120] sm:$0xff]
  %v67 = vld [vmem:[%s0 + $0x128] sm:$0xff]
  %v68 = vld [vmem:[%s0 + $0x130] sm:$0xff]
  %v69 = vld [vmem:[%s0 + $0x138] sm:$0xff]
  %v70 = vld [vmem:[%s0 + $0x140] sm:$0xff]
  %v71 = vld [vmem:[%s0 + $0x148] sm:$0xff]
  %v72 = vld [vmem:[%s0 + $0x150] sm:$0xff]
  %v73 = vld [vmem:[%s0 + $0x158] sm:$0xff]
  %v74 = vld [vmem:[%s0 + $0x160] sm:$0xff]
  %v75 = vld [vmem:[%s0 + $0x168] sm:$0xff]
  %v76 = vld [vmem:[%s0 + $0x170] sm:$0xff]
  %v77 = vld [vmem:[%s0 + $0x178] sm:$0xff]
  %v78 = vld [vmem:[%s0 + $0x180] sm:$0xff]
  %v79 = vld [vmem:[%s0 + $0x188] sm:$0xff]
  %v80 = vld [vmem:[%s0 + $0x190] sm:$0xff]
  %v81 = vld [vmem:[%s0 + $0x198] sm:$0xff]
  %v82 = vld [vmem:[%s0 + $0x1a0] sm:$0xff]
  %v83 = vld [vmem:[%s0 + $0x1a8] sm:$0xff]
  %v84 = vld [vmem:[%s0 + $0x1b0] sm:$0xff]
  %v85 = vld [vmem:[%s0 + $0x1b8] sm:$0xff]
  %v86 = vld [vmem:[%s0 + $0x1c0] sm:$0xff]
  %v87 = vld [vmem:[%s0 + $0x1c8] sm:$0xff]
  %v88 = vld [vmem:[%s0 + $0x1d0] sm:$0xff]
  %v89 = vld [vmem:[%s0 + $0x1d8] sm:$0xff]
  %v90 = vld [vmem:[%s0 + $0x1e0] sm:$0xff]
  %v91 = vld [vmem:[%s0 + $0x1e8] sm:$0xff]
  %v92 = vld [vmem:[%s0 + $0x1f0] sm:$0xff]
  %v93 = vld [vmem:[%s0 + $0x1f8] sm:$0xff]
  %v94 = vld [vmem:[%s0 + $0x200] sm:$0xff]
  %v95 = vld [vmem:[%s0 + $0x208] sm:$0xff]
  %v96 = vld [vmem:[%s0 + $0x210] sm:$0xff]
  %v97 = vld [vmem:[%s0 + $0x218] sm:$0xff]
  %v98 = vld [vmem:[%s0 + $0x220] sm:$0xff]
  %v99 = vld [vmem:[%s0 + $0x228] sm:$0xff]
  %v100 = vld [vmem:[%s0 + $0x230] sm:$0xff]
  %v101 = vld [vmem:[%s0 + $0x238] sm:$0xff]
  %v102 = vld [vmem:[%s0 + $0x240] sm:$0xff]
  %v103 = vld [vmem:[%s0 + $0x248] sm:$0xff]
  %v104 = vld [vmem:[%s0 + $0x250] sm:$0xff]
  %v105 = vld [vmem:[%s0 + $0x258] sm:$0xff]
  %v106 = vld [vmem:[%s0 + $0x260] sm:$0xff]
  %v107 = vld [vmem:[%s0 + $0x268] sm:$0xff]
  %v108 = vld [vmem:[%s0 + $0x270] sm:$0xff]
  %v109 = vld [vmem:[%s0 + $0x278] sm:$0xff]
  %v110 = vld [vmem:[%s0 + $0x280] sm:$0xff]
  %v111 = vld [vmem:[%s0 + $0x288] sm:$0xff]
  %v112 = vld [vmem:[%s0 + $0x290] sm:$0xff]
  %v113 = vld [vmem:[%s0 + $0x298] sm:$0xff]
  %v114 = vld [vmem:[%s0 + $0x2a0] sm:$0xff]
  %v115 = vld [vmem:[%s0 + $0x2a8] sm:$0xff]
  %v116 = vld [vmem:[%s0 + $0x2b0] sm:$0xff]
  %v117 = vld [vmem:[%s0 + $0x2b8] sm:$0xff]
  %v118 = vld [vmem:[%s0 + $0x2c0] sm:$0xff]
  %v119 = vld [vmem:[%s0 + $0x2c8] sm:$0xff]
  %v120 = vld [vmem:[%s0 + $0x2d0] sm:$0xff]
  %v121 = vld [vmem:[%s0 + $0x2d8] sm:$0xff]
  %v122 = vld [vmem:[%s0 + $0x2e0] sm:$0xff]
  %v123 = vld [vmem:[%s0 + $0x2e8] sm:$0xff]
  %v124 = vld [vmem:[%s0 + $0x2f0] sm:$0xff]
  %v125 = vld [vmem:[%s0 + $0x2f8] sm:$0xff]
  %v126 = vld [vmem:[%s0 + $0x300] sm:$0xff]
  %v127 = vld [vmem:[%s0 + $0x308] sm:$0xff]
  %v128 = vld [vmem:[%s0 + $0x310] sm:$0xff]
  %v129 = vld [vmem:[%s0 + $0x318] sm:$0xff]
  %v130 = vld [vmem:[%s0 + $0x320] sm:$0xff]
  %v131 = vld [vmem:[%s0 + $0x328] sm:$0xff]
  %v132 = vld [vmem:[%s0 + $0x330] sm:$0xff]
  %v133 = vld [vmem:[%s0 + $0x338] sm:$0xff]
  %v134 = vld [vmem:[%s0 + $0x340] sm:$0xff]
  %v135 = vld [vmem:[%s0 + $0x348] sm:$0xff]
  %v136 = vld [vmem:[%s0 + $0x350] sm:$0xff]
  %v137 = vld [vmem:[%s0 + $0x358] sm:$0xff]
  %v138 = vld [vmem:[%s0 + $0x360] sm:$0xff]
  %v139 = vld [vmem:[%s0 + $0x368] sm:$0xff]
  %v140 = vld [vmem:[%s0 + $0x370] sm:$0xff]
  %v141 = vld [vmem:[%s0 + $0x378] sm:$0xff]
  %v142 = vld [vmem:[%s0 + $0x380] sm:$0xff]
  %v143 = vld [vmem:[%s0 + $0x388] sm:$0xff]
  %v144 = vld [vmem:[%s0 + $0x390] sm:$0xff]
  %v145 = vld [vmem:[%s0 + $0x398] sm:$0xff]
  %v146 = vld [vmem:[%s0 + $0x3a0] sm:$0xff]
  %v147 = vld [vmem:[%s0 + $0x3a8] sm:$0xff]
  %v148 = vld [vmem:[%s0 + $0x3b0] sm:$0xff]
  %v149 = vld [vmem:[%s0 + $0x3b8] sm:$0xff]
  %v150 = vld [vmem:[%s0 + $0x3c0] sm:$0xff]
  %v151 = vld [vmem:[%s0 + $0x3c8] sm:$0xff]
  %v152 = vld [vmem:[%s0 + $0x3d0] sm:$0xff]
  %v153 = vld [vmem:[%s0 + $0x3d8] sm:$0xff]
  %v154 = vld [vmem:[%s0 + $0x3e0] sm:$0xff]
  %v155 = vld [vmem:[%s0 + $0x3e8] sm:$0xff]
  %v156 = vld [vmem:[%s0 + $0x3f0] sm:$0xff]
  %v157 = vld [vmem:[%s0 + $0x3f8] sm:$0xff]
  %v158 = vld [vmem:[%s0 + $0x400] sm:$0xff]
  %v159 = vld [vmem:[%s0 + $0x408] sm:$0xff]
  %v160 = vld [vmem:[%s0 + $0x410] sm:$0xff]
  %v161 = vld [vmem:[%s0 + $0x418] sm:$0xff]
  %v162 = vld [vmem:[%s0 + $0x420] sm:$0xff]
  %v163 = vld [vmem:[%s0 + $0x428] sm:$0xff]
  %v164 = vld [vmem:[%s0 + $0x430] sm:$0xff]
  %v165 = vld [vmem:[%s0 + $0x438] sm:$0xff]
  %v166 = vld [vmem:[%s0 + $0x440] sm:$0xff]
  %v167 = vld [vmem:[%s0 + $0x448] sm:$0xff]
  %v168 = vld [vmem:[%s0 + $0x450] sm:$0xff]
  %v169 = vld [vmem:[%s0 + $0x458] sm:$0xff]
  %v170 = vld [vmem:[%s0 + $0x460] sm:$0xff]
  %v171 = vld [vmem:[%s0 + $0x468] sm:$0xff]
  %v172 = vld [vmem:[%s0 + $0x470] sm:$0xff]
  %v173 = vld [vmem:[%s0 + $0x478] sm:$0xff]
  %v174 = vld [vmem:[%s0 + $0x480] sm:$0xff]
  %v175 = vld [vmem:[%s0 + $0x488] sm:$0xff]
  %v176 = vld [vmem:[%s0 + $0x490] sm:$0xff]
  %v177 = vld [vmem:[%s0 + $0x498] sm:$0xff]
  %v178 = vld [vmem:[%s0 + $0x4a0] sm:$0xff]
  %v179 = vld [vmem:[%s0 + $0x4a8] sm:$0xff]
  %v180 = vld [vmem:[%s0 + $0x4b0] sm:$0xff]
  %v181 = vld [vmem:[%s0 + $0x4b8] sm:$0xff]
  %v182 = vld [vmem:[%s0 + $0x4c0] sm:$0xff]
  %v183 = vld [vmem:[%s0 + $0x4c8] sm:$0xff]
  %v184 = vld [vmem:[%s0 + $0x4d0] sm:$0xff]
  %v185 = vld [vmem:[%s0 + $0x4d8] sm:$0xff]
  %v186 = vld [vmem:[%s0 + $0x4e0] sm:$0xff]
  %v187 = vld [vmem:[%s0 + $0x4e8] sm:$0xff]
  %v188 = vld [vmem:[%s0 + $0x4f0] sm:$0xff]
  %v189 = vld [vmem:[%s0 + $0x4f8] sm:$0xff]
  %v190 = vld [vmem:[%s0 + $0x500] sm:$0xff]
  %v191 = vld [vmem:[%s0 + $0x508] sm:$0xff]
  %v192 = vld [vmem:[%s0 + $0x510] sm:$0xff]
  %v193 = vld [vmem:[%s0 + $0x518] sm:$0xff]
  %v194 = vld [vmem:[%s0 + $0x520] sm:$0xff]
  %v195 = vld [vmem:[%s0 + $0x528] sm:$0xff]
  %v196 = vld [vmem:[%s0 + $0x530] sm:$0xff]
  %v197 = vld [vmem:[%s0 + $0x538] sm:$0xff]
  %v198 = vld [vmem:[%s0 + $0x540] sm:$0xff]
  %v199 = vld [vmem:[%s0 + $0x548] sm:$0xff]
  %v200 = vld [vmem:[%s0 + $0x550] sm:$0xff]
  %v201 = vld [vmem:[%s0 + $0x558] sm:$0xff]
  %v202 = vld [vmem:[%s0 + $0x560] sm:$0xff]
  %v203 = vld [vmem:[%s0 + $0x568] sm:$0xff]
  %v204 = vld [vmem:[%s0 + $0x570] sm:$0xff]
  %v205 = vld [vmem:[%s0 + $0x578] sm:$0xff]
  %v206 = vld [vmem:[%s0 + $0x580] sm:$0xff]
  %v207 = vld [vmem:[%s0 + $0x588] sm:$0xff]
  %v208 = vld [vmem:[%s0 + $0x590] sm:$0xff]
  %v209 = vld [vmem:[%s0 + $0x598] sm:$0xff]
  %v210 = vld [vmem:[%s0 + $0x5a0] sm:$0xff]
  %v211 = vld [vmem:[%s0 + $0x5a8] sm:$0xff]
  %v212 = vld [vmem:[%s0 + $0x5b0] sm:$0xff]
  %v213 = vld [vmem:[%s0 + $0x5b8] sm:$0xff]
  %v214 = vld [vmem:[%s0 + $0x5c0] sm:$0xff]
  %v215 = vld [vmem:[%s0 + $0x5c8] sm:$0xff]
  %v216 = vld [vmem:[%s0 + $0x5d0] sm:$0xff]
  %v217 = vld [vmem:[%s0 + $0x5d8] sm:$0xff]
  %v218 = vld [vmem:[%s0 + $0x5e0] sm:$0xff]
  %v219 = vld [vmem:[%s0 + $0x5e8] sm:$0xff]
  %v220 = vld [vmem:[%s0 + $0x5f0] sm:$0xff]
  %v221 = vld [vmem:[%s0 + $0x5f8] sm:$0xff]
  %v222 = vld [vmem:[%s0 + $0x600] sm:$0xff]
  %v223 = vld [vmem:[%s0 + $0x608] sm:$0xff]
  %v224 = vld [vmem:[%s0 + $0x610] sm:$0xff]
  %v225 = vld [vmem:[%s0 + $0x618] sm:$0xff]
  %v226 = vld [vmem:[%s0 + $0x620] sm:$0xff]
  %v227 = vld [vmem:[%s0 + $0x628] sm:$0xff]
  %v228 = vld [vmem:[%s0 + $0x630] sm:$0xff]
  %v229 = vld [vmem:[%s0 + $0x638] sm:$0xff]
  %v230 = vld [vmem:[%s0 + $0x640] sm:$0xff]
  %v231 = vld [vmem:[%s0 + $0x648] sm:$0xff]
  %v232 = vld [vmem:[%s0 + $0x650] sm:$0xff]
  %v233 = vld [vmem:[%s0 + $0x658] sm:$0xff]
  %v234 = vld [vmem:[%s0 + $0x660] sm:$0xff]
  %v235 = vld [vmem:[%s0 + $0x668] sm:$0xff]
  %v236 = vld [vmem:[%s0 + $0x670] sm:$0xff]
  %v237 = vld [vmem:[%s0 + $0x678] sm:$0xff]
  %v238 = vld [vmem:[%s0 + $0x680] sm:$0xff]
  %v239 = vld [vmem:[%s0 + $0x688] sm:$0xff]
  %v240 = vld [vmem:[%s0 + $0x690] sm:$0xff]
  %v241 = vld [vmem:[%s0 + $0x698] sm:$0xff]
  %v242 = vld [vmem:[%s0 + $0x6a0] sm:$0xff]
  %v243 = vld [vmem:[%s0 + $0x6a8] sm:$0xff]
  %v244 = vld [vmem:[%s0 + $0x6b0] sm:$0xff]
  %v245 = vld [vmem:[%s0 + $0x6b8] sm:$0xff]
  %v246 = vld [vmem:[%s0 + $0x6c0] sm:$0xff]
  %v247 = vld [vmem:[%s0 + $0x6c8] sm:$0xff]
  %v248 = vld [vmem:[%s0 + $0x6d0] sm:$0xff]
  %v249 = vld [vmem:[%s0 + $0x6d8] sm:$0xff]
  %v250 = vld [vmem:[%s0 + $0x6e0] sm:$0xff]
  %v251 = vld [vmem:[%s0 + $0x6e8] sm:$0xff]
  %v252 = vld [vmem:[%s0 + $0x6f0] sm:$0xff]
  %v253 = vld [vmem:[%s0 + $0x6f8] sm:$0xff]
  %v254 = vld [vmem:[%s0 + $0x700] sm:$0xff]
  %v255 = vld [vmem:[%s0 + $0x708] sm:$0xff]
  %v256 = vld [vmem:[%s0 + $0x710] sm:$0xff]
  %v257 = vld [vmem:[%s0 + $0x718] sm:$0xff]
  %v258 = vld [vmem:[%s0 + $0x720] sm:$0xff]
  %v259 = vld [vmem:[%s0 + $0x728] sm:$0xff]
  %v260 = vld [vmem:[%s0 + $0x730] sm:$0xff]
  %v261 = vld [vmem:[%s0 + $0x738] sm:$0xff]
  %v262 = vld [vmem:[%s0 + $0x740] sm:$0xff]
  %v263 = vld [vmem:[%s0 + $0x748] sm:$0xff]
  %v264 = vld [vmem:[%s0 + $0x750] sm:$0xff]
  %v265 = vld [vmem:[%s0 + $0x758] sm:$0xff]
  %v266 = vld [vmem:[%s0 + $0x760] sm:$0xff]
  %v267 = vld [vmem:[%s0 + $0x768] sm:$0xff]
  %v268 = vld [vmem:[%s0 + $0x770] sm:$0xff]
  %v269 = vld [vmem:[%s0 + $0x778] sm:$0xff]
  %v270 = vld [vmem:[%s0 + $0x780] sm:$0xff]
  %v271 = vld [vmem:[%s0 + $0x788] sm:$0xff]
  %v272 = vld [vmem:[%s0 + $0x790] sm:$0xff]
  %v273 = vld [vmem:[%s0 + $0x798] sm:$0xff]
  %v274 = vld [vmem:[%s0 + $0x7a0] sm:$0xff]
  %v275 = vld [vmem:[%s0 + $0x7a8] sm:$0xff]
  %v276 = vld [vmem:[%s0 + $0x7b0] sm:$0xff]
  %v277 = vld [vmem:[%s0 + $0x7b8] sm:$0xff]
  %v278 = vld [vmem:[%s0 + $0x7c0] sm:$0xff]
  %v279 = vld [vmem:[%s0 + $0x7c8] sm:$0xff]
  %v280 = vld [vmem:[%s0 + $0x7d0] sm:$0xff]
  %v281 = vld [vmem:[%s0 + $0x7d8] sm:$0xff]
  %v282 = vld [vmem:[%s0 + $0x7e0] sm:$0xff]
  %v283 = vld [vmem:[%s0 + $0x7e8] sm:$0xff]
  %v284 = vld [vmem:[%s0 + $0x7f0] sm:$0xff]
  %v285 = vld [vmem:[%s0 + $0x7f8] sm:$0xff]
  %v286 = vld [vmem:[%s0 + $0x800] sm:$0xff]
  %v287 = vld [vmem:[%s0 + $0x808] sm:$0xff]
  %v288 = vld [vmem:[%s0 + $0x810] sm:$0xff]
  %v289 = vld [vmem:[%s0 + $0x818] sm:$0xff]
  %v290 = vld [vmem:[%s0 + $0x820] sm:$0xff]
  %v291 = vld [vmem:[%s0 + $0x828] sm:$0xff]
  %v292 = vld [vmem:[%s0 + $0x830] sm:$0xff]
  %v293 = vld [vmem:[%s0 + $0x838] sm:$0xff]
  %v294 = vld [vmem:[%s0 + $0x840] sm:$0xff]
  %v295 = vld [vmem:[%s0 + $0x848] sm:$0xff]
  %v296 = vld [vmem:[%s0 + $0x850] sm:$0xff]
  %v297 = vld [vmem:[%s0 + $0x858] sm:$0xff]
  %v298 = vld [vmem:[%s0 + $0x860] sm:$0xff]
  %v299 = vld [vmem:[%s0 + $0x868] sm:$0xff]
  %v300 = vld [vmem:[%s0 + $0x870] sm:$0xff]
  %v301 = vld [vmem:[%s0 + $0x878] sm:$0xff]
  %v302 = vld [vmem:[%s0 + $0x880] sm:$0xff]
  %v303 = vld [vmem:[%s0 + $0x888] sm:$0xff]
  %v304 = vld [vmem:[%s0 + $0x890] sm:$0xff]
  %v305 = vld [vmem:[%s0 + $0x898] sm:$0xff]
  %v306 = vld [vmem:[%s0 + $0x8a0] sm:$0xff]
  %v307 = vld [vmem:[%s0 + $0x8a8] sm:$0xff]
  %v308 = vld [vmem:[%s0 + $0x8b0] sm:$0xff]
  %v309 = vld [vmem:[%s0 + $0x8b8] sm:$0xff]
  %v310 = vld [vmem:[%s0 + $0x8c0] sm:$0xff]
  %v311 = vld [vmem:[%s0 + $0x8c8] sm:$0xff]
  %v312 = vld [vmem:[%s0 + $0x8d0] sm:$0xff]
  %v313 = vld [vmem:[%s0 + $0x8d8] sm:$0xff]
  %v314 = vld [vmem:[%s0 + $0x8e0] sm:$0xff]
  %v315 = vld [vmem:[%s0 + $0x8e8] sm:$0xff]
  %v316 = vld [vmem:[%s0 + $0x8f0] sm:$0xff]
  %v317 = vld [vmem:[%s0 + $0x8f8] sm:$0xff]
  %v318 = vld [vmem:[%s2] sm:$0xff]
  %v319 = vld [vmem:[%s2 + $0x8] sm:$0xff]
  %321 = vset.pattern.permute.xlu0 0
  %322 = vperm.xlu0 %321, %v318
  %v323 = vpop.permute.xlu0 %322
  %326 = vset.pattern.permute.xlu0 0
  %327 = vperm.xlu0 %326, %v319
  %v328 = vpop.permute.xlu0 %327
  %vm330 = vcmask 523264
  %v332 = vsel %vm330, %v24, 0
  %v335 = vsel %vm330, %v29, 0
  %337 = vmatprep.subr.mxu0 %v31
  %338 = vmatpush1.msra.mxu0 %v30
  %339 = vmatprep.subr.mxu0 %v35
  %340 = vmatpush1.msra.mxu0 %v34
  %341 = vmatprep.subr.mxu0 %v39
  %342 = vmatpush1.msra.mxu0 %v38
  %343 = vmatprep.subr.mxu0 %v43
  %344 = vmatpush1.msra.mxu0 %v42
  %345 = vmatprep.subr.mxu0 %v47
  %346 = vmatpush1.msra.mxu0 %v46
  %347 = vmatprep.subr.mxu0 %v51
  %348 = vmatpush1.msra.mxu0 %v50
  %349 = vmatprep.subr.mxu0 %v55
  %350 = vmatpush1.msra.mxu0 %v54
  %351 = vmatprep.subr.mxu0 %v59
  %352 = vmatpush1.msra.mxu0 %v58
  %353 = vmatprep.subr.mxu0 %v63
  %354 = vmatpush1.msra.mxu0 %v62
  %355 = vmatprep.subr.mxu0 %v67
  %356 = vmatpush1.msra.mxu0 %v66
  %357 = vmatprep.subr.mxu0 %v71
  %358 = vmatpush1.msra.mxu0 %v70
  %359 = vmatprep.subr.mxu0 %v75
  %360 = vmatpush1.msra.mxu0 %v74
  %361 = vmatprep.subr.mxu0 %v79
  %362 = vmatpush1.msra.mxu0 %v78
  %363 = vmatprep.subr.mxu0 %v83
  %364 = vmatpush1.msra.mxu0 %v82
  %365 = vmatprep.subr.mxu0 %v87
  %366 = vmatpush1.msra.mxu0 %v86
  %367 = vmatprep.subr.mxu0 %v91
  %368 = vmatpush1.msra.mxu0 %v90
  %369 = vmatprep.subr.mxu0 %v95
  %370 = vmatpush1.msra.mxu0 %v94
  %371 = vmatprep.subr.mxu0 %v99
  %372 = vmatpush1.msra.mxu0 %v98
  %373 = vmatprep.subr.mxu0 %v103
  %374 = vmatpush1.msra.mxu0 %v102
  %375 = vmatprep.subr.mxu0 %v107
  %376 = vmatpush1.msra.mxu0 %v106
  %377 = vmatprep.subr.mxu0 %v111
  %378 = vmatpush1.msra.mxu0 %v110
  %379 = vmatprep.subr.mxu0 %v115
  %380 = vmatpush1.msra.mxu0 %v114
  %381 = vmatprep.subr.mxu0 %v119
  %382 = vmatpush1.msra.mxu0 %v118
  %383 = vmatprep.subr.mxu0 %v123
  %384 = vmatpush1.msra.mxu0 %v122
  %385 = vmatprep.subr.mxu0 %v127
  %386 = vmatpush1.msra.mxu0 %v126
  %387 = vmatprep.subr.mxu0 %v131
  %388 = vmatpush1.msra.mxu0 %v130
  %389 = vmatprep.subr.mxu0 %v135
  %390 = vmatpush1.msra.mxu0 %v134
  %391 = vmatprep.subr.mxu0 %v139
  %392 = vmatpush1.msra.mxu0 %v138
  %393 = vmatprep.subr.mxu0 %v143
  %394 = vmatpush1.msra.mxu0 %v142
  %395 = vmatprep.subr.mxu0 %v147
  %396 = vmatpush1.msra.mxu0 %v146
  %397 = vmatprep.subr.mxu0 %v151
  %398 = vmatpush1.msra.mxu0 %v150
  %399 = vmatprep.subr.mxu0 %v155
  %400 = vmatpush1.msra.mxu0 %v154
  %401 = vmatprep.mubr.f32.mxu0 %v21
  %402 = vmatmul.mubr.f32.gmra.mrb[0].mxu0 %v20
  %v403 = vpop.f32.mrb[0].mxu0
  %v404 = vadd.f32 %v323, %v403
  %v405 = vpop.f32.mrb[0].mxu0
  %v406 = vadd.f32 %v323, %v405
  %407 = vmatprep.mubr.f32.mxu0 %v26
  %408 = vmatmul.mubr.f32.gmra.mrb[0].mxu0 %v25
  %v409 = vpop.f32.mrb[0].mxu0
  %v410 = vadd.f32 %v328, %v409
  %v411 = vpop.f32.mrb[0].mxu0
  %v412 = vadd.f32 %v328, %v411
  %413 = vdwg.mxu0
  %414 = vmatprep.subr.mxu0 %v159
  %415 = vmatpush1.msra.mxu0 %v158
  %416 = vmatprep.subr.mxu0 %v163
  %417 = vmatpush1.msra.mxu0 %v162
  %418 = vmatprep.subr.mxu0 %v167
  %419 = vmatpush1.msra.mxu0 %v166
  %420 = vmatprep.subr.mxu0 %v171
  %421 = vmatpush1.msra.mxu0 %v170
  %422 = vmatprep.subr.mxu0 %v175
  %423 = vmatpush1.msra.mxu0 %v174
  %424 = vmatprep.subr.mxu0 %v179
  %425 = vmatpush1.msra.mxu0 %v178
  %426 = vmatprep.subr.mxu0 %v183
  %427 = vmatpush1.msra.mxu0 %v182
  %428 = vmatprep.subr.mxu0 %v187
  %429 = vmatpush1.msra.mxu0 %v186
  %430 = vmatprep.subr.mxu0 %v191
  %431 = vmatpush1.msra.mxu0 %v190
  %432 = vmatprep.subr.mxu0 %v195
  %433 = vmatpush1.msra.mxu0 %v194
  %434 = vmatprep.subr.mxu0 %v199
  %435 = vmatpush1.msra.mxu0 %v198
  %436 = vmatprep.subr.mxu0 %v203
  %437 = vmatpush1.msra.mxu0 %v202
  %438 = vmatprep.subr.mxu0 %v207
  %439 = vmatpush1.msra.mxu0 %v206
  %440 = vmatprep.subr.mxu0 %v211
  %441 = vmatpush1.msra.mxu0 %v210
  %442 = vmatprep.subr.mxu0 %v215
  %443 = vmatpush1.msra.mxu0 %v214
  %444 = vmatprep.subr.mxu0 %v219
  %445 = vmatpush1.msra.mxu0 %v218
  %446 = vmatprep.subr.mxu0 %v223
  %447 = vmatpush1.msra.mxu0 %v222
  %448 = vmatprep.subr.mxu0 %v227
  %449 = vmatpush1.msra.mxu0 %v226
  %450 = vmatprep.subr.mxu0 %v231
  %451 = vmatpush1.msra.mxu0 %v230
  %452 = vmatprep.subr.mxu0 %v235
  %453 = vmatpush1.msra.mxu0 %v234
  %454 = vmatprep.subr.mxu0 %v239
  %455 = vmatpush1.msra.mxu0 %v238
  %456 = vmatprep.subr.mxu0 %v243
  %457 = vmatpush1.msra.mxu0 %v242
  %458 = vmatprep.subr.mxu0 %v247
  %459 = vmatpush1.msra.mxu0 %v246
  %460 = vmatprep.subr.mxu0 %v251
  %461 = vmatpush1.msra.mxu0 %v250
  %462 = vmatprep.subr.mxu0 %v255
  %463 = vmatpush1.msra.mxu0 %v254
  %464 = vmatprep.subr.mxu0 %v259
  %465 = vmatpush1.msra.mxu0 %v258
  %466 = vmatprep.subr.mxu0 %v263
  %467 = vmatpush1.msra.mxu0 %v262
  %468 = vmatprep.subr.mxu0 %v267
  %469 = vmatpush1.msra.mxu0 %v266
  %470 = vmatprep.subr.mxu0 %v271
  %471 = vmatpush1.msra.mxu0 %v270
  %472 = vmatprep.subr.mxu0 %v275
  %473 = vmatpush1.msra.mxu0 %v274
  %474 = vmatprep.subr.mxu0 %v279
  %475 = vmatpush1.msra.mxu0 %v278
  %476 = vmatprep.subr.mxu0 %v283
  %477 = vmatpush1.msra.mxu0 %v282
  %478 = vmatprep.mubr.f32.mxu0 %v23
  %479 = vmatmul.mubr.f32.gmra.mrb[0].mxu0 %v22
  %v480 = vpop.f32.mrb[0].mxu0
  %v481 = vadd.f32 %v404, %v480
  %v482 = vpop.f32.mrb[0].mxu0
  %v483 = vadd.f32 %v406, %v482
  %484 = vmatprep.mubr.f32.mxu0 %v28
  %485 = vmatmul.mubr.f32.gmra.mrb[0].mxu0 %v27
  %v486 = vpop.f32.mrb[0].mxu0
  %v487 = vadd.f32 %v410, %v486
  %v488 = vpop.f32.mrb[0].mxu0
  %v489 = vadd.f32 %v412, %v488
  %490 = vdwg.mxu0
  %491 = vmatprep.subr.mxu0 %v287
  %492 = vmatpush1.msra.mxu0 %v286
  %493 = vmatprep.subr.mxu0 %v291
  %494 = vmatpush1.msra.mxu0 %v290
  %495 = vmatprep.subr.mxu0 %v295
  %496 = vmatpush1.msra.mxu0 %v294
  %497 = vmatprep.subr.mxu0 %v299
  %498 = vmatpush1.msra.mxu0 %v298
  %499 = vmatprep.subr.mxu0 %v303
  %500 = vmatpush1.msra.mxu0 %v302
  %501 = vmatprep.subr.mxu0 %v307
  %502 = vmatpush1.msra.mxu0 %v306
  %503 = vmatprep.subr.mxu0 %v311
  %504 = vmatpush1.msra.mxu0 %v310
  %505 = vmatprep.subr.mxu0 %v315
  %506 = vmatpush1.msra.mxu0 %v314
  %507 = vmatprep.subr.mxu0 0.0
  %508 = vmatpush1.msra.mxu0 0.0
  %509 = vmatprep.subr.mxu0 0.0
  %510 = vmatpush1.msra.mxu0 0.0
  %511 = vmatprep.subr.mxu0 0.0
  %512 = vmatpush1.msra.mxu0 0.0
  %513 = vmatprep.subr.mxu0 0.0
  %514 = vmatpush1.msra.mxu0 0.0
  %515 = vmatprep.subr.mxu0 0.0
  %516 = vmatpush1.msra.mxu0 0.0
  %517 = vmatprep.subr.mxu0 0.0
  %518 = vmatpush1.msra.mxu0 0.0
  %519 = vmatprep.subr.mxu0 0.0
  %520 = vmatpush1.msra.mxu0 0.0
  %521 = vmatprep.subr.mxu0 0.0
  %522 = vmatpush1.msra.mxu0 0.0
  %523 = vmatprep.subr.mxu0 0.0
  %524 = vmatpush1.msra.mxu0 0.0
  %525 = vmatprep.subr.mxu0 0.0
  %526 = vmatpush1.msra.mxu0 0.0
  %527 = vmatprep.subr.mxu0 0.0
  %528 = vmatpush1.msra.mxu0 0.0
  %529 = vmatprep.subr.mxu0 0.0
  %530 = vmatpush1.msra.mxu0 0.0
  %531 = vmatprep.subr.mxu0 0.0
  %532 = vmatpush1.msra.mxu0 0.0
  %533 = vmatprep.subr.mxu0 0.0
  %534 = vmatpush1.msra.mxu0 0.0
  %535 = vmatprep.subr.mxu0 0.0
  %536 = vmatpush1.msra.mxu0 0.0
  %537 = vmatprep.subr.mxu0 0.0
  %538 = vmatpush1.msra.mxu0 0.0
  %539 = vmatprep.subr.mxu0 0.0
  %540 = vmatpush1.msra.mxu0 0.0
  %541 = vmatprep.subr.mxu0 0.0
  %542 = vmatpush1.msra.mxu0 0.0
  %543 = vmatprep.subr.mxu0 0.0
  %544 = vmatpush1.msra.mxu0 0.0
  %545 = vmatprep.subr.mxu0 0.0
  %546 = vmatpush1.msra.mxu0 0.0
  %547 = vmatprep.subr.mxu0 0.0
  %548 = vmatpush1.msra.mxu0 0.0
  %549 = vmatprep.subr.mxu0 0.0
  %550 = vmatpush1.msra.mxu0 0.0
  %551 = vmatprep.subr.mxu0 0.0
  %552 = vmatpush1.msra.mxu0 0.0
  %553 = vmatprep.subr.mxu0 0.0
  %554 = vmatpush1.msra.mxu0 0.0
  %555 = vmatprep.mubr.f32.mxu0 0.0
  %556 = vmatmul.mubr.f32.gmra.mrb[0].mxu0 %v332
  %v557 = vpop.f32.mrb[0].mxu0
  %v558 = vadd.f32 %v481, %v557
  %v559 = vpop.f32.mrb[0].mxu0
  %v560 = vadd.f32 %v483, %v559
  %561 = vmatprep.mubr.f32.mxu0 0.0
  %562 = vmatmul.mubr.f32.gmra.mrb[0].mxu0 %v335
  %v563 = vpop.f32.mrb[0].mxu0
  %v564 = vadd.f32 %v487, %v563
  %v565 = vpop.f32.mrb[0].mxu0
  %v566 = vadd.f32 %v489, %v565
  %567 = vdwg.mxu0
  %568 = vmatprep.subr.mxu0 %v33
  %569 = vmatpush1.msra.mxu0 %v32
  %570 = vmatprep.subr.mxu0 %v37
  %571 = vmatpush1.msra.mxu0 %v36
  %572 = vmatprep.subr.mxu0 %v41
  %573 = vmatpush1.msra.mxu0 %v40
  %574 = vmatprep.subr.mxu0 %v45
  %575 = vmatpush1.msra.mxu0 %v44
  %576 = vmatprep.subr.mxu0 %v49
  %577 = vmatpush1.msra.mxu0 %v48
  %578 = vmatprep.subr.mxu0 %v53
  %579 = vmatpush1.msra.mxu0 %v52
  %580 = vmatprep.subr.mxu0 %v57
  %581 = vmatpush1.msra.mxu0 %v56
  %582 = vmatprep.subr.mxu0 %v61
  %583 = vmatpush1.msra.mxu0 %v60
  %584 = vmatprep.subr.mxu0 %v65
  %585 = vmatpush1.msra.mxu0 %v64
  %586 = vmatprep.subr.mxu0 %v69
  %587 = vmatpush1.msra.mxu0 %v68
  %588 = vmatprep.subr.mxu0 %v73
  %589 = vmatpush1.msra.mxu0 %v72
  %590 = vmatprep.subr.mxu0 %v77
  %591 = vmatpush1.msra.mxu0 %v76
  %592 = vmatprep.subr.mxu0 %v81
  %593 = vmatpush1.msra.mxu0 %v80
  %594 = vmatprep.subr.mxu0 %v85
  %595 = vmatpush1.msra.mxu0 %v84
  %596 = vmatprep.subr.mxu0 %v89
  %597 = vmatpush1.msra.mxu0 %v88
  %598 = vmatprep.subr.mxu0 %v93
  %599 = vmatpush1.msra.mxu0 %v92
  %600 = vmatprep.subr.mxu0 %v97
  %601 = vmatpush1.msra.mxu0 %v96
  %602 = vmatprep.subr.mxu0 %v101
  %603 = vmatpush1.msra.mxu0 %v100
  %604 = vmatprep.subr.mxu0 %v105
  %605 = vmatpush1.msra.mxu0 %v104
  %606 = vmatprep.subr.mxu0 %v109
  %607 = vmatpush1.msra.mxu0 %v108
  %608 = vmatprep.subr.mxu0 %v113
  %609 = vmatpush1.msra.mxu0 %v112
  %610 = vmatprep.subr.mxu0 %v117
  %611 = vmatpush1.msra.mxu0 %v116
  %612 = vmatprep.subr.mxu0 %v121
  %613 = vmatpush1.msra.mxu0 %v120
  %614 = vmatprep.subr.mxu0 %v125
  %615 = vmatpush1.msra.mxu0 %v124
  %616 = vmatprep.subr.mxu0 %v129
  %617 = vmatpush1.msra.mxu0 %v128
  %618 = vmatprep.subr.mxu0 %v133
  %619 = vmatpush1.msra.mxu0 %v132
  %620 = vmatprep.subr.mxu0 %v137
  %621 = vmatpush1.msra.mxu0 %v136
  %622 = vmatprep.subr.mxu0 %v141
  %623 = vmatpush1.msra.mxu0 %v140
  %624 = vmatprep.subr.mxu0 %v145
  %625 = vmatpush1.msra.mxu0 %v144
  %626 = vmatprep.subr.mxu0 %v149
  %627 = vmatpush1.msra.mxu0 %v148
  %628 = vmatprep.subr.mxu0 %v153
  %629 = vmatpush1.msra.mxu0 %v152
  %630 = vmatprep.subr.mxu0 %v157
  %631 = vmatpush1.msra.mxu0 %v156
  %632 = vmatprep.mubr.f32.mxu0 %v21
  %633 = vmatmul.mubr.f32.gmra.mrb[0].mxu0 %v20
  %v634 = vpop.f32.mrb[0].mxu0
  %v635 = vadd.f32 %v323, %v634
  %v636 = vpop.f32.mrb[0].mxu0
  %v637 = vadd.f32 %v323, %v636
  %638 = vmatprep.mubr.f32.mxu0 %v26
  %639 = vmatmul.mubr.f32.gmra.mrb[0].mxu0 %v25
  %v640 = vpop.f32.mrb[0].mxu0
  %v641 = vadd.f32 %v328, %v640
  %v642 = vpop.f32.mrb[0].mxu0
  %v643 = vadd.f32 %v328, %v642
  %644 = vdwg.mxu0
  %645 = vmatprep.subr.mxu0 %v161
  %646 = vmatpush1.msra.mxu0 %v160
  %647 = vmatprep.subr.mxu0 %v165
  %648 = vmatpush1.msra.mxu0 %v164
  %649 = vmatprep.subr.mxu0 %v169
  %650 = vmatpush1.msra.mxu0 %v168
  %651 = vmatprep.subr.mxu0 %v173
  %652 = vmatpush1.msra.mxu0 %v172
  %653 = vmatprep.subr.mxu0 %v177
  %654 = vmatpush1.msra.mxu0 %v176
  %655 = vmatprep.subr.mxu0 %v181
  %656 = vmatpush1.msra.mxu0 %v180
  %657 = vmatprep.subr.mxu0 %v185
  %658 = vmatpush1.msra.mxu0 %v184
  %659 = vmatprep.subr.mxu0 %v189
  %660 = vmatpush1.msra.mxu0 %v188
  %661 = vmatprep.subr.mxu0 %v193
  %662 = vmatpush1.msra.mxu0 %v192
  %663 = vmatprep.subr.mxu0 %v197
  %664 = vmatpush1.msra.mxu0 %v196
  %665 = vmatprep.subr.mxu0 %v201
  %666 = vmatpush1.msra.mxu0 %v200
  %667 = vmatprep.subr.mxu0 %v205
  %668 = vmatpush1.msra.mxu0 %v204
  %669 = vmatprep.subr.mxu0 %v209
  %670 = vmatpush1.msra.mxu0 %v208
  %671 = vmatprep.subr.mxu0 %v213
  %672 = vmatpush1.msra.mxu0 %v212
  %673 = vmatprep.subr.mxu0 %v217
  %674 = vmatpush1.msra.mxu0 %v216
  %675 = vmatprep.subr.mxu0 %v221
  %676 = vmatpush1.msra.mxu0 %v220
  %677 = vmatprep.subr.mxu0 %v225
  %678 = vmatpush1.msra.mxu0 %v224
  %679 = vmatprep.subr.mxu0 %v229
  %680 = vmatpush1.msra.mxu0 %v228
  %681 = vmatprep.subr.mxu0 %v233
  %682 = vmatpush1.msra.mxu0 %v232
  %683 = vmatprep.subr.mxu0 %v237
  %684 = vmatpush1.msra.mxu0 %v236
  %685 = vmatprep.subr.mxu0 %v241
  %686 = vmatpush1.msra.mxu0 %v240
  %687 = vmatprep.subr.mxu0 %v245
  %688 = vmatpush1.msra.mxu0 %v244
  %689 = vmatprep.subr.mxu0 %v249
  %690 = vmatpush1.msra.mxu0 %v248
  %691 = vmatprep.subr.mxu0 %v253
  %692 = vmatpush1.msra.mxu0 %v252
  %693 = vmatprep.subr.mxu0 %v257
  %694 = vmatpush1.msra.mxu0 %v256
  %695 = vmatprep.subr.mxu0 %v261
  %696 = vmatpush1.msra.mxu0 %v260
  %697 = vmatprep.subr.mxu0 %v265
  %698 = vmatpush1.msra.mxu0 %v264
  %699 = vmatprep.subr.mxu0 %v269
  %700 = vmatpush1.msra.mxu0 %v268
  %701 = vmatprep.subr.mxu0 %v273
  %702 = vmatpush1.msra.mxu0 %v272
  %703 = vmatprep.subr.mxu0 %v277
  %704 = vmatpush1.msra.mxu0 %v276
  %705 = vmatprep.subr.mxu0 %v281
  %706 = vmatpush1.msra.mxu0 %v280
  %707 = vmatprep.subr.mxu0 %v285
  %708 = vmatpush1.msra.mxu0 %v284
  %709 = vmatprep.mubr.f32.mxu0 %v23
  %710 = vmatmul.mubr.f32.gmra.mrb[0].mxu0 %v22
  %v711 = vpop.f32.mrb[0].mxu0
  %v712 = vadd.f32 %v635, %v711
  %v713 = vpop.f32.mrb[0].mxu0
  %v714 = vadd.f32 %v637, %v713
  %715 = vmatprep.mubr.f32.mxu0 %v28
  %716 = vmatmul.mubr.f32.gmra.mrb[0].mxu0 %v27
  %v717 = vpop.f32.mrb[0].mxu0
  %v718 = vadd.f32 %v641, %v717
  %v719 = vpop.f32.mrb[0].mxu0
  %v720 = vadd.f32 %v643, %v719
  %721 = vdwg.mxu0
  %722 = vmatprep.subr.mxu0 %v289
  %723 = vmatpush1.msra.mxu0 %v288
  %724 = vmatprep.subr.mxu0 %v293
  %725 = vmatpush1.msra.mxu0 %v292
  %726 = vmatprep.subr.mxu0 %v297
  %727 = vmatpush1.msra.mxu0 %v296
  %728 = vmatprep.subr.mxu0 %v301
  %729 = vmatpush1.msra.mxu0 %v300
  %730 = vmatprep.subr.mxu0 %v305
  %731 = vmatpush1.msra.mxu0 %v304
  %732 = vmatprep.subr.mxu0 %v309
  %733 = vmatpush1.msra.mxu0 %v308
  %734 = vmatprep.subr.mxu0 %v313
  %735 = vmatpush1.msra.mxu0 %v312
  %736 = vmatprep.subr.mxu0 %v317
  %737 = vmatpush1.msra.mxu0 %v316
  %738 = vmatprep.subr.mxu0 0.0
  %739 = vmatpush1.msra.mxu0 0.0
  %740 = vmatprep.subr.mxu0 0.0
  %741 = vmatpush1.msra.mxu0 0.0
  %742 = vmatprep.subr.mxu0 0.0
  %743 = vmatpush1.msra.mxu0 0.0
  %744 = vmatprep.subr.mxu0 0.0
  %745 = vmatpush1.msra.mxu0 0.0
  %746 = vmatprep.subr.mxu0 0.0
  %747 = vmatpush1.msra.mxu0 0.0
  %748 = vmatprep.subr.mxu0 0.0
  %749 = vmatpush1.msra.mxu0 0.0
  %750 = vmatprep.subr.mxu0 0.0
  %751 = vmatpush1.msra.mxu0 0.0
  %752 = vmatprep.subr.mxu0 0.0
  %753 = vmatpush1.msra.mxu0 0.0
  %754 = vmatprep.subr.mxu0 0.0
  %755 = vmatpush1.msra.mxu0 0.0
  %756 = vmatprep.subr.mxu0 0.0
  %757 = vmatpush1.msra.mxu0 0.0
  %758 = vmatprep.subr.mxu0 0.0
  %759 = vmatpush1.msra.mxu0 0.0
  %760 = vmatprep.subr.mxu0 0.0
  %761 = vmatpush1.msra.mxu0 0.0
  %762 = vmatprep.subr.mxu0 0.0
  %763 = vmatpush1.msra.mxu0 0.0
  %764 = vmatprep.subr.mxu0 0.0
  %765 = vmatpush1.msra.mxu0 0.0
  %766 = vmatprep.subr.mxu0 0.0
  %767 = vmatpush1.msra.mxu0 0.0
  %768 = vmatprep.subr.mxu0 0.0
  %769 = vmatpush1.msra.mxu0 0.0
  %770 = vmatprep.subr.mxu0 0.0
  %771 = vmatpush1.msra.mxu0 0.0
  %772 = vmatprep.subr.mxu0 0.0
  %773 = vmatpush1.msra.mxu0 0.0
  %774 = vmatprep.subr.mxu0 0.0
  %775 = vmatpush1.msra.mxu0 0.0
  %776 = vmatprep.subr.mxu0 0.0
  %777 = vmatpush1.msra.mxu0 0.0
  %778 = vmatprep.subr.mxu0 0.0
  %779 = vmatpush1.msra.mxu0 0.0
  %780 = vmatprep.subr.mxu0 0.0
  %781 = vmatpush1.msra.mxu0 0.0
  %782 = vmatprep.subr.mxu0 0.0
  %783 = vmatpush1.msra.mxu0 0.0
  %784 = vmatprep.subr.mxu0 0.0
  %785 = vmatpush1.msra.mxu0 0.0
  %786 = vmatprep.mubr.f32.mxu0 0.0
  %787 = vmatmul.mubr.f32.gmra.mrb[0].mxu0 %v332
  %v788 = vpop.f32.mrb[0].mxu0
  %v789 = vadd.f32 %v712, %v788
  %v790 = vpop.f32.mrb[0].mxu0
  %v791 = vadd.f32 %v714, %v790
  %792 = vmatprep.mubr.f32.mxu0 0.0
  %793 = vmatmul.mubr.f32.gmra.mrb[0].mxu0 %v335
  %v794 = vpop.f32.mrb[0].mxu0
  %v795 = vadd.f32 %v718, %v794
  %v796 = vpop.f32.mrb[0].mxu0
  %v797 = vadd.f32 %v720, %v796
  %798 = vdwg.mxu0
  %v799 = vmax.f32 %v558, 0.0
  %v800 = vmax.f32 %v560, 0.0
  %v801 = vmax.f32 %v789, 0.0
  %v802 = vmax.f32 %v791, 0.0
  %v803 = vmax.f32 %v564, 0.0
  %v804 = vmax.f32 %v566, 0.0
  %v805 = vmax.f32 %v795, 0.0
  %v806 = vmax.f32 %v797, 0.0
  %v807 = vld [vmem:[%s3] sm:$0xff]
  %v808 = vld [vmem:[%s3 + $0x8] sm:$0xff]
  %v809 = vld [vmem:[%s4] sm:$0xff]
  %v810 = vld [vmem:[%s4 + $0x8] sm:$0xff]
  %812 = vset.pattern.permute.xlu0 0
  %813 = vperm.xlu0 %812, %v809
  %v814 = vpop.permute.xlu0 %813
  %817 = vset.pattern.permute.xlu0 0
  %818 = vperm.xlu0 %817, %v810
  %v819 = vpop.permute.xlu0 %818
  %vm821 = vcmask 130048
  %v823 = vsel %vm821, %v807, 0
  %v826 = vsel %vm821, %v808, 0
  %828 = vmatprep.subr.mxu0 %v800
  %829 = vmatpush1.msra.mxu0 %v799
  %830 = vmatprep.subr.mxu0 %v804
  %831 = vmatpush1.msra.mxu0 %v803
  %832 = vmatprep.subr.mxu0 0.0
  %833 = vmatpush1.msra.mxu0 0.0
  %834 = vmatprep.subr.mxu0 0.0
  %835 = vmatpush1.msra.mxu0 0.0
  %836 = vmatprep.subr.mxu0 0.0
  %837 = vmatpush1.msra.mxu0 0.0
  %838 = vmatprep.subr.mxu0 0.0
  %839 = vmatpush1.msra.mxu0 0.0
  %840 = vmatprep.subr.mxu0 0.0
  %841 = vmatpush1.msra.mxu0 0.0
  %842 = vmatprep.subr.mxu0 0.0
  %843 = vmatpush1.msra.mxu0 0.0
  %844 = vmatprep.subr.mxu0 0.0
  %845 = vmatpush1.msra.mxu0 0.0
  %846 = vmatprep.subr.mxu0 0.0
  %847 = vmatpush1.msra.mxu0 0.0
  %848 = vmatprep.subr.mxu0 0.0
  %849 = vmatpush1.msra.mxu0 0.0
  %850 = vmatprep.subr.mxu0 0.0
  %851 = vmatpush1.msra.mxu0 0.0
  %852 = vmatprep.subr.mxu0 0.0
  %853 = vmatpush1.msra.mxu0 0.0
  %854 = vmatprep.subr.mxu0 0.0
  %855 = vmatpush1.msra.mxu0 0.0
  %856 = vmatprep.subr.mxu0 0.0
  %857 = vmatpush1.msra.mxu0 0.0
  %858 = vmatprep.subr.mxu0 0.0
  %859 = vmatpush1.msra.mxu0 0.0
  %860 = vmatprep.subr.mxu0 0.0
  %861 = vmatpush1.msra.mxu0 0.0
  %862 = vmatprep.subr.mxu0 0.0
  %863 = vmatpush1.msra.mxu0 0.0
  %864 = vmatprep.subr.mxu0 0.0
  %865 = vmatpush1.msra.mxu0 0.0
  %866 = vmatprep.subr.mxu0 0.0
  %867 = vmatpush1.msra.mxu0 0.0
  %868 = vmatprep.subr.mxu0 0.0
  %869 = vmatpush1.msra.mxu0 0.0
  %870 = vmatprep.subr.mxu0 0.0
  %871 = vmatpush1.msra.mxu0 0.0
  %872 = vmatprep.subr.mxu0 0.0
  %873 = vmatpush1.msra.mxu0 0.0
  %874 = vmatprep.subr.mxu0 0.0
  %875 = vmatpush1.msra.mxu0 0.0
  %876 = vmatprep.subr.mxu0 0.0
  %877 = vmatpush1.msra.mxu0 0.0
  %878 = vmatprep.subr.mxu0 0.0
  %879 = vmatpush1.msra.mxu0 0.0
  %880 = vmatprep.subr.mxu0 0.0
  %881 = vmatpush1.msra.mxu0 0.0
  %882 = vmatprep.subr.mxu0 0.0
  %883 = vmatpush1.msra.mxu0 0.0
  %884 = vmatprep.subr.mxu0 0.0
  %885 = vmatpush1.msra.mxu0 0.0
  %886 = vmatprep.subr.mxu0 0.0
  %887 = vmatpush1.msra.mxu0 0.0
  %888 = vmatprep.subr.mxu0 0.0
  %889 = vmatpush1.msra.mxu0 0.0
  %890 = vmatprep.subr.mxu0 0.0
  %891 = vmatpush1.msra.mxu0 0.0
  %892 = vmatprep.mubr.f32.mxu0 0.0
  %893 = vmatmul.mubr.f32.gmra.mrb[0].mxu0 %v823
  %v894 = vpop.f32.mrb[0].mxu0
  %v895 = vadd.f32 %v814, %v894
  %v896 = vpop.f32.mrb[0].mxu0
  %v897 = vadd.f32 %v814, %v896
  %898 = vmatprep.mubr.f32.mxu0 0.0
  %899 = vmatmul.mubr.f32.gmra.mrb[0].mxu0 %v826
  %v900 = vpop.f32.mrb[0].mxu0
  %v901 = vadd.f32 %v819, %v900
  %v902 = vpop.f32.mrb[0].mxu0
  %v903 = vadd.f32 %v819, %v902
  %904 = vdwg.mxu0
  %905 = vmatprep.subr.mxu0 %v802
  %906 = vmatpush1.msra.mxu0 %v801
  %907 = vmatprep.subr.mxu0 %v806
  %908 = vmatpush1.msra.mxu0 %v805
  %909 = vmatprep.subr.mxu0 0.0
  %910 = vmatpush1.msra.mxu0 0.0
  %911 = vmatprep.subr.mxu0 0.0
  %912 = vmatpush1.msra.mxu0 0.0
  %913 = vmatprep.subr.mxu0 0.0
  %914 = vmatpush1.msra.mxu0 0.0
  %915 = vmatprep.subr.mxu0 0.0
  %916 = vmatpush1.msra.mxu0 0.0
  %917 = vmatprep.subr.mxu0 0.0
  %918 = vmatpush1.msra.mxu0 0.0
  %919 = vmatprep.subr.mxu0 0.0
  %920 = vmatpush1.msra.mxu0 0.0
  %921 = vmatprep.subr.mxu0 0.0
  %922 = vmatpush1.msra.mxu0 0.0
  %923 = vmatprep.subr.mxu0 0.0
  %924 = vmatpush1.msra.mxu0 0.0
  %925 = vmatprep.subr.mxu0 0.0
  %926 = vmatpush1.msra.mxu0 0.0
  %927 = vmatprep.subr.mxu0 0.0
  %928 = vmatpush1.msra.mxu0 0.0
  %929 = vmatprep.subr.mxu0 0.0
  %930 = vmatpush1.msra.mxu0 0.0
  %931 = vmatprep.subr.mxu0 0.0
  %932 = vmatpush1.msra.mxu0 0.0
  %933 = vmatprep.subr.mxu0 0.0
  %934 = vmatpush1.msra.mxu0 0.0
  %935 = vmatprep.subr.mxu0 0.0
  %936 = vmatpush1.msra.mxu0 0.0
  %937 = vmatprep.subr.mxu0 0.0
  %938 = vmatpush1.msra.mxu0 0.0
  %939 = vmatprep.subr.mxu0 0.0
  %940 = vmatpush1.msra.mxu0 0.0
  %941 = vmatprep.subr.mxu0 0.0
  %942 = vmatpush1.msra.mxu0 0.0
  %943 = vmatprep.subr.mxu0 0.0
  %944 = vmatpush1.msra.mxu0 0.0
  %945 = vmatprep.subr.mxu0 0.0
  %946 = vmatpush1.msra.mxu0 0.0
  %947 = vmatprep.subr.mxu0 0.0
  %948 = vmatpush1.msra.mxu0 0.0
  %949 = vmatprep.subr.mxu0 0.0
  %950 = vmatpush1.msra.mxu0 0.0
  %951 = vmatprep.subr.mxu0 0.0
  %952 = vmatpush1.msra.mxu0 0.0
  %953 = vmatprep.subr.mxu0 0.0
  %954 = vmatpush1.msra.mxu0 0.0
  %955 = vmatprep.subr.mxu0 0.0
  %956 = vmatpush1.msra.mxu0 0.0
  %957 = vmatprep.subr.mxu0 0.0
  %958 = vmatpush1.msra.mxu0 0.0
  %959 = vmatprep.subr.mxu0 0.0
  %960 = vmatpush1.msra.mxu0 0.0
  %961 = vmatprep.subr.mxu0 0.0
  %962 = vmatpush1.msra.mxu0 0.0
  %963 = vmatprep.subr.mxu0 0.0
  %964 = vmatpush1.msra.mxu0 0.0
  %965 = vmatprep.subr.mxu0 0.0
  %966 = vmatpush1.msra.mxu0 0.0
  %967 = vmatprep.subr.mxu0 0.0
  %968 = vmatpush1.msra.mxu0 0.0
  %969 = vmatprep.mubr.f32.mxu0 0.0
  %970 = vmatmul.mubr.f32.gmra.mrb[0].mxu0 %v823
  %v971 = vpop.f32.mrb[0].mxu0
  %v972 = vadd.f32 %v814, %v971
  %v973 = vpop.f32.mrb[0].mxu0
  %v974 = vadd.f32 %v814, %v973
  %975 = vmatprep.mubr.f32.mxu0 0.0
  %976 = vmatmul.mubr.f32.gmra.mrb[0].mxu0 %v826
  %v977 = vpop.f32.mrb[0].mxu0
  %v978 = vadd.f32 %v819, %v977
  %v979 = vpop.f32.mrb[0].mxu0
  %v980 = vadd.f32 %v819, %v979
  %981 = vdwg.mxu0
  %v982 = vmax.f32 %v895, 0.0
  %v983 = vmax.f32 %v897, 0.0
  %v984 = vmax.f32 %v972, 0.0
  %v985 = vmax.f32 %v974, 0.0
  %v986 = vmax.f32 %v901, 0.0
  %v987 = vmax.f32 %v903, 0.0
  %v988 = vmax.f32 %v978, 0.0
  %v989 = vmax.f32 %v980, 0.0
  %990 = vst [vmem:[%s5] sm:$0xff] %v982
  %991 = vst [vmem:[%s5 + $0x8] sm:$0xff] %v983
  %992 = vst [vmem:[%s5 + $0x10] sm:$0xff] %v984
  %vm993 = vcmask 64512
  %994 = vst.msk [vmem:[%s5 + $0x18] sm:$0xff] %vm993, %v985
  %995 = vst [vmem:[%s5 + $0x20] sm:$0xff] %v986
  %996 = vst [vmem:[%s5 + $0x28] sm:$0xff] %v987
  %997 = vst [vmem:[%s5 + $0x30] sm:$0xff] %v988
  %998 = vst.msk [vmem:[%s5 + $0x38] sm:$0xff] %vm993, %v989
  // Predicated region
  $region22: #{decoder_forward.4} parent=0 // pred_check
    _
  $region23: #{decoder_forward.4} parent=0 // pred_check_branch
    %1000 = sbr.rel (0) target = $region25
  $region24: #{decoder_forward.4} parent=0 // pred_region
    _
  $region25: #{decoder_forward.4} parent=0 // pred_fallthru
    _
  // Predicated region
  $region26: #{decoder_forward.4} parent=0 // pred_check
    _
  $region27: #{decoder_forward.4} parent=0 // pred_check_branch
    %1002 = sbr.rel (0) target = $region29
  $region28: #{decoder_forward.4} parent=0 // pred_region
    _
  $region29: #{decoder_forward.4} parent=0 // pred_fallthru
    _

// kernel: decoder_forward.3
$region0: #{decoder_forward.3}
  #allocation0 [shape = 'u32[]', space=smem, size = 0x4, offset = 0x4, fixed_abs, tag = 'smem constant byte address 0x4 - core index']
  #allocation1 [shape = 'u32[144,128]{1,0:T(1,128)}', space=vmem, size = 0x12000, scoped, tag = 'internal scratch']
  %s0 = inlined_call_operand.vmem [shape: f32[2,1], index: 0, kind: input, shape index: {}]
  %s1 = inlined_call_operand.hbm [shape: f32[1,32], index: 1, kind: input, shape index: {}]
  %s2 = inlined_call_operand.hbm [shape: f32[1,32], index: 2, kind: input, shape index: {}]
  %s3 = inlined_call_operand.hbm [shape: f32[32,1024], index: 3, kind: input, shape index: {}]
  %s4 = inlined_call_operand.hbm [shape: f32[1,1024], index: 4, kind: input, shape index: {}]
  %s5 = inlined_call_operand.hbm [shape: s8[1024,12544], index: 5, kind: input, shape index: {}]
  %s6 = inlined_call_operand.hbm [shape: f32[1,12544], index: 6, kind: input, shape index: {}]
  %s7 = inlined_call_operand.hbm [shape: f32[1,12544], index: 7, kind: input, shape index: {}]
  %s8 = inlined_call_operand.hbm [shape: f32[256,256], index: 8, kind: input, shape index: {}]
  %s9 = inlined_call_operand.hbm [shape: f32[1,256], index: 9, kind: input, shape index: {}]
  %s10 = inlined_call_operand.vmem [shape: f32[2,12544], index: 10, kind: output, shape index: {}]
  %s11 = sld [smem:[#allocation0]]
  $region109: #{decoder_forward.3} parent=0
    _
  %s13 = ssub.s32 1, %s11
  %s14 = scalar_select 0, %s13, %s11
  $region1: #{decoder_forward.3} parent=0
    #allocation2 [shape = 'u8[512]{0}', space=vmem, size = 0x400, scoped, tag = 'input window, operand 1, single buffered']
    #allocation3 [shape = 's32[2]{0}', space=sflag, size = 0x8, scoped, tag = 'scoped memory for decoder_forward.3']
    #allocation4 [shape = 'u8[512]{0}', space=vmem, size = 0x400, scoped, tag = 'input window, operand 2, single buffered']
    #allocation5 [shape = 's32[1]{0}', space=sflag, size = 0x4, scoped, tag = 'scoped memory for decoder_forward.3']
    #allocation6 [shape = 'u8[131072]{0}', space=vmem, size = 0x20000, scoped, tag = 'input window, operand 3, single buffered']
    #allocation7 [shape = 'u8[4096]{0}', space=vmem, size = 0x1000, scoped, tag = 'input window, operand 4, single buffered']
    #allocation8 [shape = 's32[1]{0}', space=sflag, size = 0x4, scoped, tag = 'scoped memory for decoder_forward.3']
    #allocation9 [shape = 'u8[3670016]{0}', space=vmem, size = 0x380000, scoped, tag = 'input window, operand 5']
    #allocation10 [shape = 'u8[14336]{0}', space=vmem, size = 0x3800, scoped, tag = 'input window, operand 6']
    #allocation11 [shape = 'u8[14336]{0}', space=vmem, size = 0x3800, scoped, tag = 'input window, operand 7']
    #allocation12 [shape = 'u8[262144]{0}', space=vmem, size = 0x40000, scoped, tag = 'input window, operand 8, single buffered']
    #allocation13 [shape = 'u8[1024]{0}', space=vmem, size = 0x400, scoped, tag = 'input window, operand 9, single buffered']
    %15 = vsyncpa [#allocation3], 0
    %16 = vsyncpa [#allocation5], 0
    %17 = vsyncpa [#allocation8], 0
    loop: start=0, step=1, limit=9
    $region2: #{decoder_forward.3} parent=1 // loop_pre_header
      _
    $region3: #{decoder_forward.3} parent=1 // loop_header
      %s19 = sphi 0, %s23
      %p20 = scmp.ge.s32.totalorder %s19, 9
      %s27 = sphi 0, %s27
      %s29 = sphi 0, %s27
      %s30 = sphi 0, %s29
      %s44 = sphi 0, %s30
      %s48 = sphi 0, %s48
      %s50 = sphi 0, %s48
      %s51 = sphi 0, %s50
      %s65 = sphi 0, %s51
      %s69 = sphi 0, %s69
      %s71 = sphi 0, %s69
      %s72 = sphi 0, %s71
      %s86 = sphi 0, %s72
      %s90 = sphi 0, %s90
      %s92 = sphi 0, %s90
      %s93 = sphi 0, %s92
      %s107 = sphi 0, %s93
      %s111 = sphi 0, %s111
      %s113 = sphi 0, %s111
      %s114 = sphi 0, %s113
      %s128 = sphi 0, %s114
      %s134 = sphi 0, %s136
      %s137 = sphi 0, %s134
      %s138 = sphi 0, %s137
      %s154 = sphi 0, %s138
      %s160 = sphi 0, %s162
      %s163 = sphi 0, %s160
      %s164 = sphi 0, %s163
      %s180 = sphi 0, %s164
      %s186 = sphi 0, %s188
      %s189 = sphi 0, %s186
      %s190 = sphi 0, %s189
      %s206 = sphi 0, %s190
      %s210 = sphi 0, %s210
      %s212 = sphi 0, %s210
      %s213 = sphi 0, %s212
      %s227 = sphi 0, %s213
      %s231 = sphi 0, %s231
      %s233 = sphi 0, %s231
      %s234 = sphi 0, %s233
      %s248 = sphi 0, %s234
      %s254 = sphi 0, %s256
      %s257 = sphi 0, %s254
      %s258 = sphi 0, %s257
      %s274 = sphi 0, %s258
    $region4: #{decoder_forward.3} parent=1 // loop_header_branch
      %22 = sbr.rel (%p20) target = $region8
    $region5: #{decoder_forward.3} parent=1 // loop_body
      %s24 = ssub.s32 %s19, 1
      %s25 = ssub.s32 %s19, 2
      %s26 = sadd.s32 %s19, 1
      %s28 = sadd.s32 %s27, 1
      %p31 = scmp.eq.s32.totalorder %s19, 6
      %p32 = scmp.ne.s32.totalorder %s27, %s29
      %p33 = scmp.eq.s32.totalorder %s19, 0
      %p34 = por %p32, %p33
      %p35 = scmp.ne.s32.totalorder %s27, %s29
      %p36 = scmp.eq.s32.totalorder %s24, 6
      %p37 = por %p35, %p36
      %p38 = scmp.ne.s32.totalorder %s29, %s30
      %p39 = scmp.eq.s32.totalorder %s24, 0
      %p40 = por %p38, %p39
      %p41 = scmp.ne.s32.totalorder %s29, %s30
      %p42 = scmp.eq.s32.totalorder %s25, 6
      %p43 = por %p41, %p42
      %p45 = scmp.ne.s32.totalorder %s30, %s44
      %p46 = scmp.eq.s32.totalorder %s25, 0
      %p47 = por %p45, %p46
      %s49 = sadd.s32 %s48, 1
      %p52 = scmp.eq.s32.totalorder %s19, 6
      %p53 = scmp.ne.s32.totalorder %s48, %s50
      %p54 = scmp.eq.s32.totalorder %s19, 0
      %p55 = por %p53, %p54
      %p56 = scmp.ne.s32.totalorder %s48, %s50
      %p57 = scmp.eq.s32.totalorder %s24, 6
      %p58 = por %p56, %p57
      %p59 = scmp.ne.s32.totalorder %s50, %s51
      %p60 = scmp.eq.s32.totalorder %s24, 0
      %p61 = por %p59, %p60
      %p62 = scmp.ne.s32.totalorder %s50, %s51
      %p63 = scmp.eq.s32.totalorder %s25, 6
      %p64 = por %p62, %p63
      %p66 = scmp.ne.s32.totalorder %s51, %s65
      %p67 = scmp.eq.s32.totalorder %s25, 0
      %p68 = por %p66, %p67
      %s70 = sadd.s32 %s69, 1
      %p73 = scmp.eq.s32.totalorder %s19, 6
      %p74 = scmp.ne.s32.totalorder %s69, %s71
      %p75 = scmp.eq.s32.totalorder %s19, 0
      %p76 = por %p74, %p75
      %p77 = scmp.ne.s32.totalorder %s69, %s71
      %p78 = scmp.eq.s32.totalorder %s24, 6
      %p79 = por %p77, %p78
      %p80 = scmp.ne.s32.totalorder %s71, %s72
      %p81 = scmp.eq.s32.totalorder %s24, 0
      %p82 = por %p80, %p81
      %p83 = scmp.ne.s32.totalorder %s71, %s72
      %p84 = scmp.eq.s32.totalorder %s25, 6
      %p85 = por %p83, %p84
      %p87 = scmp.ne.s32.totalorder %s72, %s86
      %p88 = scmp.eq.s32.totalorder %s25, 0
      %p89 = por %p87, %p88
      %s91 = sadd.s32 %s90, 1
      %p94 = scmp.eq.s32.totalorder %s19, 6
      %p95 = scmp.ne.s32.totalorder %s90, %s92
      %p96 = scmp.eq.s32.totalorder %s19, 0
      %p97 = por %p95, %p96
      %p98 = scmp.ne.s32.totalorder %s90, %s92
      %p99 = scmp.eq.s32.totalorder %s24, 6
      %p100 = por %p98, %p99
      %p101 = scmp.ne.s32.totalorder %s92, %s93
      %p102 = scmp.eq.s32.totalorder %s24, 0
      %p103 = por %p101, %p102
      %p104 = scmp.ne.s32.totalorder %s92, %s93
      %p105 = scmp.eq.s32.totalorder %s25, 6
      %p106 = por %p104, %p105
      %p108 = scmp.ne.s32.totalorder %s93, %s107
      %p109 = scmp.eq.s32.totalorder %s25, 0
      %p110 = por %p108, %p109
      %s112 = sadd.s32 %s111, 1
      %p115 = scmp.eq.s32.totalorder %s19, 6
      %p116 = scmp.ne.s32.totalorder %s111, %s113
      %p117 = scmp.eq.s32.totalorder %s19, 0
      %p118 = por %p116, %p117
      %p119 = scmp.ne.s32.totalorder %s111, %s113
      %p120 = scmp.eq.s32.totalorder %s24, 6
      %p121 = por %p119, %p120
      %p122 = scmp.ne.s32.totalorder %s113, %s114
      %p123 = scmp.eq.s32.totalorder %s24, 0
      %p124 = por %p122, %p123
      %p125 = scmp.ne.s32.totalorder %s113, %s114
      %p126 = scmp.eq.s32.totalorder %s25, 6
      %p127 = por %p125, %p126
      %p129 = scmp.ne.s32.totalorder %s114, %s128
      %p130 = scmp.eq.s32.totalorder %s25, 0
      %p131 = por %p129, %p130
      %s132 = ssub.s32 %s19, %s26
      %p133 = scmp.eq.s32.totalorder %s132, 0
      %s135 = sadd.s32 %s134, 1
      %s136 = scalar_select %p133, %s134, %s135
      %p139 = pneg %p133
      %p140 = scmp.eq.s32.totalorder %s19, 6
      %p141 = por %p139, %p140
      %p142 = scmp.ne.s32.totalorder %s134, %s137
      %p143 = scmp.eq.s32.totalorder %s19, 0
      %p144 = por %p142, %p143
      %p145 = scmp.ne.s32.totalorder %s134, %s137
      %p146 = scmp.eq.s32.totalorder %s24, 6
      %p147 = por %p145, %p146
      %p148 = scmp.ne.s32.totalorder %s137, %s138
      %p149 = scmp.eq.s32.totalorder %s24, 0
      %p150 = por %p148, %p149
      %p151 = scmp.ne.s32.totalorder %s137, %s138
      %p152 = scmp.eq.s32.totalorder %s25, 6
      %p153 = por %p151, %p152
      %p155 = scmp.ne.s32.totalorder %s138, %s154
      %p156 = scmp.eq.s32.totalorder %s25, 0
      %p157 = por %p155, %p156
      %s158 = ssub.s32 %s19, %s26
      %p159 = scmp.eq.s32.totalorder %s158, 0
      %s161 = sadd.s32 %s160, 1
      %s162 = scalar_select %p159, %s160, %s161
      %p165 = pneg %p159
      %p166 = scmp.eq.s32.totalorder %s19, 6
      %p167 = por %p165, %p166
      %p168 = scmp.ne.s32.totalorder %s160, %s163
      %p169 = scmp.eq.s32.totalorder %s19, 0
      %p170 = por %p168, %p169
      %p171 = scmp.ne.s32.totalorder %s160, %s163
      %p172 = scmp.eq.s32.totalorder %s24, 6
      %p173 = por %p171, %p172
      %p174 = scmp.ne.s32.totalorder %s163, %s164
      %p175 = scmp.eq.s32.totalorder %s24, 0
      %p176 = por %p174, %p175
      %p177 = scmp.ne.s32.totalorder %s163, %s164
      %p178 = scmp.eq.s32.totalorder %s25, 6
      %p179 = por %p177, %p178
      %p181 = scmp.ne.s32.totalorder %s164, %s180
      %p182 = scmp.eq.s32.totalorder %s25, 0
      %p183 = por %p181, %p182
      %s184 = ssub.s32 %s19, %s26
      %p185 = scmp.eq.s32.totalorder %s184, 0
      %s187 = sadd.s32 %s186, 1
      %s188 = scalar_select %p185, %s186, %s187
      %p191 = pneg %p185
      %p192 = scmp.eq.s32.totalorder %s19, 6
      %p193 = por %p191, %p192
      %p194 = scmp.ne.s32.totalorder %s186, %s189
      %p195 = scmp.eq.s32.totalorder %s19, 0
      %p196 = por %p194, %p195
      %p197 = scmp.ne.s32.totalorder %s186, %s189
      %p198 = scmp.eq.s32.totalorder %s24, 6
      %p199 = por %p197, %p198
      %p200 = scmp.ne.s32.totalorder %s189, %s190
      %p201 = scmp.eq.s32.totalorder %s24, 0
      %p202 = por %p200, %p201
      %p203 = scmp.ne.s32.totalorder %s189, %s190
      %p204 = scmp.eq.s32.totalorder %s25, 6
      %p205 = por %p203, %p204
      %p207 = scmp.ne.s32.totalorder %s190, %s206
      %p208 = scmp.eq.s32.totalorder %s25, 0
      %p209 = por %p207, %p208
      %s211 = sadd.s32 %s210, 1
      %p214 = scmp.eq.s32.totalorder %s19, 6
      %p215 = scmp.ne.s32.totalorder %s210, %s212
      %p216 = scmp.eq.s32.totalorder %s19, 0
      %p217 = por %p215, %p216
      %p218 = scmp.ne.s32.totalorder %s210, %s212
      %p219 = scmp.eq.s32.totalorder %s24, 6
      %p220 = por %p218, %p219
      %p221 = scmp.ne.s32.totalorder %s212, %s213
      %p222 = scmp.eq.s32.totalorder %s24, 0
      %p223 = por %p221, %p222
      %p224 = scmp.ne.s32.totalorder %s212, %s213
      %p225 = scmp.eq.s32.totalorder %s25, 6
      %p226 = por %p224, %p225
      %p228 = scmp.ne.s32.totalorder %s213, %s227
      %p229 = scmp.eq.s32.totalorder %s25, 0
      %p230 = por %p228, %p229
      %s232 = sadd.s32 %s231, 1
      %p235 = scmp.eq.s32.totalorder %s19, 6
      %p236 = scmp.ne.s32.totalorder %s231, %s233
      %p237 = scmp.eq.s32.totalorder %s19, 0
      %p238 = por %p236, %p237
      %p239 = scmp.ne.s32.totalorder %s231, %s233
      %p240 = scmp.eq.s32.totalorder %s24, 6
      %p241 = por %p239, %p240
      %p242 = scmp.ne.s32.totalorder %s233, %s234
      %p243 = scmp.eq.s32.totalorder %s24, 0
      %p244 = por %p242, %p243
      %p245 = scmp.ne.s32.totalorder %s233, %s234
      %p246 = scmp.eq.s32.totalorder %s25, 6
      %p247 = por %p245, %p246
      %p249 = scmp.ne.s32.totalorder %s234, %s248
      %p250 = scmp.eq.s32.totalorder %s25, 0
      %p251 = por %p249, %p250
      %s252 = ssub.s32 %s19, %s26
      %p253 = scmp.eq.s32.totalorder %s252, 0
      %s255 = sadd.s32 %s254, 1
      %s256 = scalar_select %p253, %s254, %s255
      %p259 = pneg %p253
      %p260 = scmp.eq.s32.totalorder %s19, 6
      %p261 = por %p259, %p260
      %p262 = scmp.ne.s32.totalorder %s254, %s257
      %p263 = scmp.eq.s32.totalorder %s19, 0
      %p264 = por %p262, %p263
      %p265 = scmp.ne.s32.totalorder %s254, %s257
      %p266 = scmp.eq.s32.totalorder %s24, 6
      %p267 = por %p265, %p266
      %p268 = scmp.ne.s32.totalorder %s257, %s258
      %p269 = scmp.eq.s32.totalorder %s24, 0
      %p270 = por %p268, %p269
      %p271 = scmp.ne.s32.totalorder %s257, %s258
      %p272 = scmp.eq.s32.totalorder %s25, 6
      %p273 = por %p271, %p272
      %p275 = scmp.ne.s32.totalorder %s258, %s274
      %p276 = scmp.eq.s32.totalorder %s25, 0
      %p277 = por %p275, %p276
      %p278 = scmp.le.s32.totalorder 1, %s19
      %p279 = scmp.lt.s32.totalorder %s19, 8
      %p280 = pnand %p278, %p279
      %p281 = pneg %p280
      // Predicated region
      $region9: #{decoder_forward.3} parent=5 // pred_check
        _
      $region10: #{decoder_forward.3} parent=5 // pred_check_branch
        %283 = sbr.rel (%p280) target = $region12
      $region11: #{decoder_forward.3} parent=5 // pred_region
        %s284 = ssub.s32 %s19, 1
        // Predicated region
        $region13: #{decoder_forward.3} parent=11 // pred_check
          %p285 = pneg %p40
        $region14: #{decoder_forward.3} parent=11 // pred_check_branch
          %287 = sbr.rel (%p285) target = $region16
        $region15: #{decoder_forward.3} parent=11 // pred_region
          _
        $region16: #{decoder_forward.3} parent=11 // pred_fallthru
          _
        // Predicated region
        $region17: #{decoder_forward.3} parent=11 // pred_check
          %p288 = pneg %p61
        $region18: #{decoder_forward.3} parent=11 // pred_check_branch
          %290 = sbr.rel (%p288) target = $region20
        $region19: #{decoder_forward.3} parent=11 // pred_region
          %s292 = ssub.s32 16, 16
          %293 = vsyncadd [#allocation3], %s292
          %s295 = sshll.u32 [#allocation2], 4
          %s296 = int_to_ptr.vmem [resolvable:$true] %s295
          %298 = dma.hbm_to_vmem [thread:$0]  %s1, 16, %s296, [#allocation3]
        $region20: #{decoder_forward.3} parent=11 // pred_fallthru
          _
        // Predicated region
        $region21: #{decoder_forward.3} parent=11 // pred_check
          %p299 = pneg %p82
        $region22: #{decoder_forward.3} parent=11 // pred_check_branch
          %301 = sbr.rel (%p299) target = $region24
        $region23: #{decoder_forward.3} parent=11 // pred_region
          %s303 = ssub.s32 16, 16
          %304 = vsyncadd [#allocation5], %s303
          %s306 = sshll.u32 [#allocation4], 4
          %s307 = int_to_ptr.vmem [resolvable:$true] %s306
          %309 = dma.hbm_to_vmem [thread:$0]  %s2, 16, %s307, [#allocation5]
        $region24: #{decoder_forward.3} parent=11 // pred_fallthru
          _
        // Predicated region
        $region25: #{decoder_forward.3} parent=11 // pred_check
          %p310 = pneg %p103
        $region26: #{decoder_forward.3} parent=11 // pred_check_branch
          %312 = sbr.rel (%p310) target = $region28
        $region27: #{decoder_forward.3} parent=11 // pred_region
          %s314 = ssub.s32 4096, 4096
          %315 = vsyncadd [#allocation5], %s314
          %s316 = sshll.u32 [#allocation6], 4
          %s317 = int_to_ptr.vmem [resolvable:$true] %s316
          %322 = dma.hbm_to_vmem [thread:$0]  %s3, 4096, %s317, [#allocation5], 1024, 1024, 64
        $region28: #{decoder_forward.3} parent=11 // pred_fallthru
          _
        // Predicated region
        $region29: #{decoder_forward.3} parent=11 // pred_check
          %p323 = pneg %p124
        $region30: #{decoder_forward.3} parent=11 // pred_check_branch
          %325 = sbr.rel (%p323) target = $region32
        $region31: #{decoder_forward.3} parent=11 // pred_region
          %s327 = ssub.s32 128, 128
          %328 = vsyncadd [#allocation8], %s327
          %s330 = sshll.u32 [#allocation7], 4
          %s331 = int_to_ptr.vmem [resolvable:$true] %s330
          %333 = dma.hbm_to_vmem [thread:$0]  %s4, 128, %s331, [#allocation8]
        $region32: #{decoder_forward.3} parent=11 // pred_fallthru
          _
        // Predicated region
        $region33: #{decoder_forward.3} parent=11 // pred_check
          %p334 = pneg %p223
        $region34: #{decoder_forward.3} parent=11 // pred_check_branch
          %336 = sbr.rel (%p334) target = $region36
        $region35: #{decoder_forward.3} parent=11 // pred_region
          %s338 = ssub.s32 8192, 8192
          %339 = vsyncadd [#allocation5], %s338
          %s340 = sshll.u32 [#allocation12], 4
          %s341 = int_to_ptr.vmem [resolvable:$true] %s340
          %346 = dma.hbm_to_vmem [thread:$0]  %s8, 8192, %s341, [#allocation5], 256, 256, 16
        $region36: #{decoder_forward.3} parent=11 // pred_fallthru
          _
        // Predicated region
        $region37: #{decoder_forward.3} parent=11 // pred_check
          %p347 = pneg %p244
        $region38: #{decoder_forward.3} parent=11 // pred_check_branch
          %349 = sbr.rel (%p347) target = $region40
        $region39: #{decoder_forward.3} parent=11 // pred_region
          %s351 = ssub.s32 32, 32
          %352 = vsyncadd [#allocation8], %s351
          %s354 = sshll.u32 [#allocation13], 4
          %s355 = int_to_ptr.vmem [resolvable:$true] %s354
          %357 = dma.hbm_to_vmem [thread:$0]  %s9, 32, %s355, [#allocation8]
        $region40: #{decoder_forward.3} parent=11 // pred_fallthru
          _
      $region12: #{decoder_forward.3} parent=5 // pred_fallthru
        _
      %p358 = scmp.lt.s32.totalorder %s19, 7
      // Predicated region
      $region41: #{decoder_forward.3} parent=5 // pred_check
        %p359 = pneg %p358
      $region42: #{decoder_forward.3} parent=5 // pred_check_branch
        %361 = sbr.rel (%p359) target = $region44
      $region43: #{decoder_forward.3} parent=5 // pred_region
        // Predicated region
        $region45: #{decoder_forward.3} parent=43 // pred_check
          %p362 = pneg %p144
        $region46: #{decoder_forward.3} parent=43 // pred_check_branch
          %364 = sbr.rel (%p362) target = $region48
        $region47: #{decoder_forward.3} parent=43 // pred_region
          %s365 = sand.u32 %s19, 1
          %s366 = scalar_lea.sflag [#allocation3], %s365
          %s367 = sand.u32 %s134, 1
          %s368 = smul.addr %s367, 3584
          %s369 = scalar_lea.vmem [#allocation9], %s368
          %s370 = smul.u32 14, %s19
          %s372 = ssub.s32 57344, 57344
          %373 = vsyncadd %s366, %s372
          %s374 = smul.addr %s370, 128
          %s375 = scalar_lea.hbm %s5, %s374
          %s376 = sshll.u32 %s369, 4
          %s377 = int_to_ptr.vmem [resolvable:$true] %s376
          %382 = dma.hbm_to_vmem [thread:$0]  %s375, 57344, %s377, %s366, 12544, 1792, 112
        $region48: #{decoder_forward.3} parent=43 // pred_fallthru
          _
        // Predicated region
        $region49: #{decoder_forward.3} parent=43 // pred_check
          %p383 = pneg %p170
        $region50: #{decoder_forward.3} parent=43 // pred_check_branch
          %385 = sbr.rel (%p383) target = $region52
        $region51: #{decoder_forward.3} parent=43 // pred_region
          %s386 = sand.u32 %s19, 1
          %s387 = scalar_lea.sflag [#allocation3], %s386
          %s388 = sand.u32 %s160, 1
          %s389 = smul.addr %s388, 14
          %s390 = scalar_lea.vmem [#allocation10], %s389
          %s391 = smul.u32 14, %s19
          %s393 = ssub.s32 224, 224
          %394 = vsyncadd %s387, %s393
          %s395 = smul.addr %s391, 16
          %s396 = scalar_lea.hbm %s6, %s395
          %s398 = sshll.u32 %s390, 4
          %s399 = int_to_ptr.vmem [resolvable:$true] %s398
          %401 = dma.hbm_to_vmem [thread:$0]  %s396, 224, %s399, %s387
        $region52: #{decoder_forward.3} parent=43 // pred_fallthru
          _
        // Predicated region
        $region53: #{decoder_forward.3} parent=43 // pred_check
          %p402 = pneg %p196
        $region54: #{decoder_forward.3} parent=43 // pred_check_branch
          %404 = sbr.rel (%p402) target = $region56
        $region55: #{decoder_forward.3} parent=43 // pred_region
          %s405 = sand.u32 %s19, 1
          %s406 = scalar_lea.sflag [#allocation3], %s405
          %s407 = sand.u32 %s186, 1
          %s408 = smul.addr %s407, 14
          %s409 = scalar_lea.vmem [#allocation11], %s408
          %s410 = smul.u32 14, %s19
          %s412 = ssub.s32 224, 224
          %413 = vsyncadd %s406, %s412
          %s414 = smul.addr %s410, 16
          %s415 = scalar_lea.hbm %s7, %s414
          %s417 = sshll.u32 %s409, 4
          %s418 = int_to_ptr.vmem [resolvable:$true] %s417
          %420 = dma.hbm_to_vmem [thread:$0]  %s415, 224, %s418, %s406
        $region56: #{decoder_forward.3} parent=43 // pred_fallthru
          _
      $region44: #{decoder_forward.3} parent=5 // pred_fallthru
        _
      %p421 = scmp.le.s32.totalorder 1, %s19
      %p422 = scmp.lt.s32.totalorder %s19, 8
      %p423 = pnand %p421, %p422
      %p424 = pneg %p423
      // Predicated region
      $region57: #{decoder_forward.3} parent=5 // pred_check
        _
      $region58: #{decoder_forward.3} parent=5 // pred_check_branch
        %426 = sbr.rel (%p423) target = $region60
      $region59: #{decoder_forward.3} parent=5 // pred_region
        %s427 = ssub.s32 %s19, 1
        // Predicated region
        $region61: #{decoder_forward.3} parent=59 // pred_check
          %p428 = pneg %p61
        $region62: #{decoder_forward.3} parent=59 // pred_check_branch
          %430 = sbr.rel (%p428) target = $region64
        $region63: #{decoder_forward.3} parent=59 // pred_region
          %431 = dma.done [#allocation3], 16
        $region64: #{decoder_forward.3} parent=59 // pred_fallthru
          _
        // Predicated region
        $region65: #{decoder_forward.3} parent=59 // pred_check
          %p432 = pneg %p82
        $region66: #{decoder_forward.3} parent=59 // pred_check_branch
          %434 = sbr.rel (%p432) target = $region68
        $region67: #{decoder_forward.3} parent=59 // pred_region
          %435 = dma.done [#allocation5], 16
        $region68: #{decoder_forward.3} parent=59 // pred_fallthru
          _
        // Predicated region
        $region69: #{decoder_forward.3} parent=59 // pred_check
          %p436 = pneg %p103
        $region70: #{decoder_forward.3} parent=59 // pred_check_branch
          %438 = sbr.rel (%p436) target = $region72
        $region71: #{decoder_forward.3} parent=59 // pred_region
          %439 = dma.done [#allocation5], 4096
        $region72: #{decoder_forward.3} parent=59 // pred_fallthru
          _
        // Predicated region
        $region73: #{decoder_forward.3} parent=59 // pred_check
          %p440 = pneg %p124
        $region74: #{decoder_forward.3} parent=59 // pred_check_branch
          %442 = sbr.rel (%p440) target = $region76
        $region75: #{decoder_forward.3} parent=59 // pred_region
          %443 = dma.done [#allocation8], 128
        $region76: #{decoder_forward.3} parent=59 // pred_fallthru
          _
        %s444 = sand.u32 %s24, 1
        %s445 = scalar_lea.sflag [#allocation3], %s444
        %s446 = sand.u32 %s137, 1
        %s447 = smul.addr %s446, 3584
        %s448 = scalar_lea.vmem [#allocation9], %s447
        // Predicated region
        $region77: #{decoder_forward.3} parent=59 // pred_check
          %p449 = pneg %p150
        $region78: #{decoder_forward.3} parent=59 // pred_check_branch
          %451 = sbr.rel (%p449) target = $region80
        $region79: #{decoder_forward.3} parent=59 // pred_region
          %452 = dma.done %s445, 57344
        $region80: #{decoder_forward.3} parent=59 // pred_fallthru
          _
        %s453 = sand.u32 %s24, 1
        %s454 = scalar_lea.sflag [#allocation3], %s453
        %s455 = sand.u32 %s163, 1
        %s456 = smul.addr %s455, 14
        %s457 = scalar_lea.vmem [#allocation10], %s456
        // Predicated region
        $region81: #{decoder_forward.3} parent=59 // pred_check
          %p458 = pneg %p176
        $region82: #{decoder_forward.3} parent=59 // pred_check_branch
          %460 = sbr.rel (%p458) target = $region84
        $region83: #{decoder_forward.3} parent=59 // pred_region
          %461 = dma.done %s454, 224
        $region84: #{decoder_forward.3} parent=59 // pred_fallthru
          _
        %s462 = sand.u32 %s24, 1
        %s463 = scalar_lea.sflag [#allocation3], %s462
        %s464 = sand.u32 %s189, 1
        %s465 = smul.addr %s464, 14
        %s466 = scalar_lea.vmem [#allocation11], %s465
        // Predicated region
        $region85: #{decoder_forward.3} parent=59 // pred_check
          %p467 = pneg %p202
        $region86: #{decoder_forward.3} parent=59 // pred_check_branch
          %469 = sbr.rel (%p467) target = $region88
        $region87: #{decoder_forward.3} parent=59 // pred_region
          %470 = dma.done %s463, 224
        $region88: #{decoder_forward.3} parent=59 // pred_fallthru
          _
        // Predicated region
        $region89: #{decoder_forward.3} parent=59 // pred_check
          %p471 = pneg %p223
        $region90: #{decoder_forward.3} parent=59 // pred_check_branch
          %473 = sbr.rel (%p471) target = $region92
        $region91: #{decoder_forward.3} parent=59 // pred_region
          %474 = dma.done [#allocation5], 8192
        $region92: #{decoder_forward.3} parent=59 // pred_fallthru
          _
        // Predicated region
        $region93: #{decoder_forward.3} parent=59 // pred_check
          %p475 = pneg %p244
        $region94: #{decoder_forward.3} parent=59 // pred_check_branch
          %477 = sbr.rel (%p475) target = $region96
        $region95: #{decoder_forward.3} parent=59 // pred_region
          %478 = dma.done [#allocation8], 32
        $region96: #{decoder_forward.3} parent=59 // pred_fallthru
          _
        %p479 = pneg %p40
        %p480 = pneg %p37
        %p481 = pneg %p61
        %p482 = pneg %p58
        %p483 = pneg %p82
        %p484 = pneg %p79
        %p485 = pneg %p103
        %p486 = pneg %p100
        %p487 = pneg %p124
        %p488 = pneg %p121
        %s489 = sand.u32 %s24, 1
        %s490 = scalar_lea.sflag [#allocation3], %s489
        %s491 = sand.u32 %s137, 1
        %s492 = smul.addr %s491, 3584
        %s493 = scalar_lea.vmem [#allocation9], %s492
        %p494 = pneg %p150
        %p495 = pneg %p147
        %s496 = sand.u32 %s24, 1
        %s497 = scalar_lea.sflag [#allocation3], %s496
        %s498 = sand.u32 %s163, 1
        %s499 = smul.addr %s498, 14
        %s500 = scalar_lea.vmem [#allocation10], %s499
        %p501 = pneg %p176
        %p502 = pneg %p173
        %s503 = sand.u32 %s24, 1
        %s504 = scalar_lea.sflag [#allocation3], %s503
        %s505 = sand.u32 %s189, 1
        %s506 = smul.addr %s505, 14
        %s507 = scalar_lea.vmem [#allocation11], %s506
        %p508 = pneg %p202
        %p509 = pneg %p199
        %p510 = pneg %p223
        %p511 = pneg %p220
        %p512 = pneg %p244
        %p513 = pneg %p241
        %p514 = pneg %p270
        %p515 = pneg %p267
        %s516 = smul.u32 14, %s24
        %p517 = scmp.lt.s32.totalorder %s516, 97
        %s518 = scalar_select %p517, %s516, 97
        %s519 = smul.addr %s518, 2
        %s520 = scalar_lea.vmem %s10, %s519
        %s521 = smul.u32 14, %s24
        %s522 = smul.u32 14, %s24
        %s523 = smul.u32 14, %s24
        %s524 = smul.u32 14, %s24
        %p525 = scmp.lt.s32.totalorder %s524, 97
        %s526 = scalar_select %p525, %s524, 97
        %s527 = smul.addr %s526, 2
        %s528 = scalar_lea.vmem %s10, %s527
        %s529 = smul.u32 14, %s24
        %v530 = vld [vmem:[%s0] sm:$0x3]
        %v531 = vld [vmem:[#allocation2] sm:$0x1]
        %v532 = vld [vmem:[#allocation4] sm:$0x1]
        %v534 = vlaneseq
        %v535 = vshrl.u32 %v534, 7
        %v536 = vsub.s32 0, %v535
        %v537 = vrot.slane %v532, %v536
        %vm539 = vcmask 7168
        %v541 = vsel %vm539, %v530, 0
        %vm543 = vcmask 1040384
        %v545 = vsel %vm543, %v531, 0
        %547 = vmatprep.subr.mxu0 0.0
        %548 = vmatpush1.msra.mxu0 %v545
        %549 = vmatprep.subr.mxu0 0.0
        %550 = vmatpush1.msra.mxu0 0.0
        %551 = vmatprep.subr.mxu0 0.0
        %552 = vmatpush1.msra.mxu0 0.0
        %553 = vmatprep.subr.mxu0 0.0
        %554 = vmatpush1.msra.mxu0 0.0
        %555 = vmatprep.subr.mxu0 0.0
        %556 = vmatpush1.msra.mxu0 0.0
        %557 = vmatprep.subr.mxu0 0.0
        %558 = vmatpush1.msra.mxu0 0.0
        %559 = vmatprep.subr.mxu0 0.0
        %560 = vmatpush1.msra.mxu0 0.0
        %561 = vmatprep.subr.mxu0 0.0
        %562 = vmatpush1.msra.mxu0 0.0
        %563 = vmatprep.subr.mxu0 0.0
        %564 = vmatpush1.msra.mxu0 0.0
        %565 = vmatprep.subr.mxu0 0.0
        %566 = vmatpush1.msra.mxu0 0.0
        %567 = vmatprep.subr.mxu0 0.0
        %568 = vmatpush1.msra.mxu0 0.0
        %569 = vmatprep.subr.mxu0 0.0
        %570 = vmatpush1.msra.mxu0 0.0
        %571 = vmatprep.subr.mxu0 0.0
        %572 = vmatpush1.msra.mxu0 0.0
        %573 = vmatprep.subr.mxu0 0.0
        %574 = vmatpush1.msra.mxu0 0.0
        %575 = vmatprep.subr.mxu0 0.0
        %576 = vmatpush1.msra.mxu0 0.0
        %577 = vmatprep.subr.mxu0 0.0
        %578 = vmatpush1.msra.mxu0 0.0
        %579 = vmatprep.subr.mxu0 0.0
        %580 = vmatpush1.msra.mxu0 0.0
        %581 = vmatprep.subr.mxu0 0.0
        %582 = vmatpush1.msra.mxu0 0.0
        %583 = vmatprep.subr.mxu0 0.0
        %584 = vmatpush1.msra.mxu0 0.0
        %585 = vmatprep.subr.mxu0 0.0
        %586 = vmatpush1.msra.mxu0 0.0
        %587 = vmatprep.subr.mxu0 0.0
        %588 = vmatpush1.msra.mxu0 0.0
        %589 = vmatprep.subr.mxu0 0.0
        %590 = vmatpush1.msra.mxu0 0.0
        %591 = vmatprep.subr.mxu0 0.0
        %592 = vmatpush1.msra.mxu0 0.0
        %593 = vmatprep.subr.mxu0 0.0
        %594 = vmatpush1.msra.mxu0 0.0
        %595 = vmatprep.subr.mxu0 0.0
        %596 = vmatpush1.msra.mxu0 0.0
        %597 = vmatprep.subr.mxu0 0.0
        %598 = vmatpush1.msra.mxu0 0.0
        %599 = vmatprep.subr.mxu0 0.0
        %600 = vmatpush1.msra.mxu0 0.0
        %601 = vmatprep.subr.mxu0 0.0
        %602 = vmatpush1.msra.mxu0 0.0
        %603 = vmatprep.subr.mxu0 0.0
        %604 = vmatpush1.msra.mxu0 0.0
        %605 = vmatprep.subr.mxu0 0.0
        %606 = vmatpush1.msra.mxu0 0.0
        %607 = vmatprep.subr.mxu0 0.0
        %608 = vmatpush1.msra.mxu0 0.0
        %609 = vmatprep.subr.mxu0 0.0
        %610 = vmatpush1.msra.mxu0 0.0
        %611 = vmatprep.mubr.f32.mxu0 0.0
        %612 = vmatmul.mubr.f32.gmra.mrb[0].mxu0 %v541
        %v613 = vpop.f32.mrb[0].mxu0
        %v614 = vadd.f32 %v537, %v613
        %v615 = vpop.f32.mrb[0].mxu0
        %616 = vdwg.mxu0
        %v617 = vmax.f32 %v614, 0.0
        %v618 = vld [vmem:[#allocation6] sm:$0xff]
        %v619 = vld [vmem:[#allocation6 + $0x8] sm:$0xff]
        %v620 = vld [vmem:[#allocation6 + $0x10] sm:$0xff]
        %v621 = vld [vmem:[#allocation6 + $0x18] sm:$0xff]
        %v622 = vld [vmem:[#allocation6 + $0x20] sm:$0xff]
        %v623 = vld [vmem:[#allocation6 + $0x28] sm:$0xff]
        %v624 = vld [vmem:[#allocation6 + $0x30] sm:$0xff]
        %v625 = vld [vmem:[#allocation6 + $0x38] sm:$0xff]
        %v626 = vld [vmem:[#allocation6 + $0x40] sm:$0xff]
        %v627 = vld [vmem:[#allocation6 + $0x48] sm:$0xff]
        %v628 = vld [vmem:[#allocation6 + $0x50] sm:$0xff]
        %v629 = vld [vmem:[#allocation6 + $0x58] sm:$0xff]
        %v630 = vld [vmem:[#allocation6 + $0x60] sm:$0xff]
        %v631 = vld [vmem:[#allocation6 + $0x68] sm:$0xff]
        %v632 = vld [vmem:[#allocation6 + $0x70] sm:$0xff]
        %v633 = vld [vmem:[#allocation6 + $0x78] sm:$0xff]
        %v634 = vld [vmem:[#allocation6 + $0x80] sm:$0xff]
        %v635 = vld [vmem:[#allocation6 + $0x88] sm:$0xff]
        %v636 = vld [vmem:[#allocation6 + $0x90] sm:$0xff]
        %v637 = vld [vmem:[#allocation6 + $0x98] sm:$0xff]
        %v638 = vld [vmem:[#allocation6 + $0xa0] sm:$0xff]
        %v639 = vld [vmem:[#allocation6 + $0xa8] sm:$0xff]
        %v640 = vld [vmem:[#allocation6 + $0xb0] sm:$0xff]
        %v641 = vld [vmem:[#allocation6 + $0xb8] sm:$0xff]
        %v642 = vld [vmem:[#allocation6 + $0xc0] sm:$0xff]
        %v643 = vld [vmem:[#allocation6 + $0xc8] sm:$0xff]
        %v644 = vld [vmem:[#allocation6 + $0xd0] sm:$0xff]
        %v645 = vld [vmem:[#allocation6 + $0xd8] sm:$0xff]
        %v646 = vld [vmem:[#allocation6 + $0xe0] sm:$0xff]
        %v647 = vld [vmem:[#allocation6 + $0xe8] sm:$0xff]
        %v648 = vld [vmem:[#allocation6 + $0xf0] sm:$0xff]
        %v649 = vld [vmem:[#allocation6 + $0xf8] sm:$0xff]
        %v650 = vld [vmem:[#allocation7] sm:$0xff]
        %v652 = vlaneseq
        %v653 = vshrl.u32 %v652, 7
        %v654 = vsub.s32 0, %v653
        %v655 = vrot.slane %v650, %v654
        %v656 = vlaneseq
        %v657 = vshrl.u32 %v656, 7
        %v658 = vsub.s32 1, %v657
        %v659 = vrot.slane %v650, %v658
        %v660 = vlaneseq
        %v661 = vshrl.u32 %v660, 7
        %v662 = vsub.s32 2, %v661
        %v663 = vrot.slane %v650, %v662
        %v664 = vlaneseq
        %v665 = vshrl.u32 %v664, 7
        %v666 = vsub.s32 3, %v665
        %v667 = vrot.slane %v650, %v666
        %v668 = vlaneseq
        %v669 = vshrl.u32 %v668, 7
        %v670 = vsub.s32 4, %v669
        %v671 = vrot.slane %v650, %v670
        %v672 = vlaneseq
        %v673 = vshrl.u32 %v672, 7
        %v674 = vsub.s32 5, %v673
        %v675 = vrot.slane %v650, %v674
        %v676 = vlaneseq
        %v677 = vshrl.u32 %v676, 7
        %v678 = vsub.s32 6, %v677
        %v679 = vrot.slane %v650, %v678
        %v680 = vlaneseq
        %v681 = vshrl.u32 %v680, 7
        %v682 = vsub.s32 7, %v681
        %v683 = vrot.slane %v650, %v682
        %vm692 = vcmask 261120
        %v694 = vsel %vm692, %v617, 0
        %696 = vmatprep.subr.mxu0 %v619
        %697 = vmatpush1.msra.mxu0 %v618
        %698 = vmatprep.subr.mxu0 %v627
        %699 = vmatpush1.msra.mxu0 %v626
        %700 = vmatprep.subr.mxu0 %v635
        %701 = vmatpush1.msra.mxu0 %v634
        %702 = vmatprep.subr.mxu0 %v643
        %703 = vmatpush1.msra.mxu0 %v642
        %704 = vmatprep.subr.mxu0 0.0
        %705 = vmatpush1.msra.mxu0 0.0
        %706 = vmatprep.subr.mxu0 0.0
        %707 = vmatpush1.msra.mxu0 0.0
        %708 = vmatprep.subr.mxu0 0.0
        %709 = vmatpush1.msra.mxu0 0.0
        %710 = vmatprep.subr.mxu0 0.0
        %711 = vmatpush1.msra.mxu0 0.0
        %712 = vmatprep.subr.mxu0 0.0
        %713 = vmatpush1.msra.mxu0 0.0
        %714 = vmatprep.subr.mxu0 0.0
        %715 = vmatpush1.msra.mxu0 0.0
        %716 = vmatprep.subr.mxu0 0.0
        %717 = vmatpush1.msra.mxu0 0.0
        %718 = vmatprep.subr.mxu0 0.0
        %719 = vmatpush1.msra.mxu0 0.0
        %720 = vmatprep.subr.mxu0 0.0
        %721 = vmatpush1.msra.mxu0 0.0
        %722 = vmatprep.subr.mxu0 0.0
        %723 = vmatpush1.msra.mxu0 0.0
        %724 = vmatprep.subr.mxu0 0.0
        %725 = vmatpush1.msra.mxu0 0.0
        %726 = vmatprep.subr.mxu0 0.0
        %727 = vmatpush1.msra.mxu0 0.0
        %728 = vmatprep.subr.mxu0 0.0
        %729 = vmatpush1.msra.mxu0 0.0
        %730 = vmatprep.subr.mxu0 0.0
        %731 = vmatpush1.msra.mxu0 0.0
        %732 = vmatprep.subr.mxu0 0.0
        %733 = vmatpush1.msra.mxu0 0.0
        %734 = vmatprep.subr.mxu0 0.0
        %735 = vmatpush1.msra.mxu0 0.0
        %736 = vmatprep.subr.mxu0 0.0
        %737 = vmatpush1.msra.mxu0 0.0
        %738 = vmatprep.subr.mxu0 0.0
        %739 = vmatpush1.msra.mxu0 0.0
        %740 = vmatprep.subr.mxu0 0.0
        %741 = vmatpush1.msra.mxu0 0.0
        %742 = vmatprep.subr.mxu0 0.0
        %743 = vmatpush1.msra.mxu0 0.0
        %744 = vmatprep.subr.mxu0 0.0
        %745 = vmatpush1.msra.mxu0 0.0
        %746 = vmatprep.subr.mxu0 0.0
        %747 = vmatpush1.msra.mxu0 0.0
        %748 = vmatprep.subr.mxu0 0.0
        %749 = vmatpush1.msra.mxu0 0.0
        %750 = vmatprep.subr.mxu0 0.0
        %751 = vmatpush1.msra.mxu0 0.0
        %752 = vmatprep.subr.mxu0 0.0
        %753 = vmatpush1.msra.mxu0 0.0
        %754 = vmatprep.subr.mxu0 0.0
        %755 = vmatpush1.msra.mxu0 0.0
        %756 = vmatprep.subr.mxu0 0.0
        %757 = vmatpush1.msra.mxu0 0.0
        %758 = vmatprep.subr.mxu0 0.0
        %759 = vmatpush1.msra.mxu0 0.0
        %760 = vmatprep.mubr.f32.mxu0 0.0
        %761 = vmatmul.mubr.f32.gmra.mrb[0].mxu0 %v694
        %v762 = vpop.f32.mrb[0].mxu0
        %v763 = vadd.f32 %v655, %v762
        %v764 = vpop.f32.mrb[0].mxu0
        %v765 = vadd.f32 %v659, %v764
        %766 = vdwg.mxu0
        %767 = vmatprep.subr.mxu0 %v621
        %768 = vmatpush1.msra.mxu0 %v620
        %769 = vmatprep.subr.mxu0 %v629
        %770 = vmatpush1.msra.mxu0 %v628
        %771 = vmatprep.subr.mxu0 %v637
        %772 = vmatpush1.msra.mxu0 %v636
        %773 = vmatprep.subr.mxu0 %v645
        %774 = vmatpush1.msra.mxu0 %v644
        %775 = vmatprep.subr.mxu0 0.0
        %776 = vmatpush1.msra.mxu0 0.0
        %777 = vmatprep.subr.mxu0 0.0
        %778 = vmatpush1.msra.mxu0 0.0
        %779 = vmatprep.subr.mxu0 0.0
        %780 = vmatpush1.msra.mxu0 0.0
        %781 = vmatprep.subr.mxu0 0.0
        %782 = vmatpush1.msra.mxu0 0.0
        %783 = vmatprep.subr.mxu0 0.0
        %784 = vmatpush1.msra.mxu0 0.0
        %785 = vmatprep.subr.mxu0 0.0
        %786 = vmatpush1.msra.mxu0 0.0
        %787 = vmatprep.subr.mxu0 0.0
        %788 = vmatpush1.msra.mxu0 0.0
        %789 = vmatprep.subr.mxu0 0.0
        %790 = vmatpush1.msra.mxu0 0.0
        %791 = vmatprep.subr.mxu0 0.0
        %792 = vmatpush1.msra.mxu0 0.0
        %793 = vmatprep.subr.mxu0 0.0
        %794 = vmatpush1.msra.mxu0 0.0
        %795 = vmatprep.subr.mxu0 0.0
        %796 = vmatpush1.msra.mxu0 0.0
        %797 = vmatprep.subr.mxu0 0.0
        %798 = vmatpush1.msra.mxu0 0.0
        %799 = vmatprep.subr.mxu0 0.0
        %800 = vmatpush1.msra.mxu0 0.0
        %801 = vmatprep.subr.mxu0 0.0
        %802 = vmatpush1.msra.mxu0 0.0
        %803 = vmatprep.subr.mxu0 0.0
        %804 = vmatpush1.msra.mxu0 0.0
        %805 = vmatprep.subr.mxu0 0.0
        %806 = vmatpush1.msra.mxu0 0.0
        %807 = vmatprep.subr.mxu0 0.0
        %808 = vmatpush1.msra.mxu0 0.0
        %809 = vmatprep.subr.mxu0 0.0
        %810 = vmatpush1.msra.mxu0 0.0
        %811 = vmatprep.subr.mxu0 0.0
        %812 = vmatpush1.msra.mxu0 0.0
        %813 = vmatprep.subr.mxu0 0.0
        %814 = vmatpush1.msra.mxu0 0.0
        %815 = vmatprep.subr.mxu0 0.0
        %816 = vmatpush1.msra.mxu0 0.0
        %817 = vmatprep.subr.mxu0 0.0
        %818 = vmatpush1.msra.mxu0 0.0
        %819 = vmatprep.subr.mxu0 0.0
        %820 = vmatpush1.msra.mxu0 0.0
        %821 = vmatprep.subr.mxu0 0.0
        %822 = vmatpush1.msra.mxu0 0.0
        %823 = vmatprep.subr.mxu0 0.0
        %824 = vmatpush1.msra.mxu0 0.0
        %825 = vmatprep.subr.mxu0 0.0
        %826 = vmatpush1.msra.mxu0 0.0
        %827 = vmatprep.subr.mxu0 0.0
        %828 = vmatpush1.msra.mxu0 0.0
        %829 = vmatprep.subr.mxu0 0.0
        %830 = vmatpush1.msra.mxu0 0.0
        %831 = vmatprep.mubr.f32.mxu0 0.0
        %832 = vmatmul.mubr.f32.gmra.mrb[0].mxu0 %v694
        %v833 = vpop.f32.mrb[0].mxu0
        %v834 = vadd.f32 %v663, %v833
        %v835 = vpop.f32.mrb[0].mxu0
        %v836 = vadd.f32 %v667, %v835
        %837 = vdwg.mxu0
        %838 = vmatprep.subr.mxu0 %v623
        %839 = vmatpush1.msra.mxu0 %v622
        %840 = vmatprep.subr.mxu0 %v631
        %841 = vmatpush1.msra.mxu0 %v630
        %842 = vmatprep.subr.mxu0 %v639
        %843 = vmatpush1.msra.mxu0 %v638
        %844 = vmatprep.subr.mxu0 %v647
        %845 = vmatpush1.msra.mxu0 %v646
        %846 = vmatprep.subr.mxu0 0.0
        %847 = vmatpush1.msra.mxu0 0.0
        %848 = vmatprep.subr.mxu0 0.0
        %849 = vmatpush1.msra.mxu0 0.0
        %850 = vmatprep.subr.mxu0 0.0
        %851 = vmatpush1.msra.mxu0 0.0
        %852 = vmatprep.subr.mxu0 0.0
        %853 = vmatpush1.msra.mxu0 0.0
        %854 = vmatprep.subr.mxu0 0.0
        %855 = vmatpush1.msra.mxu0 0.0
        %856 = vmatprep.subr.mxu0 0.0
        %857 = vmatpush1.msra.mxu0 0.0
        %858 = vmatprep.subr.mxu0 0.0
        %859 = vmatpush1.msra.mxu0 0.0
        %860 = vmatprep.subr.mxu0 0.0
        %861 = vmatpush1.msra.mxu0 0.0
        %862 = vmatprep.subr.mxu0 0.0
        %863 = vmatpush1.msra.mxu0 0.0
        %864 = vmatprep.subr.mxu0 0.0
        %865 = vmatpush1.msra.mxu0 0.0
        %866 = vmatprep.subr.mxu0 0.0
        %867 = vmatpush1.msra.mxu0 0.0
        %868 = vmatprep.subr.mxu0 0.0
        %869 = vmatpush1.msra.mxu0 0.0
        %870 = vmatprep.subr.mxu0 0.0
        %871 = vmatpush1.msra.mxu0 0.0
        %872 = vmatprep.subr.mxu0 0.0
        %873 = vmatpush1.msra.mxu0 0.0
        %874 = vmatprep.subr.mxu0 0.0
        %875 = vmatpush1.msra.mxu0 0.0
        %876 = vmatprep.subr.mxu0 0.0
        %877 = vmatpush1.msra.mxu0 0.0
        %878 = vmatprep.subr.mxu0 0.0
        %879 = vmatpush1.msra.mxu0 0.0
        %880 = vmatprep.subr.mxu0 0.0
        %881 = vmatpush1.msra.mxu0 0.0
        %882 = vmatprep.subr.mxu0 0.0
        %883 = vmatpush1.msra.mxu0 0.0
        %884 = vmatprep.subr.mxu0 0.0
        %885 = vmatpush1.msra.mxu0 0.0
        %886 = vmatprep.subr.mxu0 0.0
        %887 = vmatpush1.msra.mxu0 0.0
        %888 = vmatprep.subr.mxu0 0.0
        %889 = vmatpush1.msra.mxu0 0.0
        %890 = vmatprep.subr.mxu0 0.0
        %891 = vmatpush1.msra.mxu0 0.0
        %892 = vmatprep.subr.mxu0 0.0
        %893 = vmatpush1.msra.mxu0 0.0
        %894 = vmatprep.subr.mxu0 0.0
        %895 = vmatpush1.msra.mxu0 0.0
        %896 = vmatprep.subr.mxu0 0.0
        %897 = vmatpush1.msra.mxu0 0.0
        %898 = vmatprep.subr.mxu0 0.0
        %899 = vmatpush1.msra.mxu0 0.0
        %900 = vmatprep.subr.mxu0 0.0
        %901 = vmatpush1.msra.mxu0 0.0
        %902 = vmatprep.mubr.f32.mxu0 0.0
        %903 = vmatmul.mubr.f32.gmra.mrb[0].mxu0 %v694
        %v904 = vpop.f32.mrb[0].mxu0
        %v905 = vadd.f32 %v671, %v904
        %v906 = vpop.f32.mrb[0].mxu0
        %v907 = vadd.f32 %v675, %v906
        %908 = vdwg.mxu0
        %909 = vmatprep.subr.mxu0 %v625
        %910 = vmatpush1.msra.mxu0 %v624
        %911 = vmatprep.subr.mxu0 %v633
        %912 = vmatpush1.msra.mxu0 %v632
        %913 = vmatprep.subr.mxu0 %v641
        %914 = vmatpush1.msra.mxu0 %v640
        %915 = vmatprep.subr.mxu0 %v649
        %916 = vmatpush1.msra.mxu0 %v648
        %917 = vmatprep.subr.mxu0 0.0
        %918 = vmatpush1.msra.mxu0 0.0
        %919 = vmatprep.subr.mxu0 0.0
        %920 = vmatpush1.msra.mxu0 0.0
        %921 = vmatprep.subr.mxu0 0.0
        %922 = vmatpush1.msra.mxu0 0.0
        %923 = vmatprep.subr.mxu0 0.0
        %924 = vmatpush1.msra.mxu0 0.0
        %925 = vmatprep.subr.mxu0 0.0
        %926 = vmatpush1.msra.mxu0 0.0
        %927 = vmatprep.subr.mxu0 0.0
        %928 = vmatpush1.msra.mxu0 0.0
        %929 = vmatprep.subr.mxu0 0.0
        %930 = vmatpush1.msra.mxu0 0.0
        %931 = vmatprep.subr.mxu0 0.0
        %932 = vmatpush1.msra.mxu0 0.0
        %933 = vmatprep.subr.mxu0 0.0
        %934 = vmatpush1.msra.mxu0 0.0
        %935 = vmatprep.subr.mxu0 0.0
        %936 = vmatpush1.msra.mxu0 0.0
        %937 = vmatprep.subr.mxu0 0.0
        %938 = vmatpush1.msra.mxu0 0.0
        %939 = vmatprep.subr.mxu0 0.0
        %940 = vmatpush1.msra.mxu0 0.0
        %941 = vmatprep.subr.mxu0 0.0
        %942 = vmatpush1.msra.mxu0 0.0
        %943 = vmatprep.subr.mxu0 0.0
        %944 = vmatpush1.msra.mxu0 0.0
        %945 = vmatprep.subr.mxu0 0.0
        %946 = vmatpush1.msra.mxu0 0.0
        %947 = vmatprep.subr.mxu0 0.0
        %948 = vmatpush1.msra.mxu0 0.0
        %949 = vmatprep.subr.mxu0 0.0
        %950 = vmatpush1.msra.mxu0 0.0
        %951 = vmatprep.subr.mxu0 0.0
        %952 = vmatpush1.msra.mxu0 0.0
        %953 = vmatprep.subr.mxu0 0.0
        %954 = vmatpush1.msra.mxu0 0.0
        %955 = vmatprep.subr.mxu0 0.0
        %956 = vmatpush1.msra.mxu0 0.0
        %957 = vmatprep.subr.mxu0 0.0
        %958 = vmatpush1.msra.mxu0 0.0
        %959 = vmatprep.subr.mxu0 0.0
        %960 = vmatpush1.msra.mxu0 0.0
        %961 = vmatprep.subr.mxu0 0.0
        %962 = vmatpush1.msra.mxu0 0.0
        %963 = vmatprep.subr.mxu0 0.0
        %964 = vmatpush1.msra.mxu0 0.0
        %965 = vmatprep.subr.mxu0 0.0
        %966 = vmatpush1.msra.mxu0 0.0
        %967 = vmatprep.subr.mxu0 0.0
        %968 = vmatpush1.msra.mxu0 0.0
        %969 = vmatprep.subr.mxu0 0.0
        %970 = vmatpush1.msra.mxu0 0.0
        %971 = vmatprep.subr.mxu0 0.0
        %972 = vmatpush1.msra.mxu0 0.0
        %973 = vmatprep.mubr.f32.mxu0 0.0
        %974 = vmatmul.mubr.f32.gmra.mrb[0].mxu0 %v694
        %v975 = vpop.f32.mrb[0].mxu0
        %v976 = vadd.f32 %v679, %v975
        %v977 = vpop.f32.mrb[0].mxu0
        %v978 = vadd.f32 %v683, %v977
        %979 = vdwg.mxu0
        %v980 = vmax.f32 %v763, 0.0
        %v981 = vmax.f32 %v765, 0.0
        %v982 = vmax.f32 %v834, 0.0
        %v983 = vmax.f32 %v836, 0.0
        %v984 = vmax.f32 %v905, 0.0
        %v985 = vmax.f32 %v907, 0.0
        %v986 = vmax.f32 %v976, 0.0
        %v987 = vmax.f32 %v978, 0.0
        %v988 = vld [vmem:[%s448] sm:$0xff]
        %v989 = vld [vmem:[%s448 + $0x8] sm:$0xff]
        %v990 = vld [vmem:[%s448 + $0x10] sm:$0xff]
        %v991 = vld [vmem:[%s448 + $0x18] sm:$0xff]
        %v992 = vld [vmem:[%s448 + $0x20] sm:$0xff]
        %v993 = vld [vmem:[%s448 + $0x28] sm:$0xff]
        %v994 = vld [vmem:[%s448 + $0x30] sm:$0xff]
        %v995 = vld [vmem:[%s448 + $0x38] sm:$0xff]
        %v996 = vld [vmem:[%s448 + $0x40] sm:$0xff]
        %v997 = vld [vmem:[%s448 + $0x48] sm:$0xff]
        %v998 = vld [vmem:[%s448 + $0x50] sm:$0xff]
        %v999 = vld [vmem:[%s448 + $0x58] sm:$0xff]
        %v1000 = vld [vmem:[%s448 + $0x60] sm:$0xff]
        %v1001 = vld [vmem:[%s448 + $0x68] sm:$0xff]
        %v1002 = vld [vmem:[%s448 + $0x70] sm:$0xff]
        %v1003 = vld [vmem:[%s448 + $0x78] sm:$0xff]
        %v1004 = vld [vmem:[%s448 + $0x80] sm:$0xff]
        %v1005 = vld [vmem:[%s448 + $0x88] sm:$0xff]
        %v1006 = vld [vmem:[%s448 + $0x90] sm:$0xff]
        %v1007 = vld [vmem:[%s448 + $0x98] sm:$0xff]
        %v1008 = vld [vmem:[%s448 + $0xa0] sm:$0xff]
        %v1009 = vld [vmem:[%s448 + $0xa8] sm:$0xff]
        %v1010 = vld [vmem:[%s448 + $0xb0] sm:$0xff]
        %v1011 = vld [vmem:[%s448 + $0xb8] sm:$0xff]
        %v1012 = vld [vmem:[%s448 + $0xc0] sm:$0xff]
        %v1013 = vld [vmem:[%s448 + $0xc8] sm:$0xff]
        %v1014 = vld [vmem:[%s448 + $0xd0] sm:$0xff]
        %v1015 = vld [vmem:[%s448 + $0xd8] sm:$0xff]
        %v1016 = vld [vmem:[%s448 + $0xe0] sm:$0xff]
        %v1017 = vld [vmem:[%s448 + $0xe8] sm:$0xff]
        %v1018 = vld [vmem:[%s448 + $0xf0] sm:$0xff]
        %v1019 = vld [vmem:[%s448 + $0xf8] sm:$0xff]
        %v1020 = vld [vmem:[%s448 + $0x100] sm:$0xff]
        %v1021 = vld [vmem:[%s448 + $0x108] sm:$0xff]
        %v1022 = vld [vmem:[%s448 + $0x110] sm:$0xff]
        %v1023 = vld [vmem:[%s448 + $0x118] sm:$0xff]
        %v1024 = vld [vmem:[%s448 + $0x120] sm:$0xff]
        %v1025 = vld [vmem:[%s448 + $0x128] sm:$0xff]
        %v1026 = vld [vmem:[%s448 + $0x130] sm:$0xff]
        %v1027 = vld [vmem:[%s448 + $0x138] sm:$0xff]
        %v1028 = vld [vmem:[%s448 + $0x140] sm:$0xff]
        %v1029 = vld [vmem:[%s448 + $0x148] sm:$0xff]
        %v1030 = vld [vmem:[%s448 + $0x150] sm:$0xff]
        %v1031 = vld [vmem:[%s448 + $0x158] sm:$0xff]
        %v1032 = vld [vmem:[%s448 + $0x160] sm:$0xff]
        %v1033 = vld [vmem:[%s448 + $0x168] sm:$0xff]
        %v1034 = vld [vmem:[%s448 + $0x170] sm:$0xff]
        %v1035 = vld [vmem:[%s448 + $0x178] sm:$0xff]
        %v1036 = vld [vmem:[%s448 + $0x180] sm:$0xff]
        %v1037 = vld [vmem:[%s448 + $0x188] sm:$0xff]
        %v1038 = vld [vmem:[%s448 + $0x190] sm:$0xff]
        %v1039 = vld [vmem:[%s448 + $0x198] sm:$0xff]
        %v1040 = vld [vmem:[%s448 + $0x1a0] sm:$0xff]
        %v1041 = vld [vmem:[%s448 + $0x1a8] sm:$0xff]
        %v1042 = vld [vmem:[%s448 + $0x1b0] sm:$0xff]
        %v1043 = vld [vmem:[%s448 + $0x1b8] sm:$0xff]
        %v1044 = vld [vmem:[%s448 + $0x1c0] sm:$0xff]
        %v1045 = vld [vmem:[%s448 + $0x1c8] sm:$0xff]
        %v1046 = vld [vmem:[%s448 + $0x1d0] sm:$0xff]
        %v1047 = vld [vmem:[%s448 + $0x1d8] sm:$0xff]
        %v1048 = vld [vmem:[%s448 + $0x1e0] sm:$0xff]
        %v1049 = vld [vmem:[%s448 + $0x1e8] sm:$0xff]
        %v1050 = vld [vmem:[%s448 + $0x1f0] sm:$0xff]
        %v1051 = vld [vmem:[%s448 + $0x1f8] sm:$0xff]
        %v1052 = vld [vmem:[%s448 + $0x200] sm:$0xff]
        %v1053 = vld [vmem:[%s448 + $0x208] sm:$0xff]
        %v1054 = vld [vmem:[%s448 + $0x210] sm:$0xff]
        %v1055 = vld [vmem:[%s448 + $0x218] sm:$0xff]
        %v1056 = vld [vmem:[%s448 + $0x220] sm:$0xff]
        %v1057 = vld [vmem:[%s448 + $0x228] sm:$0xff]
        %v1058 = vld [vmem:[%s448 + $0x230] sm:$0xff]
        %v1059 = vld [vmem:[%s448 + $0x238] sm:$0xff]
        %v1060 = vld [vmem:[%s448 + $0x240] sm:$0xff]
        %v1061 = vld [vmem:[%s448 + $0x248] sm:$0xff]
        %v1062 = vld [vmem:[%s448 + $0x250] sm:$0xff]
        %v1063 = vld [vmem:[%s448 + $0x258] sm:$0xff]
        %v1064 = vld [vmem:[%s448 + $0x260] sm:$0xff]
        %v1065 = vld [vmem:[%s448 + $0x268] sm:$0xff]
        %v1066 = vld [vmem:[%s448 + $0x270] sm:$0xff]
        %v1067 = vld [vmem:[%s448 + $0x278] sm:$0xff]
        %v1068 = vld [vmem:[%s448 + $0x280] sm:$0xff]
        %v1069 = vld [vmem:[%s448 + $0x288] sm:$0xff]
        %v1070 = vld [vmem:[%s448 + $0x290] sm:$0xff]
        %v1071 = vld [vmem:[%s448 + $0x298] sm:$0xff]
        %v1072 = vld [vmem:[%s448 + $0x2a0] sm:$0xff]
        %v1073 = vld [vmem:[%s448 + $0x2a8] sm:$0xff]
        %v1074 = vld [vmem:[%s448 + $0x2b0] sm:$0xff]
        %v1075 = vld [vmem:[%s448 + $0x2b8] sm:$0xff]
        %v1076 = vld [vmem:[%s448 + $0x2c0] sm:$0xff]
        %v1077 = vld [vmem:[%s448 + $0x2c8] sm:$0xff]
        %v1078 = vld [vmem:[%s448 + $0x2d0] sm:$0xff]
        %v1079 = vld [vmem:[%s448 + $0x2d8] sm:$0xff]
        %v1080 = vld [vmem:[%s448 + $0x2e0] sm:$0xff]
        %v1081 = vld [vmem:[%s448 + $0x2e8] sm:$0xff]
        %v1082 = vld [vmem:[%s448 + $0x2f0] sm:$0xff]
        %v1083 = vld [vmem:[%s448 + $0x2f8] sm:$0xff]
        %v1084 = vld [vmem:[%s448 + $0x300] sm:$0xff]
        %v1085 = vld [vmem:[%s448 + $0x308] sm:$0xff]
        %v1086 = vld [vmem:[%s448 + $0x310] sm:$0xff]
        %v1087 = vld [vmem:[%s448 + $0x318] sm:$0xff]
        %v1088 = vld [vmem:[%s448 + $0x320] sm:$0xff]
        %v1089 = vld [vmem:[%s448 + $0x328] sm:$0xff]
        %v1090 = vld [vmem:[%s448 + $0x330] sm:$0xff]
        %v1091 = vld [vmem:[%s448 + $0x338] sm:$0xff]
        %v1092 = vld [vmem:[%s448 + $0x340] sm:$0xff]
        %v1093 = vld [vmem:[%s448 + $0x348] sm:$0xff]
        %v1094 = vld [vmem:[%s448 + $0x350] sm:$0xff]
        %v1095 = vld [vmem:[%s448 + $0x358] sm:$0xff]
        %v1096 = vld [vmem:[%s448 + $0x360] sm:$0xff]
        %v1097 = vld [vmem:[%s448 + $0x368] sm:$0xff]
        %v1098 = vld [vmem:[%s448 + $0x370] sm:$0xff]
        %v1099 = vld [vmem:[%s448 + $0x378] sm:$0xff]
        %v1100 = vld [vmem:[%s448 + $0x380] sm:$0xff]
        %v1101 = vld [vmem:[%s448 + $0x388] sm:$0xff]
        %v1102 = vld [vmem:[%s448 + $0x390] sm:$0xff]
        %v1103 = vld [vmem:[%s448 + $0x398] sm:$0xff]
        %v1104 = vld [vmem:[%s448 + $0x3a0] sm:$0xff]
        %v1105 = vld [vmem:[%s448 + $0x3a8] sm:$0xff]
        %v1106 = vld [vmem:[%s448 + $0x3b0] sm:$0xff]
        %v1107 = vld [vmem:[%s448 + $0x3b8] sm:$0xff]
        %v1108 = vld [vmem:[%s448 + $0x3c0] sm:$0xff]
        %v1109 = vld [vmem:[%s448 + $0x3c8] sm:$0xff]
        %v1110 = vld [vmem:[%s448 + $0x3d0] sm:$0xff]
        %v1111 = vld [vmem:[%s448 + $0x3d8] sm:$0xff]
        %v1112 = vld [vmem:[%s448 + $0x3e0] sm:$0xff]
        %v1113 = vld [vmem:[%s448 + $0x3e8] sm:$0xff]
        %v1114 = vld [vmem:[%s448 + $0x3f0] sm:$0xff]
        %v1115 = vld [vmem:[%s448 + $0x3f8] sm:$0xff]
        %v1116 = vld [vmem:[%s448 + $0x400] sm:$0xff]
        %v1117 = vld [vmem:[%s448 + $0x408] sm:$0xff]
        %v1118 = vld [vmem:[%s448 + $0x410] sm:$0xff]
        %v1119 = vld [vmem:[%s448 + $0x418] sm:$0xff]
        %v1120 = vld [vmem:[%s448 + $0x420] sm:$0xff]
        %v1121 = vld [vmem:[%s448 + $0x428] sm:$0xff]
        %v1122 = vld [vmem:[%s448 + $0x430] sm:$0xff]
        %v1123 = vld [vmem:[%s448 + $0x438] sm:$0xff]
        %v1124 = vld [vmem:[%s448 + $0x440] sm:$0xff]
        %v1125 = vld [vmem:[%s448 + $0x448] sm:$0xff]
        %v1126 = vld [vmem:[%s448 + $0x450] sm:$0xff]
        %v1127 = vld [vmem:[%s448 + $0x458] sm:$0xff]
        %v1128 = vld [vmem:[%s448 + $0x460] sm:$0xff]
        %v1129 = vld [vmem:[%s448 + $0x468] sm:$0xff]
        %v1130 = vld [vmem:[%s448 + $0x470] sm:$0xff]
        %v1131 = vld [vmem:[%s448 + $0x478] sm:$0xff]
        %v1132 = vld [vmem:[%s448 + $0x480] sm:$0xff]
        %v1133 = vld [vmem:[%s448 + $0x488] sm:$0xff]
        %v1134 = vld [vmem:[%s448 + $0x490] sm:$0xff]
        %v1135 = vld [vmem:[%s448 + $0x498] sm:$0xff]
        %v1136 = vld [vmem:[%s448 + $0x4a0] sm:$0xff]
        %v1137 = vld [vmem:[%s448 + $0x4a8] sm:$0xff]
        %v1138 = vld [vmem:[%s448 + $0x4b0] sm:$0xff]
        %v1139 = vld [vmem:[%s448 + $0x4b8] sm:$0xff]
        %v1140 = vld [vmem:[%s448 + $0x4c0] sm:$0xff]
        %v1141 = vld [vmem:[%s448 + $0x4c8] sm:$0xff]
        %v1142 = vld [vmem:[%s448 + $0x4d0] sm:$0xff]
        %v1143 = vld [vmem:[%s448 + $0x4d8] sm:$0xff]
        %v1144 = vld [vmem:[%s448 + $0x4e0] sm:$0xff]
        %v1145 = vld [vmem:[%s448 + $0x4e8] sm:$0xff]
        %v1146 = vld [vmem:[%s448 + $0x4f0] sm:$0xff]
        %v1147 = vld [vmem:[%s448 + $0x4f8] sm:$0xff]
        %v1148 = vld [vmem:[%s448 + $0x500] sm:$0xff]
        %v1149 = vld [vmem:[%s448 + $0x508] sm:$0xff]
        %v1150 = vld [vmem:[%s448 + $0x510] sm:$0xff]
        %v1151 = vld [vmem:[%s448 + $0x518] sm:$0xff]
        %v1152 = vld [vmem:[%s448 + $0x520] sm:$0xff]
        %v1153 = vld [vmem:[%s448 + $0x528] sm:$0xff]
        %v1154 = vld [vmem:[%s448 + $0x530] sm:$0xff]
        %v1155 = vld [vmem:[%s448 + $0x538] sm:$0xff]
        %v1156 = vld [vmem:[%s448 + $0x540] sm:$0xff]
        %v1157 = vld [vmem:[%s448 + $0x548] sm:$0xff]
        %v1158 = vld [vmem:[%s448 + $0x550] sm:$0xff]
        %v1159 = vld [vmem:[%s448 + $0x558] sm:$0xff]
        %v1160 = vld [vmem:[%s448 + $0x560] sm:$0xff]
        %v1161 = vld [vmem:[%s448 + $0x568] sm:$0xff]
        %v1162 = vld [vmem:[%s448 + $0x570] sm:$0xff]
        %v1163 = vld [vmem:[%s448 + $0x578] sm:$0xff]
        %v1164 = vld [vmem:[%s448 + $0x580] sm:$0xff]
        %v1165 = vld [vmem:[%s448 + $0x588] sm:$0xff]
        %v1166 = vld [vmem:[%s448 + $0x590] sm:$0xff]
        %v1167 = vld [vmem:[%s448 + $0x598] sm:$0xff]
        %v1168 = vld [vmem:[%s448 + $0x5a0] sm:$0xff]
        %v1169 = vld [vmem:[%s448 + $0x5a8] sm:$0xff]
        %v1170 = vld [vmem:[%s448 + $0x5b0] sm:$0xff]
        %v1171 = vld [vmem:[%s448 + $0x5b8] sm:$0xff]
        %v1172 = vld [vmem:[%s448 + $0x5c0] sm:$0xff]
        %v1173 = vld [vmem:[%s448 + $0x5c8] sm:$0xff]
        %v1174 = vld [vmem:[%s448 + $0x5d0] sm:$0xff]
        %v1175 = vld [vmem:[%s448 + $0x5d8] sm:$0xff]
        %v1176 = vld [vmem:[%s448 + $0x5e0] sm:$0xff]
        %v1177 = vld [vmem:[%s448 + $0x5e8] sm:$0xff]
        %v1178 = vld [vmem:[%s448 + $0x5f0] sm:$0xff]
        %v1179 = vld [vmem:[%s448 + $0x5f8] sm:$0xff]
        %v1180 = vld [vmem:[%s448 + $0x600] sm:$0xff]
        %v1181 = vld [vmem:[%s448 + $0x608] sm:$0xff]
        %v1182 = vld [vmem:[%s448 + $0x610] sm:$0xff]
        %v1183 = vld [vmem:[%s448 + $0x618] sm:$0xff]
        %v1184 = vld [vmem:[%s448 + $0x620] sm:$0xff]
        %v1185 = vld [vmem:[%s448 + $0x628] sm:$0xff]
        %v1186 = vld [vmem:[%s448 + $0x630] sm:$0xff]
        %v1187 = vld [vmem:[%s448 + $0x638] sm:$0xff]
        %v1188 = vld [vmem:[%s448 + $0x640] sm:$0xff]
        %v1189 = vld [vmem:[%s448 + $0x648] sm:$0xff]
        %v1190 = vld [vmem:[%s448 + $0x650] sm:$0xff]
        %v1191 = vld [vmem:[%s448 + $0x658] sm:$0xff]
        %v1192 = vld [vmem:[%s448 + $0x660] sm:$0xff]
        %v1193 = vld [vmem:[%s448 + $0x668] sm:$0xff]
        %v1194 = vld [vmem:[%s448 + $0x670] sm:$0xff]
        %v1195 = vld [vmem:[%s448 + $0x678] sm:$0xff]
        %v1196 = vld [vmem:[%s448 + $0x680] sm:$0xff]
        %v1197 = vld [vmem:[%s448 + $0x688] sm:$0xff]
        %v1198 = vld [vmem:[%s448 + $0x690] sm:$0xff]
        %v1199 = vld [vmem:[%s448 + $0x698] sm:$0xff]
        %v1200 = vld [vmem:[%s448 + $0x6a0] sm:$0xff]
        %v1201 = vld [vmem:[%s448 + $0x6a8] sm:$0xff]
        %v1202 = vld [vmem:[%s448 + $0x6b0] sm:$0xff]
        %v1203 = vld [vmem:[%s448 + $0x6b8] sm:$0xff]
        %v1204 = vld [vmem:[%s448 + $0x6c0] sm:$0xff]
        %v1205 = vld [vmem:[%s448 + $0x6c8] sm:$0xff]
        %v1206 = vld [vmem:[%s448 + $0x6d0] sm:$0xff]
        %v1207 = vld [vmem:[%s448 + $0x6d8] sm:$0xff]
        %v1208 = vld [vmem:[%s448 + $0x6e0] sm:$0xff]
        %v1209 = vld [vmem:[%s448 + $0x6e8] sm:$0xff]
        %v1210 = vld [vmem:[%s448 + $0x6f0] sm:$0xff]
        %v1211 = vld [vmem:[%s448 + $0x6f8] sm:$0xff]
        %v1212 = vld [vmem:[%s448 + $0x700] sm:$0xff]
        %v1213 = vld [vmem:[%s448 + $0x708] sm:$0xff]
        %v1214 = vld [vmem:[%s448 + $0x710] sm:$0xff]
        %v1215 = vld [vmem:[%s448 + $0x718] sm:$0xff]
        %v1216 = vld [vmem:[%s448 + $0x720] sm:$0xff]
        %v1217 = vld [vmem:[%s448 + $0x728] sm:$0xff]
        %v1218 = vld [vmem:[%s448 + $0x730] sm:$0xff]
        %v1219 = vld [vmem:[%s448 + $0x738] sm:$0xff]
        %v1220 = vld [vmem:[%s448 + $0x740] sm:$0xff]
        %v1221 = vld [vmem:[%s448 + $0x748] sm:$0xff]
        %v1222 = vld [vmem:[%s448 + $0x750] sm:$0xff]
        %v1223 = vld [vmem:[%s448 + $0x758] sm:$0xff]
        %v1224 = vld [vmem:[%s448 + $0x760] sm:$0xff]
        %v1225 = vld [vmem:[%s448 + $0x768] sm:$0xff]
        %v1226 = vld [vmem:[%s448 + $0x770] sm:$0xff]
        %v1227 = vld [vmem:[%s448 + $0x778] sm:$0xff]
        %v1228 = vld [vmem:[%s448 + $0x780] sm:$0xff]
        %v1229 = vld [vmem:[%s448 + $0x788] sm:$0xff]
        %v1230 = vld [vmem:[%s448 + $0x790] sm:$0xff]
        %v1231 = vld [vmem:[%s448 + $0x798] sm:$0xff]
        %v1232 = vld [vmem:[%s448 + $0x7a0] sm:$0xff]
        %v1233 = vld [vmem:[%s448 + $0x7a8] sm:$0xff]
        %v1234 = vld [vmem:[%s448 + $0x7b0] sm:$0xff]
        %v1235 = vld [vmem:[%s448 + $0x7b8] sm:$0xff]
        %v1236 = vld [vmem:[%s448 + $0x7c0] sm:$0xff]
        %v1237 = vld [vmem:[%s448 + $0x7c8] sm:$0xff]
        %v1238 = vld [vmem:[%s448 + $0x7d0] sm:$0xff]
        %v1239 = vld [vmem:[%s448 + $0x7d8] sm:$0xff]
        %v1240 = vld [vmem:[%s448 + $0x7e0] sm:$0xff]
        %v1241 = vld [vmem:[%s448 + $0x7e8] sm:$0xff]
        %v1242 = vld [vmem:[%s448 + $0x7f0] sm:$0xff]
        %v1243 = vld [vmem:[%s448 + $0x7f8] sm:$0xff]
        %v1244 = vld [vmem:[%s448 + $0x800] sm:$0xff]
        %v1245 = vld [vmem:[%s448 + $0x808] sm:$0xff]
        %v1246 = vld [vmem:[%s448 + $0x810] sm:$0xff]
        %v1247 = vld [vmem:[%s448 + $0x818] sm:$0xff]
        %v1248 = vld [vmem:[%s448 + $0x820] sm:$0xff]
        %v1249 = vld [vmem:[%s448 + $0x828] sm:$0xff]
        %v1250 = vld [vmem:[%s448 + $0x830] sm:$0xff]
        %v1251 = vld [vmem:[%s448 + $0x838] sm:$0xff]
        %v1252 = vld [vmem:[%s448 + $0x840] sm:$0xff]
        %v1253 = vld [vmem:[%s448 + $0x848] sm:$0xff]
        %v1254 = vld [vmem:[%s448 + $0x850] sm:$0xff]
        %v1255 = vld [vmem:[%s448 + $0x858] sm:$0xff]
        %v1256 = vld [vmem:[%s448 + $0x860] sm:$0xff]
        %v1257 = vld [vmem:[%s448 + $0x868] sm:$0xff]
        %v1258 = vld [vmem:[%s448 + $0x870] sm:$0xff]
        %v1259 = vld [vmem:[%s448 + $0x878] sm:$0xff]
        %v1260 = vld [vmem:[%s448 + $0x880] sm:$0xff]
        %v1261 = vld [vmem:[%s448 + $0x888] sm:$0xff]
        %v1262 = vld [vmem:[%s448 + $0x890] sm:$0xff]
        %v1263 = vld [vmem:[%s448 + $0x898] sm:$0xff]
        %v1264 = vld [vmem:[%s448 + $0x8a0] sm:$0xff]
        %v1265 = vld [vmem:[%s448 + $0x8a8] sm:$0xff]
        %v1266 = vld [vmem:[%s448 + $0x8b0] sm:$0xff]
        %v1267 = vld [vmem:[%s448 + $0x8b8] sm:$0xff]
        %v1268 = vld [vmem:[%s448 + $0x8c0] sm:$0xff]
        %v1269 = vld [vmem:[%s448 + $0x8c8] sm:$0xff]
        %v1270 = vld [vmem:[%s448 + $0x8d0] sm:$0xff]
        %v1271 = vld [vmem:[%s448 + $0x8d8] sm:$0xff]
        %v1272 = vld [vmem:[%s448 + $0x8e0] sm:$0xff]
        %v1273 = vld [vmem:[%s448 + $0x8e8] sm:$0xff]
        %v1274 = vld [vmem:[%s448 + $0x8f0] sm:$0xff]
        %v1275 = vld [vmem:[%s448 + $0x8f8] sm:$0xff]
        %v1276 = vld [vmem:[%s448 + $0x900] sm:$0xff]
        %v1277 = vld [vmem:[%s448 + $0x908] sm:$0xff]
        %v1278 = vld [vmem:[%s448 + $0x910] sm:$0xff]
        %v1279 = vld [vmem:[%s448 + $0x918] sm:$0xff]
        %v1280 = vld [vmem:[%s448 + $0x920] sm:$0xff]
        %v1281 = vld [vmem:[%s448 + $0x928] sm:$0xff]
        %v1282 = vld [vmem:[%s448 + $0x930] sm:$0xff]
        %v1283 = vld [vmem:[%s448 + $0x938] sm:$0xff]
        %v1284 = vld [vmem:[%s448 + $0x940] sm:$0xff]
        %v1285 = vld [vmem:[%s448 + $0x948] sm:$0xff]
        %v1286 = vld [vmem:[%s448 + $0x950] sm:$0xff]
        %v1287 = vld [vmem:[%s448 + $0x958] sm:$0xff]
        %v1288 = vld [vmem:[%s448 + $0x960] sm:$0xff]
        %v1289 = vld [vmem:[%s448 + $0x968] sm:$0xff]
        %v1290 = vld [vmem:[%s448 + $0x970] sm:$0xff]
        %v1291 = vld [vmem:[%s448 + $0x978] sm:$0xff]
        %v1292 = vld [vmem:[%s448 + $0x980] sm:$0xff]
        %v1293 = vld [vmem:[%s448 + $0x988] sm:$0xff]
        %v1294 = vld [vmem:[%s448 + $0x990] sm:$0xff]
        %v1295 = vld [vmem:[%s448 + $0x998] sm:$0xff]
        %v1296 = vld [vmem:[%s448 + $0x9a0] sm:$0xff]
        %v1297 = vld [vmem:[%s448 + $0x9a8] sm:$0xff]
        %v1298 = vld [vmem:[%s448 + $0x9b0] sm:$0xff]
        %v1299 = vld [vmem:[%s448 + $0x9b8] sm:$0xff]
        %v1300 = vld [vmem:[%s448 + $0x9c0] sm:$0xff]
        %v1301 = vld [vmem:[%s448 + $0x9c8] sm:$0xff]
        %v1302 = vld [vmem:[%s448 + $0x9d0] sm:$0xff]
        %v1303 = vld [vmem:[%s448 + $0x9d8] sm:$0xff]
        %v1304 = vld [vmem:[%s448 + $0x9e0] sm:$0xff]
        %v1305 = vld [vmem:[%s448 + $0x9e8] sm:$0xff]
        %v1306 = vld [vmem:[%s448 + $0x9f0] sm:$0xff]
        %v1307 = vld [vmem:[%s448 + $0x9f8] sm:$0xff]
        %v1308 = vld [vmem:[%s448 + $0xa00] sm:$0xff]
        %v1309 = vld [vmem:[%s448 + $0xa08] sm:$0xff]
        %v1310 = vld [vmem:[%s448 + $0xa10] sm:$0xff]
        %v1311 = vld [vmem:[%s448 + $0xa18] sm:$0xff]
        %v1312 = vld [vmem:[%s448 + $0xa20] sm:$0xff]
        %v1313 = vld [vmem:[%s448 + $0xa28] sm:$0xff]
        %v1314 = vld [vmem:[%s448 + $0xa30] sm:$0xff]
        %v1315 = vld [vmem:[%s448 + $0xa38] sm:$0xff]
        %v1316 = vld [vmem:[%s448 + $0xa40] sm:$0xff]
        %v1317 = vld [vmem:[%s448 + $0xa48] sm:$0xff]
        %v1318 = vld [vmem:[%s448 + $0xa50] sm:$0xff]
        %v1319 = vld [vmem:[%s448 + $0xa58] sm:$0xff]
        %v1320 = vld [vmem:[%s448 + $0xa60] sm:$0xff]
        %v1321 = vld [vmem:[%s448 + $0xa68] sm:$0xff]
        %v1322 = vld [vmem:[%s448 + $0xa70] sm:$0xff]
        %v1323 = vld [vmem:[%s448 + $0xa78] sm:$0xff]
        %v1324 = vld [vmem:[%s448 + $0xa80] sm:$0xff]
        %v1325 = vld [vmem:[%s448 + $0xa88] sm:$0xff]
        %v1326 = vld [vmem:[%s448 + $0xa90] sm:$0xff]
        %v1327 = vld [vmem:[%s448 + $0xa98] sm:$0xff]
        %v1328 = vld [vmem:[%s448 + $0xaa0] sm:$0xff]
        %v1329 = vld [vmem:[%s448 + $0xaa8] sm:$0xff]
        %v1330 = vld [vmem:[%s448 + $0xab0] sm:$0xff]
        %v1331 = vld [vmem:[%s448 + $0xab8] sm:$0xff]
        %v1332 = vld [vmem:[%s448 + $0xac0] sm:$0xff]
        %v1333 = vld [vmem:[%s448 + $0xac8] sm:$0xff]
        %v1334 = vld [vmem:[%s448 + $0xad0] sm:$0xff]
        %v1335 = vld [vmem:[%s448 + $0xad8] sm:$0xff]
        %v1336 = vld [vmem:[%s448 + $0xae0] sm:$0xff]
        %v1337 = vld [vmem:[%s448 + $0xae8] sm:$0xff]
        %v1338 = vld [vmem:[%s448 + $0xaf0] sm:$0xff]
        %v1339 = vld [vmem:[%s448 + $0xaf8] sm:$0xff]
        %v1340 = vld [vmem:[%s448 + $0xb00] sm:$0xff]
        %v1341 = vld [vmem:[%s448 + $0xb08] sm:$0xff]
        %v1342 = vld [vmem:[%s448 + $0xb10] sm:$0xff]
        %v1343 = vld [vmem:[%s448 + $0xb18] sm:$0xff]
        %v1344 = vld [vmem:[%s448 + $0xb20] sm:$0xff]
        %v1345 = vld [vmem:[%s448 + $0xb28] sm:$0xff]
        %v1346 = vld [vmem:[%s448 + $0xb30] sm:$0xff]
        %v1347 = vld [vmem:[%s448 + $0xb38] sm:$0xff]
        %v1348 = vld [vmem:[%s448 + $0xb40] sm:$0xff]
        %v1349 = vld [vmem:[%s448 + $0xb48] sm:$0xff]
        %v1350 = vld [vmem:[%s448 + $0xb50] sm:$0xff]
        %v1351 = vld [vmem:[%s448 + $0xb58] sm:$0xff]
        %v1352 = vld [vmem:[%s448 + $0xb60] sm:$0xff]
        %v1353 = vld [vmem:[%s448 + $0xb68] sm:$0xff]
        %v1354 = vld [vmem:[%s448 + $0xb70] sm:$0xff]
        %v1355 = vld [vmem:[%s448 + $0xb78] sm:$0xff]
        %v1356 = vld [vmem:[%s448 + $0xb80] sm:$0xff]
        %v1357 = vld [vmem:[%s448 + $0xb88] sm:$0xff]
        %v1358 = vld [vmem:[%s448 + $0xb90] sm:$0xff]
        %v1359 = vld [vmem:[%s448 + $0xb98] sm:$0xff]
        %v1360 = vld [vmem:[%s448 + $0xba0] sm:$0xff]
        %v1361 = vld [vmem:[%s448 + $0xba8] sm:$0xff]
        %v1362 = vld [vmem:[%s448 + $0xbb0] sm:$0xff]
        %v1363 = vld [vmem:[%s448 + $0xbb8] sm:$0xff]
        %v1364 = vld [vmem:[%s448 + $0xbc0] sm:$0xff]
        %v1365 = vld [vmem:[%s448 + $0xbc8] sm:$0xff]
        %v1366 = vld [vmem:[%s448 + $0xbd0] sm:$0xff]
        %v1367 = vld [vmem:[%s448 + $0xbd8] sm:$0xff]
        %v1368 = vld [vmem:[%s448 + $0xbe0] sm:$0xff]
        %v1369 = vld [vmem:[%s448 + $0xbe8] sm:$0xff]
        %v1370 = vld [vmem:[%s448 + $0xbf0] sm:$0xff]
        %v1371 = vld [vmem:[%s448 + $0xbf8] sm:$0xff]
        %v1372 = vld [vmem:[%s448 + $0xc00] sm:$0xff]
        %v1373 = vld [vmem:[%s448 + $0xc08] sm:$0xff]
        %v1374 = vld [vmem:[%s448 + $0xc10] sm:$0xff]
        %v1375 = vld [vmem:[%s448 + $0xc18] sm:$0xff]
        %v1376 = vld [vmem:[%s448 + $0xc20] sm:$0xff]
        %v1377 = vld [vmem:[%s448 + $0xc28] sm:$0xff]
        %v1378 = vld [vmem:[%s448 + $0xc30] sm:$0xff]
        %v1379 = vld [vmem:[%s448 + $0xc38] sm:$0xff]
        %v1380 = vld [vmem:[%s448 + $0xc40] sm:$0xff]
        %v1381 = vld [vmem:[%s448 + $0xc48] sm:$0xff]
        %v1382 = vld [vmem:[%s448 + $0xc50] sm:$0xff]
        %v1383 = vld [vmem:[%s448 + $0xc58] sm:$0xff]
        %v1384 = vld [vmem:[%s448 + $0xc60] sm:$0xff]
        %v1385 = vld [vmem:[%s448 + $0xc68] sm:$0xff]
        %v1386 = vld [vmem:[%s448 + $0xc70] sm:$0xff]
        %v1387 = vld [vmem:[%s448 + $0xc78] sm:$0xff]
        %v1388 = vld [vmem:[%s448 + $0xc80] sm:$0xff]
        %v1389 = vld [vmem:[%s448 + $0xc88] sm:$0xff]
        %v1390 = vld [vmem:[%s448 + $0xc90] sm:$0xff]
        %v1391 = vld [vmem:[%s448 + $0xc98] sm:$0xff]
        %v1392 = vld [vmem:[%s448 + $0xca0] sm:$0xff]
        %v1393 = vld [vmem:[%s448 + $0xca8] sm:$0xff]
        %v1394 = vld [vmem:[%s448 + $0xcb0] sm:$0xff]
        %v1395 = vld [vmem:[%s448 + $0xcb8] sm:$0xff]
        %v1396 = vld [vmem:[%s448 + $0xcc0] sm:$0xff]
        %v1397 = vld [vmem:[%s448 + $0xcc8] sm:$0xff]
        %v1398 = vld [vmem:[%s448 + $0xcd0] sm:$0xff]
        %v1399 = vld [vmem:[%s448 + $0xcd8] sm:$0xff]
        %v1400 = vld [vmem:[%s448 + $0xce0] sm:$0xff]
        %v1401 = vld [vmem:[%s448 + $0xce8] sm:$0xff]
        %v1402 = vld [vmem:[%s448 + $0xcf0] sm:$0xff]
        %v1403 = vld [vmem:[%s448 + $0xcf8] sm:$0xff]
        %v1404 = vld [vmem:[%s448 + $0xd00] sm:$0xff]
        %v1405 = vld [vmem:[%s448 + $0xd08] sm:$0xff]
        %v1406 = vld [vmem:[%s448 + $0xd10] sm:$0xff]
        %v1407 = vld [vmem:[%s448 + $0xd18] sm:$0xff]
        %v1408 = vld [vmem:[%s448 + $0xd20] sm:$0xff]
        %v1409 = vld [vmem:[%s448 + $0xd28] sm:$0xff]
        %v1410 = vld [vmem:[%s448 + $0xd30] sm:$0xff]
        %v1411 = vld [vmem:[%s448 + $0xd38] sm:$0xff]
        %v1412 = vld [vmem:[%s448 + $0xd40] sm:$0xff]
        %v1413 = vld [vmem:[%s448 + $0xd48] sm:$0xff]
        %v1414 = vld [vmem:[%s448 + $0xd50] sm:$0xff]
        %v1415 = vld [vmem:[%s448 + $0xd58] sm:$0xff]
        %v1416 = vld [vmem:[%s448 + $0xd60] sm:$0xff]
        %v1417 = vld [vmem:[%s448 + $0xd68] sm:$0xff]
        %v1418 = vld [vmem:[%s448 + $0xd70] sm:$0xff]
        %v1419 = vld [vmem:[%s448 + $0xd78] sm:$0xff]
        %v1420 = vld [vmem:[%s448 + $0xd80] sm:$0xff]
        %v1421 = vld [vmem:[%s448 + $0xd88] sm:$0xff]
        %v1422 = vld [vmem:[%s448 + $0xd90] sm:$0xff]
        %v1423 = vld [vmem:[%s448 + $0xd98] sm:$0xff]
        %v1424 = vld [vmem:[%s448 + $0xda0] sm:$0xff]
        %v1425 = vld [vmem:[%s448 + $0xda8] sm:$0xff]
        %v1426 = vld [vmem:[%s448 + $0xdb0] sm:$0xff]
        %v1427 = vld [vmem:[%s448 + $0xdb8] sm:$0xff]
        %v1428 = vld [vmem:[%s448 + $0xdc0] sm:$0xff]
        %v1429 = vld [vmem:[%s448 + $0xdc8] sm:$0xff]
        %v1430 = vld [vmem:[%s448 + $0xdd0] sm:$0xff]
        %v1431 = vld [vmem:[%s448 + $0xdd8] sm:$0xff]
        %v1432 = vld [vmem:[%s448 + $0xde0] sm:$0xff]
        %v1433 = vld [vmem:[%s448 + $0xde8] sm:$0xff]
        %v1434 = vld [vmem:[%s448 + $0xdf0] sm:$0xff]
        %v1435 = vld [vmem:[%s448 + $0xdf8] sm:$0xff]
        %v1436 = vunpack.c.l.s8.bf16 %v988
        %v1437 = vunpack.c.l.s8.bf16 %v989
        %v1438 = vunpack.c.l.s8.bf16 %v990
        %v1439 = vunpack.c.l.s8.bf16 %v991
        %v1440 = vunpack.c.l.s8.bf16 %v992
        %v1441 = vunpack.c.l.s8.bf16 %v993
        %v1442 = vunpack.c.l.s8.bf16 %v994
        %v1443 = vunpack.c.l.s8.bf16 %v995
        %v1444 = vunpack.c.l.s8.bf16 %v996
        %v1445 = vunpack.c.l.s8.bf16 %v997
        %v1446 = vunpack.c.l.s8.bf16 %v998
        %v1447 = vunpack.c.l.s8.bf16 %v999
        %v1448 = vunpack.c.l.s8.bf16 %v1000
        %v1449 = vunpack.c.l.s8.bf16 %v1001
        %v1450 = vunpack.c.h.s8.bf16 %v988
        %v1451 = vunpack.c.h.s8.bf16 %v989
        %v1452 = vunpack.c.h.s8.bf16 %v990
        %v1453 = vunpack.c.h.s8.bf16 %v991
        %v1454 = vunpack.c.h.s8.bf16 %v992
        %v1455 = vunpack.c.h.s8.bf16 %v993
        %v1456 = vunpack.c.h.s8.bf16 %v994
        %v1457 = vunpack.c.h.s8.bf16 %v995
        %v1458 = vunpack.c.h.s8.bf16 %v996
        %v1459 = vunpack.c.h.s8.bf16 %v997
        %v1460 = vunpack.c.h.s8.bf16 %v998
        %v1461 = vunpack.c.h.s8.bf16 %v999
        %v1462 = vunpack.c.h.s8.bf16 %v1000
        %v1463 = vunpack.c.h.s8.bf16 %v1001
        %v1464 = vunpack.c.l.s8.bf16 %v1002
        %v1465 = vunpack.c.l.s8.bf16 %v1003
        %v1466 = vunpack.c.l.s8.bf16 %v1004
        %v1467 = vunpack.c.l.s8.bf16 %v1005
        %v1468 = vunpack.c.l.s8.bf16 %v1006
        %v1469 = vunpack.c.l.s8.bf16 %v1007
        %v1470 = vunpack.c.l.s8.bf16 %v1008
        %v1471 = vunpack.c.l.s8.bf16 %v1009
        %v1472 = vunpack.c.l.s8.bf16 %v1010
        %v1473 = vunpack.c.l.s8.bf16 %v1011
        %v1474 = vunpack.c.l.s8.bf16 %v1012
        %v1475 = vunpack.c.l.s8.bf16 %v1013
        %v1476 = vunpack.c.l.s8.bf16 %v1014
        %v1477 = vunpack.c.l.s8.bf16 %v1015
        %v1478 = vunpack.c.h.s8.bf16 %v1002
        %v1479 = vunpack.c.h.s8.bf16 %v1003
        %v1480 = vunpack.c.h.s8.bf16 %v1004
        %v1481 = vunpack.c.h.s8.bf16 %v1005
        %v1482 = vunpack.c.h.s8.bf16 %v1006
        %v1483 = vunpack.c.h.s8.bf16 %v1007
        %v1484 = vunpack.c.h.s8.bf16 %v1008
        %v1485 = vunpack.c.h.s8.bf16 %v1009
        %v1486 = vunpack.c.h.s8.bf16 %v1010
        %v1487 = vunpack.c.h.s8.bf16 %v1011
        %v1488 = vunpack.c.h.s8.bf16 %v1012
        %v1489 = vunpack.c.h.s8.bf16 %v1013
        %v1490 = vunpack.c.h.s8.bf16 %v1014
        %v1491 = vunpack.c.h.s8.bf16 %v1015
        %v1492 = vunpack.c.l.s8.bf16 %v1016
        %v1493 = vunpack.c.l.s8.bf16 %v1017
        %v1494 = vunpack.c.l.s8.bf16 %v1018
        %v1495 = vunpack.c.l.s8.bf16 %v1019
        %v1496 = vunpack.c.l.s8.bf16 %v1020
        %v1497 = vunpack.c.l.s8.bf16 %v1021
        %v1498 = vunpack.c.l.s8.bf16 %v1022
        %v1499 = vunpack.c.l.s8.bf16 %v1023
        %v1500 = vunpack.c.l.s8.bf16 %v1024
        %v1501 = vunpack.c.l.s8.bf16 %v1025
        %v1502 = vunpack.c.l.s8.bf16 %v1026
        %v1503 = vunpack.c.l.s8.bf16 %v1027
        %v1504 = vunpack.c.l.s8.bf16 %v1028
        %v1505 = vunpack.c.l.s8.bf16 %v1029
        %v1506 = vunpack.c.h.s8.bf16 %v1016
        %v1507 = vunpack.c.h.s8.bf16 %v1017
        %v1508 = vunpack.c.h.s8.bf16 %v1018
        %v1509 = vunpack.c.h.s8.bf16 %v1019
        %v1510 = vunpack.c.h.s8.bf16 %v1020
        %v1511 = vunpack.c.h.s8.bf16 %v1021
        %v1512 = vunpack.c.h.s8.bf16 %v1022
        %v1513 = vunpack.c.h.s8.bf16 %v1023
        %v1514 = vunpack.c.h.s8.bf16 %v1024
        %v1515 = vunpack.c.h.s8.bf16 %v1025
        %v1516 = vunpack.c.h.s8.bf16 %v1026
        %v1517 = vunpack.c.h.s8.bf16 %v1027
        %v1518 = vunpack.c.h.s8.bf16 %v1028
        %v1519 = vunpack.c.h.s8.bf16 %v1029
        %v1520 = vunpack.c.l.s8.bf16 %v1030
        %v1521 = vunpack.c.l.s8.bf16 %v1031
        %v1522 = vunpack.c.l.s8.bf16 %v1032
        %v1523 = vunpack.c.l.s8.bf16 %v1033
        %v1524 = vunpack.c.l.s8.bf16 %v1034
        %v1525 = vunpack.c.l.s8.bf16 %v1035
        %v1526 = vunpack.c.l.s8.bf16 %v1036
        %v1527 = vunpack.c.l.s8.bf16 %v1037
        %v1528 = vunpack.c.l.s8.bf16 %v1038
        %v1529 = vunpack.c.l.s8.bf16 %v1039
        %v1530 = vunpack.c.l.s8.bf16 %v1040
        %v1531 = vunpack.c.l.s8.bf16 %v1041
        %v1532 = vunpack.c.l.s8.bf16 %v1042
        %v1533 = vunpack.c.l.s8.bf16 %v1043
        %v1534 = vunpack.c.h.s8.bf16 %v1030
        %v1535 = vunpack.c.h.s8.bf16 %v1031
        %v1536 = vunpack.c.h.s8.bf16 %v1032
        %v1537 = vunpack.c.h.s8.bf16 %v1033
        %v1538 = vunpack.c.h.s8.bf16 %v1034
        %v1539 = vunpack.c.h.s8.bf16 %v1035
        %v1540 = vunpack.c.h.s8.bf16 %v1036
        %v1541 = vunpack.c.h.s8.bf16 %v1037
        %v1542 = vunpack.c.h.s8.bf16 %v1038
        %v1543 = vunpack.c.h.s8.bf16 %v1039
        %v1544 = vunpack.c.h.s8.bf16 %v1040
        %v1545 = vunpack.c.h.s8.bf16 %v1041
        %v1546 = vunpack.c.h.s8.bf16 %v1042
        %v1547 = vunpack.c.h.s8.bf16 %v1043
        %v1548 = vunpack.c.l.s8.bf16 %v1044
        %v1549 = vunpack.c.l.s8.bf16 %v1045
        %v1550 = vunpack.c.l.s8.bf16 %v1046
        %v1551 = vunpack.c.l.s8.bf16 %v1047
        %v1552 = vunpack.c.l.s8.bf16 %v1048
        %v1553 = vunpack.c.l.s8.bf16 %v1049
        %v1554 = vunpack.c.l.s8.bf16 %v1050
        %v1555 = vunpack.c.l.s8.bf16 %v1051
        %v1556 = vunpack.c.l.s8.bf16 %v1052
        %v1557 = vunpack.c.l.s8.bf16 %v1053
        %v1558 = vunpack.c.l.s8.bf16 %v1054
        %v1559 = vunpack.c.l.s8.bf16 %v1055
        %v1560 = vunpack.c.l.s8.bf16 %v1056
        %v1561 = vunpack.c.l.s8.bf16 %v1057
        %v1562 = vunpack.c.h.s8.bf16 %v1044
        %v1563 = vunpack.c.h.s8.bf16 %v1045
        %v1564 = vunpack.c.h.s8.bf16 %v1046
        %v1565 = vunpack.c.h.s8.bf16 %v1047
        %v1566 = vunpack.c.h.s8.bf16 %v1048
        %v1567 = vunpack.c.h.s8.bf16 %v1049
        %v1568 = vunpack.c.h.s8.bf16 %v1050
        %v1569 = vunpack.c.h.s8.bf16 %v1051
        %v1570 = vunpack.c.h.s8.bf16 %v1052
        %v1571 = vunpack.c.h.s8.bf16 %v1053
        %v1572 = vunpack.c.h.s8.bf16 %v1054
        %v1573 = vunpack.c.h.s8.bf16 %v1055
        %v1574 = vunpack.c.h.s8.bf16 %v1056
        %v1575 = vunpack.c.h.s8.bf16 %v1057
        %v1576 = vunpack.c.l.s8.bf16 %v1058
        %v1577 = vunpack.c.l.s8.bf16 %v1059
        %v1578 = vunpack.c.l.s8.bf16 %v1060
        %v1579 = vunpack.c.l.s8.bf16 %v1061
        %v1580 = vunpack.c.l.s8.bf16 %v1062
        %v1581 = vunpack.c.l.s8.bf16 %v1063
        %v1582 = vunpack.c.l.s8.bf16 %v1064
        %v1583 = vunpack.c.l.s8.bf16 %v1065
        %v1584 = vunpack.c.l.s8.bf16 %v1066
        %v1585 = vunpack.c.l.s8.bf16 %v1067
        %v1586 = vunpack.c.l.s8.bf16 %v1068
        %v1587 = vunpack.c.l.s8.bf16 %v1069
        %v1588 = vunpack.c.l.s8.bf16 %v1070
        %v1589 = vunpack.c.l.s8.bf16 %v1071
        %v1590 = vunpack.c.h.s8.bf16 %v1058
        %v1591 = vunpack.c.h.s8.bf16 %v1059
        %v1592 = vunpack.c.h.s8.bf16 %v1060
        %v1593 = vunpack.c.h.s8.bf16 %v1061
        %v1594 = vunpack.c.h.s8.bf16 %v1062
        %v1595 = vunpack.c.h.s8.bf16 %v1063
        %v1596 = vunpack.c.h.s8.bf16 %v1064
        %v1597 = vunpack.c.h.s8.bf16 %v1065
        %v1598 = vunpack.c.h.s8.bf16 %v1066
        %v1599 = vunpack.c.h.s8.bf16 %v1067
        %v1600 = vunpack.c.h.s8.bf16 %v1068
        %v1601 = vunpack.c.h.s8.bf16 %v1069
        %v1602 = vunpack.c.h.s8.bf16 %v1070
        %v1603 = vunpack.c.h.s8.bf16 %v1071
        %v1604 = vunpack.c.l.s8.bf16 %v1072
        %v1605 = vunpack.c.l.s8.bf16 %v1073
        %v1606 = vunpack.c.l.s8.bf16 %v1074
        %v1607 = vunpack.c.l.s8.bf16 %v1075
        %v1608 = vunpack.c.l.s8.bf16 %v1076
        %v1609 = vunpack.c.l.s8.bf16 %v1077
        %v1610 = vunpack.c.l.s8.bf16 %v1078
        %v1611 = vunpack.c.l.s8.bf16 %v1079
        %v1612 = vunpack.c.l.s8.bf16 %v1080
        %v1613 = vunpack.c.l.s8.bf16 %v1081
        %v1614 = vunpack.c.l.s8.bf16 %v1082
        %v1615 = vunpack.c.l.s8.bf16 %v1083
        %v1616 = vunpack.c.l.s8.bf16 %v1084
        %v1617 = vunpack.c.l.s8.bf16 %v1085
        %v1618 = vunpack.c.h.s8.bf16 %v1072
        %v1619 = vunpack.c.h.s8.bf16 %v1073
        %v1620 = vunpack.c.h.s8.bf16 %v1074
        %v1621 = vunpack.c.h.s8.bf16 %v1075
        %v1622 = vunpack.c.h.s8.bf16 %v1076
        %v1623 = vunpack.c.h.s8.bf16 %v1077
        %v1624 = vunpack.c.h.s8.bf16 %v1078
        %v1625 = vunpack.c.h.s8.bf16 %v1079
        %v1626 = vunpack.c.h.s8.bf16 %v1080
        %v1627 = vunpack.c.h.s8.bf16 %v1081
        %v1628 = vunpack.c.h.s8.bf16 %v1082
        %v1629 = vunpack.c.h.s8.bf16 %v1083
        %v1630 = vunpack.c.h.s8.bf16 %v1084
        %v1631 = vunpack.c.h.s8.bf16 %v1085
        %v1632 = vunpack.c.l.s8.bf16 %v1086
        %v1633 = vunpack.c.l.s8.bf16 %v1087
        %v1634 = vunpack.c.l.s8.bf16 %v1088
        %v1635 = vunpack.c.l.s8.bf16 %v1089
        %v1636 = vunpack.c.l.s8.bf16 %v1090
        %v1637 = vunpack.c.l.s8.bf16 %v1091
        %v1638 = vunpack.c.l.s8.bf16 %v1092
        %v1639 = vunpack.c.l.s8.bf16 %v1093
        %v1640 = vunpack.c.l.s8.bf16 %v1094
        %v1641 = vunpack.c.l.s8.bf16 %v1095
        %v1642 = vunpack.c.l.s8.bf16 %v1096
        %v1643 = vunpack.c.l.s8.bf16 %v1097
        %v1644 = vunpack.c.l.s8.bf16 %v1098
        %v1645 = vunpack.c.l.s8.bf16 %v1099
        %v1646 = vunpack.c.h.s8.bf16 %v1086
        %v1647 = vunpack.c.h.s8.bf16 %v1087
        %v1648 = vunpack.c.h.s8.bf16 %v1088
        %v1649 = vunpack.c.h.s8.bf16 %v1089
        %v1650 = vunpack.c.h.s8.bf16 %v1090
        %v1651 = vunpack.c.h.s8.bf16 %v1091
        %v1652 = vunpack.c.h.s8.bf16 %v1092
        %v1653 = vunpack.c.h.s8.bf16 %v1093
        %v1654 = vunpack.c.h.s8.bf16 %v1094
        %v1655 = vunpack.c.h.s8.bf16 %v1095
        %v1656 = vunpack.c.h.s8.bf16 %v1096
        %v1657 = vunpack.c.h.s8.bf16 %v1097
        %v1658 = vunpack.c.h.s8.bf16 %v1098
        %v1659 = vunpack.c.h.s8.bf16 %v1099
        %v1660 = vunpack.c.l.s8.bf16 %v1100
        %v1661 = vunpack.c.l.s8.bf16 %v1101
        %v1662 = vunpack.c.l.s8.bf16 %v1102
        %v1663 = vunpack.c.l.s8.bf16 %v1103
        %v1664 = vunpack.c.l.s8.bf16 %v1104
        %v1665 = vunpack.c.l.s8.bf16 %v1105
        %v1666 = vunpack.c.l.s8.bf16 %v1106
        %v1667 = vunpack.c.l.s8.bf16 %v1107
        %v1668 = vunpack.c.l.s8.bf16 %v1108
        %v1669 = vunpack.c.l.s8.bf16 %v1109
        %v1670 = vunpack.c.l.s8.bf16 %v1110
        %v1671 = vunpack.c.l.s8.bf16 %v1111
        %v1672 = vunpack.c.l.s8.bf16 %v1112
        %v1673 = vunpack.c.l.s8.bf16 %v1113
        %v1674 = vunpack.c.h.s8.bf16 %v1100
        %v1675 = vunpack.c.h.s8.bf16 %v1101
        %v1676 = vunpack.c.h.s8.bf16 %v1102
        %v1677 = vunpack.c.h.s8.bf16 %v1103
        %v1678 = vunpack.c.h.s8.bf16 %v1104
        %v1679 = vunpack.c.h.s8.bf16 %v1105
        %v1680 = vunpack.c.h.s8.bf16 %v1106
        %v1681 = vunpack.c.h.s8.bf16 %v1107
        %v1682 = vunpack.c.h.s8.bf16 %v1108
        %v1683 = vunpack.c.h.s8.bf16 %v1109
        %v1684 = vunpack.c.h.s8.bf16 %v1110
        %v1685 = vunpack.c.h.s8.bf16 %v1111
        %v1686 = vunpack.c.h.s8.bf16 %v1112
        %v1687 = vunpack.c.h.s8.bf16 %v1113
        %v1688 = vunpack.c.l.s8.bf16 %v1114
        %v1689 = vunpack.c.l.s8.bf16 %v1115
        %v1690 = vunpack.c.l.s8.bf16 %v1116
        %v1691 = vunpack.c.l.s8.bf16 %v1117
        %v1692 = vunpack.c.l.s8.bf16 %v1118
        %v1693 = vunpack.c.l.s8.bf16 %v1119
        %v1694 = vunpack.c.l.s8.bf16 %v1120
        %v1695 = vunpack.c.l.s8.bf16 %v1121
        %v1696 = vunpack.c.l.s8.bf16 %v1122
        %v1697 = vunpack.c.l.s8.bf16 %v1123
        %v1698 = vunpack.c.l.s8.bf16 %v1124
        %v1699 = vunpack.c.l.s8.bf16 %v1125
        %v1700 = vunpack.c.l.s8.bf16 %v1126
        %v1701 = vunpack.c.l.s8.bf16 %v1127
        %v1702 = vunpack.c.h.s8.bf16 %v1114
        %v1703 = vunpack.c.h.s8.bf16 %v1115
        %v1704 = vunpack.c.h.s8.bf16 %v1116
        %v1705 = vunpack.c.h.s8.bf16 %v1117
        %v1706 = vunpack.c.h.s8.bf16 %v1118
        %v1707 = vunpack.c.h.s8.bf16 %v1119
        %v1708 = vunpack.c.h.s8.bf16 %v1120
        %v1709 = vunpack.c.h.s8.bf16 %v1121
        %v1710 = vunpack.c.h.s8.bf16 %v1122
        %v1711 = vunpack.c.h.s8.bf16 %v1123
        %v1712 = vunpack.c.h.s8.bf16 %v1124
        %v1713 = vunpack.c.h.s8.bf16 %v1125
        %v1714 = vunpack.c.h.s8.bf16 %v1126
        %v1715 = vunpack.c.h.s8.bf16 %v1127
        %v1716 = vunpack.c.l.s8.bf16 %v1128
        %v1717 = vunpack.c.l.s8.bf16 %v1129
        %v1718 = vunpack.c.l.s8.bf16 %v1130
        %v1719 = vunpack.c.l.s8.bf16 %v1131
        %v1720 = vunpack.c.l.s8.bf16 %v1132
        %v1721 = vunpack.c.l.s8.bf16 %v1133
        %v1722 = vunpack.c.l.s8.bf16 %v1134
        %v1723 = vunpack.c.l.s8.bf16 %v1135
        %v1724 = vunpack.c.l.s8.bf16 %v1136
        %v1725 = vunpack.c.l.s8.bf16 %v1137
        %v1726 = vunpack.c.l.s8.bf16 %v1138
        %v1727 = vunpack.c.l.s8.bf16 %v1139
        %v1728 = vunpack.c.l.s8.bf16 %v1140
        %v1729 = vunpack.c.l.s8.bf16 %v1141
        %v1730 = vunpack.c.h.s8.bf16 %v1128
        %v1731 = vunpack.c.h.s8.bf16 %v1129
        %v1732 = vunpack.c.h.s8.bf16 %v1130
        %v1733 = vunpack.c.h.s8.bf16 %v1131
        %v1734 = vunpack.c.h.s8.bf16 %v1132
        %v1735 = vunpack.c.h.s8.bf16 %v1133
        %v1736 = vunpack.c.h.s8.bf16 %v1134
        %v1737 = vunpack.c.h.s8.bf16 %v1135
        %v1738 = vunpack.c.h.s8.bf16 %v1136
        %v1739 = vunpack.c.h.s8.bf16 %v1137
        %v1740 = vunpack.c.h.s8.bf16 %v1138
        %v1741 = vunpack.c.h.s8.bf16 %v1139
        %v1742 = vunpack.c.h.s8.bf16 %v1140
        %v1743 = vunpack.c.h.s8.bf16 %v1141
        %v1744 = vunpack.c.l.s8.bf16 %v1142
        %v1745 = vunpack.c.l.s8.bf16 %v1143
        %v1746 = vunpack.c.l.s8.bf16 %v1144
        %v1747 = vunpack.c.l.s8.bf16 %v1145
        %v1748 = vunpack.c.l.s8.bf16 %v1146
        %v1749 = vunpack.c.l.s8.bf16 %v1147
        %v1750 = vunpack.c.l.s8.bf16 %v1148
        %v1751 = vunpack.c.l.s8.bf16 %v1149
        %v1752 = vunpack.c.l.s8.bf16 %v1150
        %v1753 = vunpack.c.l.s8.bf16 %v1151
        %v1754 = vunpack.c.l.s8.bf16 %v1152
        %v1755 = vunpack.c.l.s8.bf16 %v1153
        %v1756 = vunpack.c.l.s8.bf16 %v1154
        %v1757 = vunpack.c.l.s8.bf16 %v1155
        %v1758 = vunpack.c.h.s8.bf16 %v1142
        %v1759 = vunpack.c.h.s8.bf16 %v1143
        %v1760 = vunpack.c.h.s8.bf16 %v1144
        %v1761 = vunpack.c.h.s8.bf16 %v1145
        %v1762 = vunpack.c.h.s8.bf16 %v1146
        %v1763 = vunpack.c.h.s8.bf16 %v1147
        %v1764 = vunpack.c.h.s8.bf16 %v1148
        %v1765 = vunpack.c.h.s8.bf16 %v1149
        %v1766 = vunpack.c.h.s8.bf16 %v1150
        %v1767 = vunpack.c.h.s8.bf16 %v1151
        %v1768 = vunpack.c.h.s8.bf16 %v1152
        %v1769 = vunpack.c.h.s8.bf16 %v1153
        %v1770 = vunpack.c.h.s8.bf16 %v1154
        %v1771 = vunpack.c.h.s8.bf16 %v1155
        %v1772 = vunpack.c.l.s8.bf16 %v1156
        %v1773 = vunpack.c.l.s8.bf16 %v1157
        %v1774 = vunpack.c.l.s8.bf16 %v1158
        %v1775 = vunpack.c.l.s8.bf16 %v1159
        %v1776 = vunpack.c.l.s8.bf16 %v1160
        %v1777 = vunpack.c.l.s8.bf16 %v1161
        %v1778 = vunpack.c.l.s8.bf16 %v1162
        %v1779 = vunpack.c.l.s8.bf16 %v1163
        %v1780 = vunpack.c.l.s8.bf16 %v1164
        %v1781 = vunpack.c.l.s8.bf16 %v1165
        %v1782 = vunpack.c.l.s8.bf16 %v1166
        %v1783 = vunpack.c.l.s8.bf16 %v1167
        %v1784 = vunpack.c.l.s8.bf16 %v1168
        %v1785 = vunpack.c.l.s8.bf16 %v1169
        %v1786 = vunpack.c.h.s8.bf16 %v1156
        %v1787 = vunpack.c.h.s8.bf16 %v1157
        %v1788 = vunpack.c.h.s8.bf16 %v1158
        %v1789 = vunpack.c.h.s8.bf16 %v1159
        %v1790 = vunpack.c.h.s8.bf16 %v1160
        %v1791 = vunpack.c.h.s8.bf16 %v1161
        %v1792 = vunpack.c.h.s8.bf16 %v1162
        %v1793 = vunpack.c.h.s8.bf16 %v1163
        %v1794 = vunpack.c.h.s8.bf16 %v1164
        %v1795 = vunpack.c.h.s8.bf16 %v1165
        %v1796 = vunpack.c.h.s8.bf16 %v1166
        %v1797 = vunpack.c.h.s8.bf16 %v1167
        %v1798 = vunpack.c.h.s8.bf16 %v1168
        %v1799 = vunpack.c.h.s8.bf16 %v1169
        %v1800 = vunpack.c.l.s8.bf16 %v1170
        %v1801 = vunpack.c.l.s8.bf16 %v1171
        %v1802 = vunpack.c.l.s8.bf16 %v1172
        %v1803 = vunpack.c.l.s8.bf16 %v1173
        %v1804 = vunpack.c.l.s8.bf16 %v1174
        %v1805 = vunpack.c.l.s8.bf16 %v1175
        %v1806 = vunpack.c.l.s8.bf16 %v1176
        %v1807 = vunpack.c.l.s8.bf16 %v1177
        %v1808 = vunpack.c.l.s8.bf16 %v1178
        %v1809 = vunpack.c.l.s8.bf16 %v1179
        %v1810 = vunpack.c.l.s8.bf16 %v1180
        %v1811 = vunpack.c.l.s8.bf16 %v1181
        %v1812 = vunpack.c.l.s8.bf16 %v1182
        %v1813 = vunpack.c.l.s8.bf16 %v1183
        %v1814 = vunpack.c.h.s8.bf16 %v1170
        %v1815 = vunpack.c.h.s8.bf16 %v1171
        %v1816 = vunpack.c.h.s8.bf16 %v1172
        %v1817 = vunpack.c.h.s8.bf16 %v1173
        %v1818 = vunpack.c.h.s8.bf16 %v1174
        %v1819 = vunpack.c.h.s8.bf16 %v1175
        %v1820 = vunpack.c.h.s8.bf16 %v1176
        %v1821 = vunpack.c.h.s8.bf16 %v1177
        %v1822 = vunpack.c.h.s8.bf16 %v1178
        %v1823 = vunpack.c.h.s8.bf16 %v1179
        %v1824 = vunpack.c.h.s8.bf16 %v1180
        %v1825 = vunpack.c.h.s8.bf16 %v1181
        %v1826 = vunpack.c.h.s8.bf16 %v1182
        %v1827 = vunpack.c.h.s8.bf16 %v1183
        %v1828 = vunpack.c.l.s8.bf16 %v1184
        %v1829 = vunpack.c.l.s8.bf16 %v1185
        %v1830 = vunpack.c.l.s8.bf16 %v1186
        %v1831 = vunpack.c.l.s8.bf16 %v1187
        %v1832 = vunpack.c.l.s8.bf16 %v1188
        %v1833 = vunpack.c.l.s8.bf16 %v1189
        %v1834 = vunpack.c.l.s8.bf16 %v1190
        %v1835 = vunpack.c.l.s8.bf16 %v1191
        %v1836 = vunpack.c.l.s8.bf16 %v1192
        %v1837 = vunpack.c.l.s8.bf16 %v1193
        %v1838 = vunpack.c.l.s8.bf16 %v1194
        %v1839 = vunpack.c.l.s8.bf16 %v1195
        %v1840 = vunpack.c.l.s8.bf16 %v1196
        %v1841 = vunpack.c.l.s8.bf16 %v1197
        %v1842 = vunpack.c.h.s8.bf16 %v1184
        %v1843 = vunpack.c.h.s8.bf16 %v1185
        %v1844 = vunpack.c.h.s8.bf16 %v1186
        %v1845 = vunpack.c.h.s8.bf16 %v1187
        %v1846 = vunpack.c.h.s8.bf16 %v1188
        %v1847 = vunpack.c.h.s8.bf16 %v1189
        %v1848 = vunpack.c.h.s8.bf16 %v1190
        %v1849 = vunpack.c.h.s8.bf16 %v1191
        %v1850 = vunpack.c.h.s8.bf16 %v1192
        %v1851 = vunpack.c.h.s8.bf16 %v1193
        %v1852 = vunpack.c.h.s8.bf16 %v1194
        %v1853 = vunpack.c.h.s8.bf16 %v1195
        %v1854 = vunpack.c.h.s8.bf16 %v1196
        %v1855 = vunpack.c.h.s8.bf16 %v1197
        %v1856 = vunpack.c.l.s8.bf16 %v1198
        %v1857 = vunpack.c.l.s8.bf16 %v1199
        %v1858 = vunpack.c.l.s8.bf16 %v1200
        %v1859 = vunpack.c.l.s8.bf16 %v1201
        %v1860 = vunpack.c.l.s8.bf16 %v1202
        %v1861 = vunpack.c.l.s8.bf16 %v1203
        %v1862 = vunpack.c.l.s8.bf16 %v1204
        %v1863 = vunpack.c.l.s8.bf16 %v1205
        %v1864 = vunpack.c.l.s8.bf16 %v1206
        %v1865 = vunpack.c.l.s8.bf16 %v1207
        %v1866 = vunpack.c.l.s8.bf16 %v1208
        %v1867 = vunpack.c.l.s8.bf16 %v1209
        %v1868 = vunpack.c.l.s8.bf16 %v1210
        %v1869 = vunpack.c.l.s8.bf16 %v1211
        %v1870 = vunpack.c.h.s8.bf16 %v1198
        %v1871 = vunpack.c.h.s8.bf16 %v1199
        %v1872 = vunpack.c.h.s8.bf16 %v1200
        %v1873 = vunpack.c.h.s8.bf16 %v1201
        %v1874 = vunpack.c.h.s8.bf16 %v1202
        %v1875 = vunpack.c.h.s8.bf16 %v1203
        %v1876 = vunpack.c.h.s8.bf16 %v1204
        %v1877 = vunpack.c.h.s8.bf16 %v1205
        %v1878 = vunpack.c.h.s8.bf16 %v1206
        %v1879 = vunpack.c.h.s8.bf16 %v1207
        %v1880 = vunpack.c.h.s8.bf16 %v1208
        %v1881 = vunpack.c.h.s8.bf16 %v1209
        %v1882 = vunpack.c.h.s8.bf16 %v1210
        %v1883 = vunpack.c.h.s8.bf16 %v1211
        %v1884 = vunpack.c.l.s8.bf16 %v1212
        %v1885 = vunpack.c.l.s8.bf16 %v1213
        %v1886 = vunpack.c.l.s8.bf16 %v1214
        %v1887 = vunpack.c.l.s8.bf16 %v1215
        %v1888 = vunpack.c.l.s8.bf16 %v1216
        %v1889 = vunpack.c.l.s8.bf16 %v1217
        %v1890 = vunpack.c.l.s8.bf16 %v1218
        %v1891 = vunpack.c.l.s8.bf16 %v1219
        %v1892 = vunpack.c.l.s8.bf16 %v1220
        %v1893 = vunpack.c.l.s8.bf16 %v1221
        %v1894 = vunpack.c.l.s8.bf16 %v1222
        %v1895 = vunpack.c.l.s8.bf16 %v1223
        %v1896 = vunpack.c.l.s8.bf16 %v1224
        %v1897 = vunpack.c.l.s8.bf16 %v1225
        %v1898 = vunpack.c.h.s8.bf16 %v1212
        %v1899 = vunpack.c.h.s8.bf16 %v1213
        %v1900 = vunpack.c.h.s8.bf16 %v1214
        %v1901 = vunpack.c.h.s8.bf16 %v1215
        %v1902 = vunpack.c.h.s8.bf16 %v1216
        %v1903 = vunpack.c.h.s8.bf16 %v1217
        %v1904 = vunpack.c.h.s8.bf16 %v1218
        %v1905 = vunpack.c.h.s8.bf16 %v1219
        %v1906 = vunpack.c.h.s8.bf16 %v1220
        %v1907 = vunpack.c.h.s8.bf16 %v1221
        %v1908 = vunpack.c.h.s8.bf16 %v1222
        %v1909 = vunpack.c.h.s8.bf16 %v1223
        %v1910 = vunpack.c.h.s8.bf16 %v1224
        %v1911 = vunpack.c.h.s8.bf16 %v1225
        %v1912 = vunpack.c.l.s8.bf16 %v1226
        %v1913 = vunpack.c.l.s8.bf16 %v1227
        %v1914 = vunpack.c.l.s8.bf16 %v1228
        %v1915 = vunpack.c.l.s8.bf16 %v1229
        %v1916 = vunpack.c.l.s8.bf16 %v1230
        %v1917 = vunpack.c.l.s8.bf16 %v1231
        %v1918 = vunpack.c.l.s8.bf16 %v1232
        %v1919 = vunpack.c.l.s8.bf16 %v1233
        %v1920 = vunpack.c.l.s8.bf16 %v1234
        %v1921 = vunpack.c.l.s8.bf16 %v1235
        %v1922 = vunpack.c.l.s8.bf16 %v1236
        %v1923 = vunpack.c.l.s8.bf16 %v1237
        %v1924 = vunpack.c.l.s8.bf16 %v1238
        %v1925 = vunpack.c.l.s8.bf16 %v1239
        %v1926 = vunpack.c.h.s8.bf16 %v1226
        %v1927 = vunpack.c.h.s8.bf16 %v1227
        %v1928 = vunpack.c.h.s8.bf16 %v1228
        %v1929 = vunpack.c.h.s8.bf16 %v1229
        %v1930 = vunpack.c.h.s8.bf16 %v1230
        %v1931 = vunpack.c.h.s8.bf16 %v1231
        %v1932 = vunpack.c.h.s8.bf16 %v1232
        %v1933 = vunpack.c.h.s8.bf16 %v1233
        %v1934 = vunpack.c.h.s8.bf16 %v1234
        %v1935 = vunpack.c.h.s8.bf16 %v1235
        %v1936 = vunpack.c.h.s8.bf16 %v1236
        %v1937 = vunpack.c.h.s8.bf16 %v1237
        %v1938 = vunpack.c.h.s8.bf16 %v1238
        %v1939 = vunpack.c.h.s8.bf16 %v1239
        %v1940 = vunpack.c.l.s8.bf16 %v1240
        %v1941 = vunpack.c.l.s8.bf16 %v1241
        %v1942 = vunpack.c.l.s8.bf16 %v1242
        %v1943 = vunpack.c.l.s8.bf16 %v1243
        %v1944 = vunpack.c.l.s8.bf16 %v1244
        %v1945 = vunpack.c.l.s8.bf16 %v1245
        %v1946 = vunpack.c.l.s8.bf16 %v1246
        %v1947 = vunpack.c.l.s8.bf16 %v1247
        %v1948 = vunpack.c.l.s8.bf16 %v1248
        %v1949 = vunpack.c.l.s8.bf16 %v1249
        %v1950 = vunpack.c.l.s8.bf16 %v1250
        %v1951 = vunpack.c.l.s8.bf16 %v1251
        %v1952 = vunpack.c.l.s8.bf16 %v1252
        %v1953 = vunpack.c.l.s8.bf16 %v1253
        %v1954 = vunpack.c.h.s8.bf16 %v1240
        %v1955 = vunpack.c.h.s8.bf16 %v1241
        %v1956 = vunpack.c.h.s8.bf16 %v1242
        %v1957 = vunpack.c.h.s8.bf16 %v1243
        %v1958 = vunpack.c.h.s8.bf16 %v1244
        %v1959 = vunpack.c.h.s8.bf16 %v1245
        %v1960 = vunpack.c.h.s8.bf16 %v1246
        %v1961 = vunpack.c.h.s8.bf16 %v1247
        %v1962 = vunpack.c.h.s8.bf16 %v1248
        %v1963 = vunpack.c.h.s8.bf16 %v1249
        %v1964 = vunpack.c.h.s8.bf16 %v1250
        %v1965 = vunpack.c.h.s8.bf16 %v1251
        %v1966 = vunpack.c.h.s8.bf16 %v1252
        %v1967 = vunpack.c.h.s8.bf16 %v1253
        %v1968 = vunpack.c.l.s8.bf16 %v1254
        %v1969 = vunpack.c.l.s8.bf16 %v1255
        %v1970 = vunpack.c.l.s8.bf16 %v1256
        %v1971 = vunpack.c.l.s8.bf16 %v1257
        %v1972 = vunpack.c.l.s8.bf16 %v1258
        %v1973 = vunpack.c.l.s8.bf16 %v1259
        %v1974 = vunpack.c.l.s8.bf16 %v1260
        %v1975 = vunpack.c.l.s8.bf16 %v1261
        %v1976 = vunpack.c.l.s8.bf16 %v1262
        %v1977 = vunpack.c.l.s8.bf16 %v1263
        %v1978 = vunpack.c.l.s8.bf16 %v1264
        %v1979 = vunpack.c.l.s8.bf16 %v1265
        %v1980 = vunpack.c.l.s8.bf16 %v1266
        %v1981 = vunpack.c.l.s8.bf16 %v1267
        %v1982 = vunpack.c.h.s8.bf16 %v1254
        %v1983 = vunpack.c.h.s8.bf16 %v1255
        %v1984 = vunpack.c.h.s8.bf16 %v1256
        %v1985 = vunpack.c.h.s8.bf16 %v1257
        %v1986 = vunpack.c.h.s8.bf16 %v1258
        %v1987 = vunpack.c.h.s8.bf16 %v1259
        %v1988 = vunpack.c.h.s8.bf16 %v1260
        %v1989 = vunpack.c.h.s8.bf16 %v1261
        %v1990 = vunpack.c.h.s8.bf16 %v1262
        %v1991 = vunpack.c.h.s8.bf16 %v1263
        %v1992 = vunpack.c.h.s8.bf16 %v1264
        %v1993 = vunpack.c.h.s8.bf16 %v1265
        %v1994 = vunpack.c.h.s8.bf16 %v1266
        %v1995 = vunpack.c.h.s8.bf16 %v1267
        %v1996 = vunpack.c.l.s8.bf16 %v1268
        %v1997 = vunpack.c.l.s8.bf16 %v1269
        %v1998 = vunpack.c.l.s8.bf16 %v1270
        %v1999 = vunpack.c.l.s8.bf16 %v1271
        %v2000 = vunpack.c.l.s8.bf16 %v1272
        %v2001 = vunpack.c.l.s8.bf16 %v1273
        %v2002 = vunpack.c.l.s8.bf16 %v1274
        %v2003 = vunpack.c.l.s8.bf16 %v1275
        %v2004 = vunpack.c.l.s8.bf16 %v1276
        %v2005 = vunpack.c.l.s8.bf16 %v1277
        %v2006 = vunpack.c.l.s8.bf16 %v1278
        %v2007 = vunpack.c.l.s8.bf16 %v1279
        %v2008 = vunpack.c.l.s8.bf16 %v1280
        %v2009 = vunpack.c.l.s8.bf16 %v1281
        %v2010 = vunpack.c.h.s8.bf16 %v1268
        %v2011 = vunpack.c.h.s8.bf16 %v1269
        %v2012 = vunpack.c.h.s8.bf16 %v1270
        %v2013 = vunpack.c.h.s8.bf16 %v1271
        %v2014 = vunpack.c.h.s8.bf16 %v1272
        %v2015 = vunpack.c.h.s8.bf16 %v1273
        %v2016 = vunpack.c.h.s8.bf16 %v1274
        %v2017 = vunpack.c.h.s8.bf16 %v1275
        %v2018 = vunpack.c.h.s8.bf16 %v1276
        %v2019 = vunpack.c.h.s8.bf16 %v1277
        %v2020 = vunpack.c.h.s8.bf16 %v1278
        %v2021 = vunpack.c.h.s8.bf16 %v1279
        %v2022 = vunpack.c.h.s8.bf16 %v1280
        %v2023 = vunpack.c.h.s8.bf16 %v1281
        %v2024 = vunpack.c.l.s8.bf16 %v1282
        %v2025 = vunpack.c.l.s8.bf16 %v1283
        %v2026 = vunpack.c.l.s8.bf16 %v1284
        %v2027 = vunpack.c.l.s8.bf16 %v1285
        %v2028 = vunpack.c.l.s8.bf16 %v1286
        %v2029 = vunpack.c.l.s8.bf16 %v1287
        %v2030 = vunpack.c.l.s8.bf16 %v1288
        %v2031 = vunpack.c.l.s8.bf16 %v1289
        %v2032 = vunpack.c.l.s8.bf16 %v1290
        %v2033 = vunpack.c.l.s8.bf16 %v1291
        %v2034 = vunpack.c.l.s8.bf16 %v1292
        %v2035 = vunpack.c.l.s8.bf16 %v1293
        %v2036 = vunpack.c.l.s8.bf16 %v1294
        %v2037 = vunpack.c.l.s8.bf16 %v1295
        %v2038 = vunpack.c.h.s8.bf16 %v1282
        %v2039 = vunpack.c.h.s8.bf16 %v1283
        %v2040 = vunpack.c.h.s8.bf16 %v1284
        %v2041 = vunpack.c.h.s8.bf16 %v1285
        %v2042 = vunpack.c.h.s8.bf16 %v1286
        %v2043 = vunpack.c.h.s8.bf16 %v1287
        %v2044 = vunpack.c.h.s8.bf16 %v1288
        %v2045 = vunpack.c.h.s8.bf16 %v1289
        %v2046 = vunpack.c.h.s8.bf16 %v1290
        %v2047 = vunpack.c.h.s8.bf16 %v1291
        %v2048 = vunpack.c.h.s8.bf16 %v1292
        %v2049 = vunpack.c.h.s8.bf16 %v1293
        %v2050 = vunpack.c.h.s8.bf16 %v1294
        %v2051 = vunpack.c.h.s8.bf16 %v1295
        %v2052 = vunpack.c.l.s8.bf16 %v1296
        %v2053 = vunpack.c.l.s8.bf16 %v1297
        %v2054 = vunpack.c.l.s8.bf16 %v1298
        %v2055 = vunpack.c.l.s8.bf16 %v1299
        %v2056 = vunpack.c.l.s8.bf16 %v1300
        %v2057 = vunpack.c.l.s8.bf16 %v1301
        %v2058 = vunpack.c.l.s8.bf16 %v1302
        %v2059 = vunpack.c.l.s8.bf16 %v1303
        %v2060 = vunpack.c.l.s8.bf16 %v1304
        %v2061 = vunpack.c.l.s8.bf16 %v1305
        %v2062 = vunpack.c.l.s8.bf16 %v1306
        %v2063 = vunpack.c.l.s8.bf16 %v1307
        %v2064 = vunpack.c.l.s8.bf16 %v1308
        %v2065 = vunpack.c.l.s8.bf16 %v1309
        %v2066 = vunpack.c.h.s8.bf16 %v1296
        %v2067 = vunpack.c.h.s8.bf16 %v1297
        %v2068 = vunpack.c.h.s8.bf16 %v1298
        %v2069 = vunpack.c.h.s8.bf16 %v1299
        %v2070 = vunpack.c.h.s8.bf16 %v1300
        %v2071 = vunpack.c.h.s8.bf16 %v1301
        %v2072 = vunpack.c.h.s8.bf16 %v1302
        %v2073 = vunpack.c.h.s8.bf16 %v1303
        %v2074 = vunpack.c.h.s8.bf16 %v1304
        %v2075 = vunpack.c.h.s8.bf16 %v1305
        %v2076 = vunpack.c.h.s8.bf16 %v1306
        %v2077 = vunpack.c.h.s8.bf16 %v1307
        %v2078 = vunpack.c.h.s8.bf16 %v1308
        %v2079 = vunpack.c.h.s8.bf16 %v1309
        %v2080 = vunpack.c.l.s8.bf16 %v1310
        %v2081 = vunpack.c.l.s8.bf16 %v1311
        %v2082 = vunpack.c.l.s8.bf16 %v1312
        %v2083 = vunpack.c.l.s8.bf16 %v1313
        %v2084 = vunpack.c.l.s8.bf16 %v1314
        %v2085 = vunpack.c.l.s8.bf16 %v1315
        %v2086 = vunpack.c.l.s8.bf16 %v1316
        %v2087 = vunpack.c.l.s8.bf16 %v1317
        %v2088 = vunpack.c.l.s8.bf16 %v1318
        %v2089 = vunpack.c.l.s8.bf16 %v1319
        %v2090 = vunpack.c.l.s8.bf16 %v1320
        %v2091 = vunpack.c.l.s8.bf16 %v1321
        %v2092 = vunpack.c.l.s8.bf16 %v1322
        %v2093 = vunpack.c.l.s8.bf16 %v1323
        %v2094 = vunpack.c.h.s8.bf16 %v1310
        %v2095 = vunpack.c.h.s8.bf16 %v1311
        %v2096 = vunpack.c.h.s8.bf16 %v1312
        %v2097 = vunpack.c.h.s8.bf16 %v1313
        %v2098 = vunpack.c.h.s8.bf16 %v1314
        %v2099 = vunpack.c.h.s8.bf16 %v1315
        %v2100 = vunpack.c.h.s8.bf16 %v1316
        %v2101 = vunpack.c.h.s8.bf16 %v1317
        %v2102 = vunpack.c.h.s8.bf16 %v1318
        %v2103 = vunpack.c.h.s8.bf16 %v1319
        %v2104 = vunpack.c.h.s8.bf16 %v1320
        %v2105 = vunpack.c.h.s8.bf16 %v1321
        %v2106 = vunpack.c.h.s8.bf16 %v1322
        %v2107 = vunpack.c.h.s8.bf16 %v1323
        %v2108 = vunpack.c.l.s8.bf16 %v1324
        %v2109 = vunpack.c.l.s8.bf16 %v1325
        %v2110 = vunpack.c.l.s8.bf16 %v1326
        %v2111 = vunpack.c.l.s8.bf16 %v1327
        %v2112 = vunpack.c.l.s8.bf16 %v1328
        %v2113 = vunpack.c.l.s8.bf16 %v1329
        %v2114 = vunpack.c.l.s8.bf16 %v1330
        %v2115 = vunpack.c.l.s8.bf16 %v1331
        %v2116 = vunpack.c.l.s8.bf16 %v1332
        %v2117 = vunpack.c.l.s8.bf16 %v1333
        %v2118 = vunpack.c.l.s8.bf16 %v1334
        %v2119 = vunpack.c.l.s8.bf16 %v1335
        %v2120 = vunpack.c.l.s8.bf16 %v1336
        %v2121 = vunpack.c.l.s8.bf16 %v1337
        %v2122 = vunpack.c.h.s8.bf16 %v1324
        %v2123 = vunpack.c.h.s8.bf16 %v1325
        %v2124 = vunpack.c.h.s8.bf16 %v1326
        %v2125 = vunpack.c.h.s8.bf16 %v1327
        %v2126 = vunpack.c.h.s8.bf16 %v1328
        %v2127 = vunpack.c.h.s8.bf16 %v1329
        %v2128 = vunpack.c.h.s8.bf16 %v1330
        %v2129 = vunpack.c.h.s8.bf16 %v1331
        %v2130 = vunpack.c.h.s8.bf16 %v1332
        %v2131 = vunpack.c.h.s8.bf16 %v1333
        %v2132 = vunpack.c.h.s8.bf16 %v1334
        %v2133 = vunpack.c.h.s8.bf16 %v1335
        %v2134 = vunpack.c.h.s8.bf16 %v1336
        %v2135 = vunpack.c.h.s8.bf16 %v1337
        %v2136 = vunpack.c.l.s8.bf16 %v1338
        %v2137 = vunpack.c.l.s8.bf16 %v1339
        %v2138 = vunpack.c.l.s8.bf16 %v1340
        %v2139 = vunpack.c.l.s8.bf16 %v1341
        %v2140 = vunpack.c.l.s8.bf16 %v1342
        %v2141 = vunpack.c.l.s8.bf16 %v1343
        %v2142 = vunpack.c.l.s8.bf16 %v1344
        %v2143 = vunpack.c.l.s8.bf16 %v1345
        %v2144 = vunpack.c.l.s8.bf16 %v1346
        %v2145 = vunpack.c.l.s8.bf16 %v1347
        %v2146 = vunpack.c.l.s8.bf16 %v1348
        %v2147 = vunpack.c.l.s8.bf16 %v1349
        %v2148 = vunpack.c.l.s8.bf16 %v1350
        %v2149 = vunpack.c.l.s8.bf16 %v1351
        %v2150 = vunpack.c.h.s8.bf16 %v1338
        %v2151 = vunpack.c.h.s8.bf16 %v1339
        %v2152 = vunpack.c.h.s8.bf16 %v1340
        %v2153 = vunpack.c.h.s8.bf16 %v1341
        %v2154 = vunpack.c.h.s8.bf16 %v1342
        %v2155 = vunpack.c.h.s8.bf16 %v1343
        %v2156 = vunpack.c.h.s8.bf16 %v1344
        %v2157 = vunpack.c.h.s8.bf16 %v1345
        %v2158 = vunpack.c.h.s8.bf16 %v1346
        %v2159 = vunpack.c.h.s8.bf16 %v1347
        %v2160 = vunpack.c.h.s8.bf16 %v1348
        %v2161 = vunpack.c.h.s8.bf16 %v1349
        %v2162 = vunpack.c.h.s8.bf16 %v1350
        %v2163 = vunpack.c.h.s8.bf16 %v1351
        %v2164 = vunpack.c.l.s8.bf16 %v1352
        %v2165 = vunpack.c.l.s8.bf16 %v1353
        %v2166 = vunpack.c.l.s8.bf16 %v1354
        %v2167 = vunpack.c.l.s8.bf16 %v1355
        %v2168 = vunpack.c.l.s8.bf16 %v1356
        %v2169 = vunpack.c.l.s8.bf16 %v1357
        %v2170 = vunpack.c.l.s8.bf16 %v1358
        %v2171 = vunpack.c.l.s8.bf16 %v1359
        %v2172 = vunpack.c.l.s8.bf16 %v1360
        %v2173 = vunpack.c.l.s8.bf16 %v1361
        %v2174 = vunpack.c.l.s8.bf16 %v1362
        %v2175 = vunpack.c.l.s8.bf16 %v1363
        %v2176 = vunpack.c.l.s8.bf16 %v1364
        %v2177 = vunpack.c.l.s8.bf16 %v1365
        %v2178 = vunpack.c.h.s8.bf16 %v1352
        %v2179 = vunpack.c.h.s8.bf16 %v1353
        %v2180 = vunpack.c.h.s8.bf16 %v1354
        %v2181 = vunpack.c.h.s8.bf16 %v1355
        %v2182 = vunpack.c.h.s8.bf16 %v1356
        %v2183 = vunpack.c.h.s8.bf16 %v1357
        %v2184 = vunpack.c.h.s8.bf16 %v1358
        %v2185 = vunpack.c.h.s8.bf16 %v1359
        %v2186 = vunpack.c.h.s8.bf16 %v1360
        %v2187 = vunpack.c.h.s8.bf16 %v1361
        %v2188 = vunpack.c.h.s8.bf16 %v1362
        %v2189 = vunpack.c.h.s8.bf16 %v1363
        %v2190 = vunpack.c.h.s8.bf16 %v1364
        %v2191 = vunpack.c.h.s8.bf16 %v1365
        %v2192 = vunpack.c.l.s8.bf16 %v1366
        %v2193 = vunpack.c.l.s8.bf16 %v1367
        %v2194 = vunpack.c.l.s8.bf16 %v1368
        %v2195 = vunpack.c.l.s8.bf16 %v1369
        %v2196 = vunpack.c.l.s8.bf16 %v1370
        %v2197 = vunpack.c.l.s8.bf16 %v1371
        %v2198 = vunpack.c.l.s8.bf16 %v1372
        %v2199 = vunpack.c.l.s8.bf16 %v1373
        %v2200 = vunpack.c.l.s8.bf16 %v1374
        %v2201 = vunpack.c.l.s8.bf16 %v1375
        %v2202 = vunpack.c.l.s8.bf16 %v1376
        %v2203 = vunpack.c.l.s8.bf16 %v1377
        %v2204 = vunpack.c.l.s8.bf16 %v1378
        %v2205 = vunpack.c.l.s8.bf16 %v1379
        %v2206 = vunpack.c.h.s8.bf16 %v1366
        %v2207 = vunpack.c.h.s8.bf16 %v1367
        %v2208 = vunpack.c.h.s8.bf16 %v1368
        %v2209 = vunpack.c.h.s8.bf16 %v1369
        %v2210 = vunpack.c.h.s8.bf16 %v1370
        %v2211 = vunpack.c.h.s8.bf16 %v1371
        %v2212 = vunpack.c.h.s8.bf16 %v1372
        %v2213 = vunpack.c.h.s8.bf16 %v1373
        %v2214 = vunpack.c.h.s8.bf16 %v1374
        %v2215 = vunpack.c.h.s8.bf16 %v1375
        %v2216 = vunpack.c.h.s8.bf16 %v1376
        %v2217 = vunpack.c.h.s8.bf16 %v1377
        %v2218 = vunpack.c.h.s8.bf16 %v1378
        %v2219 = vunpack.c.h.s8.bf16 %v1379
        %v2220 = vunpack.c.l.s8.bf16 %v1380
        %v2221 = vunpack.c.l.s8.bf16 %v1381
        %v2222 = vunpack.c.l.s8.bf16 %v1382
        %v2223 = vunpack.c.l.s8.bf16 %v1383
        %v2224 = vunpack.c.l.s8.bf16 %v1384
        %v2225 = vunpack.c.l.s8.bf16 %v1385
        %v2226 = vunpack.c.l.s8.bf16 %v1386
        %v2227 = vunpack.c.l.s8.bf16 %v1387
        %v2228 = vunpack.c.l.s8.bf16 %v1388
        %v2229 = vunpack.c.l.s8.bf16 %v1389
        %v2230 = vunpack.c.l.s8.bf16 %v1390
        %v2231 = vunpack.c.l.s8.bf16 %v1391
        %v2232 = vunpack.c.l.s8.bf16 %v1392
        %v2233 = vunpack.c.l.s8.bf16 %v1393
        %v2234 = vunpack.c.h.s8.bf16 %v1380
        %v2235 = vunpack.c.h.s8.bf16 %v1381
        %v2236 = vunpack.c.h.s8.bf16 %v1382
        %v2237 = vunpack.c.h.s8.bf16 %v1383
        %v2238 = vunpack.c.h.s8.bf16 %v1384
        %v2239 = vunpack.c.h.s8.bf16 %v1385
        %v2240 = vunpack.c.h.s8.bf16 %v1386
        %v2241 = vunpack.c.h.s8.bf16 %v1387
        %v2242 = vunpack.c.h.s8.bf16 %v1388
        %v2243 = vunpack.c.h.s8.bf16 %v1389
        %v2244 = vunpack.c.h.s8.bf16 %v1390
        %v2245 = vunpack.c.h.s8.bf16 %v1391
        %v2246 = vunpack.c.h.s8.bf16 %v1392
        %v2247 = vunpack.c.h.s8.bf16 %v1393
        %v2248 = vunpack.c.l.s8.bf16 %v1394
        %v2249 = vunpack.c.l.s8.bf16 %v1395
        %v2250 = vunpack.c.l.s8.bf16 %v1396
        %v2251 = vunpack.c.l.s8.bf16 %v1397
        %v2252 = vunpack.c.l.s8.bf16 %v1398
        %v2253 = vunpack.c.l.s8.bf16 %v1399
        %v2254 = vunpack.c.l.s8.bf16 %v1400
        %v2255 = vunpack.c.l.s8.bf16 %v1401
        %v2256 = vunpack.c.l.s8.bf16 %v1402
        %v2257 = vunpack.c.l.s8.bf16 %v1403
        %v2258 = vunpack.c.l.s8.bf16 %v1404
        %v2259 = vunpack.c.l.s8.bf16 %v1405
        %v2260 = vunpack.c.l.s8.bf16 %v1406
        %v2261 = vunpack.c.l.s8.bf16 %v1407
        %v2262 = vunpack.c.h.s8.bf16 %v1394
        %v2263 = vunpack.c.h.s8.bf16 %v1395
        %v2264 = vunpack.c.h.s8.bf16 %v1396
        %v2265 = vunpack.c.h.s8.bf16 %v1397
        %v2266 = vunpack.c.h.s8.bf16 %v1398
        %v2267 = vunpack.c.h.s8.bf16 %v1399
        %v2268 = vunpack.c.h.s8.bf16 %v1400
        %v2269 = vunpack.c.h.s8.bf16 %v1401
        %v2270 = vunpack.c.h.s8.bf16 %v1402
        %v2271 = vunpack.c.h.s8.bf16 %v1403
        %v2272 = vunpack.c.h.s8.bf16 %v1404
        %v2273 = vunpack.c.h.s8.bf16 %v1405
        %v2274 = vunpack.c.h.s8.bf16 %v1406
        %v2275 = vunpack.c.h.s8.bf16 %v1407
        %v2276 = vunpack.c.l.s8.bf16 %v1408
        %v2277 = vunpack.c.l.s8.bf16 %v1409
        %v2278 = vunpack.c.l.s8.bf16 %v1410
        %v2279 = vunpack.c.l.s8.bf16 %v1411
        %v2280 = vunpack.c.l.s8.bf16 %v1412
        %v2281 = vunpack.c.l.s8.bf16 %v1413
        %v2282 = vunpack.c.l.s8.bf16 %v1414
        %v2283 = vunpack.c.l.s8.bf16 %v1415
        %v2284 = vunpack.c.l.s8.bf16 %v1416
        %v2285 = vunpack.c.l.s8.bf16 %v1417
        %v2286 = vunpack.c.l.s8.bf16 %v1418
        %v2287 = vunpack.c.l.s8.bf16 %v1419
        %v2288 = vunpack.c.l.s8.bf16 %v1420
        %v2289 = vunpack.c.l.s8.bf16 %v1421
        %v2290 = vunpack.c.h.s8.bf16 %v1408
        %v2291 = vunpack.c.h.s8.bf16 %v1409
        %v2292 = vunpack.c.h.s8.bf16 %v1410
        %v2293 = vunpack.c.h.s8.bf16 %v1411
        %v2294 = vunpack.c.h.s8.bf16 %v1412
        %v2295 = vunpack.c.h.s8.bf16 %v1413
        %v2296 = vunpack.c.h.s8.bf16 %v1414
        %v2297 = vunpack.c.h.s8.bf16 %v1415
        %v2298 = vunpack.c.h.s8.bf16 %v1416
        %v2299 = vunpack.c.h.s8.bf16 %v1417
        %v2300 = vunpack.c.h.s8.bf16 %v1418
        %v2301 = vunpack.c.h.s8.bf16 %v1419
        %v2302 = vunpack.c.h.s8.bf16 %v1420
        %v2303 = vunpack.c.h.s8.bf16 %v1421
        %v2304 = vunpack.c.l.s8.bf16 %v1422
        %v2305 = vunpack.c.l.s8.bf16 %v1423
        %v2306 = vunpack.c.l.s8.bf16 %v1424
        %v2307 = vunpack.c.l.s8.bf16 %v1425
        %v2308 = vunpack.c.l.s8.bf16 %v1426
        %v2309 = vunpack.c.l.s8.bf16 %v1427
        %v2310 = vunpack.c.l.s8.bf16 %v1428
        %v2311 = vunpack.c.l.s8.bf16 %v1429
        %v2312 = vunpack.c.l.s8.bf16 %v1430
        %v2313 = vunpack.c.l.s8.bf16 %v1431
        %v2314 = vunpack.c.l.s8.bf16 %v1432
        %v2315 = vunpack.c.l.s8.bf16 %v1433
        %v2316 = vunpack.c.l.s8.bf16 %v1434
        %v2317 = vunpack.c.l.s8.bf16 %v1435
        %v2318 = vunpack.c.h.s8.bf16 %v1422
        %v2319 = vunpack.c.h.s8.bf16 %v1423
        %v2320 = vunpack.c.h.s8.bf16 %v1424
        %v2321 = vunpack.c.h.s8.bf16 %v1425
        %v2322 = vunpack.c.h.s8.bf16 %v1426
        %v2323 = vunpack.c.h.s8.bf16 %v1427
        %v2324 = vunpack.c.h.s8.bf16 %v1428
        %v2325 = vunpack.c.h.s8.bf16 %v1429
        %v2326 = vunpack.c.h.s8.bf16 %v1430
        %v2327 = vunpack.c.h.s8.bf16 %v1431
        %v2328 = vunpack.c.h.s8.bf16 %v1432
        %v2329 = vunpack.c.h.s8.bf16 %v1433
        %v2330 = vunpack.c.h.s8.bf16 %v1434
        %v2331 = vunpack.c.h.s8.bf16 %v1435
        %v2332 = vpack.c.bf16 %v980, %v980
        %v2333 = vpack.c.bf16 %v981, %v981
        %v2334 = vpack.c.bf16 %v982, %v982
        %v2335 = vpack.c.bf16 %v983, %v983
        %v2336 = vpack.c.bf16 %v984, %v984
        %v2337 = vpack.c.bf16 %v985, %v985
        %v2338 = vpack.c.bf16 %v986, %v986
        %v2339 = vpack.c.bf16 %v987, %v987
        %2340 = vmatprep.subr.bf16.mxu0 %v1437
        %2341 = vmatpush1.bf16.msra.mxu0 %v1436
        %2342 = vmatprep.subr.bf16.mxu0 %v1451
        %2343 = vmatpush1.bf16.msra.mxu0 %v1450
        %2344 = vmatprep.subr.bf16.mxu0 %v1465
        %2345 = vmatpush1.bf16.msra.mxu0 %v1464
        %2346 = vmatprep.subr.bf16.mxu0 %v1479
        %2347 = vmatpush1.bf16.msra.mxu0 %v1478
        %2348 = vmatprep.subr.bf16.mxu0 %v1493
        %2349 = vmatpush1.bf16.msra.mxu0 %v1492
        %2350 = vmatprep.subr.bf16.mxu0 %v1507
        %2351 = vmatpush1.bf16.msra.mxu0 %v1506
        %2352 = vmatprep.subr.bf16.mxu0 %v1521
        %2353 = vmatpush1.bf16.msra.mxu0 %v1520
        %2354 = vmatprep.subr.bf16.mxu0 %v1535
        %2355 = vmatpush1.bf16.msra.mxu0 %v1534
        %2356 = vmatprep.subr.bf16.mxu0 %v1549
        %2357 = vmatpush1.bf16.msra.mxu0 %v1548
        %2358 = vmatprep.subr.bf16.mxu0 %v1563
        %2359 = vmatpush1.bf16.msra.mxu0 %v1562
        %2360 = vmatprep.subr.bf16.mxu0 %v1577
        %2361 = vmatpush1.bf16.msra.mxu0 %v1576
        %2362 = vmatprep.subr.bf16.mxu0 %v1591
        %2363 = vmatpush1.bf16.msra.mxu0 %v1590
        %2364 = vmatprep.subr.bf16.mxu0 %v1605
        %2365 = vmatpush1.bf16.msra.mxu0 %v1604
        %2366 = vmatprep.subr.bf16.mxu0 %v1619
        %2367 = vmatpush1.bf16.msra.mxu0 %v1618
        %2368 = vmatprep.subr.bf16.mxu0 %v1633
        %2369 = vmatpush1.bf16.msra.mxu0 %v1632
        %2370 = vmatprep.subr.bf16.mxu0 %v1647
        %2371 = vmatpush1.bf16.msra.mxu0 %v1646
        %2372 = vmatprep.mubr.bf16.mxu0 %v2333
        %2373 = vmatmul.mubr.bf16.gmra.mrb[0].mxu0 %v2332
        %v2374 = vpop.f32.mrb[0].mxu0
        %v2375 = vadd.f32 0.0, %v2374
        %v2376 = vpop.f32.mrb[0].mxu0
        %v2377 = vadd.f32 0.0, %v2376
        %v2378 = vpop.f32.mrb[0].mxu0
        %v2379 = vpop.f32.mrb[0].mxu0
        %2380 = vdwg.mxu0
        %2381 = vmatprep.subr.bf16.mxu0 %v1661
        %2382 = vmatpush1.bf16.msra.mxu0 %v1660
        %2383 = vmatprep.subr.bf16.mxu0 %v1675
        %2384 = vmatpush1.bf16.msra.mxu0 %v1674
        %2385 = vmatprep.subr.bf16.mxu0 %v1689
        %2386 = vmatpush1.bf16.msra.mxu0 %v1688
        %2387 = vmatprep.subr.bf16.mxu0 %v1703
        %2388 = vmatpush1.bf16.msra.mxu0 %v1702
        %2389 = vmatprep.subr.bf16.mxu0 %v1717
        %2390 = vmatpush1.bf16.msra.mxu0 %v1716
        %2391 = vmatprep.subr.bf16.mxu0 %v1731
        %2392 = vmatpush1.bf16.msra.mxu0 %v1730
        %2393 = vmatprep.subr.bf16.mxu0 %v1745
        %2394 = vmatpush1.bf16.msra.mxu0 %v1744
        %2395 = vmatprep.subr.bf16.mxu0 %v1759
        %2396 = vmatpush1.bf16.msra.mxu0 %v1758
        %2397 = vmatprep.subr.bf16.mxu0 %v1773
        %2398 = vmatpush1.bf16.msra.mxu0 %v1772
        %2399 = vmatprep.subr.bf16.mxu0 %v1787
        %2400 = vmatpush1.bf16.msra.mxu0 %v1786
        %2401 = vmatprep.subr.bf16.mxu0 %v1801
        %2402 = vmatpush1.bf16.msra.mxu0 %v1800
        %2403 = vmatprep.subr.bf16.mxu0 %v1815
        %2404 = vmatpush1.bf16.msra.mxu0 %v1814
        %2405 = vmatprep.subr.bf16.mxu0 %v1829
        %2406 = vmatpush1.bf16.msra.mxu0 %v1828
        %2407 = vmatprep.subr.bf16.mxu0 %v1843
        %2408 = vmatpush1.bf16.msra.mxu0 %v1842
        %2409 = vmatprep.subr.bf16.mxu0 %v1857
        %2410 = vmatpush1.bf16.msra.mxu0 %v1856
        %2411 = vmatprep.subr.bf16.mxu0 %v1871
        %2412 = vmatpush1.bf16.msra.mxu0 %v1870
        %2413 = vmatprep.mubr.bf16.mxu0 %v2335
        %2414 = vmatmul.mubr.bf16.gmra.mrb[0].mxu0 %v2334
        %v2415 = vpop.f32.mrb[0].mxu0
        %v2416 = vadd.f32 %v2375, %v2415
        %v2417 = vpop.f32.mrb[0].mxu0
        %v2418 = vadd.f32 %v2377, %v2417
        %v2419 = vpop.f32.mrb[0].mxu0
        %v2420 = vpop.f32.mrb[0].mxu0
        %2421 = vdwg.mxu0
        %2422 = vmatprep.subr.bf16.mxu0 %v1885
        %2423 = vmatpush1.bf16.msra.mxu0 %v1884
        %2424 = vmatprep.subr.bf16.mxu0 %v1899
        %2425 = vmatpush1.bf16.msra.mxu0 %v1898
        %2426 = vmatprep.subr.bf16.mxu0 %v1913
        %2427 = vmatpush1.bf16.msra.mxu0 %v1912
        %2428 = vmatprep.subr.bf16.mxu0 %v1927
        %2429 = vmatpush1.bf16.msra.mxu0 %v1926
        %2430 = vmatprep.subr.bf16.mxu0 %v1941
        %2431 = vmatpush1.bf16.msra.mxu0 %v1940
        %2432 = vmatprep.subr.bf16.mxu0 %v1955
        %2433 = vmatpush1.bf16.msra.mxu0 %v1954
        %2434 = vmatprep.subr.bf16.mxu0 %v1969
        %2435 = vmatpush1.bf16.msra.mxu0 %v1968
        %2436 = vmatprep.subr.bf16.mxu0 %v1983
        %2437 = vmatpush1.bf16.msra.mxu0 %v1982
        %2438 = vmatprep.subr.bf16.mxu0 %v1997
        %2439 = vmatpush1.bf16.msra.mxu0 %v1996
        %2440 = vmatprep.subr.bf16.mxu0 %v2011
        %2441 = vmatpush1.bf16.msra.mxu0 %v2010
        %2442 = vmatprep.subr.bf16.mxu0 %v2025
        %2443 = vmatpush1.bf16.msra.mxu0 %v2024
        %2444 = vmatprep.subr.bf16.mxu0 %v2039
        %2445 = vmatpush1.bf16.msra.mxu0 %v2038
        %2446 = vmatprep.subr.bf16.mxu0 %v2053
        %2447 = vmatpush1.bf16.msra.mxu0 %v2052
        %2448 = vmatprep.subr.bf16.mxu0 %v2067
        %2449 = vmatpush1.bf16.msra.mxu0 %v2066
        %2450 = vmatprep.subr.bf16.mxu0 %v2081
        %2451 = vmatpush1.bf16.msra.mxu0 %v2080
        %2452 = vmatprep.subr.bf16.mxu0 %v2095
        %2453 = vmatpush1.bf16.msra.mxu0 %v2094
        %2454 = vmatprep.mubr.bf16.mxu0 %v2337
        %2455 = vmatmul.mubr.bf16.gmra.mrb[0].mxu0 %v2336
        %v2456 = vpop.f32.mrb[0].mxu0
        %v2457 = vadd.f32 %v2416, %v2456
        %v2458 = vpop.f32.mrb[0].mxu0
        %v2459 = vadd.f32 %v2418, %v2458
        %v2460 = vpop.f32.mrb[0].mxu0
        %v2461 = vpop.f32.mrb[0].mxu0
        %2462 = vdwg.mxu0
        %2463 = vmatprep.subr.bf16.mxu0 %v2109
        %2464 = vmatpush1.bf16.msra.mxu0 %v2108
        %2465 = vmatprep.subr.bf16.mxu0 %v2123
        %2466 = vmatpush1.bf16.msra.mxu0 %v2122
        %2467 = vmatprep.subr.bf16.mxu0 %v2137
        %2468 = vmatpush1.bf16.msra.mxu0 %v2136
        %2469 = vmatprep.subr.bf16.mxu0 %v2151
        %2470 = vmatpush1.bf16.msra.mxu0 %v2150
        %2471 = vmatprep.subr.bf16.mxu0 %v2165
        %2472 = vmatpush1.bf16.msra.mxu0 %v2164
        %2473 = vmatprep.subr.bf16.mxu0 %v2179
        %2474 = vmatpush1.bf16.msra.mxu0 %v2178
        %2475 = vmatprep.subr.bf16.mxu0 %v2193
        %2476 = vmatpush1.bf16.msra.mxu0 %v2192
        %2477 = vmatprep.subr.bf16.mxu0 %v2207
        %2478 = vmatpush1.bf16.msra.mxu0 %v2206
        %2479 = vmatprep.subr.bf16.mxu0 %v2221
        %2480 = vmatpush1.bf16.msra.mxu0 %v2220
        %2481 = vmatprep.subr.bf16.mxu0 %v2235
        %2482 = vmatpush1.bf16.msra.mxu0 %v2234
        %2483 = vmatprep.subr.bf16.mxu0 %v2249
        %2484 = vmatpush1.bf16.msra.mxu0 %v2248
        %2485 = vmatprep.subr.bf16.mxu0 %v2263
        %2486 = vmatpush1.bf16.msra.mxu0 %v2262
        %2487 = vmatprep.subr.bf16.mxu0 %v2277
        %2488 = vmatpush1.bf16.msra.mxu0 %v2276
        %2489 = vmatprep.subr.bf16.mxu0 %v2291
        %2490 = vmatpush1.bf16.msra.mxu0 %v2290
        %2491 = vmatprep.subr.bf16.mxu0 %v2305
        %2492 = vmatpush1.bf16.msra.mxu0 %v2304
        %2493 = vmatprep.subr.bf16.mxu0 %v2319
        %2494 = vmatpush1.bf16.msra.mxu0 %v2318
        %2495 = vmatprep.mubr.bf16.mxu0 %v2339
        %2496 = vmatmul.mubr.bf16.gmra.mrb[0].mxu0 %v2338
        %v2497 = vpop.f32.mrb[0].mxu0
        %v2498 = vadd.f32 %v2457, %v2497
        %v2499 = vpop.f32.mrb[0].mxu0
        %v2500 = vadd.f32 %v2459, %v2499
        %v2501 = vpop.f32.mrb[0].mxu0
        %v2502 = vpop.f32.mrb[0].mxu0
        %2503 = vdwg.mxu0
        %2504 = vmatprep.subr.bf16.mxu0 %v1439
        %2505 = vmatpush1.bf16.msra.mxu0 %v1438
        %2506 = vmatprep.subr.bf16.mxu0 %v1453
        %2507 = vmatpush1.bf16.msra.mxu0 %v1452
        %2508 = vmatprep.subr.bf16.mxu0 %v1467
        %2509 = vmatpush1.bf16.msra.mxu0 %v1466
        %2510 = vmatprep.subr.bf16.mxu0 %v1481
        %2511 = vmatpush1.bf16.msra.mxu0 %v1480
        %2512 = vmatprep.subr.bf16.mxu0 %v1495
        %2513 = vmatpush1.bf16.msra.mxu0 %v1494
        %2514 = vmatprep.subr.bf16.mxu0 %v1509
        %2515 = vmatpush1.bf16.msra.mxu0 %v1508
        %2516 = vmatprep.subr.bf16.mxu0 %v1523
        %2517 = vmatpush1.bf16.msra.mxu0 %v1522
        %2518 = vmatprep.subr.bf16.mxu0 %v1537
        %2519 = vmatpush1.bf16.msra.mxu0 %v1536
        %2520 = vmatprep.subr.bf16.mxu0 %v1551
        %2521 = vmatpush1.bf16.msra.mxu0 %v1550
        %2522 = vmatprep.subr.bf16.mxu0 %v1565
        %2523 = vmatpush1.bf16.msra.mxu0 %v1564
        %2524 = vmatprep.subr.bf16.mxu0 %v1579
        %2525 = vmatpush1.bf16.msra.mxu0 %v1578
        %2526 = vmatprep.subr.bf16.mxu0 %v1593
        %2527 = vmatpush1.bf16.msra.mxu0 %v1592
        %2528 = vmatprep.subr.bf16.mxu0 %v1607
        %2529 = vmatpush1.bf16.msra.mxu0 %v1606
        %2530 = vmatprep.subr.bf16.mxu0 %v1621
        %2531 = vmatpush1.bf16.msra.mxu0 %v1620
        %2532 = vmatprep.subr.bf16.mxu0 %v1635
        %2533 = vmatpush1.bf16.msra.mxu0 %v1634
        %2534 = vmatprep.subr.bf16.mxu0 %v1649
        %2535 = vmatpush1.bf16.msra.mxu0 %v1648
        %2536 = vmatprep.mubr.bf16.mxu0 %v2333
        %2537 = vmatmul.mubr.bf16.gmra.mrb[0].mxu0 %v2332
        %v2538 = vpop.f32.mrb[0].mxu0
        %v2539 = vadd.f32 0.0, %v2538
        %v2540 = vpop.f32.mrb[0].mxu0
        %v2541 = vadd.f32 0.0, %v2540
        %v2542 = vpop.f32.mrb[0].mxu0
        %v2543 = vpop.f32.mrb[0].mxu0
        %2544 = vdwg.mxu0
        %2545 = vmatprep.subr.bf16.mxu0 %v1663
        %2546 = vmatpush1.bf16.msra.mxu0 %v1662
        %2547 = vmatprep.subr.bf16.mxu0 %v1677
        %2548 = vmatpush1.bf16.msra.mxu0 %v1676
        %2549 = vmatprep.subr.bf16.mxu0 %v1691
        %2550 = vmatpush1.bf16.msra.mxu0 %v1690
        %2551 = vmatprep.subr.bf16.mxu0 %v1705
        %2552 = vmatpush1.bf16.msra.mxu0 %v1704
        %2553 = vmatprep.subr.bf16.mxu0 %v1719
        %2554 = vmatpush1.bf16.msra.mxu0 %v1718
        %2555 = vmatprep.subr.bf16.mxu0 %v1733
        %2556 = vmatpush1.bf16.msra.mxu0 %v1732
        %2557 = vmatprep.subr.bf16.mxu0 %v1747
        %2558 = vmatpush1.bf16.msra.mxu0 %v1746
        %2559 = vmatprep.subr.bf16.mxu0 %v1761
        %2560 = vmatpush1.bf16.msra.mxu0 %v1760
        %2561 = vmatprep.subr.bf16.mxu0 %v1775
        %2562 = vmatpush1.bf16.msra.mxu0 %v1774
        %2563 = vmatprep.subr.bf16.mxu0 %v1789
        %2564 = vmatpush1.bf16.msra.mxu0 %v1788
        %2565 = vmatprep.subr.bf16.mxu0 %v1803
        %2566 = vmatpush1.bf16.msra.mxu0 %v1802
        %2567 = vmatprep.subr.bf16.mxu0 %v1817
        %2568 = vmatpush1.bf16.msra.mxu0 %v1816
        %2569 = vmatprep.subr.bf16.mxu0 %v1831
        %2570 = vmatpush1.bf16.msra.mxu0 %v1830
        %2571 = vmatprep.subr.bf16.mxu0 %v1845
        %2572 = vmatpush1.bf16.msra.mxu0 %v1844
        %2573 = vmatprep.subr.bf16.mxu0 %v1859
        %2574 = vmatpush1.bf16.msra.mxu0 %v1858
        %2575 = vmatprep.subr.bf16.mxu0 %v1873
        %2576 = vmatpush1.bf16.msra.mxu0 %v1872
        %2577 = vmatprep.mubr.bf16.mxu0 %v2335
        %2578 = vmatmul.mubr.bf16.gmra.mrb[0].mxu0 %v2334
        %v2579 = vpop.f32.mrb[0].mxu0
        %v2580 = vadd.f32 %v2539, %v2579
        %v2581 = vpop.f32.mrb[0].mxu0
        %v2582 = vadd.f32 %v2541, %v2581
        %v2583 = vpop.f32.mrb[0].mxu0
        %v2584 = vpop.f32.mrb[0].mxu0
        %2585 = vdwg.mxu0
        %2586 = vmatprep.subr.bf16.mxu0 %v1887
        %2587 = vmatpush1.bf16.msra.mxu0 %v1886
        %2588 = vmatprep.subr.bf16.mxu0 %v1901
        %2589 = vmatpush1.bf16.msra.mxu0 %v1900
        %2590 = vmatprep.subr.bf16.mxu0 %v1915
        %2591 = vmatpush1.bf16.msra.mxu0 %v1914
        %2592 = vmatprep.subr.bf16.mxu0 %v1929
        %2593 = vmatpush1.bf16.msra.mxu0 %v1928
        %2594 = vmatprep.subr.bf16.mxu0 %v1943
        %2595 = vmatpush1.bf16.msra.mxu0 %v1942
        %2596 = vmatprep.subr.bf16.mxu0 %v1957
        %2597 = vmatpush1.bf16.msra.mxu0 %v1956
        %2598 = vmatprep.subr.bf16.mxu0 %v1971
        %2599 = vmatpush1.bf16.msra.mxu0 %v1970
        %2600 = vmatprep.subr.bf16.mxu0 %v1985
        %2601 = vmatpush1.bf16.msra.mxu0 %v1984
        %2602 = vmatprep.subr.bf16.mxu0 %v1999
        %2603 = vmatpush1.bf16.msra.mxu0 %v1998
        %2604 = vmatprep.subr.bf16.mxu0 %v2013
        %2605 = vmatpush1.bf16.msra.mxu0 %v2012
        %2606 = vmatprep.subr.bf16.mxu0 %v2027
        %2607 = vmatpush1.bf16.msra.mxu0 %v2026
        %2608 = vmatprep.subr.bf16.mxu0 %v2041
        %2609 = vmatpush1.bf16.msra.mxu0 %v2040
        %2610 = vmatprep.subr.bf16.mxu0 %v2055
        %2611 = vmatpush1.bf16.msra.mxu0 %v2054
        %2612 = vmatprep.subr.bf16.mxu0 %v2069
        %2613 = vmatpush1.bf16.msra.mxu0 %v2068
        %2614 = vmatprep.subr.bf16.mxu0 %v2083
        %2615 = vmatpush1.bf16.msra.mxu0 %v2082
        %2616 = vmatprep.subr.bf16.mxu0 %v2097
        %2617 = vmatpush1.bf16.msra.mxu0 %v2096
        %2618 = vmatprep.mubr.bf16.mxu0 %v2337
        %2619 = vmatmul.mubr.bf16.gmra.mrb[0].mxu0 %v2336
        %v2620 = vpop.f32.mrb[0].mxu0
        %v2621 = vadd.f32 %v2580, %v2620
        %v2622 = vpop.f32.mrb[0].mxu0
        %v2623 = vadd.f32 %v2582, %v2622
        %v2624 = vpop.f32.mrb[0].mxu0
        %v2625 = vpop.f32.mrb[0].mxu0
        %2626 = vdwg.mxu0
        %2627 = vmatprep.subr.bf16.mxu0 %v2111
        %2628 = vmatpush1.bf16.msra.mxu0 %v2110
        %2629 = vmatprep.subr.bf16.mxu0 %v2125
        %2630 = vmatpush1.bf16.msra.mxu0 %v2124
        %2631 = vmatprep.subr.bf16.mxu0 %v2139
        %2632 = vmatpush1.bf16.msra.mxu0 %v2138
        %2633 = vmatprep.subr.bf16.mxu0 %v2153
        %2634 = vmatpush1.bf16.msra.mxu0 %v2152
        %2635 = vmatprep.subr.bf16.mxu0 %v2167
        %2636 = vmatpush1.bf16.msra.mxu0 %v2166
        %2637 = vmatprep.subr.bf16.mxu0 %v2181
        %2638 = vmatpush1.bf16.msra.mxu0 %v2180
        %2639 = vmatprep.subr.bf16.mxu0 %v2195
        %2640 = vmatpush1.bf16.msra.mxu0 %v2194
        %2641 = vmatprep.subr.bf16.mxu0 %v2209
        %2642 = vmatpush1.bf16.msra.mxu0 %v2208
        %2643 = vmatprep.subr.bf16.mxu0 %v2223
        %2644 = vmatpush1.bf16.msra.mxu0 %v2222
        %2645 = vmatprep.subr.bf16.mxu0 %v2237
        %2646 = vmatpush1.bf16.msra.mxu0 %v2236
        %2647 = vmatprep.subr.bf16.mxu0 %v2251
        %2648 = vmatpush1.bf16.msra.mxu0 %v2250
        %2649 = vmatprep.subr.bf16.mxu0 %v2265
        %2650 = vmatpush1.bf16.msra.mxu0 %v2264
        %2651 = vmatprep.subr.bf16.mxu0 %v2279
        %2652 = vmatpush1.bf16.msra.mxu0 %v2278
        %2653 = vmatprep.subr.bf16.mxu0 %v2293
        %2654 = vmatpush1.bf16.msra.mxu0 %v2292
        %2655 = vmatprep.subr.bf16.mxu0 %v2307
        %2656 = vmatpush1.bf16.msra.mxu0 %v2306
        %2657 = vmatprep.subr.bf16.mxu0 %v2321
        %2658 = vmatpush1.bf16.msra.mxu0 %v2320
        %2659 = vmatprep.mubr.bf16.mxu0 %v2339
        %2660 = vmatmul.mubr.bf16.gmra.mrb[0].mxu0 %v2338
        %v2661 = vpop.f32.mrb[0].mxu0
        %v2662 = vadd.f32 %v2621, %v2661
        %v2663 = vpop.f32.mrb[0].mxu0
        %v2664 = vadd.f32 %v2623, %v2663
        %v2665 = vpop.f32.mrb[0].mxu0
        %v2666 = vpop.f32.mrb[0].mxu0
        %2667 = vdwg.mxu0
        %2668 = vmatprep.subr.bf16.mxu0 %v1441
        %2669 = vmatpush1.bf16.msra.mxu0 %v1440
        %2670 = vmatprep.subr.bf16.mxu0 %v1455
        %2671 = vmatpush1.bf16.msra.mxu0 %v1454
        %2672 = vmatprep.subr.bf16.mxu0 %v1469
        %2673 = vmatpush1.bf16.msra.mxu0 %v1468
        %2674 = vmatprep.subr.bf16.mxu0 %v1483
        %2675 = vmatpush1.bf16.msra.mxu0 %v1482
        %2676 = vmatprep.subr.bf16.mxu0 %v1497
        %2677 = vmatpush1.bf16.msra.mxu0 %v1496
        %2678 = vmatprep.subr.bf16.mxu0 %v1511
        %2679 = vmatpush1.bf16.msra.mxu0 %v1510
        %2680 = vmatprep.subr.bf16.mxu0 %v1525
        %2681 = vmatpush1.bf16.msra.mxu0 %v1524
        %2682 = vmatprep.subr.bf16.mxu0 %v1539
        %2683 = vmatpush1.bf16.msra.mxu0 %v1538
        %2684 = vmatprep.subr.bf16.mxu0 %v1553
        %2685 = vmatpush1.bf16.msra.mxu0 %v1552
        %2686 = vmatprep.subr.bf16.mxu0 %v1567
        %2687 = vmatpush1.bf16.msra.mxu0 %v1566
        %2688 = vmatprep.subr.bf16.mxu0 %v1581
        %2689 = vmatpush1.bf16.msra.mxu0 %v1580
        %2690 = vmatprep.subr.bf16.mxu0 %v1595
        %2691 = vmatpush1.bf16.msra.mxu0 %v1594
        %2692 = vmatprep.subr.bf16.mxu0 %v1609
        %2693 = vmatpush1.bf16.msra.mxu0 %v1608
        %2694 = vmatprep.subr.bf16.mxu0 %v1623
        %2695 = vmatpush1.bf16.msra.mxu0 %v1622
        %2696 = vmatprep.subr.bf16.mxu0 %v1637
        %2697 = vmatpush1.bf16.msra.mxu0 %v1636
        %2698 = vmatprep.subr.bf16.mxu0 %v1651
        %2699 = vmatpush1.bf16.msra.mxu0 %v1650
        %2700 = vmatprep.mubr.bf16.mxu0 %v2333
        %2701 = vmatmul.mubr.bf16.gmra.mrb[0].mxu0 %v2332
        %v2702 = vpop.f32.mrb[0].mxu0
        %v2703 = vadd.f32 0.0, %v2702
        %v2704 = vpop.f32.mrb[0].mxu0
        %v2705 = vadd.f32 0.0, %v2704
        %v2706 = vpop.f32.mrb[0].mxu0
        %v2707 = vpop.f32.mrb[0].mxu0
        %2708 = vdwg.mxu0
        %2709 = vmatprep.subr.bf16.mxu0 %v1665
        %2710 = vmatpush1.bf16.msra.mxu0 %v1664
        %2711 = vmatprep.subr.bf16.mxu0 %v1679
        %2712 = vmatpush1.bf16.msra.mxu0 %v1678
        %2713 = vmatprep.subr.bf16.mxu0 %v1693
        %2714 = vmatpush1.bf16.msra.mxu0 %v1692
        %2715 = vmatprep.subr.bf16.mxu0 %v1707
        %2716 = vmatpush1.bf16.msra.mxu0 %v1706
        %2717 = vmatprep.subr.bf16.mxu0 %v1721
        %2718 = vmatpush1.bf16.msra.mxu0 %v1720
        %2719 = vmatprep.subr.bf16.mxu0 %v1735
        %2720 = vmatpush1.bf16.msra.mxu0 %v1734
        %2721 = vmatprep.subr.bf16.mxu0 %v1749
        %2722 = vmatpush1.bf16.msra.mxu0 %v1748
        %2723 = vmatprep.subr.bf16.mxu0 %v1763
        %2724 = vmatpush1.bf16.msra.mxu0 %v1762
        %2725 = vmatprep.subr.bf16.mxu0 %v1777
        %2726 = vmatpush1.bf16.msra.mxu0 %v1776
        %2727 = vmatprep.subr.bf16.mxu0 %v1791
        %2728 = vmatpush1.bf16.msra.mxu0 %v1790
        %2729 = vmatprep.subr.bf16.mxu0 %v1805
        %2730 = vmatpush1.bf16.msra.mxu0 %v1804
        %2731 = vmatprep.subr.bf16.mxu0 %v1819
        %2732 = vmatpush1.bf16.msra.mxu0 %v1818
        %2733 = vmatprep.subr.bf16.mxu0 %v1833
        %2734 = vmatpush1.bf16.msra.mxu0 %v1832
        %2735 = vmatprep.subr.bf16.mxu0 %v1847
        %2736 = vmatpush1.bf16.msra.mxu0 %v1846
        %2737 = vmatprep.subr.bf16.mxu0 %v1861
        %2738 = vmatpush1.bf16.msra.mxu0 %v1860
        %2739 = vmatprep.subr.bf16.mxu0 %v1875
        %2740 = vmatpush1.bf16.msra.mxu0 %v1874
        %2741 = vmatprep.mubr.bf16.mxu0 %v2335
        %2742 = vmatmul.mubr.bf16.gmra.mrb[0].mxu0 %v2334
        %v2743 = vpop.f32.mrb[0].mxu0
        %v2744 = vadd.f32 %v2703, %v2743
        %v2745 = vpop.f32.mrb[0].mxu0
        %v2746 = vadd.f32 %v2705, %v2745
        %v2747 = vpop.f32.mrb[0].mxu0
        %v2748 = vpop.f32.mrb[0].mxu0
        %2749 = vdwg.mxu0
        %2750 = vmatprep.subr.bf16.mxu0 %v1889
        %2751 = vmatpush1.bf16.msra.mxu0 %v1888
        %2752 = vmatprep.subr.bf16.mxu0 %v1903
        %2753 = vmatpush1.bf16.msra.mxu0 %v1902
        %2754 = vmatprep.subr.bf16.mxu0 %v1917
        %2755 = vmatpush1.bf16.msra.mxu0 %v1916
        %2756 = vmatprep.subr.bf16.mxu0 %v1931
        %2757 = vmatpush1.bf16.msra.mxu0 %v1930
        %2758 = vmatprep.subr.bf16.mxu0 %v1945
        %2759 = vmatpush1.bf16.msra.mxu0 %v1944
        %2760 = vmatprep.subr.bf16.mxu0 %v1959
        %2761 = vmatpush1.bf16.msra.mxu0 %v1958
        %2762 = vmatprep.subr.bf16.mxu0 %v1973
        %2763 = vmatpush1.bf16.msra.mxu0 %v1972
        %2764 = vmatprep.subr.bf16.mxu0 %v1987
        %2765 = vmatpush1.bf16.msra.mxu0 %v1986
        %2766 = vmatprep.subr.bf16.mxu0 %v2001
        %2767 = vmatpush1.bf16.msra.mxu0 %v2000
        %2768 = vmatprep.subr.bf16.mxu0 %v2015
        %2769 = vmatpush1.bf16.msra.mxu0 %v2014
        %2770 = vmatprep.subr.bf16.mxu0 %v2029
        %2771 = vmatpush1.bf16.msra.mxu0 %v2028
        %2772 = vmatprep.subr.bf16.mxu0 %v2043
        %2773 = vmatpush1.bf16.msra.mxu0 %v2042
        %2774 = vmatprep.subr.bf16.mxu0 %v2057
        %2775 = vmatpush1.bf16.msra.mxu0 %v2056
        %2776 = vmatprep.subr.bf16.mxu0 %v2071
        %2777 = vmatpush1.bf16.msra.mxu0 %v2070
        %2778 = vmatprep.subr.bf16.mxu0 %v2085
        %2779 = vmatpush1.bf16.msra.mxu0 %v2084
        %2780 = vmatprep.subr.bf16.mxu0 %v2099
        %2781 = vmatpush1.bf16.msra.mxu0 %v2098
        %2782 = vmatprep.mubr.bf16.mxu0 %v2337
        %2783 = vmatmul.mubr.bf16.gmra.mrb[0].mxu0 %v2336
        %v2784 = vpop.f32.mrb[0].mxu0
        %v2785 = vadd.f32 %v2744, %v2784
        %v2786 = vpop.f32.mrb[0].mxu0
        %v2787 = vadd.f32 %v2746, %v2786
        %v2788 = vpop.f32.mrb[0].mxu0
        %v2789 = vpop.f32.mrb[0].mxu0
        %2790 = vdwg.mxu0
        %2791 = vmatprep.subr.bf16.mxu0 %v2113
        %2792 = vmatpush1.bf16.msra.mxu0 %v2112
        %2793 = vmatprep.subr.bf16.mxu0 %v2127
        %2794 = vmatpush1.bf16.msra.mxu0 %v2126
        %2795 = vmatprep.subr.bf16.mxu0 %v2141
        %2796 = vmatpush1.bf16.msra.mxu0 %v2140
        %2797 = vmatprep.subr.bf16.mxu0 %v2155
        %2798 = vmatpush1.bf16.msra.mxu0 %v2154
        %2799 = vmatprep.subr.bf16.mxu0 %v2169
        %2800 = vmatpush1.bf16.msra.mxu0 %v2168
        %2801 = vmatprep.subr.bf16.mxu0 %v2183
        %2802 = vmatpush1.bf16.msra.mxu0 %v2182
        %2803 = vmatprep.subr.bf16.mxu0 %v2197
        %2804 = vmatpush1.bf16.msra.mxu0 %v2196
        %2805 = vmatprep.subr.bf16.mxu0 %v2211
        %2806 = vmatpush1.bf16.msra.mxu0 %v2210
        %2807 = vmatprep.subr.bf16.mxu0 %v2225
        %2808 = vmatpush1.bf16.msra.mxu0 %v2224
        %2809 = vmatprep.subr.bf16.mxu0 %v2239
        %2810 = vmatpush1.bf16.msra.mxu0 %v2238
        %2811 = vmatprep.subr.bf16.mxu0 %v2253
        %2812 = vmatpush1.bf16.msra.mxu0 %v2252
        %2813 = vmatprep.subr.bf16.mxu0 %v2267
        %2814 = vmatpush1.bf16.msra.mxu0 %v2266
        %2815 = vmatprep.subr.bf16.mxu0 %v2281
        %2816 = vmatpush1.bf16.msra.mxu0 %v2280
        %2817 = vmatprep.subr.bf16.mxu0 %v2295
        %2818 = vmatpush1.bf16.msra.mxu0 %v2294
        %2819 = vmatprep.subr.bf16.mxu0 %v2309
        %2820 = vmatpush1.bf16.msra.mxu0 %v2308
        %2821 = vmatprep.subr.bf16.mxu0 %v2323
        %2822 = vmatpush1.bf16.msra.mxu0 %v2322
        %2823 = vmatprep.mubr.bf16.mxu0 %v2339
        %2824 = vmatmul.mubr.bf16.gmra.mrb[0].mxu0 %v2338
        %v2825 = vpop.f32.mrb[0].mxu0
        %v2826 = vadd.f32 %v2785, %v2825
        %v2827 = vpop.f32.mrb[0].mxu0
        %v2828 = vadd.f32 %v2787, %v2827
        %v2829 = vpop.f32.mrb[0].mxu0
        %v2830 = vpop.f32.mrb[0].mxu0
        %2831 = vdwg.mxu0
        %2832 = vmatprep.subr.bf16.mxu0 %v1443
        %2833 = vmatpush1.bf16.msra.mxu0 %v1442
        %2834 = vmatprep.subr.bf16.mxu0 %v1457
        %2835 = vmatpush1.bf16.msra.mxu0 %v1456
        %2836 = vmatprep.subr.bf16.mxu0 %v1471
        %2837 = vmatpush1.bf16.msra.mxu0 %v1470
        %2838 = vmatprep.subr.bf16.mxu0 %v1485
        %2839 = vmatpush1.bf16.msra.mxu0 %v1484
        %2840 = vmatprep.subr.bf16.mxu0 %v1499
        %2841 = vmatpush1.bf16.msra.mxu0 %v1498
        %2842 = vmatprep.subr.bf16.mxu0 %v1513
        %2843 = vmatpush1.bf16.msra.mxu0 %v1512
        %2844 = vmatprep.subr.bf16.mxu0 %v1527
        %2845 = vmatpush1.bf16.msra.mxu0 %v1526
        %2846 = vmatprep.subr.bf16.mxu0 %v1541
        %2847 = vmatpush1.bf16.msra.mxu0 %v1540
        %2848 = vmatprep.subr.bf16.mxu0 %v1555
        %2849 = vmatpush1.bf16.msra.mxu0 %v1554
        %2850 = vmatprep.subr.bf16.mxu0 %v1569
        %2851 = vmatpush1.bf16.msra.mxu0 %v1568
        %2852 = vmatprep.subr.bf16.mxu0 %v1583
        %2853 = vmatpush1.bf16.msra.mxu0 %v1582
        %2854 = vmatprep.subr.bf16.mxu0 %v1597
        %2855 = vmatpush1.bf16.msra.mxu0 %v1596
        %2856 = vmatprep.subr.bf16.mxu0 %v1611
        %2857 = vmatpush1.bf16.msra.mxu0 %v1610
        %2858 = vmatprep.subr.bf16.mxu0 %v1625
        %2859 = vmatpush1.bf16.msra.mxu0 %v1624
        %2860 = vmatprep.subr.bf16.mxu0 %v1639
        %2861 = vmatpush1.bf16.msra.mxu0 %v1638
        %2862 = vmatprep.subr.bf16.mxu0 %v1653
        %2863 = vmatpush1.bf16.msra.mxu0 %v1652
        %2864 = vmatprep.mubr.bf16.mxu0 %v2333
        %2865 = vmatmul.mubr.bf16.gmra.mrb[0].mxu0 %v2332
        %v2866 = vpop.f32.mrb[0].mxu0
        %v2867 = vadd.f32 0.0, %v2866
        %v2868 = vpop.f32.mrb[0].mxu0
        %v2869 = vadd.f32 0.0, %v2868
        %v2870 = vpop.f32.mrb[0].mxu0
        %v2871 = vpop.f32.mrb[0].mxu0
        %2872 = vdwg.mxu0
        %2873 = vmatprep.subr.bf16.mxu0 %v1667
        %2874 = vmatpush1.bf16.msra.mxu0 %v1666
        %2875 = vmatprep.subr.bf16.mxu0 %v1681
        %2876 = vmatpush1.bf16.msra.mxu0 %v1680
        %2877 = vmatprep.subr.bf16.mxu0 %v1695
        %2878 = vmatpush1.bf16.msra.mxu0 %v1694
        %2879 = vmatprep.subr.bf16.mxu0 %v1709
        %2880 = vmatpush1.bf16.msra.mxu0 %v1708
        %2881 = vmatprep.subr.bf16.mxu0 %v1723
        %2882 = vmatpush1.bf16.msra.mxu0 %v1722
        %2883 = vmatprep.subr.bf16.mxu0 %v1737
        %2884 = vmatpush1.bf16.msra.mxu0 %v1736
        %2885 = vmatprep.subr.bf16.mxu0 %v1751
        %2886 = vmatpush1.bf16.msra.mxu0 %v1750
        %2887 = vmatprep.subr.bf16.mxu0 %v1765
        %2888 = vmatpush1.bf16.msra.mxu0 %v1764
        %2889 = vmatprep.subr.bf16.mxu0 %v1779
        %2890 = vmatpush1.bf16.msra.mxu0 %v1778
        %2891 = vmatprep.subr.bf16.mxu0 %v1793
        %2892 = vmatpush1.bf16.msra.mxu0 %v1792
        %2893 = vmatprep.subr.bf16.mxu0 %v1807
        %2894 = vmatpush1.bf16.msra.mxu0 %v1806
        %2895 = vmatprep.subr.bf16.mxu0 %v1821
        %2896 = vmatpush1.bf16.msra.mxu0 %v1820
        %2897 = vmatprep.subr.bf16.mxu0 %v1835
        %2898 = vmatpush1.bf16.msra.mxu0 %v1834
        %2899 = vmatprep.subr.bf16.mxu0 %v1849
        %2900 = vmatpush1.bf16.msra.mxu0 %v1848
        %2901 = vmatprep.subr.bf16.mxu0 %v1863
        %2902 = vmatpush1.bf16.msra.mxu0 %v1862
        %2903 = vmatprep.subr.bf16.mxu0 %v1877
        %2904 = vmatpush1.bf16.msra.mxu0 %v1876
        %2905 = vmatprep.mubr.bf16.mxu0 %v2335
        %2906 = vmatmul.mubr.bf16.gmra.mrb[0].mxu0 %v2334
        %v2907 = vpop.f32.mrb[0].mxu0
        %v2908 = vadd.f32 %v2867, %v2907
        %v2909 = vpop.f32.mrb[0].mxu0
        %v2910 = vadd.f32 %v2869, %v2909
        %v2911 = vpop.f32.mrb[0].mxu0
        %v2912 = vpop.f32.mrb[0].mxu0
        %2913 = vdwg.mxu0
        %2914 = vmatprep.subr.bf16.mxu0 %v1891
        %2915 = vmatpush1.bf16.msra.mxu0 %v1890
        %2916 = vmatprep.subr.bf16.mxu0 %v1905
        %2917 = vmatpush1.bf16.msra.mxu0 %v1904
        %2918 = vmatprep.subr.bf16.mxu0 %v1919
        %2919 = vmatpush1.bf16.msra.mxu0 %v1918
        %2920 = vmatprep.subr.bf16.mxu0 %v1933
        %2921 = vmatpush1.bf16.msra.mxu0 %v1932
        %2922 = vmatprep.subr.bf16.mxu0 %v1947
        %2923 = vmatpush1.bf16.msra.mxu0 %v1946
        %2924 = vmatprep.subr.bf16.mxu0 %v1961
        %2925 = vmatpush1.bf16.msra.mxu0 %v1960
        %2926 = vmatprep.subr.bf16.mxu0 %v1975
        %2927 = vmatpush1.bf16.msra.mxu0 %v1974
        %2928 = vmatprep.subr.bf16.mxu0 %v1989
        %2929 = vmatpush1.bf16.msra.mxu0 %v1988
        %2930 = vmatprep.subr.bf16.mxu0 %v2003
        %2931 = vmatpush1.bf16.msra.mxu0 %v2002
        %2932 = vmatprep.subr.bf16.mxu0 %v2017
        %2933 = vmatpush1.bf16.msra.mxu0 %v2016
        %2934 = vmatprep.subr.bf16.mxu0 %v2031
        %2935 = vmatpush1.bf16.msra.mxu0 %v2030
        %2936 = vmatprep.subr.bf16.mxu0 %v2045
        %2937 = vmatpush1.bf16.msra.mxu0 %v2044
        %2938 = vmatprep.subr.bf16.mxu0 %v2059
        %2939 = vmatpush1.bf16.msra.mxu0 %v2058
        %2940 = vmatprep.subr.bf16.mxu0 %v2073
        %2941 = vmatpush1.bf16.msra.mxu0 %v2072
        %2942 = vmatprep.subr.bf16.mxu0 %v2087
        %2943 = vmatpush1.bf16.msra.mxu0 %v2086
        %2944 = vmatprep.subr.bf16.mxu0 %v2101
        %2945 = vmatpush1.bf16.msra.mxu0 %v2100
        %2946 = vmatprep.mubr.bf16.mxu0 %v2337
        %2947 = vmatmul.mubr.bf16.gmra.mrb[0].mxu0 %v2336
        %v2948 = vpop.f32.mrb[0].mxu0
        %v2949 = vadd.f32 %v2908, %v2948
        %v2950 = vpop.f32.mrb[0].mxu0
        %v2951 = vadd.f32 %v2910, %v2950
        %v2952 = vpop.f32.mrb[0].mxu0
        %v2953 = vpop.f32.mrb[0].mxu0
        %2954 = vdwg.mxu0
        %2955 = vmatprep.subr.bf16.mxu0 %v2115
        %2956 = vmatpush1.bf16.msra.mxu0 %v2114
        %2957 = vmatprep.subr.bf16.mxu0 %v2129
        %2958 = vmatpush1.bf16.msra.mxu0 %v2128
        %2959 = vmatprep.subr.bf16.mxu0 %v2143
        %2960 = vmatpush1.bf16.msra.mxu0 %v2142
        %2961 = vmatprep.subr.bf16.mxu0 %v2157
        %2962 = vmatpush1.bf16.msra.mxu0 %v2156
        %2963 = vmatprep.subr.bf16.mxu0 %v2171
        %2964 = vmatpush1.bf16.msra.mxu0 %v2170
        %2965 = vmatprep.subr.bf16.mxu0 %v2185
        %2966 = vmatpush1.bf16.msra.mxu0 %v2184
        %2967 = vmatprep.subr.bf16.mxu0 %v2199
        %2968 = vmatpush1.bf16.msra.mxu0 %v2198
        %2969 = vmatprep.subr.bf16.mxu0 %v2213
        %2970 = vmatpush1.bf16.msra.mxu0 %v2212
        %2971 = vmatprep.subr.bf16.mxu0 %v2227
        %2972 = vmatpush1.bf16.msra.mxu0 %v2226
        %2973 = vmatprep.subr.bf16.mxu0 %v2241
        %2974 = vmatpush1.bf16.msra.mxu0 %v2240
        %2975 = vmatprep.subr.bf16.mxu0 %v2255
        %2976 = vmatpush1.bf16.msra.mxu0 %v2254
        %2977 = vmatprep.subr.bf16.mxu0 %v2269
        %2978 = vmatpush1.bf16.msra.mxu0 %v2268
        %2979 = vmatprep.subr.bf16.mxu0 %v2283
        %2980 = vmatpush1.bf16.msra.mxu0 %v2282
        %2981 = vmatprep.subr.bf16.mxu0 %v2297
        %2982 = vmatpush1.bf16.msra.mxu0 %v2296
        %2983 = vmatprep.subr.bf16.mxu0 %v2311
        %2984 = vmatpush1.bf16.msra.mxu0 %v2310
        %2985 = vmatprep.subr.bf16.mxu0 %v2325
        %2986 = vmatpush1.bf16.msra.mxu0 %v2324
        %2987 = vmatprep.mubr.bf16.mxu0 %v2339
        %2988 = vmatmul.mubr.bf16.gmra.mrb[0].mxu0 %v2338
        %v2989 = vpop.f32.mrb[0].mxu0
        %v2990 = vadd.f32 %v2949, %v2989
        %v2991 = vpop.f32.mrb[0].mxu0
        %v2992 = vadd.f32 %v2951, %v2991
        %v2993 = vpop.f32.mrb[0].mxu0
        %v2994 = vpop.f32.mrb[0].mxu0
        %2995 = vdwg.mxu0
        %2996 = vmatprep.subr.bf16.mxu0 %v1445
        %2997 = vmatpush1.bf16.msra.mxu0 %v1444
        %2998 = vmatprep.subr.bf16.mxu0 %v1459
        %2999 = vmatpush1.bf16.msra.mxu0 %v1458
        %3000 = vmatprep.subr.bf16.mxu0 %v1473
        %3001 = vmatpush1.bf16.msra.mxu0 %v1472
        %3002 = vmatprep.subr.bf16.mxu0 %v1487
        %3003 = vmatpush1.bf16.msra.mxu0 %v1486
        %3004 = vmatprep.subr.bf16.mxu0 %v1501
        %3005 = vmatpush1.bf16.msra.mxu0 %v1500
        %3006 = vmatprep.subr.bf16.mxu0 %v1515
        %3007 = vmatpush1.bf16.msra.mxu0 %v1514
        %3008 = vmatprep.subr.bf16.mxu0 %v1529
        %3009 = vmatpush1.bf16.msra.mxu0 %v1528
        %3010 = vmatprep.subr.bf16.mxu0 %v1543
        %3011 = vmatpush1.bf16.msra.mxu0 %v1542
        %3012 = vmatprep.subr.bf16.mxu0 %v1557
        %3013 = vmatpush1.bf16.msra.mxu0 %v1556
        %3014 = vmatprep.subr.bf16.mxu0 %v1571
        %3015 = vmatpush1.bf16.msra.mxu0 %v1570
        %3016 = vmatprep.subr.bf16.mxu0 %v1585
        %3017 = vmatpush1.bf16.msra.mxu0 %v1584
        %3018 = vmatprep.subr.bf16.mxu0 %v1599
        %3019 = vmatpush1.bf16.msra.mxu0 %v1598
        %3020 = vmatprep.subr.bf16.mxu0 %v1613
        %3021 = vmatpush1.bf16.msra.mxu0 %v1612
        %3022 = vmatprep.subr.bf16.mxu0 %v1627
        %3023 = vmatpush1.bf16.msra.mxu0 %v1626
        %3024 = vmatprep.subr.bf16.mxu0 %v1641
        %3025 = vmatpush1.bf16.msra.mxu0 %v1640
        %3026 = vmatprep.subr.bf16.mxu0 %v1655
        %3027 = vmatpush1.bf16.msra.mxu0 %v1654
        %3028 = vmatprep.mubr.bf16.mxu0 %v2333
        %3029 = vmatmul.mubr.bf16.gmra.mrb[0].mxu0 %v2332
        %v3030 = vpop.f32.mrb[0].mxu0
        %v3031 = vadd.f32 0.0, %v3030
        %v3032 = vpop.f32.mrb[0].mxu0
        %v3033 = vadd.f32 0.0, %v3032
        %v3034 = vpop.f32.mrb[0].mxu0
        %v3035 = vpop.f32.mrb[0].mxu0
        %3036 = vdwg.mxu0
        %3037 = vmatprep.subr.bf16.mxu0 %v1669
        %3038 = vmatpush1.bf16.msra.mxu0 %v1668
        %3039 = vmatprep.subr.bf16.mxu0 %v1683
        %3040 = vmatpush1.bf16.msra.mxu0 %v1682
        %3041 = vmatprep.subr.bf16.mxu0 %v1697
        %3042 = vmatpush1.bf16.msra.mxu0 %v1696
        %3043 = vmatprep.subr.bf16.mxu0 %v1711
        %3044 = vmatpush1.bf16.msra.mxu0 %v1710
        %3045 = vmatprep.subr.bf16.mxu0 %v1725
        %3046 = vmatpush1.bf16.msra.mxu0 %v1724
        %3047 = vmatprep.subr.bf16.mxu0 %v1739
        %3048 = vmatpush1.bf16.msra.mxu0 %v1738
        %3049 = vmatprep.subr.bf16.mxu0 %v1753
        %3050 = vmatpush1.bf16.msra.mxu0 %v1752
        %3051 = vmatprep.subr.bf16.mxu0 %v1767
        %3052 = vmatpush1.bf16.msra.mxu0 %v1766
        %3053 = vmatprep.subr.bf16.mxu0 %v1781
        %3054 = vmatpush1.bf16.msra.mxu0 %v1780
        %3055 = vmatprep.subr.bf16.mxu0 %v1795
        %3056 = vmatpush1.bf16.msra.mxu0 %v1794
        %3057 = vmatprep.subr.bf16.mxu0 %v1809
        %3058 = vmatpush1.bf16.msra.mxu0 %v1808
        %3059 = vmatprep.subr.bf16.mxu0 %v1823
        %3060 = vmatpush1.bf16.msra.mxu0 %v1822
        %3061 = vmatprep.subr.bf16.mxu0 %v1837
        %3062 = vmatpush1.bf16.msra.mxu0 %v1836
        %3063 = vmatprep.subr.bf16.mxu0 %v1851
        %3064 = vmatpush1.bf16.msra.mxu0 %v1850
        %3065 = vmatprep.subr.bf16.mxu0 %v1865
        %3066 = vmatpush1.bf16.msra.mxu0 %v1864
        %3067 = vmatprep.subr.bf16.mxu0 %v1879
        %3068 = vmatpush1.bf16.msra.mxu0 %v1878
        %3069 = vmatprep.mubr.bf16.mxu0 %v2335
        %3070 = vmatmul.mubr.bf16.gmra.mrb[0].mxu0 %v2334
        %v3071 = vpop.f32.mrb[0].mxu0
        %v3072 = vadd.f32 %v3031, %v3071
        %v3073 = vpop.f32.mrb[0].mxu0
        %v3074 = vadd.f32 %v3033, %v3073
        %v3075 = vpop.f32.mrb[0].mxu0
        %v3076 = vpop.f32.mrb[0].mxu0
        %3077 = vdwg.mxu0
        %3078 = vmatprep.subr.bf16.mxu0 %v1893
        %3079 = vmatpush1.bf16.msra.mxu0 %v1892
        %3080 = vmatprep.subr.bf16.mxu0 %v1907
        %3081 = vmatpush1.bf16.msra.mxu0 %v1906
        %3082 = vmatprep.subr.bf16.mxu0 %v1921
        %3083 = vmatpush1.bf16.msra.mxu0 %v1920
        %3084 = vmatprep.subr.bf16.mxu0 %v1935
        %3085 = vmatpush1.bf16.msra.mxu0 %v1934
        %3086 = vmatprep.subr.bf16.mxu0 %v1949
        %3087 = vmatpush1.bf16.msra.mxu0 %v1948
        %3088 = vmatprep.subr.bf16.mxu0 %v1963
        %3089 = vmatpush1.bf16.msra.mxu0 %v1962
        %3090 = vmatprep.subr.bf16.mxu0 %v1977
        %3091 = vmatpush1.bf16.msra.mxu0 %v1976
        %3092 = vmatprep.subr.bf16.mxu0 %v1991
        %3093 = vmatpush1.bf16.msra.mxu0 %v1990
        %3094 = vmatprep.subr.bf16.mxu0 %v2005
        %3095 = vmatpush1.bf16.msra.mxu0 %v2004
        %3096 = vmatprep.subr.bf16.mxu0 %v2019
        %3097 = vmatpush1.bf16.msra.mxu0 %v2018
        %3098 = vmatprep.subr.bf16.mxu0 %v2033
        %3099 = vmatpush1.bf16.msra.mxu0 %v2032
        %3100 = vmatprep.subr.bf16.mxu0 %v2047
        %3101 = vmatpush1.bf16.msra.mxu0 %v2046
        %3102 = vmatprep.subr.bf16.mxu0 %v2061
        %3103 = vmatpush1.bf16.msra.mxu0 %v2060
        %3104 = vmatprep.subr.bf16.mxu0 %v2075
        %3105 = vmatpush1.bf16.msra.mxu0 %v2074
        %3106 = vmatprep.subr.bf16.mxu0 %v2089
        %3107 = vmatpush1.bf16.msra.mxu0 %v2088
        %3108 = vmatprep.subr.bf16.mxu0 %v2103
        %3109 = vmatpush1.bf16.msra.mxu0 %v2102
        %3110 = vmatprep.mubr.bf16.mxu0 %v2337
        %3111 = vmatmul.mubr.bf16.gmra.mrb[0].mxu0 %v2336
        %v3112 = vpop.f32.mrb[0].mxu0
        %v3113 = vadd.f32 %v3072, %v3112
        %v3114 = vpop.f32.mrb[0].mxu0
        %v3115 = vadd.f32 %v3074, %v3114
        %v3116 = vpop.f32.mrb[0].mxu0
        %v3117 = vpop.f32.mrb[0].mxu0
        %3118 = vdwg.mxu0
        %3119 = vmatprep.subr.bf16.mxu0 %v2117
        %3120 = vmatpush1.bf16.msra.mxu0 %v2116
        %3121 = vmatprep.subr.bf16.mxu0 %v2131
        %3122 = vmatpush1.bf16.msra.mxu0 %v2130
        %3123 = vmatprep.subr.bf16.mxu0 %v2145
        %3124 = vmatpush1.bf16.msra.mxu0 %v2144
        %3125 = vmatprep.subr.bf16.mxu0 %v2159
        %3126 = vmatpush1.bf16.msra.mxu0 %v2158
        %3127 = vmatprep.subr.bf16.mxu0 %v2173
        %3128 = vmatpush1.bf16.msra.mxu0 %v2172
        %3129 = vmatprep.subr.bf16.mxu0 %v2187
        %3130 = vmatpush1.bf16.msra.mxu0 %v2186
        %3131 = vmatprep.subr.bf16.mxu0 %v2201
        %3132 = vmatpush1.bf16.msra.mxu0 %v2200
        %3133 = vmatprep.subr.bf16.mxu0 %v2215
        %3134 = vmatpush1.bf16.msra.mxu0 %v2214
        %3135 = vmatprep.subr.bf16.mxu0 %v2229
        %3136 = vmatpush1.bf16.msra.mxu0 %v2228
        %3137 = vmatprep.subr.bf16.mxu0 %v2243
        %3138 = vmatpush1.bf16.msra.mxu0 %v2242
        %3139 = vmatprep.subr.bf16.mxu0 %v2257
        %3140 = vmatpush1.bf16.msra.mxu0 %v2256
        %3141 = vmatprep.subr.bf16.mxu0 %v2271
        %3142 = vmatpush1.bf16.msra.mxu0 %v2270
        %3143 = vmatprep.subr.bf16.mxu0 %v2285
        %3144 = vmatpush1.bf16.msra.mxu0 %v2284
        %3145 = vmatprep.subr.bf16.mxu0 %v2299
        %3146 = vmatpush1.bf16.msra.mxu0 %v2298
        %3147 = vmatprep.subr.bf16.mxu0 %v2313
        %3148 = vmatpush1.bf16.msra.mxu0 %v2312
        %3149 = vmatprep.subr.bf16.mxu0 %v2327
        %3150 = vmatpush1.bf16.msra.mxu0 %v2326
        %3151 = vmatprep.mubr.bf16.mxu0 %v2339
        %3152 = vmatmul.mubr.bf16.gmra.mrb[0].mxu0 %v2338
        %v3153 = vpop.f32.mrb[0].mxu0
        %v3154 = vadd.f32 %v3113, %v3153
        %v3155 = vpop.f32.mrb[0].mxu0
        %v3156 = vadd.f32 %v3115, %v3155
        %v3157 = vpop.f32.mrb[0].mxu0
        %v3158 = vpop.f32.mrb[0].mxu0
        %3159 = vdwg.mxu0
        %3160 = vmatprep.subr.bf16.mxu0 %v1447
        %3161 = vmatpush1.bf16.msra.mxu0 %v1446
        %3162 = vmatprep.subr.bf16.mxu0 %v1461
        %3163 = vmatpush1.bf16.msra.mxu0 %v1460
        %3164 = vmatprep.subr.bf16.mxu0 %v1475
        %3165 = vmatpush1.bf16.msra.mxu0 %v1474
        %3166 = vmatprep.subr.bf16.mxu0 %v1489
        %3167 = vmatpush1.bf16.msra.mxu0 %v1488
        %3168 = vmatprep.subr.bf16.mxu0 %v1503
        %3169 = vmatpush1.bf16.msra.mxu0 %v1502
        %3170 = vmatprep.subr.bf16.mxu0 %v1517
        %3171 = vmatpush1.bf16.msra.mxu0 %v1516
        %3172 = vmatprep.subr.bf16.mxu0 %v1531
        %3173 = vmatpush1.bf16.msra.mxu0 %v1530
        %3174 = vmatprep.subr.bf16.mxu0 %v1545
        %3175 = vmatpush1.bf16.msra.mxu0 %v1544
        %3176 = vmatprep.subr.bf16.mxu0 %v1559
        %3177 = vmatpush1.bf16.msra.mxu0 %v1558
        %3178 = vmatprep.subr.bf16.mxu0 %v1573
        %3179 = vmatpush1.bf16.msra.mxu0 %v1572
        %3180 = vmatprep.subr.bf16.mxu0 %v1587
        %3181 = vmatpush1.bf16.msra.mxu0 %v1586
        %3182 = vmatprep.subr.bf16.mxu0 %v1601
        %3183 = vmatpush1.bf16.msra.mxu0 %v1600
        %3184 = vmatprep.subr.bf16.mxu0 %v1615
        %3185 = vmatpush1.bf16.msra.mxu0 %v1614
        %3186 = vmatprep.subr.bf16.mxu0 %v1629
        %3187 = vmatpush1.bf16.msra.mxu0 %v1628
        %3188 = vmatprep.subr.bf16.mxu0 %v1643
        %3189 = vmatpush1.bf16.msra.mxu0 %v1642
        %3190 = vmatprep.subr.bf16.mxu0 %v1657
        %3191 = vmatpush1.bf16.msra.mxu0 %v1656
        %3192 = vmatprep.mubr.bf16.mxu0 %v2333
        %3193 = vmatmul.mubr.bf16.gmra.mrb[0].mxu0 %v2332
        %v3194 = vpop.f32.mrb[0].mxu0
        %v3195 = vadd.f32 0.0, %v3194
        %v3196 = vpop.f32.mrb[0].mxu0
        %v3197 = vadd.f32 0.0, %v3196
        %v3198 = vpop.f32.mrb[0].mxu0
        %v3199 = vpop.f32.mrb[0].mxu0
        %3200 = vdwg.mxu0
        %3201 = vmatprep.subr.bf16.mxu0 %v1671
        %3202 = vmatpush1.bf16.msra.mxu0 %v1670
        %3203 = vmatprep.subr.bf16.mxu0 %v1685
        %3204 = vmatpush1.bf16.msra.mxu0 %v1684
        %3205 = vmatprep.subr.bf16.mxu0 %v1699
        %3206 = vmatpush1.bf16.msra.mxu0 %v1698
        %3207 = vmatprep.subr.bf16.mxu0 %v1713
        %3208 = vmatpush1.bf16.msra.mxu0 %v1712
        %3209 = vmatprep.subr.bf16.mxu0 %v1727
        %3210 = vmatpush1.bf16.msra.mxu0 %v1726
        %3211 = vmatprep.subr.bf16.mxu0 %v1741
        %3212 = vmatpush1.bf16.msra.mxu0 %v1740
        %3213 = vmatprep.subr.bf16.mxu0 %v1755
        %3214 = vmatpush1.bf16.msra.mxu0 %v1754
        %3215 = vmatprep.subr.bf16.mxu0 %v1769
        %3216 = vmatpush1.bf16.msra.mxu0 %v1768
        %3217 = vmatprep.subr.bf16.mxu0 %v1783
        %3218 = vmatpush1.bf16.msra.mxu0 %v1782
        %3219 = vmatprep.subr.bf16.mxu0 %v1797
        %3220 = vmatpush1.bf16.msra.mxu0 %v1796
        %3221 = vmatprep.subr.bf16.mxu0 %v1811
        %3222 = vmatpush1.bf16.msra.mxu0 %v1810
        %3223 = vmatprep.subr.bf16.mxu0 %v1825
        %3224 = vmatpush1.bf16.msra.mxu0 %v1824
        %3225 = vmatprep.subr.bf16.mxu0 %v1839
        %3226 = vmatpush1.bf16.msra.mxu0 %v1838
        %3227 = vmatprep.subr.bf16.mxu0 %v1853
        %3228 = vmatpush1.bf16.msra.mxu0 %v1852
        %3229 = vmatprep.subr.bf16.mxu0 %v1867
        %3230 = vmatpush1.bf16.msra.mxu0 %v1866
        %3231 = vmatprep.subr.bf16.mxu0 %v1881
        %3232 = vmatpush1.bf16.msra.mxu0 %v1880
        %3233 = vmatprep.mubr.bf16.mxu0 %v2335
        %3234 = vmatmul.mubr.bf16.gmra.mrb[0].mxu0 %v2334
        %v3235 = vpop.f32.mrb[0].mxu0
        %v3236 = vadd.f32 %v3195, %v3235
        %v3237 = vpop.f32.mrb[0].mxu0
        %v3238 = vadd.f32 %v3197, %v3237
        %v3239 = vpop.f32.mrb[0].mxu0
        %v3240 = vpop.f32.mrb[0].mxu0
        %3241 = vdwg.mxu0
        %3242 = vmatprep.subr.bf16.mxu0 %v1895
        %3243 = vmatpush1.bf16.msra.mxu0 %v1894
        %3244 = vmatprep.subr.bf16.mxu0 %v1909
        %3245 = vmatpush1.bf16.msra.mxu0 %v1908
        %3246 = vmatprep.subr.bf16.mxu0 %v1923
        %3247 = vmatpush1.bf16.msra.mxu0 %v1922
        %3248 = vmatprep.subr.bf16.mxu0 %v1937
        %3249 = vmatpush1.bf16.msra.mxu0 %v1936
        %3250 = vmatprep.subr.bf16.mxu0 %v1951
        %3251 = vmatpush1.bf16.msra.mxu0 %v1950
        %3252 = vmatprep.subr.bf16.mxu0 %v1965
        %3253 = vmatpush1.bf16.msra.mxu0 %v1964
        %3254 = vmatprep.subr.bf16.mxu0 %v1979
        %3255 = vmatpush1.bf16.msra.mxu0 %v1978
        %3256 = vmatprep.subr.bf16.mxu0 %v1993
        %3257 = vmatpush1.bf16.msra.mxu0 %v1992
        %3258 = vmatprep.subr.bf16.mxu0 %v2007
        %3259 = vmatpush1.bf16.msra.mxu0 %v2006
        %3260 = vmatprep.subr.bf16.mxu0 %v2021
        %3261 = vmatpush1.bf16.msra.mxu0 %v2020
        %3262 = vmatprep.subr.bf16.mxu0 %v2035
        %3263 = vmatpush1.bf16.msra.mxu0 %v2034
        %3264 = vmatprep.subr.bf16.mxu0 %v2049
        %3265 = vmatpush1.bf16.msra.mxu0 %v2048
        %3266 = vmatprep.subr.bf16.mxu0 %v2063
        %3267 = vmatpush1.bf16.msra.mxu0 %v2062
        %3268 = vmatprep.subr.bf16.mxu0 %v2077
        %3269 = vmatpush1.bf16.msra.mxu0 %v2076
        %3270 = vmatprep.subr.bf16.mxu0 %v2091
        %3271 = vmatpush1.bf16.msra.mxu0 %v2090
        %3272 = vmatprep.subr.bf16.mxu0 %v2105
        %3273 = vmatpush1.bf16.msra.mxu0 %v2104
        %3274 = vmatprep.mubr.bf16.mxu0 %v2337
        %3275 = vmatmul.mubr.bf16.gmra.mrb[0].mxu0 %v2336
        %v3276 = vpop.f32.mrb[0].mxu0
        %v3277 = vadd.f32 %v3236, %v3276
        %v3278 = vpop.f32.mrb[0].mxu0
        %v3279 = vadd.f32 %v3238, %v3278
        %v3280 = vpop.f32.mrb[0].mxu0
        %v3281 = vpop.f32.mrb[0].mxu0
        %3282 = vdwg.mxu0
        %3283 = vmatprep.subr.bf16.mxu0 %v2119
        %3284 = vmatpush1.bf16.msra.mxu0 %v2118
        %3285 = vmatprep.subr.bf16.mxu0 %v2133
        %3286 = vmatpush1.bf16.msra.mxu0 %v2132
        %3287 = vmatprep.subr.bf16.mxu0 %v2147
        %3288 = vmatpush1.bf16.msra.mxu0 %v2146
        %3289 = vmatprep.subr.bf16.mxu0 %v2161
        %3290 = vmatpush1.bf16.msra.mxu0 %v2160
        %3291 = vmatprep.subr.bf16.mxu0 %v2175
        %3292 = vmatpush1.bf16.msra.mxu0 %v2174
        %3293 = vmatprep.subr.bf16.mxu0 %v2189
        %3294 = vmatpush1.bf16.msra.mxu0 %v2188
        %3295 = vmatprep.subr.bf16.mxu0 %v2203
        %3296 = vmatpush1.bf16.msra.mxu0 %v2202
        %3297 = vmatprep.subr.bf16.mxu0 %v2217
        %3298 = vmatpush1.bf16.msra.mxu0 %v2216
        %3299 = vmatprep.subr.bf16.mxu0 %v2231
        %3300 = vmatpush1.bf16.msra.mxu0 %v2230
        %3301 = vmatprep.subr.bf16.mxu0 %v2245
        %3302 = vmatpush1.bf16.msra.mxu0 %v2244
        %3303 = vmatprep.subr.bf16.mxu0 %v2259
        %3304 = vmatpush1.bf16.msra.mxu0 %v2258
        %3305 = vmatprep.subr.bf16.mxu0 %v2273
        %3306 = vmatpush1.bf16.msra.mxu0 %v2272
        %3307 = vmatprep.subr.bf16.mxu0 %v2287
        %3308 = vmatpush1.bf16.msra.mxu0 %v2286
        %3309 = vmatprep.subr.bf16.mxu0 %v2301
        %3310 = vmatpush1.bf16.msra.mxu0 %v2300
        %3311 = vmatprep.subr.bf16.mxu0 %v2315
        %3312 = vmatpush1.bf16.msra.mxu0 %v2314
        %3313 = vmatprep.subr.bf16.mxu0 %v2329
        %3314 = vmatpush1.bf16.msra.mxu0 %v2328
        %3315 = vmatprep.mubr.bf16.mxu0 %v2339
        %3316 = vmatmul.mubr.bf16.gmra.mrb[0].mxu0 %v2338
        %v3317 = vpop.f32.mrb[0].mxu0
        %v3318 = vadd.f32 %v3277, %v3317
        %v3319 = vpop.f32.mrb[0].mxu0
        %v3320 = vadd.f32 %v3279, %v3319
        %v3321 = vpop.f32.mrb[0].mxu0
        %v3322 = vpop.f32.mrb[0].mxu0
        %3323 = vdwg.mxu0
        %3324 = vmatprep.subr.bf16.mxu0 %v1449
        %3325 = vmatpush1.bf16.msra.mxu0 %v1448
        %3326 = vmatprep.subr.bf16.mxu0 %v1463
        %3327 = vmatpush1.bf16.msra.mxu0 %v1462
        %3328 = vmatprep.subr.bf16.mxu0 %v1477
        %3329 = vmatpush1.bf16.msra.mxu0 %v1476
        %3330 = vmatprep.subr.bf16.mxu0 %v1491
        %3331 = vmatpush1.bf16.msra.mxu0 %v1490
        %3332 = vmatprep.subr.bf16.mxu0 %v1505
        %3333 = vmatpush1.bf16.msra.mxu0 %v1504
        %3334 = vmatprep.subr.bf16.mxu0 %v1519
        %3335 = vmatpush1.bf16.msra.mxu0 %v1518
        %3336 = vmatprep.subr.bf16.mxu0 %v1533
        %3337 = vmatpush1.bf16.msra.mxu0 %v1532
        %3338 = vmatprep.subr.bf16.mxu0 %v1547
        %3339 = vmatpush1.bf16.msra.mxu0 %v1546
        %3340 = vmatprep.subr.bf16.mxu0 %v1561
        %3341 = vmatpush1.bf16.msra.mxu0 %v1560
        %3342 = vmatprep.subr.bf16.mxu0 %v1575
        %3343 = vmatpush1.bf16.msra.mxu0 %v1574
        %3344 = vmatprep.subr.bf16.mxu0 %v1589
        %3345 = vmatpush1.bf16.msra.mxu0 %v1588
        %3346 = vmatprep.subr.bf16.mxu0 %v1603
        %3347 = vmatpush1.bf16.msra.mxu0 %v1602
        %3348 = vmatprep.subr.bf16.mxu0 %v1617
        %3349 = vmatpush1.bf16.msra.mxu0 %v1616
        %3350 = vmatprep.subr.bf16.mxu0 %v1631
        %3351 = vmatpush1.bf16.msra.mxu0 %v1630
        %3352 = vmatprep.subr.bf16.mxu0 %v1645
        %3353 = vmatpush1.bf16.msra.mxu0 %v1644
        %3354 = vmatprep.subr.bf16.mxu0 %v1659
        %3355 = vmatpush1.bf16.msra.mxu0 %v1658
        %3356 = vmatprep.mubr.bf16.mxu0 %v2333
        %3357 = vmatmul.mubr.bf16.gmra.mrb[0].mxu0 %v2332
        %v3358 = vpop.f32.mrb[0].mxu0
        %v3359 = vadd.f32 0.0, %v3358
        %v3360 = vpop.f32.mrb[0].mxu0
        %v3361 = vadd.f32 0.0, %v3360
        %v3362 = vpop.f32.mrb[0].mxu0
        %v3363 = vpop.f32.mrb[0].mxu0
        %3364 = vdwg.mxu0
        %3365 = vmatprep.subr.bf16.mxu0 %v1673
        %3366 = vmatpush1.bf16.msra.mxu0 %v1672
        %3367 = vmatprep.subr.bf16.mxu0 %v1687
        %3368 = vmatpush1.bf16.msra.mxu0 %v1686
        %3369 = vmatprep.subr.bf16.mxu0 %v1701
        %3370 = vmatpush1.bf16.msra.mxu0 %v1700
        %3371 = vmatprep.subr.bf16.mxu0 %v1715
        %3372 = vmatpush1.bf16.msra.mxu0 %v1714
        %3373 = vmatprep.subr.bf16.mxu0 %v1729
        %3374 = vmatpush1.bf16.msra.mxu0 %v1728
        %3375 = vmatprep.subr.bf16.mxu0 %v1743
        %3376 = vmatpush1.bf16.msra.mxu0 %v1742
        %3377 = vmatprep.subr.bf16.mxu0 %v1757
        %3378 = vmatpush1.bf16.msra.mxu0 %v1756
        %3379 = vmatprep.subr.bf16.mxu0 %v1771
        %3380 = vmatpush1.bf16.msra.mxu0 %v1770
        %3381 = vmatprep.subr.bf16.mxu0 %v1785
        %3382 = vmatpush1.bf16.msra.mxu0 %v1784
        %3383 = vmatprep.subr.bf16.mxu0 %v1799
        %3384 = vmatpush1.bf16.msra.mxu0 %v1798
        %3385 = vmatprep.subr.bf16.mxu0 %v1813
        %3386 = vmatpush1.bf16.msra.mxu0 %v1812
        %3387 = vmatprep.subr.bf16.mxu0 %v1827
        %3388 = vmatpush1.bf16.msra.mxu0 %v1826
        %3389 = vmatprep.subr.bf16.mxu0 %v1841
        %3390 = vmatpush1.bf16.msra.mxu0 %v1840
        %3391 = vmatprep.subr.bf16.mxu0 %v1855
        %3392 = vmatpush1.bf16.msra.mxu0 %v1854
        %3393 = vmatprep.subr.bf16.mxu0 %v1869
        %3394 = vmatpush1.bf16.msra.mxu0 %v1868
        %3395 = vmatprep.subr.bf16.mxu0 %v1883
        %3396 = vmatpush1.bf16.msra.mxu0 %v1882
        %3397 = vmatprep.mubr.bf16.mxu0 %v2335
        %3398 = vmatmul.mubr.bf16.gmra.mrb[0].mxu0 %v2334
        %v3399 = vpop.f32.mrb[0].mxu0
        %v3400 = vadd.f32 %v3359, %v3399
        %v3401 = vpop.f32.mrb[0].mxu0
        %v3402 = vadd.f32 %v3361, %v3401
        %v3403 = vpop.f32.mrb[0].mxu0
        %v3404 = vpop.f32.mrb[0].mxu0
        %3405 = vdwg.mxu0
        %3406 = vmatprep.subr.bf16.mxu0 %v1897
        %3407 = vmatpush1.bf16.msra.mxu0 %v1896
        %3408 = vmatprep.subr.bf16.mxu0 %v1911
        %3409 = vmatpush1.bf16.msra.mxu0 %v1910
        %3410 = vmatprep.subr.bf16.mxu0 %v1925
        %3411 = vmatpush1.bf16.msra.mxu0 %v1924
        %3412 = vmatprep.subr.bf16.mxu0 %v1939
        %3413 = vmatpush1.bf16.msra.mxu0 %v1938
        %3414 = vmatprep.subr.bf16.mxu0 %v1953
        %3415 = vmatpush1.bf16.msra.mxu0 %v1952
        %3416 = vmatprep.subr.bf16.mxu0 %v1967
        %3417 = vmatpush1.bf16.msra.mxu0 %v1966
        %3418 = vmatprep.subr.bf16.mxu0 %v1981
        %3419 = vmatpush1.bf16.msra.mxu0 %v1980
        %3420 = vmatprep.subr.bf16.mxu0 %v1995
        %3421 = vmatpush1.bf16.msra.mxu0 %v1994
        %3422 = vmatprep.subr.bf16.mxu0 %v2009
        %3423 = vmatpush1.bf16.msra.mxu0 %v2008
        %3424 = vmatprep.subr.bf16.mxu0 %v2023
        %3425 = vmatpush1.bf16.msra.mxu0 %v2022
        %3426 = vmatprep.subr.bf16.mxu0 %v2037
        %3427 = vmatpush1.bf16.msra.mxu0 %v2036
        %3428 = vmatprep.subr.bf16.mxu0 %v2051
        %3429 = vmatpush1.bf16.msra.mxu0 %v2050
        %3430 = vmatprep.subr.bf16.mxu0 %v2065
        %3431 = vmatpush1.bf16.msra.mxu0 %v2064
        %3432 = vmatprep.subr.bf16.mxu0 %v2079
        %3433 = vmatpush1.bf16.msra.mxu0 %v2078
        %3434 = vmatprep.subr.bf16.mxu0 %v2093
        %3435 = vmatpush1.bf16.msra.mxu0 %v2092
        %3436 = vmatprep.subr.bf16.mxu0 %v2107
        %3437 = vmatpush1.bf16.msra.mxu0 %v2106
        %3438 = vmatprep.mubr.bf16.mxu0 %v2337
        %3439 = vmatmul.mubr.bf16.gmra.mrb[0].mxu0 %v2336
        %v3440 = vpop.f32.mrb[0].mxu0
        %v3441 = vadd.f32 %v3400, %v3440
        %v3442 = vpop.f32.mrb[0].mxu0
        %v3443 = vadd.f32 %v3402, %v3442
        %v3444 = vpop.f32.mrb[0].mxu0
        %v3445 = vpop.f32.mrb[0].mxu0
        %3446 = vdwg.mxu0
        %3447 = vmatprep.subr.bf16.mxu0 %v2121
        %3448 = vmatpush1.bf16.msra.mxu0 %v2120
        %3449 = vmatprep.subr.bf16.mxu0 %v2135
        %3450 = vmatpush1.bf16.msra.mxu0 %v2134
        %3451 = vmatprep.subr.bf16.mxu0 %v2149
        %3452 = vmatpush1.bf16.msra.mxu0 %v2148
        %3453 = vmatprep.subr.bf16.mxu0 %v2163
        %3454 = vmatpush1.bf16.msra.mxu0 %v2162
        %3455 = vmatprep.subr.bf16.mxu0 %v2177
        %3456 = vmatpush1.bf16.msra.mxu0 %v2176
        %3457 = vmatprep.subr.bf16.mxu0 %v2191
        %3458 = vmatpush1.bf16.msra.mxu0 %v2190
        %3459 = vmatprep.subr.bf16.mxu0 %v2205
        %3460 = vmatpush1.bf16.msra.mxu0 %v2204
        %3461 = vmatprep.subr.bf16.mxu0 %v2219
        %3462 = vmatpush1.bf16.msra.mxu0 %v2218
        %3463 = vmatprep.subr.bf16.mxu0 %v2233
        %3464 = vmatpush1.bf16.msra.mxu0 %v2232
        %3465 = vmatprep.subr.bf16.mxu0 %v2247
        %3466 = vmatpush1.bf16.msra.mxu0 %v2246
        %3467 = vmatprep.subr.bf16.mxu0 %v2261
        %3468 = vmatpush1.bf16.msra.mxu0 %v2260
        %3469 = vmatprep.subr.bf16.mxu0 %v2275
        %3470 = vmatpush1.bf16.msra.mxu0 %v2274
        %3471 = vmatprep.subr.bf16.mxu0 %v2289
        %3472 = vmatpush1.bf16.msra.mxu0 %v2288
        %3473 = vmatprep.subr.bf16.mxu0 %v2303
        %3474 = vmatpush1.bf16.msra.mxu0 %v2302
        %3475 = vmatprep.subr.bf16.mxu0 %v2317
        %3476 = vmatpush1.bf16.msra.mxu0 %v2316
        %3477 = vmatprep.subr.bf16.mxu0 %v2331
        %3478 = vmatpush1.bf16.msra.mxu0 %v2330
        %3479 = vmatprep.mubr.bf16.mxu0 %v2339
        %3480 = vmatmul.mubr.bf16.gmra.mrb[0].mxu0 %v2338
        %v3481 = vpop.f32.mrb[0].mxu0
        %v3482 = vadd.f32 %v3441, %v3481
        %v3483 = vpop.f32.mrb[0].mxu0
        %v3484 = vadd.f32 %v3443, %v3483
        %v3485 = vpop.f32.mrb[0].mxu0
        %v3486 = vpop.f32.mrb[0].mxu0
        %3487 = vdwg.mxu0
        %v3488 = vld [vmem:[%s457] sm:$0xff]
        %v3489 = vld [vmem:[%s457 + $0x8] sm:$0x3f]
        %v3492 = vlaneseq
        %v3493 = vshrl.u32 %v3492, 7
        %v3494 = vsub.s32 0, %v3493
        %v3495 = vrot.slane %v3488, %v3494
        %v3496 = vlaneseq
        %v3497 = vshrl.u32 %v3496, 7
        %v3498 = vsub.s32 1, %v3497
        %v3499 = vrot.slane %v3488, %v3498
        %v3500 = vlaneseq
        %v3501 = vshrl.u32 %v3500, 7
        %v3502 = vsub.s32 2, %v3501
        %v3503 = vrot.slane %v3488, %v3502
        %v3504 = vlaneseq
        %v3505 = vshrl.u32 %v3504, 7
        %v3506 = vsub.s32 3, %v3505
        %v3507 = vrot.slane %v3488, %v3506
        %v3508 = vlaneseq
        %v3509 = vshrl.u32 %v3508, 7
        %v3510 = vsub.s32 4, %v3509
        %v3511 = vrot.slane %v3488, %v3510
        %v3512 = vlaneseq
        %v3513 = vshrl.u32 %v3512, 7
        %v3514 = vsub.s32 5, %v3513
        %v3515 = vrot.slane %v3488, %v3514
        %v3516 = vlaneseq
        %v3517 = vshrl.u32 %v3516, 7
        %v3518 = vsub.s32 6, %v3517
        %v3519 = vrot.slane %v3488, %v3518
        %v3520 = vlaneseq
        %v3521 = vshrl.u32 %v3520, 7
        %v3522 = vsub.s32 7, %v3521
        %v3523 = vrot.slane %v3488, %v3522
        %v3524 = vlaneseq
        %v3525 = vshrl.u32 %v3524, 7
        %v3526 = vsub.s32 0, %v3525
        %v3527 = vrot.slane %v3489, %v3526
        %v3528 = vlaneseq
        %v3529 = vshrl.u32 %v3528, 7
        %v3530 = vsub.s32 1, %v3529
        %v3531 = vrot.slane %v3489, %v3530
        %v3532 = vlaneseq
        %v3533 = vshrl.u32 %v3532, 7
        %v3534 = vsub.s32 2, %v3533
        %v3535 = vrot.slane %v3489, %v3534
        %v3536 = vlaneseq
        %v3537 = vshrl.u32 %v3536, 7
        %v3538 = vsub.s32 3, %v3537
        %v3539 = vrot.slane %v3489, %v3538
        %v3540 = vlaneseq
        %v3541 = vshrl.u32 %v3540, 7
        %v3542 = vsub.s32 4, %v3541
        %v3543 = vrot.slane %v3489, %v3542
        %v3544 = vlaneseq
        %v3545 = vshrl.u32 %v3544, 7
        %v3546 = vsub.s32 5, %v3545
        %v3547 = vrot.slane %v3489, %v3546
        %v3562 = vmul.f32 %v2498, %v3495
        %v3563 = vmul.f32 %v2500, %v3499
        %v3564 = vmul.f32 %v2662, %v3503
        %v3565 = vmul.f32 %v2664, %v3507
        %v3566 = vmul.f32 %v2826, %v3511
        %v3567 = vmul.f32 %v2828, %v3515
        %v3568 = vmul.f32 %v2990, %v3519
        %v3569 = vmul.f32 %v2992, %v3523
        %v3570 = vmul.f32 %v3154, %v3527
        %v3571 = vmul.f32 %v3156, %v3531
        %v3572 = vmul.f32 %v3318, %v3535
        %v3573 = vmul.f32 %v3320, %v3539
        %v3574 = vmul.f32 %v3482, %v3543
        %v3575 = vmul.f32 %v3484, %v3547
        %v3576 = vld [vmem:[%s466] sm:$0xff]
        %v3577 = vld [vmem:[%s466 + $0x8] sm:$0x3f]
        %v3580 = vlaneseq
        %v3581 = vshrl.u32 %v3580, 7
        %v3582 = vsub.s32 0, %v3581
        %v3583 = vrot.slane %v3576, %v3582
        %v3584 = vlaneseq
        %v3585 = vshrl.u32 %v3584, 7
        %v3586 = vsub.s32 1, %v3585
        %v3587 = vrot.slane %v3576, %v3586
        %v3588 = vlaneseq
        %v3589 = vshrl.u32 %v3588, 7
        %v3590 = vsub.s32 2, %v3589
        %v3591 = vrot.slane %v3576, %v3590
        %v3592 = vlaneseq
        %v3593 = vshrl.u32 %v3592, 7
        %v3594 = vsub.s32 3, %v3593
        %v3595 = vrot.slane %v3576, %v3594
        %v3596 = vlaneseq
        %v3597 = vshrl.u32 %v3596, 7
        %v3598 = vsub.s32 4, %v3597
        %v3599 = vrot.slane %v3576, %v3598
        %v3600 = vlaneseq
        %v3601 = vshrl.u32 %v3600, 7
        %v3602 = vsub.s32 5, %v3601
        %v3603 = vrot.slane %v3576, %v3602
        %v3604 = vlaneseq
        %v3605 = vshrl.u32 %v3604, 7
        %v3606 = vsub.s32 6, %v3605
        %v3607 = vrot.slane %v3576, %v3606
        %v3608 = vlaneseq
        %v3609 = vshrl.u32 %v3608, 7
        %v3610 = vsub.s32 7, %v3609
        %v3611 = vrot.slane %v3576, %v3610
        %v3612 = vlaneseq
        %v3613 = vshrl.u32 %v3612, 7
        %v3614 = vsub.s32 0, %v3613
        %v3615 = vrot.slane %v3577, %v3614
        %v3616 = vlaneseq
        %v3617 = vshrl.u32 %v3616, 7
        %v3618 = vsub.s32 1, %v3617
        %v3619 = vrot.slane %v3577, %v3618
        %v3620 = vlaneseq
        %v3621 = vshrl.u32 %v3620, 7
        %v3622 = vsub.s32 2, %v3621
        %v3623 = vrot.slane %v3577, %v3622
        %v3624 = vlaneseq
        %v3625 = vshrl.u32 %v3624, 7
        %v3626 = vsub.s32 3, %v3625
        %v3627 = vrot.slane %v3577, %v3626
        %v3628 = vlaneseq
        %v3629 = vshrl.u32 %v3628, 7
        %v3630 = vsub.s32 4, %v3629
        %v3631 = vrot.slane %v3577, %v3630
        %v3632 = vlaneseq
        %v3633 = vshrl.u32 %v3632, 7
        %v3634 = vsub.s32 5, %v3633
        %v3635 = vrot.slane %v3577, %v3634
        %v3650 = vadd.f32 %v3562, %v3583
        %v3651 = vadd.f32 %v3563, %v3587
        %v3652 = vadd.f32 %v3564, %v3591
        %v3653 = vadd.f32 %v3565, %v3595
        %v3654 = vadd.f32 %v3566, %v3599
        %v3655 = vadd.f32 %v3567, %v3603
        %v3656 = vadd.f32 %v3568, %v3607
        %v3657 = vadd.f32 %v3569, %v3611
        %v3658 = vadd.f32 %v3570, %v3615
        %v3659 = vadd.f32 %v3571, %v3619
        %v3660 = vadd.f32 %v3572, %v3623
        %v3661 = vadd.f32 %v3573, %v3627
        %v3662 = vadd.f32 %v3574, %v3631
        %v3663 = vadd.f32 %v3575, %v3635
        %v3664 = vmax.f32 %v3650, 0.0
        %v3665 = vmax.f32 %v3651, 0.0
        %v3666 = vmax.f32 %v3652, 0.0
        %v3667 = vmax.f32 %v3653, 0.0
        %v3668 = vmax.f32 %v3654, 0.0
        %v3669 = vmax.f32 %v3655, 0.0
        %v3670 = vmax.f32 %v3656, 0.0
        %v3671 = vmax.f32 %v3657, 0.0
        %v3672 = vmax.f32 %v3658, 0.0
        %v3673 = vmax.f32 %v3659, 0.0
        %v3674 = vmax.f32 %v3660, 0.0
        %v3675 = vmax.f32 %v3661, 0.0
        %v3676 = vmax.f32 %v3662, 0.0
        %v3677 = vmax.f32 %v3663, 0.0
        %v3678 = vld [vmem:[#allocation12] sm:$0xff]
        %v3679 = vld [vmem:[#allocation12 + $0x8] sm:$0xff]
        %v3680 = vld [vmem:[#allocation12 + $0x10] sm:$0xff]
        %v3681 = vld [vmem:[#allocation12 + $0x18] sm:$0xff]
        %v3682 = vld [vmem:[#allocation12 + $0x20] sm:$0xff]
        %v3683 = vld [vmem:[#allocation12 + $0x28] sm:$0xff]
        %v3684 = vld [vmem:[#allocation12 + $0x30] sm:$0xff]
        %v3685 = vld [vmem:[#allocation12 + $0x38] sm:$0xff]
        %v3686 = vld [vmem:[#allocation12 + $0x40] sm:$0xff]
        %v3687 = vld [vmem:[#allocation12 + $0x48] sm:$0xff]
        %v3688 = vld [vmem:[#allocation12 + $0x50] sm:$0xff]
        %v3689 = vld [vmem:[#allocation12 + $0x58] sm:$0xff]
        %v3690 = vld [vmem:[#allocation12 + $0x60] sm:$0xff]
        %v3691 = vld [vmem:[#allocation12 + $0x68] sm:$0xff]
        %v3692 = vld [vmem:[#allocation12 + $0x70] sm:$0xff]
        %v3693 = vld [vmem:[#allocation12 + $0x78] sm:$0xff]
        %v3694 = vld [vmem:[#allocation12 + $0x80] sm:$0xff]
        %v3695 = vld [vmem:[#allocation12 + $0x88] sm:$0xff]
        %v3696 = vld [vmem:[#allocation12 + $0x90] sm:$0xff]
        %v3697 = vld [vmem:[#allocation12 + $0x98] sm:$0xff]
        %v3698 = vld [vmem:[#allocation12 + $0xa0] sm:$0xff]
        %v3699 = vld [vmem:[#allocation12 + $0xa8] sm:$0xff]
        %v3700 = vld [vmem:[#allocation12 + $0xb0] sm:$0xff]
        %v3701 = vld [vmem:[#allocation12 + $0xb8] sm:$0xff]
        %v3702 = vld [vmem:[#allocation12 + $0xc0] sm:$0xff]
        %v3703 = vld [vmem:[#allocation12 + $0xc8] sm:$0xff]
        %v3704 = vld [vmem:[#allocation12 + $0xd0] sm:$0xff]
        %v3705 = vld [vmem:[#allocation12 + $0xd8] sm:$0xff]
        %v3706 = vld [vmem:[#allocation12 + $0xe0] sm:$0xff]
        %v3707 = vld [vmem:[#allocation12 + $0xe8] sm:$0xff]
        %v3708 = vld [vmem:[#allocation12 + $0xf0] sm:$0xff]
        %v3709 = vld [vmem:[#allocation12 + $0xf8] sm:$0xff]
        %v3710 = vld [vmem:[#allocation12 + $0x100] sm:$0xff]
        %v3711 = vld [vmem:[#allocation12 + $0x108] sm:$0xff]
        %v3712 = vld [vmem:[#allocation12 + $0x110] sm:$0xff]
        %v3713 = vld [vmem:[#allocation12 + $0x118] sm:$0xff]
        %v3714 = vld [vmem:[#allocation12 + $0x120] sm:$0xff]
        %v3715 = vld [vmem:[#allocation12 + $0x128] sm:$0xff]
        %v3716 = vld [vmem:[#allocation12 + $0x130] sm:$0xff]
        %v3717 = vld [vmem:[#allocation12 + $0x138] sm:$0xff]
        %v3718 = vld [vmem:[#allocation12 + $0x140] sm:$0xff]
        %v3719 = vld [vmem:[#allocation12 + $0x148] sm:$0xff]
        %v3720 = vld [vmem:[#allocation12 + $0x150] sm:$0xff]
        %v3721 = vld [vmem:[#allocation12 + $0x158] sm:$0xff]
        %v3722 = vld [vmem:[#allocation12 + $0x160] sm:$0xff]
        %v3723 = vld [vmem:[#allocation12 + $0x168] sm:$0xff]
        %v3724 = vld [vmem:[#allocation12 + $0x170] sm:$0xff]
        %v3725 = vld [vmem:[#allocation12 + $0x178] sm:$0xff]
        %v3726 = vld [vmem:[#allocation12 + $0x180] sm:$0xff]
        %v3727 = vld [vmem:[#allocation12 + $0x188] sm:$0xff]
        %v3728 = vld [vmem:[#allocation12 + $0x190] sm:$0xff]
        %v3729 = vld [vmem:[#allocation12 + $0x198] sm:$0xff]
        %v3730 = vld [vmem:[#allocation12 + $0x1a0] sm:$0xff]
        %v3731 = vld [vmem:[#allocation12 + $0x1a8] sm:$0xff]
        %v3732 = vld [vmem:[#allocation12 + $0x1b0] sm:$0xff]
        %v3733 = vld [vmem:[#allocation12 + $0x1b8] sm:$0xff]
        %v3734 = vld [vmem:[#allocation12 + $0x1c0] sm:$0xff]
        %v3735 = vld [vmem:[#allocation12 + $0x1c8] sm:$0xff]
        %v3736 = vld [vmem:[#allocation12 + $0x1d0] sm:$0xff]
        %v3737 = vld [vmem:[#allocation12 + $0x1d8] sm:$0xff]
        %v3738 = vld [vmem:[#allocation12 + $0x1e0] sm:$0xff]
        %v3739 = vld [vmem:[#allocation12 + $0x1e8] sm:$0xff]
        %v3740 = vld [vmem:[#allocation12 + $0x1f0] sm:$0xff]
        %v3741 = vld [vmem:[#allocation12 + $0x1f8] sm:$0xff]
        %v3742 = vld [vmem:[#allocation13] sm:$0x3]
        %v3744 = vlaneseq
        %v3745 = vshrl.u32 %v3744, 7
        %v3746 = vsub.s32 0, %v3745
        %v3747 = vrot.slane %v3742, %v3746
        %v3748 = vlaneseq
        %v3749 = vshrl.u32 %v3748, 7
        %v3750 = vsub.s32 1, %v3749
        %v3751 = vrot.slane %v3742, %v3750
        %3754 = vmatprep.subr.mxu0 %v3679
        %3755 = vmatpush1.msra.mxu0 %v3678
        %3756 = vmatprep.subr.mxu0 %v3681
        %3757 = vmatpush1.msra.mxu0 %v3680
        %3758 = vmatprep.subr.mxu0 %v3683
        %3759 = vmatpush1.msra.mxu0 %v3682
        %3760 = vmatprep.subr.mxu0 %v3685
        %3761 = vmatpush1.msra.mxu0 %v3684
        %3762 = vmatprep.subr.mxu0 %v3687
        %3763 = vmatpush1.msra.mxu0 %v3686
        %3764 = vmatprep.subr.mxu0 %v3689
        %3765 = vmatpush1.msra.mxu0 %v3688
        %3766 = vmatprep.subr.mxu0 %v3691
        %3767 = vmatpush1.msra.mxu0 %v3690
        %3768 = vmatprep.subr.mxu0 %v3693
        %3769 = vmatpush1.msra.mxu0 %v3692
        %3770 = vmatprep.subr.mxu0 %v3695
        %3771 = vmatpush1.msra.mxu0 %v3694
        %3772 = vmatprep.subr.mxu0 %v3697
        %3773 = vmatpush1.msra.mxu0 %v3696
        %3774 = vmatprep.subr.mxu0 %v3699
        %3775 = vmatpush1.msra.mxu0 %v3698
        %3776 = vmatprep.subr.mxu0 %v3701
        %3777 = vmatpush1.msra.mxu0 %v3700
        %3778 = vmatprep.subr.mxu0 %v3703
        %3779 = vmatpush1.msra.mxu0 %v3702
        %3780 = vmatprep.subr.mxu0 %v3705
        %3781 = vmatpush1.msra.mxu0 %v3704
        %3782 = vmatprep.subr.mxu0 %v3707
        %3783 = vmatpush1.msra.mxu0 %v3706
        %3784 = vmatprep.subr.mxu0 %v3709
        %3785 = vmatpush1.msra.mxu0 %v3708
        %3786 = vmatprep.subr.mxu0 %v3711
        %3787 = vmatpush1.msra.mxu0 %v3710
        %3788 = vmatprep.subr.mxu0 %v3713
        %3789 = vmatpush1.msra.mxu0 %v3712
        %3790 = vmatprep.subr.mxu0 %v3715
        %3791 = vmatpush1.msra.mxu0 %v3714
        %3792 = vmatprep.subr.mxu0 %v3717
        %3793 = vmatpush1.msra.mxu0 %v3716
        %3794 = vmatprep.subr.mxu0 %v3719
        %3795 = vmatpush1.msra.mxu0 %v3718
        %3796 = vmatprep.subr.mxu0 %v3721
        %3797 = vmatpush1.msra.mxu0 %v3720
        %3798 = vmatprep.subr.mxu0 %v3723
        %3799 = vmatpush1.msra.mxu0 %v3722
        %3800 = vmatprep.subr.mxu0 %v3725
        %3801 = vmatpush1.msra.mxu0 %v3724
        %3802 = vmatprep.subr.mxu0 %v3727
        %3803 = vmatpush1.msra.mxu0 %v3726
        %3804 = vmatprep.subr.mxu0 %v3729
        %3805 = vmatpush1.msra.mxu0 %v3728
        %3806 = vmatprep.subr.mxu0 %v3731
        %3807 = vmatpush1.msra.mxu0 %v3730
        %3808 = vmatprep.subr.mxu0 %v3733
        %3809 = vmatpush1.msra.mxu0 %v3732
        %3810 = vmatprep.subr.mxu0 %v3735
        %3811 = vmatpush1.msra.mxu0 %v3734
        %3812 = vmatprep.subr.mxu0 %v3737
        %3813 = vmatpush1.msra.mxu0 %v3736
        %3814 = vmatprep.subr.mxu0 %v3739
        %3815 = vmatpush1.msra.mxu0 %v3738
        %3816 = vmatprep.subr.mxu0 %v3741
        %3817 = vmatpush1.msra.mxu0 %v3740
        %3818 = vmatprep.mubr.f32.mxu0 %v3665
        %3819 = vmatmul.mubr.f32.gmra.mrb[0].mxu0 %v3664
        %v3820 = vpop.f32.mrb[0].mxu0
        %v3821 = vadd.f32 %v3747, %v3820
        %v3822 = vpop.f32.mrb[0].mxu0
        %v3823 = vadd.f32 %v3751, %v3822
        %3824 = vdwg.mxu0
        %v3825 = vmax.f32 %v3821, 0.0
        %v3826 = vmax.f32 %v3823, 0.0
        %v3829 = vcombine.low %v3825, %v3826
        %v3831 = vunpack.c.l.s4 1983009808
        %v3832 = vunpack.c.0.s8 %v3831
        %v3833 = vlaneseq
        %v3834 = vshrl.u32 %v3833, 7
        %v3835 = vsub.s32 %v3832, %v3834
        %v3836 = vrot.slane %v3829, %v3835
        %3838 = vst [vmem:[%s528] sm:$0xf] %v3836
        %3839 = vmatprep.subr.mxu0 %v3679
        %3840 = vmatpush1.msra.mxu0 %v3678
        %3841 = vmatprep.subr.mxu0 %v3681
        %3842 = vmatpush1.msra.mxu0 %v3680
        %3843 = vmatprep.subr.mxu0 %v3683
        %3844 = vmatpush1.msra.mxu0 %v3682
        %3845 = vmatprep.subr.mxu0 %v3685
        %3846 = vmatpush1.msra.mxu0 %v3684
        %3847 = vmatprep.subr.mxu0 %v3687
        %3848 = vmatpush1.msra.mxu0 %v3686
        %3849 = vmatprep.subr.mxu0 %v3689
        %3850 = vmatpush1.msra.mxu0 %v3688
        %3851 = vmatprep.subr.mxu0 %v3691
        %3852 = vmatpush1.msra.mxu0 %v3690
        %3853 = vmatprep.subr.mxu0 %v3693
        %3854 = vmatpush1.msra.mxu0 %v3692
        %3855 = vmatprep.subr.mxu0 %v3695
        %3856 = vmatpush1.msra.mxu0 %v3694
        %3857 = vmatprep.subr.mxu0 %v3697
        %3858 = vmatpush1.msra.mxu0 %v3696
        %3859 = vmatprep.subr.mxu0 %v3699
        %3860 = vmatpush1.msra.mxu0 %v3698
        %3861 = vmatprep.subr.mxu0 %v3701
        %3862 = vmatpush1.msra.mxu0 %v3700
        %3863 = vmatprep.subr.mxu0 %v3703
        %3864 = vmatpush1.msra.mxu0 %v3702
        %3865 = vmatprep.subr.mxu0 %v3705
        %3866 = vmatpush1.msra.mxu0 %v3704
        %3867 = vmatprep.subr.mxu0 %v3707
        %3868 = vmatpush1.msra.mxu0 %v3706
        %3869 = vmatprep.subr.mxu0 %v3709
        %3870 = vmatpush1.msra.mxu0 %v3708
        %3871 = vmatprep.subr.mxu0 %v3711
        %3872 = vmatpush1.msra.mxu0 %v3710
        %3873 = vmatprep.subr.mxu0 %v3713
        %3874 = vmatpush1.msra.mxu0 %v3712
        %3875 = vmatprep.subr.mxu0 %v3715
        %3876 = vmatpush1.msra.mxu0 %v3714
        %3877 = vmatprep.subr.mxu0 %v3717
        %3878 = vmatpush1.msra.mxu0 %v3716
        %3879 = vmatprep.subr.mxu0 %v3719
        %3880 = vmatpush1.msra.mxu0 %v3718
        %3881 = vmatprep.subr.mxu0 %v3721
        %3882 = vmatpush1.msra.mxu0 %v3720
        %3883 = vmatprep.subr.mxu0 %v3723
        %3884 = vmatpush1.msra.mxu0 %v3722
        %3885 = vmatprep.subr.mxu0 %v3725
        %3886 = vmatpush1.msra.mxu0 %v3724
        %3887 = vmatprep.subr.mxu0 %v3727
        %3888 = vmatpush1.msra.mxu0 %v3726
        %3889 = vmatprep.subr.mxu0 %v3729
        %3890 = vmatpush1.msra.mxu0 %v3728
        %3891 = vmatprep.subr.mxu0 %v3731
        %3892 = vmatpush1.msra.mxu0 %v3730
        %3893 = vmatprep.subr.mxu0 %v3733
        %3894 = vmatpush1.msra.mxu0 %v3732
        %3895 = vmatprep.subr.mxu0 %v3735
        %3896 = vmatpush1.msra.mxu0 %v3734
        %3897 = vmatprep.subr.mxu0 %v3737
        %3898 = vmatpush1.msra.mxu0 %v3736
        %3899 = vmatprep.subr.mxu0 %v3739
        %3900 = vmatpush1.msra.mxu0 %v3738
        %3901 = vmatprep.subr.mxu0 %v3741
        %3902 = vmatpush1.msra.mxu0 %v3740
        %3903 = vmatprep.mubr.f32.mxu0 %v3667
        %3904 = vmatmul.mubr.f32.gmra.mrb[0].mxu0 %v3666
        %v3905 = vpop.f32.mrb[0].mxu0
        %v3906 = vadd.f32 %v3747, %v3905
        %v3907 = vpop.f32.mrb[0].mxu0
        %v3908 = vadd.f32 %v3751, %v3907
        %3909 = vdwg.mxu0
        %v3910 = vmax.f32 %v3906, 0.0
        %v3911 = vmax.f32 %v3908, 0.0
        %v3914 = vcombine.low %v3910, %v3911
        %v3916 = vunpack.c.l.s4 1983009808
        %v3917 = vunpack.c.0.s8 %v3916
        %v3918 = vlaneseq
        %v3919 = vshrl.u32 %v3918, 7
        %v3920 = vsub.s32 %v3917, %v3919
        %v3921 = vrot.slane %v3914, %v3920
        %3923 = vst [vmem:[%s528 + $0x4] sm:$0xf] %v3921
        %3924 = vmatprep.subr.mxu0 %v3679
        %3925 = vmatpush1.msra.mxu0 %v3678
        %3926 = vmatprep.subr.mxu0 %v3681
        %3927 = vmatpush1.msra.mxu0 %v3680
        %3928 = vmatprep.subr.mxu0 %v3683
        %3929 = vmatpush1.msra.mxu0 %v3682
        %3930 = vmatprep.subr.mxu0 %v3685
        %3931 = vmatpush1.msra.mxu0 %v3684
        %3932 = vmatprep.subr.mxu0 %v3687
        %3933 = vmatpush1.msra.mxu0 %v3686
        %3934 = vmatprep.subr.mxu0 %v3689
        %3935 = vmatpush1.msra.mxu0 %v3688
        %3936 = vmatprep.subr.mxu0 %v3691
        %3937 = vmatpush1.msra.mxu0 %v3690
        %3938 = vmatprep.subr.mxu0 %v3693
        %3939 = vmatpush1.msra.mxu0 %v3692
        %3940 = vmatprep.subr.mxu0 %v3695
        %3941 = vmatpush1.msra.mxu0 %v3694
        %3942 = vmatprep.subr.mxu0 %v3697
        %3943 = vmatpush1.msra.mxu0 %v3696
        %3944 = vmatprep.subr.mxu0 %v3699
        %3945 = vmatpush1.msra.mxu0 %v3698
        %3946 = vmatprep.subr.mxu0 %v3701
        %3947 = vmatpush1.msra.mxu0 %v3700
        %3948 = vmatprep.subr.mxu0 %v3703
        %3949 = vmatpush1.msra.mxu0 %v3702
        %3950 = vmatprep.subr.mxu0 %v3705
        %3951 = vmatpush1.msra.mxu0 %v3704
        %3952 = vmatprep.subr.mxu0 %v3707
        %3953 = vmatpush1.msra.mxu0 %v3706
        %3954 = vmatprep.subr.mxu0 %v3709
        %3955 = vmatpush1.msra.mxu0 %v3708
        %3956 = vmatprep.subr.mxu0 %v3711
        %3957 = vmatpush1.msra.mxu0 %v3710
        %3958 = vmatprep.subr.mxu0 %v3713
        %3959 = vmatpush1.msra.mxu0 %v3712
        %3960 = vmatprep.subr.mxu0 %v3715
        %3961 = vmatpush1.msra.mxu0 %v3714
        %3962 = vmatprep.subr.mxu0 %v3717
        %3963 = vmatpush1.msra.mxu0 %v3716
        %3964 = vmatprep.subr.mxu0 %v3719
        %3965 = vmatpush1.msra.mxu0 %v3718
        %3966 = vmatprep.subr.mxu0 %v3721
        %3967 = vmatpush1.msra.mxu0 %v3720
        %3968 = vmatprep.subr.mxu0 %v3723
        %3969 = vmatpush1.msra.mxu0 %v3722
        %3970 = vmatprep.subr.mxu0 %v3725
        %3971 = vmatpush1.msra.mxu0 %v3724
        %3972 = vmatprep.subr.mxu0 %v3727
        %3973 = vmatpush1.msra.mxu0 %v3726
        %3974 = vmatprep.subr.mxu0 %v3729
        %3975 = vmatpush1.msra.mxu0 %v3728
        %3976 = vmatprep.subr.mxu0 %v3731
        %3977 = vmatpush1.msra.mxu0 %v3730
        %3978 = vmatprep.subr.mxu0 %v3733
        %3979 = vmatpush1.msra.mxu0 %v3732
        %3980 = vmatprep.subr.mxu0 %v3735
        %3981 = vmatpush1.msra.mxu0 %v3734
        %3982 = vmatprep.subr.mxu0 %v3737
        %3983 = vmatpush1.msra.mxu0 %v3736
        %3984 = vmatprep.subr.mxu0 %v3739
        %3985 = vmatpush1.msra.mxu0 %v3738
        %3986 = vmatprep.subr.mxu0 %v3741
        %3987 = vmatpush1.msra.mxu0 %v3740
        %3988 = vmatprep.mubr.f32.mxu0 %v3669
        %3989 = vmatmul.mubr.f32.gmra.mrb[0].mxu0 %v3668
        %v3990 = vpop.f32.mrb[0].mxu0
        %v3991 = vadd.f32 %v3747, %v3990
        %v3992 = vpop.f32.mrb[0].mxu0
        %v3993 = vadd.f32 %v3751, %v3992
        %3994 = vdwg.mxu0
        %v3995 = vmax.f32 %v3991, 0.0
        %v3996 = vmax.f32 %v3993, 0.0
        %v3999 = vcombine.low %v3995, %v3996
        %v4001 = vunpack.c.l.s4 1983009808
        %v4002 = vunpack.c.0.s8 %v4001
        %v4003 = vlaneseq
        %v4004 = vshrl.u32 %v4003, 7
        %v4005 = vsub.s32 %v4002, %v4004
        %v4006 = vrot.slane %v3999, %v4005
        %4008 = vst [vmem:[%s528 + $0x8] sm:$0xf] %v4006
        %4009 = vmatprep.subr.mxu0 %v3679
        %4010 = vmatpush1.msra.mxu0 %v3678
        %4011 = vmatprep.subr.mxu0 %v3681
        %4012 = vmatpush1.msra.mxu0 %v3680
        %4013 = vmatprep.subr.mxu0 %v3683
        %4014 = vmatpush1.msra.mxu0 %v3682
        %4015 = vmatprep.subr.mxu0 %v3685
        %4016 = vmatpush1.msra.mxu0 %v3684
        %4017 = vmatprep.subr.mxu0 %v3687
        %4018 = vmatpush1.msra.mxu0 %v3686
        %4019 = vmatprep.subr.mxu0 %v3689
        %4020 = vmatpush1.msra.mxu0 %v3688
        %4021 = vmatprep.subr.mxu0 %v3691
        %4022 = vmatpush1.msra.mxu0 %v3690
        %4023 = vmatprep.subr.mxu0 %v3693
        %4024 = vmatpush1.msra.mxu0 %v3692
        %4025 = vmatprep.subr.mxu0 %v3695
        %4026 = vmatpush1.msra.mxu0 %v3694
        %4027 = vmatprep.subr.mxu0 %v3697
        %4028 = vmatpush1.msra.mxu0 %v3696
        %4029 = vmatprep.subr.mxu0 %v3699
        %4030 = vmatpush1.msra.mxu0 %v3698
        %4031 = vmatprep.subr.mxu0 %v3701
        %4032 = vmatpush1.msra.mxu0 %v3700
        %4033 = vmatprep.subr.mxu0 %v3703
        %4034 = vmatpush1.msra.mxu0 %v3702
        %4035 = vmatprep.subr.mxu0 %v3705
        %4036 = vmatpush1.msra.mxu0 %v3704
        %4037 = vmatprep.subr.mxu0 %v3707
        %4038 = vmatpush1.msra.mxu0 %v3706
        %4039 = vmatprep.subr.mxu0 %v3709
        %4040 = vmatpush1.msra.mxu0 %v3708
        %4041 = vmatprep.subr.mxu0 %v3711
        %4042 = vmatpush1.msra.mxu0 %v3710
        %4043 = vmatprep.subr.mxu0 %v3713
        %4044 = vmatpush1.msra.mxu0 %v3712
        %4045 = vmatprep.subr.mxu0 %v3715
        %4046 = vmatpush1.msra.mxu0 %v3714
        %4047 = vmatprep.subr.mxu0 %v3717
        %4048 = vmatpush1.msra.mxu0 %v3716
        %4049 = vmatprep.subr.mxu0 %v3719
        %4050 = vmatpush1.msra.mxu0 %v3718
        %4051 = vmatprep.subr.mxu0 %v3721
        %4052 = vmatpush1.msra.mxu0 %v3720
        %4053 = vmatprep.subr.mxu0 %v3723
        %4054 = vmatpush1.msra.mxu0 %v3722
        %4055 = vmatprep.subr.mxu0 %v3725
        %4056 = vmatpush1.msra.mxu0 %v3724
        %4057 = vmatprep.subr.mxu0 %v3727
        %4058 = vmatpush1.msra.mxu0 %v3726
        %4059 = vmatprep.subr.mxu0 %v3729
        %4060 = vmatpush1.msra.mxu0 %v3728
        %4061 = vmatprep.subr.mxu0 %v3731
        %4062 = vmatpush1.msra.mxu0 %v3730
        %4063 = vmatprep.subr.mxu0 %v3733
        %4064 = vmatpush1.msra.mxu0 %v3732
        %4065 = vmatprep.subr.mxu0 %v3735
        %4066 = vmatpush1.msra.mxu0 %v3734
        %4067 = vmatprep.subr.mxu0 %v3737
        %4068 = vmatpush1.msra.mxu0 %v3736
        %4069 = vmatprep.subr.mxu0 %v3739
        %4070 = vmatpush1.msra.mxu0 %v3738
        %4071 = vmatprep.subr.mxu0 %v3741
        %4072 = vmatpush1.msra.mxu0 %v3740
        %4073 = vmatprep.mubr.f32.mxu0 %v3671
        %4074 = vmatmul.mubr.f32.gmra.mrb[0].mxu0 %v3670
        %v4075 = vpop.f32.mrb[0].mxu0
        %v4076 = vadd.f32 %v3747, %v4075
        %v4077 = vpop.f32.mrb[0].mxu0
        %v4078 = vadd.f32 %v3751, %v4077
        %4079 = vdwg.mxu0
        %v4080 = vmax.f32 %v4076, 0.0
        %v4081 = vmax.f32 %v4078, 0.0
        %v4084 = vcombine.low %v4080, %v4081
        %v4086 = vunpack.c.l.s4 1983009808
        %v4087 = vunpack.c.0.s8 %v4086
        %v4088 = vlaneseq
        %v4089 = vshrl.u32 %v4088, 7
        %v4090 = vsub.s32 %v4087, %v4089
        %v4091 = vrot.slane %v4084, %v4090
        %4093 = vst [vmem:[%s528 + $0xc] sm:$0xf] %v4091
        %4094 = vmatprep.subr.mxu0 %v3679
        %4095 = vmatpush1.msra.mxu0 %v3678
        %4096 = vmatprep.subr.mxu0 %v3681
        %4097 = vmatpush1.msra.mxu0 %v3680
        %4098 = vmatprep.subr.mxu0 %v3683
        %4099 = vmatpush1.msra.mxu0 %v3682
        %4100 = vmatprep.subr.mxu0 %v3685
        %4101 = vmatpush1.msra.mxu0 %v3684
        %4102 = vmatprep.subr.mxu0 %v3687
        %4103 = vmatpush1.msra.mxu0 %v3686
        %4104 = vmatprep.subr.mxu0 %v3689
        %4105 = vmatpush1.msra.mxu0 %v3688
        %4106 = vmatprep.subr.mxu0 %v3691
        %4107 = vmatpush1.msra.mxu0 %v3690
        %4108 = vmatprep.subr.mxu0 %v3693
        %4109 = vmatpush1.msra.mxu0 %v3692
        %4110 = vmatprep.subr.mxu0 %v3695
        %4111 = vmatpush1.msra.mxu0 %v3694
        %4112 = vmatprep.subr.mxu0 %v3697
        %4113 = vmatpush1.msra.mxu0 %v3696
        %4114 = vmatprep.subr.mxu0 %v3699
        %4115 = vmatpush1.msra.mxu0 %v3698
        %4116 = vmatprep.subr.mxu0 %v3701
        %4117 = vmatpush1.msra.mxu0 %v3700
        %4118 = vmatprep.subr.mxu0 %v3703
        %4119 = vmatpush1.msra.mxu0 %v3702
        %4120 = vmatprep.subr.mxu0 %v3705
        %4121 = vmatpush1.msra.mxu0 %v3704
        %4122 = vmatprep.subr.mxu0 %v3707
        %4123 = vmatpush1.msra.mxu0 %v3706
        %4124 = vmatprep.subr.mxu0 %v3709
        %4125 = vmatpush1.msra.mxu0 %v3708
        %4126 = vmatprep.subr.mxu0 %v3711
        %4127 = vmatpush1.msra.mxu0 %v3710
        %4128 = vmatprep.subr.mxu0 %v3713
        %4129 = vmatpush1.msra.mxu0 %v3712
        %4130 = vmatprep.subr.mxu0 %v3715
        %4131 = vmatpush1.msra.mxu0 %v3714
        %4132 = vmatprep.subr.mxu0 %v3717
        %4133 = vmatpush1.msra.mxu0 %v3716
        %4134 = vmatprep.subr.mxu0 %v3719
        %4135 = vmatpush1.msra.mxu0 %v3718
        %4136 = vmatprep.subr.mxu0 %v3721
        %4137 = vmatpush1.msra.mxu0 %v3720
        %4138 = vmatprep.subr.mxu0 %v3723
        %4139 = vmatpush1.msra.mxu0 %v3722
        %4140 = vmatprep.subr.mxu0 %v3725
        %4141 = vmatpush1.msra.mxu0 %v3724
        %4142 = vmatprep.subr.mxu0 %v3727
        %4143 = vmatpush1.msra.mxu0 %v3726
        %4144 = vmatprep.subr.mxu0 %v3729
        %4145 = vmatpush1.msra.mxu0 %v3728
        %4146 = vmatprep.subr.mxu0 %v3731
        %4147 = vmatpush1.msra.mxu0 %v3730
        %4148 = vmatprep.subr.mxu0 %v3733
        %4149 = vmatpush1.msra.mxu0 %v3732
        %4150 = vmatprep.subr.mxu0 %v3735
        %4151 = vmatpush1.msra.mxu0 %v3734
        %4152 = vmatprep.subr.mxu0 %v3737
        %4153 = vmatpush1.msra.mxu0 %v3736
        %4154 = vmatprep.subr.mxu0 %v3739
        %4155 = vmatpush1.msra.mxu0 %v3738
        %4156 = vmatprep.subr.mxu0 %v3741
        %4157 = vmatpush1.msra.mxu0 %v3740
        %4158 = vmatprep.mubr.f32.mxu0 %v3673
        %4159 = vmatmul.mubr.f32.gmra.mrb[0].mxu0 %v3672
        %v4160 = vpop.f32.mrb[0].mxu0
        %v4161 = vadd.f32 %v3747, %v4160
        %v4162 = vpop.f32.mrb[0].mxu0
        %v4163 = vadd.f32 %v3751, %v4162
        %4164 = vdwg.mxu0
        %v4165 = vmax.f32 %v4161, 0.0
        %v4166 = vmax.f32 %v4163, 0.0
        %v4169 = vcombine.low %v4165, %v4166
        %v4171 = vunpack.c.l.s4 1983009808
        %v4172 = vunpack.c.0.s8 %v4171
        %v4173 = vlaneseq
        %v4174 = vshrl.u32 %v4173, 7
        %v4175 = vsub.s32 %v4172, %v4174
        %v4176 = vrot.slane %v4169, %v4175
        %4178 = vst [vmem:[%s528 + $0x10] sm:$0xf] %v4176
        %4179 = vmatprep.subr.mxu0 %v3679
        %4180 = vmatpush1.msra.mxu0 %v3678
        %4181 = vmatprep.subr.mxu0 %v3681
        %4182 = vmatpush1.msra.mxu0 %v3680
        %4183 = vmatprep.subr.mxu0 %v3683
        %4184 = vmatpush1.msra.mxu0 %v3682
        %4185 = vmatprep.subr.mxu0 %v3685
        %4186 = vmatpush1.msra.mxu0 %v3684
        %4187 = vmatprep.subr.mxu0 %v3687
        %4188 = vmatpush1.msra.mxu0 %v3686
        %4189 = vmatprep.subr.mxu0 %v3689
        %4190 = vmatpush1.msra.mxu0 %v3688
        %4191 = vmatprep.subr.mxu0 %v3691
        %4192 = vmatpush1.msra.mxu0 %v3690
        %4193 = vmatprep.subr.mxu0 %v3693
        %4194 = vmatpush1.msra.mxu0 %v3692
        %4195 = vmatprep.subr.mxu0 %v3695
        %4196 = vmatpush1.msra.mxu0 %v3694
        %4197 = vmatprep.subr.mxu0 %v3697
        %4198 = vmatpush1.msra.mxu0 %v3696
        %4199 = vmatprep.subr.mxu0 %v3699
        %4200 = vmatpush1.msra.mxu0 %v3698
        %4201 = vmatprep.subr.mxu0 %v3701
        %4202 = vmatpush1.msra.mxu0 %v3700
        %4203 = vmatprep.subr.mxu0 %v3703
        %4204 = vmatpush1.msra.mxu0 %v3702
        %4205 = vmatprep.subr.mxu0 %v3705
        %4206 = vmatpush1.msra.mxu0 %v3704
        %4207 = vmatprep.subr.mxu0 %v3707
        %4208 = vmatpush1.msra.mxu0 %v3706
        %4209 = vmatprep.subr.mxu0 %v3709
        %4210 = vmatpush1.msra.mxu0 %v3708
        %4211 = vmatprep.subr.mxu0 %v3711
        %4212 = vmatpush1.msra.mxu0 %v3710
        %4213 = vmatprep.subr.mxu0 %v3713
        %4214 = vmatpush1.msra.mxu0 %v3712
        %4215 = vmatprep.subr.mxu0 %v3715
        %4216 = vmatpush1.msra.mxu0 %v3714
        %4217 = vmatprep.subr.mxu0 %v3717
        %4218 = vmatpush1.msra.mxu0 %v3716
        %4219 = vmatprep.subr.mxu0 %v3719
        %4220 = vmatpush1.msra.mxu0 %v3718
        %4221 = vmatprep.subr.mxu0 %v3721
        %4222 = vmatpush1.msra.mxu0 %v3720
        %4223 = vmatprep.subr.mxu0 %v3723
        %4224 = vmatpush1.msra.mxu0 %v3722
        %4225 = vmatprep.subr.mxu0 %v3725
        %4226 = vmatpush1.msra.mxu0 %v3724
        %4227 = vmatprep.subr.mxu0 %v3727
        %4228 = vmatpush1.msra.mxu0 %v3726
        %4229 = vmatprep.subr.mxu0 %v3729
        %4230 = vmatpush1.msra.mxu0 %v3728
        %4231 = vmatprep.subr.mxu0 %v3731
        %4232 = vmatpush1.msra.mxu0 %v3730
        %4233 = vmatprep.subr.mxu0 %v3733
        %4234 = vmatpush1.msra.mxu0 %v3732
        %4235 = vmatprep.subr.mxu0 %v3735
        %4236 = vmatpush1.msra.mxu0 %v3734
        %4237 = vmatprep.subr.mxu0 %v3737
        %4238 = vmatpush1.msra.mxu0 %v3736
        %4239 = vmatprep.subr.mxu0 %v3739
        %4240 = vmatpush1.msra.mxu0 %v3738
        %4241 = vmatprep.subr.mxu0 %v3741
        %4242 = vmatpush1.msra.mxu0 %v3740
        %4243 = vmatprep.mubr.f32.mxu0 %v3675
        %4244 = vmatmul.mubr.f32.gmra.mrb[0].mxu0 %v3674
        %v4245 = vpop.f32.mrb[0].mxu0
        %v4246 = vadd.f32 %v3747, %v4245
        %v4247 = vpop.f32.mrb[0].mxu0
        %v4248 = vadd.f32 %v3751, %v4247
        %4249 = vdwg.mxu0
        %v4250 = vmax.f32 %v4246, 0.0
        %v4251 = vmax.f32 %v4248, 0.0
        %v4254 = vcombine.low %v4250, %v4251
        %v4256 = vunpack.c.l.s4 1983009808
        %v4257 = vunpack.c.0.s8 %v4256
        %v4258 = vlaneseq
        %v4259 = vshrl.u32 %v4258, 7
        %v4260 = vsub.s32 %v4257, %v4259
        %v4261 = vrot.slane %v4254, %v4260
        %4263 = vst [vmem:[%s528 + $0x14] sm:$0xf] %v4261
        %4264 = vmatprep.subr.mxu0 %v3679
        %4265 = vmatpush1.msra.mxu0 %v3678
        %4266 = vmatprep.subr.mxu0 %v3681
        %4267 = vmatpush1.msra.mxu0 %v3680
        %4268 = vmatprep.subr.mxu0 %v3683
        %4269 = vmatpush1.msra.mxu0 %v3682
        %4270 = vmatprep.subr.mxu0 %v3685
        %4271 = vmatpush1.msra.mxu0 %v3684
        %4272 = vmatprep.subr.mxu0 %v3687
        %4273 = vmatpush1.msra.mxu0 %v3686
        %4274 = vmatprep.subr.mxu0 %v3689
        %4275 = vmatpush1.msra.mxu0 %v3688
        %4276 = vmatprep.subr.mxu0 %v3691
        %4277 = vmatpush1.msra.mxu0 %v3690
        %4278 = vmatprep.subr.mxu0 %v3693
        %4279 = vmatpush1.msra.mxu0 %v3692
        %4280 = vmatprep.subr.mxu0 %v3695
        %4281 = vmatpush1.msra.mxu0 %v3694
        %4282 = vmatprep.subr.mxu0 %v3697
        %4283 = vmatpush1.msra.mxu0 %v3696
        %4284 = vmatprep.subr.mxu0 %v3699
        %4285 = vmatpush1.msra.mxu0 %v3698
        %4286 = vmatprep.subr.mxu0 %v3701
        %4287 = vmatpush1.msra.mxu0 %v3700
        %4288 = vmatprep.subr.mxu0 %v3703
        %4289 = vmatpush1.msra.mxu0 %v3702
        %4290 = vmatprep.subr.mxu0 %v3705
        %4291 = vmatpush1.msra.mxu0 %v3704
        %4292 = vmatprep.subr.mxu0 %v3707
        %4293 = vmatpush1.msra.mxu0 %v3706
        %4294 = vmatprep.subr.mxu0 %v3709
        %4295 = vmatpush1.msra.mxu0 %v3708
        %4296 = vmatprep.subr.mxu0 %v3711
        %4297 = vmatpush1.msra.mxu0 %v3710
        %4298 = vmatprep.subr.mxu0 %v3713
        %4299 = vmatpush1.msra.mxu0 %v3712
        %4300 = vmatprep.subr.mxu0 %v3715
        %4301 = vmatpush1.msra.mxu0 %v3714
        %4302 = vmatprep.subr.mxu0 %v3717
        %4303 = vmatpush1.msra.mxu0 %v3716
        %4304 = vmatprep.subr.mxu0 %v3719
        %4305 = vmatpush1.msra.mxu0 %v3718
        %4306 = vmatprep.subr.mxu0 %v3721
        %4307 = vmatpush1.msra.mxu0 %v3720
        %4308 = vmatprep.subr.mxu0 %v3723
        %4309 = vmatpush1.msra.mxu0 %v3722
        %4310 = vmatprep.subr.mxu0 %v3725
        %4311 = vmatpush1.msra.mxu0 %v3724
        %4312 = vmatprep.subr.mxu0 %v3727
        %4313 = vmatpush1.msra.mxu0 %v3726
        %4314 = vmatprep.subr.mxu0 %v3729
        %4315 = vmatpush1.msra.mxu0 %v3728
        %4316 = vmatprep.subr.mxu0 %v3731
        %4317 = vmatpush1.msra.mxu0 %v3730
        %4318 = vmatprep.subr.mxu0 %v3733
        %4319 = vmatpush1.msra.mxu0 %v3732
        %4320 = vmatprep.subr.mxu0 %v3735
        %4321 = vmatpush1.msra.mxu0 %v3734
        %4322 = vmatprep.subr.mxu0 %v3737
        %4323 = vmatpush1.msra.mxu0 %v3736
        %4324 = vmatprep.subr.mxu0 %v3739
        %4325 = vmatpush1.msra.mxu0 %v3738
        %4326 = vmatprep.subr.mxu0 %v3741
        %4327 = vmatpush1.msra.mxu0 %v3740
        %4328 = vmatprep.mubr.f32.mxu0 %v3677
        %4329 = vmatmul.mubr.f32.gmra.mrb[0].mxu0 %v3676
        %v4330 = vpop.f32.mrb[0].mxu0
        %v4331 = vadd.f32 %v3747, %v4330
        %v4332 = vpop.f32.mrb[0].mxu0
        %v4333 = vadd.f32 %v3751, %v4332
        %4334 = vdwg.mxu0
        %v4335 = vmax.f32 %v4331, 0.0
        %v4336 = vmax.f32 %v4333, 0.0
        %v4339 = vcombine.low %v4335, %v4336
        %v4341 = vunpack.c.l.s4 1983009808
        %v4342 = vunpack.c.0.s8 %v4341
        %v4343 = vlaneseq
        %v4344 = vshrl.u32 %v4343, 7
        %v4345 = vsub.s32 %v4342, %v4344
        %v4346 = vrot.slane %v4339, %v4345
        %4348 = vst [vmem:[%s528 + $0x18] sm:$0xf] %v4346
        %s4349 = smul.u32 14, %s24
        %p4350 = scmp.lt.s32.totalorder %s4349, 97
        %s4351 = scalar_select %p4350, %s4349, 97
        %s4352 = smul.addr %s4351, 2
        %s4353 = scalar_lea.vmem %s10, %s4352
        // Predicated region
        $region97: #{decoder_forward.3} parent=59 // pred_check
          %p4354 = pneg %p267
        $region98: #{decoder_forward.3} parent=59 // pred_check_branch
          %4356 = sbr.rel (%p4354) target = $region100
        $region99: #{decoder_forward.3} parent=59 // pred_region
          %s4357 = smul.u32 14, %s24
        $region100: #{decoder_forward.3} parent=59 // pred_fallthru
          _
      $region60: #{decoder_forward.3} parent=5 // pred_fallthru
        _
      %p4358 = scmp.le.s32.totalorder 2, %s19
      // Predicated region
      $region101: #{decoder_forward.3} parent=5 // pred_check
        %p4359 = pneg %p4358
      $region102: #{decoder_forward.3} parent=5 // pred_check_branch
        %4361 = sbr.rel (%p4359) target = $region104
      $region103: #{decoder_forward.3} parent=5 // pred_region
        %s4362 = ssub.s32 %s19, 2
        // Predicated region
        $region105: #{decoder_forward.3} parent=103 // pred_check
          %p4363 = pneg %p273
        $region106: #{decoder_forward.3} parent=103 // pred_check_branch
          %4365 = sbr.rel (%p4363) target = $region108
        $region107: #{decoder_forward.3} parent=103 // pred_region
          %s4366 = smul.u32 14, %s25
          %p4367 = scmp.lt.s32.totalorder %s4366, 97
          %s4368 = scalar_select %p4367, %s4366, 97
          %s4369 = smul.addr %s4368, 2
          %s4370 = scalar_lea.vmem %s10, %s4369
        $region108: #{decoder_forward.3} parent=103 // pred_fallthru
          _
      $region104: #{decoder_forward.3} parent=5 // pred_fallthru
        _
    $region6: #{decoder_forward.3} parent=1 // loop_footer
      %s23 = sadd.s32 1, %s19
    $region7: #{decoder_forward.3} parent=1 // loop_footer_branch
      %18 = sbr.rel target = $region3
    $region8: #{decoder_forward.3} parent=1 // loop_exit
      _
    %4371 = vsyncpa [#allocation3], 1
    %s4372 = scalar_lea.sflag [#allocation3], 1
    %4373 = vsyncpa %s4372, 1
    %4374 = vsyncpa [#allocation5], 1
    %4375 = vsyncpa [#allocation8], 1

// kernel: decoder_forward.5
$region0: #{decoder_forward.5}
  #allocation0 [shape = 'u32[]', space=smem, size = 0x4, offset = 0x4, fixed_abs, tag = 'smem constant byte address 0x4 - core index']
  #allocation1 [shape = 'u32[144,128]{1,0:T(1,128)}', space=vmem, size = 0x12000, scoped, tag = 'internal scratch']
  %s0 = inlined_call_operand.vmem [shape: f32[144,392], index: 0, kind: input, shape index: {}]
  %s1 = inlined_call_operand.vmem [shape: f32[4,144], index: 1, kind: input, shape index: {}]
  %s2 = inlined_call_operand.vmem [shape: f32[4,1], index: 2, kind: input, shape index: {}]
  %s3 = inlined_call_operand.vmem [shape: f32[4,392], index: 3, kind: output, shape index: {}]
  %s4 = sld [smem:[#allocation0]]
  $region22: #{decoder_forward.5} parent=0
    _
  %s6 = ssub.s32 1, %s4
  %s7 = scalar_select 0, %s6, %s4
  // Predicated region
  $region2: #{decoder_forward.5} parent=0 // pred_check
    _
  $region3: #{decoder_forward.5} parent=0 // pred_check_branch
    %9 = sbr.rel (0) target = $region5
  $region4: #{decoder_forward.5} parent=0 // pred_region
    _
  $region5: #{decoder_forward.5} parent=0 // pred_fallthru
    _
  // Predicated region
  $region6: #{decoder_forward.5} parent=0 // pred_check
    _
  $region7: #{decoder_forward.5} parent=0 // pred_check_branch
    %11 = sbr.rel (0) target = $region9
  $region8: #{decoder_forward.5} parent=0 // pred_region
    _
  $region9: #{decoder_forward.5} parent=0 // pred_fallthru
    _
  // Predicated region
  $region10: #{decoder_forward.5} parent=0 // pred_check
    _
  $region11: #{decoder_forward.5} parent=0 // pred_check_branch
    %13 = sbr.rel (0) target = $region13
  $region12: #{decoder_forward.5} parent=0 // pred_region
    _
  $region13: #{decoder_forward.5} parent=0 // pred_fallthru
    _
  %v14 = vld [vmem:[%s1] sm:$0xff]
  %v15 = vld [vmem:[%s0] sm:$0xff]
  %v16 = vld [vmem:[%s0 + $0x8] sm:$0xff]
  %v17 = vld [vmem:[%s0 + $0x10] sm:$0xff]
  %v18 = vld [vmem:[%s0 + $0x18] sm:$0xff]
  %v19 = vld [vmem:[%s0 + $0x20] sm:$0xff]
  %v20 = vld [vmem:[%s0 + $0x28] sm:$0xff]
  %v21 = vld [vmem:[%s0 + $0x30] sm:$0xff]
  %v22 = vld [vmem:[%s0 + $0x38] sm:$0xff]
  %v23 = vld [vmem:[%s0 + $0x40] sm:$0xff]
  %v24 = vld [vmem:[%s0 + $0x48] sm:$0xff]
  %v25 = vld [vmem:[%s0 + $0x50] sm:$0xff]
  %v26 = vld [vmem:[%s0 + $0x58] sm:$0xff]
  %v27 = vld [vmem:[%s0 + $0x60] sm:$0xff]
  %v28 = vld [vmem:[%s0 + $0x68] sm:$0xff]
  %v29 = vld [vmem:[%s0 + $0x70] sm:$0xff]
  %v30 = vld [vmem:[%s0 + $0x78] sm:$0xff]
  %v31 = vld [vmem:[%s0 + $0x80] sm:$0xff]
  %v32 = vld [vmem:[%s0 + $0x88] sm:$0xff]
  %v33 = vld [vmem:[%s0 + $0x90] sm:$0xff]
  %v34 = vld [vmem:[%s0 + $0x98] sm:$0xff]
  %v35 = vld [vmem:[%s0 + $0xa0] sm:$0xff]
  %v36 = vld [vmem:[%s0 + $0xa8] sm:$0xff]
  %v37 = vld [vmem:[%s0 + $0xb0] sm:$0xff]
  %v38 = vld [vmem:[%s0 + $0xb8] sm:$0xff]
  %v39 = vld [vmem:[%s0 + $0xc0] sm:$0xff]
  %v40 = vld [vmem:[%s0 + $0xc8] sm:$0xff]
  %v41 = vld [vmem:[%s0 + $0xd0] sm:$0xff]
  %v42 = vld [vmem:[%s0 + $0xd8] sm:$0xff]
  %v43 = vld [vmem:[%s0 + $0xe0] sm:$0xff]
  %v44 = vld [vmem:[%s0 + $0xe8] sm:$0xff]
  %v45 = vld [vmem:[%s0 + $0xf0] sm:$0xff]
  %v46 = vld [vmem:[%s0 + $0xf8] sm:$0xff]
  %v47 = vld [vmem:[%s0 + $0x100] sm:$0xff]
  %v48 = vld [vmem:[%s0 + $0x108] sm:$0xff]
  %v49 = vld [vmem:[%s0 + $0x110] sm:$0xff]
  %v50 = vld [vmem:[%s0 + $0x118] sm:$0xff]
  %v51 = vld [vmem:[%s0 + $0x120] sm:$0xff]
  %v52 = vld [vmem:[%s0 + $0x128] sm:$0xff]
  %v53 = vld [vmem:[%s0 + $0x130] sm:$0xff]
  %v54 = vld [vmem:[%s0 + $0x138] sm:$0xff]
  %v55 = vld [vmem:[%s0 + $0x140] sm:$0xff]
  %v56 = vld [vmem:[%s0 + $0x148] sm:$0xff]
  %v57 = vld [vmem:[%s0 + $0x150] sm:$0xff]
  %v58 = vld [vmem:[%s0 + $0x158] sm:$0xff]
  %v59 = vld [vmem:[%s0 + $0x160] sm:$0xff]
  %v60 = vld [vmem:[%s0 + $0x168] sm:$0xff]
  %v61 = vld [vmem:[%s0 + $0x170] sm:$0xff]
  %v62 = vld [vmem:[%s0 + $0x178] sm:$0xff]
  %v63 = vld [vmem:[%s0 + $0x180] sm:$0xff]
  %v64 = vld [vmem:[%s0 + $0x188] sm:$0xff]
  %v65 = vld [vmem:[%s0 + $0x190] sm:$0xff]
  %v66 = vld [vmem:[%s0 + $0x198] sm:$0xff]
  %v67 = vld [vmem:[%s0 + $0x1a0] sm:$0xff]
  %v68 = vld [vmem:[%s0 + $0x1a8] sm:$0xff]
  %v69 = vld [vmem:[%s0 + $0x1b0] sm:$0xff]
  %v70 = vld [vmem:[%s0 + $0x1b8] sm:$0xff]
  %v71 = vld [vmem:[%s0 + $0x1c0] sm:$0xff]
  %v72 = vld [vmem:[%s0 + $0x1c8] sm:$0xff]
  %v73 = vld [vmem:[%s0 + $0x1d0] sm:$0xff]
  %v74 = vld [vmem:[%s0 + $0x1d8] sm:$0xff]
  %v75 = vld [vmem:[%s0 + $0x1e0] sm:$0xff]
  %v76 = vld [vmem:[%s0 + $0x1e8] sm:$0xff]
  %v77 = vld [vmem:[%s0 + $0x1f0] sm:$0xff]
  %v78 = vld [vmem:[%s0 + $0x1f8] sm:$0xff]
  %v79 = vld [vmem:[%s0 + $0x200] sm:$0xff]
  %v80 = vld [vmem:[%s0 + $0x208] sm:$0xff]
  %v81 = vld [vmem:[%s0 + $0x210] sm:$0xff]
  %v82 = vld [vmem:[%s0 + $0x218] sm:$0xff]
  %v83 = vld [vmem:[%s0 + $0x220] sm:$0xff]
  %v84 = vld [vmem:[%s0 + $0x228] sm:$0xff]
  %v85 = vld [vmem:[%s0 + $0x230] sm:$0xff]
  %v86 = vld [vmem:[%s0 + $0x238] sm:$0xff]
  %v87 = vld [vmem:[%s2] sm:$0xf]
  %89 = vset.pattern.permute.xlu0 0
  %90 = vperm.xlu0 %89, %v87
  %v91 = vpop.permute.xlu0 %90
  %v94 = vcombine.high %v14, %v14
  %vm95 = vcmask 130048
  %v96 = vsel %vm95, %v94, 0
  %98 = vmatprep.subr.mxu0 %v16
  %99 = vmatpush1.msra.mxu0 %v15
  %100 = vmatprep.subr.mxu0 %v20
  %101 = vmatpush1.msra.mxu0 %v19
  %102 = vmatprep.subr.mxu0 %v24
  %103 = vmatpush1.msra.mxu0 %v23
  %104 = vmatprep.subr.mxu0 %v28
  %105 = vmatpush1.msra.mxu0 %v27
  %106 = vmatprep.subr.mxu0 %v32
  %107 = vmatpush1.msra.mxu0 %v31
  %108 = vmatprep.subr.mxu0 %v36
  %109 = vmatpush1.msra.mxu0 %v35
  %110 = vmatprep.subr.mxu0 %v40
  %111 = vmatpush1.msra.mxu0 %v39
  %112 = vmatprep.subr.mxu0 %v44
  %113 = vmatpush1.msra.mxu0 %v43
  %114 = vmatprep.subr.mxu0 %v48
  %115 = vmatpush1.msra.mxu0 %v47
  %116 = vmatprep.subr.mxu0 %v52
  %117 = vmatpush1.msra.mxu0 %v51
  %118 = vmatprep.subr.mxu0 %v56
  %119 = vmatpush1.msra.mxu0 %v55
  %120 = vmatprep.subr.mxu0 %v60
  %121 = vmatpush1.msra.mxu0 %v59
  %122 = vmatprep.subr.mxu0 %v64
  %123 = vmatpush1.msra.mxu0 %v63
  %124 = vmatprep.subr.mxu0 %v68
  %125 = vmatpush1.msra.mxu0 %v67
  %126 = vmatprep.subr.mxu0 %v72
  %127 = vmatpush1.msra.mxu0 %v71
  %128 = vmatprep.subr.mxu0 %v76
  %129 = vmatpush1.msra.mxu0 %v75
  %130 = vmatprep.subr.mxu0 %v80
  %131 = vmatpush1.msra.mxu0 %v79
  %132 = vmatprep.subr.mxu0 %v84
  %133 = vmatpush1.msra.mxu0 %v83
  %134 = vmatprep.subr.mxu0 0.0
  %135 = vmatpush1.msra.mxu0 0.0
  %136 = vmatprep.subr.mxu0 0.0
  %137 = vmatpush1.msra.mxu0 0.0
  %138 = vmatprep.subr.mxu0 0.0
  %139 = vmatpush1.msra.mxu0 0.0
  %140 = vmatprep.subr.mxu0 0.0
  %141 = vmatpush1.msra.mxu0 0.0
  %142 = vmatprep.subr.mxu0 0.0
  %143 = vmatpush1.msra.mxu0 0.0
  %144 = vmatprep.subr.mxu0 0.0
  %145 = vmatpush1.msra.mxu0 0.0
  %146 = vmatprep.subr.mxu0 0.0
  %147 = vmatpush1.msra.mxu0 0.0
  %148 = vmatprep.subr.mxu0 0.0
  %149 = vmatpush1.msra.mxu0 0.0
  %150 = vmatprep.subr.mxu0 0.0
  %151 = vmatpush1.msra.mxu0 0.0
  %152 = vmatprep.subr.mxu0 0.0
  %153 = vmatpush1.msra.mxu0 0.0
  %154 = vmatprep.subr.mxu0 0.0
  %155 = vmatpush1.msra.mxu0 0.0
  %156 = vmatprep.subr.mxu0 0.0
  %157 = vmatpush1.msra.mxu0 0.0
  %158 = vmatprep.subr.mxu0 0.0
  %159 = vmatpush1.msra.mxu0 0.0
  %160 = vmatprep.subr.mxu0 0.0
  %161 = vmatpush1.msra.mxu0 0.0
  %162 = vmatprep.mubr.f32.mxu0 %v96
  %163 = vmatmul.mubr.f32.gmra.mrb[0].mxu0 %v14
  %v164 = vpop.f32.mrb[0].mxu0
  %v165 = vadd.f32 %v91, %v164
  %v166 = vpop.f32.mrb[0].mxu0
  %v167 = vadd.f32 %v91, %v166
  %168 = vdwg.mxu0
  %169 = vmatprep.subr.mxu0 %v18
  %170 = vmatpush1.msra.mxu0 %v17
  %171 = vmatprep.subr.mxu0 %v22
  %172 = vmatpush1.msra.mxu0 %v21
  %173 = vmatprep.subr.mxu0 %v26
  %174 = vmatpush1.msra.mxu0 %v25
  %175 = vmatprep.subr.mxu0 %v30
  %176 = vmatpush1.msra.mxu0 %v29
  %177 = vmatprep.subr.mxu0 %v34
  %178 = vmatpush1.msra.mxu0 %v33
  %179 = vmatprep.subr.mxu0 %v38
  %180 = vmatpush1.msra.mxu0 %v37
  %181 = vmatprep.subr.mxu0 %v42
  %182 = vmatpush1.msra.mxu0 %v41
  %183 = vmatprep.subr.mxu0 %v46
  %184 = vmatpush1.msra.mxu0 %v45
  %185 = vmatprep.subr.mxu0 %v50
  %186 = vmatpush1.msra.mxu0 %v49
  %187 = vmatprep.subr.mxu0 %v54
  %188 = vmatpush1.msra.mxu0 %v53
  %189 = vmatprep.subr.mxu0 %v58
  %190 = vmatpush1.msra.mxu0 %v57
  %191 = vmatprep.subr.mxu0 %v62
  %192 = vmatpush1.msra.mxu0 %v61
  %193 = vmatprep.subr.mxu0 %v66
  %194 = vmatpush1.msra.mxu0 %v65
  %195 = vmatprep.subr.mxu0 %v70
  %196 = vmatpush1.msra.mxu0 %v69
  %197 = vmatprep.subr.mxu0 %v74
  %198 = vmatpush1.msra.mxu0 %v73
  %199 = vmatprep.subr.mxu0 %v78
  %200 = vmatpush1.msra.mxu0 %v77
  %201 = vmatprep.subr.mxu0 %v82
  %202 = vmatpush1.msra.mxu0 %v81
  %203 = vmatprep.subr.mxu0 %v86
  %204 = vmatpush1.msra.mxu0 %v85
  %205 = vmatprep.subr.mxu0 0.0
  %206 = vmatpush1.msra.mxu0 0.0
  %207 = vmatprep.subr.mxu0 0.0
  %208 = vmatpush1.msra.mxu0 0.0
  %209 = vmatprep.subr.mxu0 0.0
  %210 = vmatpush1.msra.mxu0 0.0
  %211 = vmatprep.subr.mxu0 0.0
  %212 = vmatpush1.msra.mxu0 0.0
  %213 = vmatprep.subr.mxu0 0.0
  %214 = vmatpush1.msra.mxu0 0.0
  %215 = vmatprep.subr.mxu0 0.0
  %216 = vmatpush1.msra.mxu0 0.0
  %217 = vmatprep.subr.mxu0 0.0
  %218 = vmatpush1.msra.mxu0 0.0
  %219 = vmatprep.subr.mxu0 0.0
  %220 = vmatpush1.msra.mxu0 0.0
  %221 = vmatprep.subr.mxu0 0.0
  %222 = vmatpush1.msra.mxu0 0.0
  %223 = vmatprep.subr.mxu0 0.0
  %224 = vmatpush1.msra.mxu0 0.0
  %225 = vmatprep.subr.mxu0 0.0
  %226 = vmatpush1.msra.mxu0 0.0
  %227 = vmatprep.subr.mxu0 0.0
  %228 = vmatpush1.msra.mxu0 0.0
  %229 = vmatprep.subr.mxu0 0.0
  %230 = vmatpush1.msra.mxu0 0.0
  %231 = vmatprep.subr.mxu0 0.0
  %232 = vmatpush1.msra.mxu0 0.0
  %233 = vmatprep.mubr.f32.mxu0 %v96
  %234 = vmatmul.mubr.f32.gmra.mrb[0].mxu0 %v14
  %v235 = vpop.f32.mrb[0].mxu0
  %v236 = vadd.f32 %v91, %v235
  %v237 = vpop.f32.mrb[0].mxu0
  %v238 = vadd.f32 %v91, %v237
  %239 = vdwg.mxu0
  %v240 = vxor.u32 %v165, 2147483648
  %v241 = vxor.u32 %v167, 2147483648
  %v242 = vxor.u32 %v236, 2147483648
  %v243 = vxor.u32 %v238, 2147483648
  %v244 = vmul.f32 %v240, 1.442695
  %v245 = vpow.pop %v244
  %v246 = vmul.f32 %v241, 1.442695
  %v247 = vpow.pop %v246
  %v248 = vmul.f32 %v242, 1.442695
  %v249 = vpow.pop %v248
  %v250 = vmul.f32 %v243, 1.442695
  %v251 = vpow.pop %v250
  %v252 = vadd.f32 %v245, 1.0
  %v253 = vadd.f32 %v247, 1.0
  %v254 = vadd.f32 %v249, 1.0
  %v255 = vadd.f32 %v251, 1.0
  %v256 = vrcp.pop %v252
  %v257 = vmul.f32 1.0, %v256
  %v258 = vrcp.pop %v253
  %v259 = vmul.f32 1.0, %v258
  %v260 = vrcp.pop %v254
  %v261 = vmul.f32 1.0, %v260
  %v262 = vrcp.pop %v255
  %v263 = vmul.f32 1.0, %v262
  %v268 = vcombine.low %v257, %v259
  %v269 = vcombine.low %v261, %v263
  %272 = vst [vmem:[%s3] sm:$0xff] %v268
  %vm273 = vcmask 1043456
  %vm274 = vcmask 64516
  %vm275 = vmor %vm274, %vm273
  %276 = vst.msk [vmem:[%s3 + $0x8] sm:$0xff] %vm275, %v269
  // Predicated region
  $region14: #{decoder_forward.5} parent=0 // pred_check
    _
  $region15: #{decoder_forward.5} parent=0 // pred_check_branch
    %278 = sbr.rel (0) target = $region17
  $region16: #{decoder_forward.5} parent=0 // pred_region
    _
  $region17: #{decoder_forward.5} parent=0 // pred_fallthru
    _
  // Predicated region
  $region18: #{decoder_forward.5} parent=0 // pred_check
    _
  $region19: #{decoder_forward.5} parent=0 // pred_check_branch
    %280 = sbr.rel (0) target = $region21
  $region20: #{decoder_forward.5} parent=0 // pred_region
    _
  $region21: #{decoder_forward.5} parent=0 // pred_fallthru
    _

</llo_original>
